<compile_context>
chip_gen: v6e
topology: v6e:2x2x1
jax: 0.10.0
libtpu: 0.0.40
codegen_flags: <defaults>
</compile_context>

<pallas_src>
import numpy as np
import jax
import jax.numpy as jnp
from jax.experimental import pallas as pl
from jax.experimental.pallas import tpu as pltpu

LANE = 128


# ---------------------------------------------------------------------------
# Fused Pallas kernel (whole PFSC forward)
# ---------------------------------------------------------------------------
def _build_kernel(schedule):
    """schedule: tuple of (conv_base_idx, mask_row, dilation, down_idx_or_None)."""

    def kernel(x_ref, mask_ref, cwc_ref, cwp_ref, cb_ref, wd_ref, bd_ref,
               wk_ref, g_ref, db_ref, o_ref):
        # Activation stays resident in VMEM/vregs for the whole network.
        # NOTE: padded lanes (columns >= N*L) accumulate relu(bias) garbage
        # across blocks.  This is benign because (a) the causal roll+mask never
        # lets a padded lane feed a valid lane, (b) matmuls only contract over
        # the channel (sublane) axis, and (c) wk / g are zero on padded lanes.
        h = x_ref[...]                                        # [C, lanes] f32
        for (base, mrow, dil, down) in schedule:              # unrolled at trace time
            x_in = h
            m = mask_ref[mrow]                                # [1, lanes] causal mask
            for j in range(3):                                # 3 convs per TemporalBlock
                wc = cwc_ref[base + j]                        # [C, C] bf16, current tap
                wp = cwp_ref[base + j]                        # [C, C] bf16, previous tap
                b = cb_ref[base + j]                          # [C, 1]  f32
                # causal shift by `dil` within each batch segment (XLU roll + VPU mask)
                h_prev = pltpu.roll(h, dil, axis=1) * m
                acc = jnp.dot(wc, h.astype(jnp.bfloat16),
                              preferred_element_type=jnp.float32)
                acc = acc + jnp.dot(wp, h_prev.astype(jnp.bfloat16),
                                    preferred_element_type=jnp.float32)
                h = jnp.maximum(acc + b, 0.0)
                # dropout is identity in eval mode
            if down is not None:                              # real 1x1 downsample residual
                res = (jnp.dot(wd_ref[down], x_in.astype(jnp.bfloat16),
                               preferred_element_type=jnp.float32) + bd_ref[down])
            else:                                             # identity residual (no matmul)
                res = x_in
            h = jnp.maximum(h + res, 0.0)

        # Dense head (kept in f32): channel-reduce first, then a tiny lane
        # contraction; avoids a lane-sparse [C,lanes]x[lanes,N] MXU pass.
        colsum = jnp.sum(h * wk_ref[...], axis=0, keepdims=True)        # [1, lanes]
        z = jnp.dot(colsum, g_ref[...],
                    preferred_element_type=jnp.float32) + db_ref[0, 0]   # [1, N]
        o_ref[...] = 1.0 / (1.0 + jnp.exp(-z))

    return kernel


# ---------------------------------------------------------------------------
# One-time prepare: pack weights, build constants, construct the pallas_call
# ---------------------------------------------------------------------------
def make_pfsc_forward(params, n, c_in, length):
    """Returns a jitted forward(elec) -> [n, 1].  All weight packing happens
    here (once); the per-call path is just input layout + one kernel launch."""
    nl = n * length
    lanes = max(LANE, ((nl + LANE - 1) // LANE) * LANE)

    tcn1, tcn2 = params["tcn1"], params["tcn2"]
    levels = len(tcn1)
    C = tcn1[0]["w1"].shape[0]                     # 64 channels (multiple of 8)
    assert c_in <= C
    uniq = list(tcn1) + list(tcn2)                 # tcn2 weights packed once, executed twice
    dils = sorted({2 ** i for i in range(levels)})

    def pad_cols(w):                               # pad contracting dim up to C
        w = np.asarray(w, np.float32)
        return np.pad(w, ((0, 0), (0, C - w.shape[1])))

    # ---- pack conv weights: separate current / previous tap stacks (bf16) ----
    cwc_l, cwp_l, cb_l = [], [], []
    wd_l, bd_l, down_idx = [], [], []
    for bp in uniq:
        for wn, bn in (("w1", "b1"), ("w2", "b2"), ("w3", "b3")):
            w = np.asarray(bp[wn], np.float32)     # [C, c_in_blk, 2]; [:,:,1]=cur, [:,:,0]=prev
            cwc_l.append(pad_cols(w[:, :, 1]))
            cwp_l.append(pad_cols(w[:, :, 0]))
            cb_l.append(np.asarray(bp[bn], np.float32)[:, None])
        if "wd" in bp:                             # real 1x1 downsample -> compact index
            down_idx.append(len(wd_l))
            wd_l.append(pad_cols(np.asarray(bp["wd"], np.float32)[:, :, 0]))
            bd_l.append(np.asarray(bp["bd"], np.float32)[:, None])
        else:                                      # identity residual -> matmul skipped in kernel
            down_idx.append(None)
    if not wd_l:                                   # keep non-empty shapes (never indexed)
        wd_l = [np.zeros((C, C), np.float32)]
        bd_l = [np.zeros((C, 1), np.float32)]

    cwc = jnp.asarray(np.stack(cwc_l), jnp.bfloat16)   # [3U, C, C]
    cwp = jnp.asarray(np.stack(cwp_l), jnp.bfloat16)   # [3U, C, C]
    cb = jnp.asarray(np.stack(cb_l), jnp.float32)      # [3U, C, 1]
    wdx = jnp.asarray(np.stack(wd_l), jnp.bfloat16)    # [n_down, C, C] (only real downsamples)
    bdx = jnp.asarray(np.stack(bd_l), jnp.float32)     # [n_down, C, 1]

    # Execution order: tcn1 blocks, then tcn2 blocks twice (PyTorch reuses tcn_block2).
    exec_order = list(range(levels)) + list(range(levels, 2 * levels)) * 2
    schedule = tuple(
        (3 * u, dils.index(2 ** (u % levels)), 2 ** (u % levels), down_idx[u])
        for u in exec_order)

    # ---- constants: per-dilation causal masks + per-batch lane-sum matrix ----
    q = np.arange(lanes)
    mask_np = np.zeros((len(dils), 1, lanes), np.float32)
    for r, d in enumerate(dils):
        mask_np[r, 0, :] = (((q % length) >= d) & (q < nl)).astype(np.float32)
    g_np = np.zeros((lanes, n), np.float32)
    for b in range(n):
        g_np[b * length:(b + 1) * length, b] = 1.0
    mask = jnp.asarray(mask_np)
    g = jnp.asarray(g_np)

    # ---- dense head: re-lay weights onto the [C, lanes] activation grid ----
    dw = np.asarray(params["dense_w"], np.float32).reshape(C, length)      # [C, L]
    wk = jnp.asarray(np.pad(np.tile(dw, (1, n)), ((0, 0), (0, lanes - nl))))  # [C, lanes]
    db = jnp.asarray(np.asarray(params["dense_b"], np.float32).reshape(1, 1))

    vmem = pltpu.MemorySpace.VMEM
    smem = pltpu.MemorySpace.SMEM
    call = pl.pallas_call(
        _build_kernel(schedule),
        out_shape=jax.ShapeDtypeStruct((1, n), jnp.float32),
        in_specs=[pl.BlockSpec(memory_space=vmem)] * 9        # x, mask, cwc, cwp, cb, wd, bd, wk, g
                 + [pl.BlockSpec(memory_space=smem)],         # db scalar in SMEM
        out_specs=pl.BlockSpec(memory_space=vmem),
    )

    @jax.jit
    def forward(elec):
        # Per-call work: NCL -> [C, lanes] layout (channels padded to C,
        # lanes zero-padded to a multiple of 128), then one fused kernel.
        x = jnp.transpose(elec.astype(jnp.float32), (1, 0, 2)).reshape(c_in, nl)
        x = jnp.pad(x, ((0, C - c_in), (0, lanes - nl)))
        out = call(x, mask, cwc, cwp, cb, wdx, bdx, wk, g, db)
        # TODO(synk): PyTorch casts pred to float64 (.double()); TPU Pallas keeps float32.
        return out.reshape(n, 1)

    return forward


# ---------------------------------------------------------------------------
# Deterministic parameter init (weight_norm collapses to an effective weight)
# ---------------------------------------------------------------------------
def _init_block(key, c_in, c_out):
    ks = jax.random.split(key, 8)
    p = {
        "w1": 0.1 * jax.random.normal(ks[0], (c_out, c_in, 2), jnp.float32),
        "b1": 0.05 * jax.random.normal(ks[1], (c_out,), jnp.float32),
        "w2": 0.1 * jax.random.normal(ks[2], (c_out, c_out, 2), jnp.float32),
        "b2": 0.05 * jax.random.normal(ks[3], (c_out,), jnp.float32),
        "w3": 0.1 * jax.random.normal(ks[4], (c_out, c_out, 2), jnp.float32),
        "b3": 0.05 * jax.random.normal(ks[5], (c_out,), jnp.float32),
    }
    if c_in != c_out:
        p["wd"] = 0.1 * jax.random.normal(ks[6], (c_out, c_in, 1), jnp.float32)
        p["bd"] = 0.05 * jax.random.normal(ks[7], (c_out,), jnp.float32)
    return p


def _init_tcn(key, num_inputs, num_channels):
    keys = jax.random.split(key, len(num_channels))
    blocks = []
    for i, k in enumerate(keys):
        c_in = num_inputs if i == 0 else num_channels[i - 1]
        blocks.append(_init_block(k, c_in, num_channels[i]))
    return blocks


def init_pfsc_params(key, input_size=1, num_channels=(64, 64, 64), length=6):
    k1, k2, k3, k4 = jax.random.split(key, 4)
    return {
        "tcn1": _init_tcn(k1, input_size, num_channels),
        "tcn2": _init_tcn(k2, num_channels[0], num_channels),
        # tcn_block3 is constructed in __init__ but never used in forward -> omitted.
        "dense_w": 0.1 * jax.random.normal(k3, (1, num_channels[-1] * length), jnp.float32),
        "dense_b": 0.05 * jax.random.normal(k4, (1,), jnp.float32),
    }


# ---------------------------------------------------------------------------
# Pure-JAX f32 reference (NCL layout) for validation
# ---------------------------------------------------------------------------
def _ref_causal_conv(x, w, b, d):
    length = x.shape[-1]
    xprev = jnp.pad(x, ((0, 0), (0, 0), (d, 0)))[:, :, :length]
    return (jnp.einsum("oi,nil->nol", w[:, :, 0], xprev)
            + jnp.einsum("oi,nil->nol", w[:, :, 1], x)
            + b[None, :, None])


def _ref_block(x, p, d):
    h = jax.nn.relu(_ref_causal_conv(x, p["w1"], p["b1"], d))
    h = jax.nn.relu(_ref_causal_conv(h, p["w2"], p["b2"], d))
    h = jax.nn.relu(_ref_causal_conv(h, p["w3"], p["b3"], d))
    if "wd" in p:
        res = jnp.einsum("oi,nil->nol", p["wd"][:, :, 0], x) + p["bd"][None, :, None]
    else:
        res = x
    return jax.nn.relu(h + res)


def ref_forward(elec, params):
    x = elec.astype(jnp.float32)
    for blocks in (params["tcn1"], params["tcn2"], params["tcn2"]):
        for i, bp in enumerate(blocks):
            x = _ref_block(x, bp, 2 ** i)
    n = x.shape[0]
    feat = x.reshape(n, -1)
    return jax.nn.sigmoid(feat @ params["dense_w"].T + params["dense_b"])


# ---------------------------------------------------------------------------
if __name__ == "__main__":
    key = jax.random.PRNGKey(0)
    k_in, k_p = jax.random.split(key)
    N, C_IN, L = 2, 1, 6  # L = 6 is forced by nn.Linear(num_channels[-1] * 6, 1)
    elec = jax.random.normal(k_in, (N, C_IN, L), jnp.float32)
    params = init_pfsc_params(k_p, input_size=C_IN, num_channels=(64, 64, 64), length=L)

    forward = make_pfsc_forward(params, N, C_IN, L)   # one-time packing + kernel build
    pred = jax.block_until_ready(forward(elec))

    ref = ref_forward(elec, params)
    assert pred.shape == (N, 1)
    # Kernel uses bf16 conv weights (f32 accumulation, f32 head) vs an f32
    # reference: tolerance relaxed to cover bf16 rounding over the 27-matmul
    # dependent chain.
    np.testing.assert_allclose(np.asarray(pred), np.asarray(ref), rtol=3e-2, atol=3e-2)
    print("KERNEL_OK")
</pallas_src>

<mosaic_0001>
module attributes {stable_mosaic.version = 11 : i64} {
  func.func @kernel(%arg0: memref<64x128xf32, #tpu.memory_space<vmem>>, %arg1: memref<3x1x128xf32, #tpu.memory_space<vmem>>, %arg2: memref<18x64x64xbf16, #tpu.memory_space<vmem>>, %arg3: memref<18x64x64xbf16, #tpu.memory_space<vmem>>, %arg4: memref<18x64x1xf32, #tpu.memory_space<vmem>>, %arg5: memref<1x64x64xbf16, #tpu.memory_space<vmem>>, %arg6: memref<1x64x1xf32, #tpu.memory_space<vmem>>, %arg7: memref<64x128xf32, #tpu.memory_space<vmem>>, %arg8: memref<128x2xf32, #tpu.memory_space<vmem>>, %arg9: memref<1x1xf32, #tpu.memory_space<smem>>, %arg10: memref<1x2xf32, #tpu.memory_space<vmem>>) attributes {dimension_semantics = [], scalar_prefetch = 0 : i64, scratch_operands = 0 : i64, tpu.core_type = #tpu.core_type<tc>} {
    %c0 = arith.constant 0 : index
    %c0_0 = arith.constant 0 : index
    %0 = vector.load %arg0[%c0, %c0_0] : memref<64x128xf32, #tpu.memory_space<vmem>>, vector<64x128xf32>
    %c0_1 = arith.constant 0 : index
    %c0_2 = arith.constant 0 : index
    %c0_3 = arith.constant 0 : index
    %1 = vector.load %arg1[%c0_1, %c0_2, %c0_3] : memref<3x1x128xf32, #tpu.memory_space<vmem>>, vector<1x1x128xf32>
    %2 = vector.shape_cast %1 : vector<1x1x128xf32> to vector<1x128xf32>
    %c0_4 = arith.constant 0 : index
    %c0_5 = arith.constant 0 : index
    %c0_6 = arith.constant 0 : index
    %3 = vector.load %arg2[%c0_4, %c0_5, %c0_6] : memref<18x64x64xbf16, #tpu.memory_space<vmem>>, vector<1x64x64xbf16>
    %4 = vector.shape_cast %3 : vector<1x64x64xbf16> to vector<64x64xbf16>
    %c0_7 = arith.constant 0 : index
    %c0_8 = arith.constant 0 : index
    %c0_9 = arith.constant 0 : index
    %5 = vector.load %arg3[%c0_7, %c0_8, %c0_9] : memref<18x64x64xbf16, #tpu.memory_space<vmem>>, vector<1x64x64xbf16>
    %6 = vector.shape_cast %5 : vector<1x64x64xbf16> to vector<64x64xbf16>
    %c0_10 = arith.constant 0 : index
    %c0_11 = arith.constant 0 : index
    %c0_12 = arith.constant 0 : index
    %7 = vector.load %arg4[%c0_10, %c0_11, %c0_12] : memref<18x64x1xf32, #tpu.memory_space<vmem>>, vector<1x64x1xf32>
    %8 = vector.shape_cast %7 : vector<1x64x1xf32> to vector<64x1xf32>
    %c1_i32 = arith.constant 1 : i32
    %9 = tpu.dynamic_rotate %0 by %c1_i32 dim 1 : vector<64x128xf32>, i32 -> vector<64x128xf32>
    %10 = vector.broadcast %2 : vector<1x128xf32> to vector<64x128xf32>
    %11 = arith.mulf %9, %10 : vector<64x128xf32>
    %12 = arith.truncf %0 : vector<64x128xf32> to vector<64x128xbf16>
    %cst = arith.constant dense<0.000000e+00> : vector<64x128xf32>
    %13 = tpu.matmul %4, %12, %cst {dimension_numbers = #tpu.dot_dimension_numbers<[1], [0], [0], [1], [0, 0, 1, 1], [], []>} : vector<64x64xbf16>, vector<64x128xbf16>, vector<64x128xf32> -> vector<64x128xf32>
    %14 = arith.truncf %11 : vector<64x128xf32> to vector<64x128xbf16>
    %cst_13 = arith.constant dense<0.000000e+00> : vector<64x128xf32>
    %15 = tpu.matmul %6, %14, %cst_13 {dimension_numbers = #tpu.dot_dimension_numbers<[1], [0], [0], [1], [0, 0, 1, 1], [], []>} : vector<64x64xbf16>, vector<64x128xbf16>, vector<64x128xf32> -> vector<64x128xf32>
    %16 = arith.addf %13, %15 : vector<64x128xf32>
    %17 = vector.broadcast %8 : vector<64x1xf32> to vector<64x128xf32>
    %18 = arith.addf %16, %17 : vector<64x128xf32>
    %cst_14 = arith.constant 0.000000e+00 : f32
    %19 = vector.broadcast %cst_14 : f32 to vector<64x128xf32>
    %20 = arith.maximumf %18, %19 : vector<64x128xf32>
    %c1 = arith.constant 1 : index
    %c0_15 = arith.constant 0 : index
    %c0_16 = arith.constant 0 : index
    %21 = vector.load %arg2[%c1, %c0_15, %c0_16] : memref<18x64x64xbf16, #tpu.memory_space<vmem>>, vector<1x64x64xbf16>
    %22 = vector.shape_cast %21 : vector<1x64x64xbf16> to vector<64x64xbf16>
    %c1_17 = arith.constant 1 : index
    %c0_18 = arith.constant 0 : index
    %c0_19 = arith.constant 0 : index
    %23 = vector.load %arg3[%c1_17, %c0_18, %c0_19] : memref<18x64x64xbf16, #tpu.memory_space<vmem>>, vector<1x64x64xbf16>
    %24 = vector.shape_cast %23 : vector<1x64x64xbf16> to vector<64x64xbf16>
    %c1_20 = arith.constant 1 : index
    %c0_21 = arith.constant 0 : index
    %c0_22 = arith.constant 0 : index
    %25 = vector.load %arg4[%c1_20, %c0_21, %c0_22] : memref<18x64x1xf32, #tpu.memory_space<vmem>>, vector<1x64x1xf32>
    %26 = vector.shape_cast %25 : vector<1x64x1xf32> to vector<64x1xf32>
    %c1_i32_23 = arith.constant 1 : i32
    %27 = tpu.dynamic_rotate %20 by %c1_i32_23 dim 1 : vector<64x128xf32>, i32 -> vector<64x128xf32>
    %28 = vector.broadcast %2 : vector<1x128xf32> to vector<64x128xf32>
    %29 = arith.mulf %27, %28 : vector<64x128xf32>
    %30 = arith.truncf %20 : vector<64x128xf32> to vector<64x128xbf16>
    %cst_24 = arith.constant dense<0.000000e+00> : vector<64x128xf32>
    %31 = tpu.matmul %22, %30, %cst_24 {dimension_numbers = #tpu.dot_dimension_numbers<[1], [0], [0], [1], [0, 0, 1, 1], [], []>} : vector<64x64xbf16>, vector<64x128xbf16>, vector<64x128xf32> -> vector<64x128xf32>
    %32 = arith.truncf %29 : vector<64x128xf32> to vector<64x128xbf16>
    %cst_25 = arith.constant dense<0.000000e+00> : vector<64x128xf32>
    %33 = tpu.matmul %24, %32, %cst_25 {dimension_numbers = #tpu.dot_dimension_numbers<[1], [0], [0], [1], [0, 0, 1, 1], [], []>} : vector<64x64xbf16>, vector<64x128xbf16>, vector<64x128xf32> -> vector<64x128xf32>
    %34 = arith.addf %31, %33 : vector<64x128xf32>
    %35 = vector.broadcast %26 : vector<64x1xf32> to vector<64x128xf32>
    %36 = arith.addf %34, %35 : vector<64x128xf32>
    %cst_26 = arith.constant 0.000000e+00 : f32
    %37 = vector.broadcast %cst_26 : f32 to vector<64x128xf32>
    %38 = arith.maximumf %36, %37 : vector<64x128xf32>
    %c2 = arith.constant 2 : index
    %c0_27 = arith.constant 0 : index
    %c0_28 = arith.constant 0 : index
    %39 = vector.load %arg2[%c2, %c0_27, %c0_28] : memref<18x64x64xbf16, #tpu.memory_space<vmem>>, vector<1x64x64xbf16>
    %40 = vector.shape_cast %39 : vector<1x64x64xbf16> to vector<64x64xbf16>
    %c2_29 = arith.constant 2 : index
    %c0_30 = arith.constant 0 : index
    %c0_31 = arith.constant 0 : index
    %41 = vector.load %arg3[%c2_29, %c0_30, %c0_31] : memref<18x64x64xbf16, #tpu.memory_space<vmem>>, vector<1x64x64xbf16>
    %42 = vector.shape_cast %41 : vector<1x64x64xbf16> to vector<64x64xbf16>
    %c2_32 = arith.constant 2 : index
    %c0_33 = arith.constant 0 : index
    %c0_34 = arith.constant 0 : index
    %43 = vector.load %arg4[%c2_32, %c0_33, %c0_34] : memref<18x64x1xf32, #tpu.memory_space<vmem>>, vector<1x64x1xf32>
    %44 = vector.shape_cast %43 : vector<1x64x1xf32> to vector<64x1xf32>
    %c1_i32_35 = arith.constant 1 : i32
    %45 = tpu.dynamic_rotate %38 by %c1_i32_35 dim 1 : vector<64x128xf32>, i32 -> vector<64x128xf32>
    %46 = vector.broadcast %2 : vector<1x128xf32> to vector<64x128xf32>
    %47 = arith.mulf %45, %46 : vector<64x128xf32>
    %48 = arith.truncf %38 : vector<64x128xf32> to vector<64x128xbf16>
    %cst_36 = arith.constant dense<0.000000e+00> : vector<64x128xf32>
    %49 = tpu.matmul %40, %48, %cst_36 {dimension_numbers = #tpu.dot_dimension_numbers<[1], [0], [0], [1], [0, 0, 1, 1], [], []>} : vector<64x64xbf16>, vector<64x128xbf16>, vector<64x128xf32> -> vector<64x128xf32>
    %50 = arith.truncf %47 : vector<64x128xf32> to vector<64x128xbf16>
    %cst_37 = arith.constant dense<0.000000e+00> : vector<64x128xf32>
    %51 = tpu.matmul %42, %50, %cst_37 {dimension_numbers = #tpu.dot_dimension_numbers<[1], [0], [0], [1], [0, 0, 1, 1], [], []>} : vector<64x64xbf16>, vector<64x128xbf16>, vector<64x128xf32> -> vector<64x128xf32>
    %52 = arith.addf %49, %51 : vector<64x128xf32>
    %53 = vector.broadcast %44 : vector<64x1xf32> to vector<64x128xf32>
    %54 = arith.addf %52, %53 : vector<64x128xf32>
    %cst_38 = arith.constant 0.000000e+00 : f32
    %55 = vector.broadcast %cst_38 : f32 to vector<64x128xf32>
    %56 = arith.maximumf %54, %55 : vector<64x128xf32>
    %c0_39 = arith.constant 0 : index
    %c0_40 = arith.constant 0 : index
    %c0_41 = arith.constant 0 : index
    %57 = vector.load %arg5[%c0_39, %c0_40, %c0_41] : memref<1x64x64xbf16, #tpu.memory_space<vmem>>, vector<1x64x64xbf16>
    %58 = vector.shape_cast %57 : vector<1x64x64xbf16> to vector<64x64xbf16>
    %59 = arith.truncf %0 : vector<64x128xf32> to vector<64x128xbf16>
    %cst_42 = arith.constant dense<0.000000e+00> : vector<64x128xf32>
    %60 = tpu.matmul %58, %59, %cst_42 {dimension_numbers = #tpu.dot_dimension_numbers<[1], [0], [0], [1], [0, 0, 1, 1], [], []>} : vector<64x64xbf16>, vector<64x128xbf16>, vector<64x128xf32> -> vector<64x128xf32>
    %c0_43 = arith.constant 0 : index
    %c0_44 = arith.constant 0 : index
    %c0_45 = arith.constant 0 : index
    %61 = vector.load %arg6[%c0_43, %c0_44, %c0_45] : memref<1x64x1xf32, #tpu.memory_space<vmem>>, vector<1x64x1xf32>
    %62 = vector.shape_cast %61 : vector<1x64x1xf32> to vector<64x1xf32>
    %63 = vector.broadcast %62 : vector<64x1xf32> to vector<64x128xf32>
    %64 = arith.addf %60, %63 : vector<64x128xf32>
    %65 = arith.addf %56, %64 : vector<64x128xf32>
    %cst_46 = arith.constant 0.000000e+00 : f32
    %66 = vector.broadcast %cst_46 : f32 to vector<64x128xf32>
    %67 = arith.maximumf %65, %66 : vector<64x128xf32>
    %c1_47 = arith.constant 1 : index
    %c0_48 = arith.constant 0 : index
    %c0_49 = arith.constant 0 : index
    %68 = vector.load %arg1[%c1_47, %c0_48, %c0_49] : memref<3x1x128xf32, #tpu.memory_space<vmem>>, vector<1x1x128xf32>
    %69 = vector.shape_cast %68 : vector<1x1x128xf32> to vector<1x128xf32>
    %c3 = arith.constant 3 : index
    %c0_50 = arith.constant 0 : index
    %c0_51 = arith.constant 0 : index
    %70 = vector.load %arg2[%c3, %c0_50, %c0_51] : memref<18x64x64xbf16, #tpu.memory_space<vmem>>, vector<1x64x64xbf16>
    %71 = vector.shape_cast %70 : vector<1x64x64xbf16> to vector<64x64xbf16>
    %c3_52 = arith.constant 3 : index
    %c0_53 = arith.constant 0 : index
    %c0_54 = arith.constant 0 : index
    %72 = vector.load %arg3[%c3_52, %c0_53, %c0_54] : memref<18x64x64xbf16, #tpu.memory_space<vmem>>, vector<1x64x64xbf16>
    %73 = vector.shape_cast %72 : vector<1x64x64xbf16> to vector<64x64xbf16>
    %c3_55 = arith.constant 3 : index
    %c0_56 = arith.constant 0 : index
    %c0_57 = arith.constant 0 : index
    %74 = vector.load %arg4[%c3_55, %c0_56, %c0_57] : memref<18x64x1xf32, #tpu.memory_space<vmem>>, vector<1x64x1xf32>
    %75 = vector.shape_cast %74 : vector<1x64x1xf32> to vector<64x1xf32>
    %c2_i32 = arith.constant 2 : i32
    %76 = tpu.dynamic_rotate %67 by %c2_i32 dim 1 : vector<64x128xf32>, i32 -> vector<64x128xf32>
    %77 = vector.broadcast %69 : vector<1x128xf32> to vector<64x128xf32>
    %78 = arith.mulf %76, %77 : vector<64x128xf32>
    %79 = arith.truncf %67 : vector<64x128xf32> to vector<64x128xbf16>
    %cst_58 = arith.constant dense<0.000000e+00> : vector<64x128xf32>
    %80 = tpu.matmul %71, %79, %cst_58 {dimension_numbers = #tpu.dot_dimension_numbers<[1], [0], [0], [1], [0, 0, 1, 1], [], []>} : vector<64x64xbf16>, vector<64x128xbf16>, vector<64x128xf32> -> vector<64x128xf32>
    %81 = arith.truncf %78 : vector<64x128xf32> to vector<64x128xbf16>
    %cst_59 = arith.constant dense<0.000000e+00> : vector<64x128xf32>
    %82 = tpu.matmul %73, %81, %cst_59 {dimension_numbers = #tpu.dot_dimension_numbers<[1], [0], [0], [1], [0, 0, 1, 1], [], []>} : vector<64x64xbf16>, vector<64x128xbf16>, vector<64x128xf32> -> vector<64x128xf32>
    %83 = arith.addf %80, %82 : vector<64x128xf32>
    %84 = vector.broadcast %75 : vector<64x1xf32> to vector<64x128xf32>
    %85 = arith.addf %83, %84 : vector<64x128xf32>
    %cst_60 = arith.constant 0.000000e+00 : f32
    %86 = vector.broadcast %cst_60 : f32 to vector<64x128xf32>
    %87 = arith.maximumf %85, %86 : vector<64x128xf32>
    %c4 = arith.constant 4 : index
    %c0_61 = arith.constant 0 : index
    %c0_62 = arith.constant 0 : index
    %88 = vector.load %arg2[%c4, %c0_61, %c0_62] : memref<18x64x64xbf16, #tpu.memory_space<vmem>>, vector<1x64x64xbf16>
    %89 = vector.shape_cast %88 : vector<1x64x64xbf16> to vector<64x64xbf16>
    %c4_63 = arith.constant 4 : index
    %c0_64 = arith.constant 0 : index
    %c0_65 = arith.constant 0 : index
    %90 = vector.load %arg3[%c4_63, %c0_64, %c0_65] : memref<18x64x64xbf16, #tpu.memory_space<vmem>>, vector<1x64x64xbf16>
    %91 = vector.shape_cast %90 : vector<1x64x64xbf16> to vector<64x64xbf16>
    %c4_66 = arith.constant 4 : index
    %c0_67 = arith.constant 0 : index
    %c0_68 = arith.constant 0 : index
    %92 = vector.load %arg4[%c4_66, %c0_67, %c0_68] : memref<18x64x1xf32, #tpu.memory_space<vmem>>, vector<1x64x1xf32>
    %93 = vector.shape_cast %92 : vector<1x64x1xf32> to vector<64x1xf32>
    %c2_i32_69 = arith.constant 2 : i32
    %94 = tpu.dynamic_rotate %87 by %c2_i32_69 dim 1 : vector<64x128xf32>, i32 -> vector<64x128xf32>
    %95 = vector.broadcast %69 : vector<1x128xf32> to vector<64x128xf32>
    %96 = arith.mulf %94, %95 : vector<64x128xf32>
    %97 = arith.truncf %87 : vector<64x128xf32> to vector<64x128xbf16>
    %cst_70 = arith.constant dense<0.000000e+00> : vector<64x128xf32>
    %98 = tpu.matmul %89, %97, %cst_70 {dimension_numbers = #tpu.dot_dimension_numbers<[1], [0], [0], [1], [0, 0, 1, 1], [], []>} : vector<64x64xbf16>, vector<64x128xbf16>, vector<64x128xf32> -> vector<64x128xf32>
    %99 = arith.truncf %96 : vector<64x128xf32> to vector<64x128xbf16>
    %cst_71 = arith.constant dense<0.000000e+00> : vector<64x128xf32>
    %100 = tpu.matmul %91, %99, %cst_71 {dimension_numbers = #tpu.dot_dimension_numbers<[1], [0], [0], [1], [0, 0, 1, 1], [], []>} : vector<64x64xbf16>, vector<64x128xbf16>, vector<64x128xf32> -> vector<64x128xf32>
    %101 = arith.addf %98, %100 : vector<64x128xf32>
    %102 = vector.broadcast %93 : vector<64x1xf32> to vector<64x128xf32>
    %103 = arith.addf %101, %102 : vector<64x128xf32>
    %cst_72 = arith.constant 0.000000e+00 : f32
    %104 = vector.broadcast %cst_72 : f32 to vector<64x128xf32>
    %105 = arith.maximumf %103, %104 : vector<64x128xf32>
    %c5 = arith.constant 5 : index
    %c0_73 = arith.constant 0 : index
    %c0_74 = arith.constant 0 : index
    %106 = vector.load %arg2[%c5, %c0_73, %c0_74] : memref<18x64x64xbf16, #tpu.memory_space<vmem>>, vector<1x64x64xbf16>
    %107 = vector.shape_cast %106 : vector<1x64x64xbf16> to vector<64x64xbf16>
    %c5_75 = arith.constant 5 : index
    %c0_76 = arith.constant 0 : index
    %c0_77 = arith.constant 0 : index
    %108 = vector.load %arg3[%c5_75, %c0_76, %c0_77] : memref<18x64x64xbf16, #tpu.memory_space<vmem>>, vector<1x64x64xbf16>
    %109 = vector.shape_cast %108 : vector<1x64x64xbf16> to vector<64x64xbf16>
    %c5_78 = arith.constant 5 : index
    %c0_79 = arith.constant 0 : index
    %c0_80 = arith.constant 0 : index
    %110 = vector.load %arg4[%c5_78, %c0_79, %c0_80] : memref<18x64x1xf32, #tpu.memory_space<vmem>>, vector<1x64x1xf32>
    %111 = vector.shape_cast %110 : vector<1x64x1xf32> to vector<64x1xf32>
    %c2_i32_81 = arith.constant 2 : i32
    %112 = tpu.dynamic_rotate %105 by %c2_i32_81 dim 1 : vector<64x128xf32>, i32 -> vector<64x128xf32>
    %113 = vector.broadcast %69 : vector<1x128xf32> to vector<64x128xf32>
    %114 = arith.mulf %112, %113 : vector<64x128xf32>
    %115 = arith.truncf %105 : vector<64x128xf32> to vector<64x128xbf16>
    %cst_82 = arith.constant dense<0.000000e+00> : vector<64x128xf32>
    %116 = tpu.matmul %107, %115, %cst_82 {dimension_numbers = #tpu.dot_dimension_numbers<[1], [0], [0], [1], [0, 0, 1, 1], [], []>} : vector<64x64xbf16>, vector<64x128xbf16>, vector<64x128xf32> -> vector<64x128xf32>
    %117 = arith.truncf %114 : vector<64x128xf32> to vector<64x128xbf16>
    %cst_83 = arith.constant dense<0.000000e+00> : vector<64x128xf32>
    %118 = tpu.matmul %109, %117, %cst_83 {dimension_numbers = #tpu.dot_dimension_numbers<[1], [0], [0], [1], [0, 0, 1, 1], [], []>} : vector<64x64xbf16>, vector<64x128xbf16>, vector<64x128xf32> -> vector<64x128xf32>
    %119 = arith.addf %116, %118 : vector<64x128xf32>
    %120 = vector.broadcast %111 : vector<64x1xf32> to vector<64x128xf32>
    %121 = arith.addf %119, %120 : vector<64x128xf32>
    %cst_84 = arith.constant 0.000000e+00 : f32
    %122 = vector.broadcast %cst_84 : f32 to vector<64x128xf32>
    %123 = arith.maximumf %121, %122 : vector<64x128xf32>
    %124 = arith.addf %123, %67 : vector<64x128xf32>
    %cst_85 = arith.constant 0.000000e+00 : f32
    %125 = vector.broadcast %cst_85 : f32 to vector<64x128xf32>
    %126 = arith.maximumf %124, %125 : vector<64x128xf32>
    %c2_86 = arith.constant 2 : index
    %c0_87 = arith.constant 0 : index
    %c0_88 = arith.constant 0 : index
    %127 = vector.load %arg1[%c2_86, %c0_87, %c0_88] : memref<3x1x128xf32, #tpu.memory_space<vmem>>, vector<1x1x128xf32>
    %128 = vector.shape_cast %127 : vector<1x1x128xf32> to vector<1x128xf32>
    %c6 = arith.constant 6 : index
    %c0_89 = arith.constant 0 : index
    %c0_90 = arith.constant 0 : index
    %129 = vector.load %arg2[%c6, %c0_89, %c0_90] : memref<18x64x64xbf16, #tpu.memory_space<vmem>>, vector<1x64x64xbf16>
    %130 = vector.shape_cast %129 : vector<1x64x64xbf16> to vector<64x64xbf16>
    %c6_91 = arith.constant 6 : index
    %c0_92 = arith.constant 0 : index
    %c0_93 = arith.constant 0 : index
    %131 = vector.load %arg3[%c6_91, %c0_92, %c0_93] : memref<18x64x64xbf16, #tpu.memory_space<vmem>>, vector<1x64x64xbf16>
    %132 = vector.shape_cast %131 : vector<1x64x64xbf16> to vector<64x64xbf16>
    %c6_94 = arith.constant 6 : index
    %c0_95 = arith.constant 0 : index
    %c0_96 = arith.constant 0 : index
    %133 = vector.load %arg4[%c6_94, %c0_95, %c0_96] : memref<18x64x1xf32, #tpu.memory_space<vmem>>, vector<1x64x1xf32>
    %134 = vector.shape_cast %133 : vector<1x64x1xf32> to vector<64x1xf32>
    %c4_i32 = arith.constant 4 : i32
    %135 = tpu.dynamic_rotate %126 by %c4_i32 dim 1 : vector<64x128xf32>, i32 -> vector<64x128xf32>
    %136 = vector.broadcast %128 : vector<1x128xf32> to vector<64x128xf32>
    %137 = arith.mulf %135, %136 : vector<64x128xf32>
    %138 = arith.truncf %126 : vector<64x128xf32> to vector<64x128xbf16>
    %cst_97 = arith.constant dense<0.000000e+00> : vector<64x128xf32>
    %139 = tpu.matmul %130, %138, %cst_97 {dimension_numbers = #tpu.dot_dimension_numbers<[1], [0], [0], [1], [0, 0, 1, 1], [], []>} : vector<64x64xbf16>, vector<64x128xbf16>, vector<64x128xf32> -> vector<64x128xf32>
    %140 = arith.truncf %137 : vector<64x128xf32> to vector<64x128xbf16>
    %cst_98 = arith.constant dense<0.000000e+00> : vector<64x128xf32>
    %141 = tpu.matmul %132, %140, %cst_98 {dimension_numbers = #tpu.dot_dimension_numbers<[1], [0], [0], [1], [0, 0, 1, 1], [], []>} : vector<64x64xbf16>, vector<64x128xbf16>, vector<64x128xf32> -> vector<64x128xf32>
    %142 = arith.addf %139, %141 : vector<64x128xf32>
    %143 = vector.broadcast %134 : vector<64x1xf32> to vector<64x128xf32>
    %144 = arith.addf %142, %143 : vector<64x128xf32>
    %cst_99 = arith.constant 0.000000e+00 : f32
    %145 = vector.broadcast %cst_99 : f32 to vector<64x128xf32>
    %146 = arith.maximumf %144, %145 : vector<64x128xf32>
    %c7 = arith.constant 7 : index
    %c0_100 = arith.constant 0 : index
    %c0_101 = arith.constant 0 : index
    %147 = vector.load %arg2[%c7, %c0_100, %c0_101] : memref<18x64x64xbf16, #tpu.memory_space<vmem>>, vector<1x64x64xbf16>
    %148 = vector.shape_cast %147 : vector<1x64x64xbf16> to vector<64x64xbf16>
    %c7_102 = arith.constant 7 : index
    %c0_103 = arith.constant 0 : index
    %c0_104 = arith.constant 0 : index
    %149 = vector.load %arg3[%c7_102, %c0_103, %c0_104] : memref<18x64x64xbf16, #tpu.memory_space<vmem>>, vector<1x64x64xbf16>
    %150 = vector.shape_cast %149 : vector<1x64x64xbf16> to vector<64x64xbf16>
    %c7_105 = arith.constant 7 : index
    %c0_106 = arith.constant 0 : index
    %c0_107 = arith.constant 0 : index
    %151 = vector.load %arg4[%c7_105, %c0_106, %c0_107] : memref<18x64x1xf32, #tpu.memory_space<vmem>>, vector<1x64x1xf32>
    %152 = vector.shape_cast %151 : vector<1x64x1xf32> to vector<64x1xf32>
    %c4_i32_108 = arith.constant 4 : i32
    %153 = tpu.dynamic_rotate %146 by %c4_i32_108 dim 1 : vector<64x128xf32>, i32 -> vector<64x128xf32>
    %154 = vector.broadcast %128 : vector<1x128xf32> to vector<64x128xf32>
    %155 = arith.mulf %153, %154 : vector<64x128xf32>
    %156 = arith.truncf %146 : vector<64x128xf32> to vector<64x128xbf16>
    %cst_109 = arith.constant dense<0.000000e+00> : vector<64x128xf32>
    %157 = tpu.matmul %148, %156, %cst_109 {dimension_numbers = #tpu.dot_dimension_numbers<[1], [0], [0], [1], [0, 0, 1, 1], [], []>} : vector<64x64xbf16>, vector<64x128xbf16>, vector<64x128xf32> -> vector<64x128xf32>
    %158 = arith.truncf %155 : vector<64x128xf32> to vector<64x128xbf16>
    %cst_110 = arith.constant dense<0.000000e+00> : vector<64x128xf32>
    %159 = tpu.matmul %150, %158, %cst_110 {dimension_numbers = #tpu.dot_dimension_numbers<[1], [0], [0], [1], [0, 0, 1, 1], [], []>} : vector<64x64xbf16>, vector<64x128xbf16>, vector<64x128xf32> -> vector<64x128xf32>
    %160 = arith.addf %157, %159 : vector<64x128xf32>
    %161 = vector.broadcast %152 : vector<64x1xf32> to vector<64x128xf32>
    %162 = arith.addf %160, %161 : vector<64x128xf32>
    %cst_111 = arith.constant 0.000000e+00 : f32
    %163 = vector.broadcast %cst_111 : f32 to vector<64x128xf32>
    %164 = arith.maximumf %162, %163 : vector<64x128xf32>
    %c8 = arith.constant 8 : index
    %c0_112 = arith.constant 0 : index
    %c0_113 = arith.constant 0 : index
    %165 = vector.load %arg2[%c8, %c0_112, %c0_113] : memref<18x64x64xbf16, #tpu.memory_space<vmem>>, vector<1x64x64xbf16>
    %166 = vector.shape_cast %165 : vector<1x64x64xbf16> to vector<64x64xbf16>
    %c8_114 = arith.constant 8 : index
    %c0_115 = arith.constant 0 : index
    %c0_116 = arith.constant 0 : index
    %167 = vector.load %arg3[%c8_114, %c0_115, %c0_116] : memref<18x64x64xbf16, #tpu.memory_space<vmem>>, vector<1x64x64xbf16>
    %168 = vector.shape_cast %167 : vector<1x64x64xbf16> to vector<64x64xbf16>
    %c8_117 = arith.constant 8 : index
    %c0_118 = arith.constant 0 : index
    %c0_119 = arith.constant 0 : index
    %169 = vector.load %arg4[%c8_117, %c0_118, %c0_119] : memref<18x64x1xf32, #tpu.memory_space<vmem>>, vector<1x64x1xf32>
    %170 = vector.shape_cast %169 : vector<1x64x1xf32> to vector<64x1xf32>
    %c4_i32_120 = arith.constant 4 : i32
    %171 = tpu.dynamic_rotate %164 by %c4_i32_120 dim 1 : vector<64x128xf32>, i32 -> vector<64x128xf32>
    %172 = vector.broadcast %128 : vector<1x128xf32> to vector<64x128xf32>
    %173 = arith.mulf %171, %172 : vector<64x128xf32>
    %174 = arith.truncf %164 : vector<64x128xf32> to vector<64x128xbf16>
    %cst_121 = arith.constant dense<0.000000e+00> : vector<64x128xf32>
    %175 = tpu.matmul %166, %174, %cst_121 {dimension_numbers = #tpu.dot_dimension_numbers<[1], [0], [0], [1], [0, 0, 1, 1], [], []>} : vector<64x64xbf16>, vector<64x128xbf16>, vector<64x128xf32> -> vector<64x128xf32>
    %176 = arith.truncf %173 : vector<64x128xf32> to vector<64x128xbf16>
    %cst_122 = arith.constant dense<0.000000e+00> : vector<64x128xf32>
    %177 = tpu.matmul %168, %176, %cst_122 {dimension_numbers = #tpu.dot_dimension_numbers<[1], [0], [0], [1], [0, 0, 1, 1], [], []>} : vector<64x64xbf16>, vector<64x128xbf16>, vector<64x128xf32> -> vector<64x128xf32>
    %178 = arith.addf %175, %177 : vector<64x128xf32>
    %179 = vector.broadcast %170 : vector<64x1xf32> to vector<64x128xf32>
    %180 = arith.addf %178, %179 : vector<64x128xf32>
    %cst_123 = arith.constant 0.000000e+00 : f32
    %181 = vector.broadcast %cst_123 : f32 to vector<64x128xf32>
    %182 = arith.maximumf %180, %181 : vector<64x128xf32>
    %183 = arith.addf %182, %126 : vector<64x128xf32>
    %cst_124 = arith.constant 0.000000e+00 : f32
    %184 = vector.broadcast %cst_124 : f32 to vector<64x128xf32>
    %185 = arith.maximumf %183, %184 : vector<64x128xf32>
    %c0_125 = arith.constant 0 : index
    %c0_126 = arith.constant 0 : index
    %c0_127 = arith.constant 0 : index
    %186 = vector.load %arg1[%c0_125, %c0_126, %c0_127] : memref<3x1x128xf32, #tpu.memory_space<vmem>>, vector<1x1x128xf32>
    %187 = vector.shape_cast %186 : vector<1x1x128xf32> to vector<1x128xf32>
    %c9 = arith.constant 9 : index
    %c0_128 = arith.constant 0 : index
    %c0_129 = arith.constant 0 : index
    %188 = vector.load %arg2[%c9, %c0_128, %c0_129] : memref<18x64x64xbf16, #tpu.memory_space<vmem>>, vector<1x64x64xbf16>
    %189 = vector.shape_cast %188 : vector<1x64x64xbf16> to vector<64x64xbf16>
    %c9_130 = arith.constant 9 : index
    %c0_131 = arith.constant 0 : index
    %c0_132 = arith.constant 0 : index
    %190 = vector.load %arg3[%c9_130, %c0_131, %c0_132] : memref<18x64x64xbf16, #tpu.memory_space<vmem>>, vector<1x64x64xbf16>
    %191 = vector.shape_cast %190 : vector<1x64x64xbf16> to vector<64x64xbf16>
    %c9_133 = arith.constant 9 : index
    %c0_134 = arith.constant 0 : index
    %c0_135 = arith.constant 0 : index
    %192 = vector.load %arg4[%c9_133, %c0_134, %c0_135] : memref<18x64x1xf32, #tpu.memory_space<vmem>>, vector<1x64x1xf32>
    %193 = vector.shape_cast %192 : vector<1x64x1xf32> to vector<64x1xf32>
    %c1_i32_136 = arith.constant 1 : i32
    %194 = tpu.dynamic_rotate %185 by %c1_i32_136 dim 1 : vector<64x128xf32>, i32 -> vector<64x128xf32>
    %195 = vector.broadcast %187 : vector<1x128xf32> to vector<64x128xf32>
    %196 = arith.mulf %194, %195 : vector<64x128xf32>
    %197 = arith.truncf %185 : vector<64x128xf32> to vector<64x128xbf16>
    %cst_137 = arith.constant dense<0.000000e+00> : vector<64x128xf32>
    %198 = tpu.matmul %189, %197, %cst_137 {dimension_numbers = #tpu.dot_dimension_numbers<[1], [0], [0], [1], [0, 0, 1, 1], [], []>} : vector<64x64xbf16>, vector<64x128xbf16>, vector<64x128xf32> -> vector<64x128xf32>
    %199 = arith.truncf %196 : vector<64x128xf32> to vector<64x128xbf16>
    %cst_138 = arith.constant dense<0.000000e+00> : vector<64x128xf32>
    %200 = tpu.matmul %191, %199, %cst_138 {dimension_numbers = #tpu.dot_dimension_numbers<[1], [0], [0], [1], [0, 0, 1, 1], [], []>} : vector<64x64xbf16>, vector<64x128xbf16>, vector<64x128xf32> -> vector<64x128xf32>
    %201 = arith.addf %198, %200 : vector<64x128xf32>
    %202 = vector.broadcast %193 : vector<64x1xf32> to vector<64x128xf32>
    %203 = arith.addf %201, %202 : vector<64x128xf32>
    %cst_139 = arith.constant 0.000000e+00 : f32
    %204 = vector.broadcast %cst_139 : f32 to vector<64x128xf32>
    %205 = arith.maximumf %203, %204 : vector<64x128xf32>
    %c10 = arith.constant 10 : index
    %c0_140 = arith.constant 0 : index
    %c0_141 = arith.constant 0 : index
    %206 = vector.load %arg2[%c10, %c0_140, %c0_141] : memref<18x64x64xbf16, #tpu.memory_space<vmem>>, vector<1x64x64xbf16>
    %207 = vector.shape_cast %206 : vector<1x64x64xbf16> to vector<64x64xbf16>
    %c10_142 = arith.constant 10 : index
    %c0_143 = arith.constant 0 : index
    %c0_144 = arith.constant 0 : index
    %208 = vector.load %arg3[%c10_142, %c0_143, %c0_144] : memref<18x64x64xbf16, #tpu.memory_space<vmem>>, vector<1x64x64xbf16>
    %209 = vector.shape_cast %208 : vector<1x64x64xbf16> to vector<64x64xbf16>
    %c10_145 = arith.constant 10 : index
    %c0_146 = arith.constant 0 : index
    %c0_147 = arith.constant 0 : index
    %210 = vector.load %arg4[%c10_145, %c0_146, %c0_147] : memref<18x64x1xf32, #tpu.memory_space<vmem>>, vector<1x64x1xf32>
    %211 = vector.shape_cast %210 : vector<1x64x1xf32> to vector<64x1xf32>
    %c1_i32_148 = arith.constant 1 : i32
    %212 = tpu.dynamic_rotate %205 by %c1_i32_148 dim 1 : vector<64x128xf32>, i32 -> vector<64x128xf32>
    %213 = vector.broadcast %187 : vector<1x128xf32> to vector<64x128xf32>
    %214 = arith.mulf %212, %213 : vector<64x128xf32>
    %215 = arith.truncf %205 : vector<64x128xf32> to vector<64x128xbf16>
    %cst_149 = arith.constant dense<0.000000e+00> : vector<64x128xf32>
    %216 = tpu.matmul %207, %215, %cst_149 {dimension_numbers = #tpu.dot_dimension_numbers<[1], [0], [0], [1], [0, 0, 1, 1], [], []>} : vector<64x64xbf16>, vector<64x128xbf16>, vector<64x128xf32> -> vector<64x128xf32>
    %217 = arith.truncf %214 : vector<64x128xf32> to vector<64x128xbf16>
    %cst_150 = arith.constant dense<0.000000e+00> : vector<64x128xf32>
    %218 = tpu.matmul %209, %217, %cst_150 {dimension_numbers = #tpu.dot_dimension_numbers<[1], [0], [0], [1], [0, 0, 1, 1], [], []>} : vector<64x64xbf16>, vector<64x128xbf16>, vector<64x128xf32> -> vector<64x128xf32>
    %219 = arith.addf %216, %218 : vector<64x128xf32>
    %220 = vector.broadcast %211 : vector<64x1xf32> to vector<64x128xf32>
    %221 = arith.addf %219, %220 : vector<64x128xf32>
    %cst_151 = arith.constant 0.000000e+00 : f32
    %222 = vector.broadcast %cst_151 : f32 to vector<64x128xf32>
    %223 = arith.maximumf %221, %222 : vector<64x128xf32>
    %c11 = arith.constant 11 : index
    %c0_152 = arith.constant 0 : index
    %c0_153 = arith.constant 0 : index
    %224 = vector.load %arg2[%c11, %c0_152, %c0_153] : memref<18x64x64xbf16, #tpu.memory_space<vmem>>, vector<1x64x64xbf16>
    %225 = vector.shape_cast %224 : vector<1x64x64xbf16> to vector<64x64xbf16>
    %c11_154 = arith.constant 11 : index
    %c0_155 = arith.constant 0 : index
    %c0_156 = arith.constant 0 : index
    %226 = vector.load %arg3[%c11_154, %c0_155, %c0_156] : memref<18x64x64xbf16, #tpu.memory_space<vmem>>, vector<1x64x64xbf16>
    %227 = vector.shape_cast %226 : vector<1x64x64xbf16> to vector<64x64xbf16>
    %c11_157 = arith.constant 11 : index
    %c0_158 = arith.constant 0 : index
    %c0_159 = arith.constant 0 : index
    %228 = vector.load %arg4[%c11_157, %c0_158, %c0_159] : memref<18x64x1xf32, #tpu.memory_space<vmem>>, vector<1x64x1xf32>
    %229 = vector.shape_cast %228 : vector<1x64x1xf32> to vector<64x1xf32>
    %c1_i32_160 = arith.constant 1 : i32
    %230 = tpu.dynamic_rotate %223 by %c1_i32_160 dim 1 : vector<64x128xf32>, i32 -> vector<64x128xf32>
    %231 = vector.broadcast %187 : vector<1x128xf32> to vector<64x128xf32>
    %232 = arith.mulf %230, %231 : vector<64x128xf32>
    %233 = arith.truncf %223 : vector<64x128xf32> to vector<64x128xbf16>
    %cst_161 = arith.constant dense<0.000000e+00> : vector<64x128xf32>
    %234 = tpu.matmul %225, %233, %cst_161 {dimension_numbers = #tpu.dot_dimension_numbers<[1], [0], [0], [1], [0, 0, 1, 1], [], []>} : vector<64x64xbf16>, vector<64x128xbf16>, vector<64x128xf32> -> vector<64x128xf32>
    %235 = arith.truncf %232 : vector<64x128xf32> to vector<64x128xbf16>
    %cst_162 = arith.constant dense<0.000000e+00> : vector<64x128xf32>
    %236 = tpu.matmul %227, %235, %cst_162 {dimension_numbers = #tpu.dot_dimension_numbers<[1], [0], [0], [1], [0, 0, 1, 1], [], []>} : vector<64x64xbf16>, vector<64x128xbf16>, vector<64x128xf32> -> vector<64x128xf32>
    %237 = arith.addf %234, %236 : vector<64x128xf32>
    %238 = vector.broadcast %229 : vector<64x1xf32> to vector<64x128xf32>
    %239 = arith.addf %237, %238 : vector<64x128xf32>
    %cst_163 = arith.constant 0.000000e+00 : f32
    %240 = vector.broadcast %cst_163 : f32 to vector<64x128xf32>
    %241 = arith.maximumf %239, %240 : vector<64x128xf32>
    %242 = arith.addf %241, %185 : vector<64x128xf32>
    %cst_164 = arith.constant 0.000000e+00 : f32
    %243 = vector.broadcast %cst_164 : f32 to vector<64x128xf32>
    %244 = arith.maximumf %242, %243 : vector<64x128xf32>
    %c1_165 = arith.constant 1 : index
    %c0_166 = arith.constant 0 : index
    %c0_167 = arith.constant 0 : index
    %245 = vector.load %arg1[%c1_165, %c0_166, %c0_167] : memref<3x1x128xf32, #tpu.memory_space<vmem>>, vector<1x1x128xf32>
    %246 = vector.shape_cast %245 : vector<1x1x128xf32> to vector<1x128xf32>
    %c12 = arith.constant 12 : index
    %c0_168 = arith.constant 0 : index
    %c0_169 = arith.constant 0 : index
    %247 = vector.load %arg2[%c12, %c0_168, %c0_169] : memref<18x64x64xbf16, #tpu.memory_space<vmem>>, vector<1x64x64xbf16>
    %248 = vector.shape_cast %247 : vector<1x64x64xbf16> to vector<64x64xbf16>
    %c12_170 = arith.constant 12 : index
    %c0_171 = arith.constant 0 : index
    %c0_172 = arith.constant 0 : index
    %249 = vector.load %arg3[%c12_170, %c0_171, %c0_172] : memref<18x64x64xbf16, #tpu.memory_space<vmem>>, vector<1x64x64xbf16>
    %250 = vector.shape_cast %249 : vector<1x64x64xbf16> to vector<64x64xbf16>
    %c12_173 = arith.constant 12 : index
    %c0_174 = arith.constant 0 : index
    %c0_175 = arith.constant 0 : index
    %251 = vector.load %arg4[%c12_173, %c0_174, %c0_175] : memref<18x64x1xf32, #tpu.memory_space<vmem>>, vector<1x64x1xf32>
    %252 = vector.shape_cast %251 : vector<1x64x1xf32> to vector<64x1xf32>
    %c2_i32_176 = arith.constant 2 : i32
    %253 = tpu.dynamic_rotate %244 by %c2_i32_176 dim 1 : vector<64x128xf32>, i32 -> vector<64x128xf32>
    %254 = vector.broadcast %246 : vector<1x128xf32> to vector<64x128xf32>
    %255 = arith.mulf %253, %254 : vector<64x128xf32>
    %256 = arith.truncf %244 : vector<64x128xf32> to vector<64x128xbf16>
    %cst_177 = arith.constant dense<0.000000e+00> : vector<64x128xf32>
    %257 = tpu.matmul %248, %256, %cst_177 {dimension_numbers = #tpu.dot_dimension_numbers<[1], [0], [0], [1], [0, 0, 1, 1], [], []>} : vector<64x64xbf16>, vector<64x128xbf16>, vector<64x128xf32> -> vector<64x128xf32>
    %258 = arith.truncf %255 : vector<64x128xf32> to vector<64x128xbf16>
    %cst_178 = arith.constant dense<0.000000e+00> : vector<64x128xf32>
    %259 = tpu.matmul %250, %258, %cst_178 {dimension_numbers = #tpu.dot_dimension_numbers<[1], [0], [0], [1], [0, 0, 1, 1], [], []>} : vector<64x64xbf16>, vector<64x128xbf16>, vector<64x128xf32> -> vector<64x128xf32>
    %260 = arith.addf %257, %259 : vector<64x128xf32>
    %261 = vector.broadcast %252 : vector<64x1xf32> to vector<64x128xf32>
    %262 = arith.addf %260, %261 : vector<64x128xf32>
    %cst_179 = arith.constant 0.000000e+00 : f32
    %263 = vector.broadcast %cst_179 : f32 to vector<64x128xf32>
    %264 = arith.maximumf %262, %263 : vector<64x128xf32>
    %c13 = arith.constant 13 : index
    %c0_180 = arith.constant 0 : index
    %c0_181 = arith.constant 0 : index
    %265 = vector.load %arg2[%c13, %c0_180, %c0_181] : memref<18x64x64xbf16, #tpu.memory_space<vmem>>, vector<1x64x64xbf16>
    %266 = vector.shape_cast %265 : vector<1x64x64xbf16> to vector<64x64xbf16>
    %c13_182 = arith.constant 13 : index
    %c0_183 = arith.constant 0 : index
    %c0_184 = arith.constant 0 : index
    %267 = vector.load %arg3[%c13_182, %c0_183, %c0_184] : memref<18x64x64xbf16, #tpu.memory_space<vmem>>, vector<1x64x64xbf16>
    %268 = vector.shape_cast %267 : vector<1x64x64xbf16> to vector<64x64xbf16>
    %c13_185 = arith.constant 13 : index
    %c0_186 = arith.constant 0 : index
    %c0_187 = arith.constant 0 : index
    %269 = vector.load %arg4[%c13_185, %c0_186, %c0_187] : memref<18x64x1xf32, #tpu.memory_space<vmem>>, vector<1x64x1xf32>
    %270 = vector.shape_cast %269 : vector<1x64x1xf32> to vector<64x1xf32>
    %c2_i32_188 = arith.constant 2 : i32
    %271 = tpu.dynamic_rotate %264 by %c2_i32_188 dim 1 : vector<64x128xf32>, i32 -> vector<64x128xf32>
    %272 = vector.broadcast %246 : vector<1x128xf32> to vector<64x128xf32>
    %273 = arith.mulf %271, %272 : vector<64x128xf32>
    %274 = arith.truncf %264 : vector<64x128xf32> to vector<64x128xbf16>
    %cst_189 = arith.constant dense<0.000000e+00> : vector<64x128xf32>
    %275 = tpu.matmul %266, %274, %cst_189 {dimension_numbers = #tpu.dot_dimension_numbers<[1], [0], [0], [1], [0, 0, 1, 1], [], []>} : vector<64x64xbf16>, vector<64x128xbf16>, vector<64x128xf32> -> vector<64x128xf32>
    %276 = arith.truncf %273 : vector<64x128xf32> to vector<64x128xbf16>
    %cst_190 = arith.constant dense<0.000000e+00> : vector<64x128xf32>
    %277 = tpu.matmul %268, %276, %cst_190 {dimension_numbers = #tpu.dot_dimension_numbers<[1], [0], [0], [1], [0, 0, 1, 1], [], []>} : vector<64x64xbf16>, vector<64x128xbf16>, vector<64x128xf32> -> vector<64x128xf32>
    %278 = arith.addf %275, %277 : vector<64x128xf32>
    %279 = vector.broadcast %270 : vector<64x1xf32> to vector<64x128xf32>
    %280 = arith.addf %278, %279 : vector<64x128xf32>
    %cst_191 = arith.constant 0.000000e+00 : f32
    %281 = vector.broadcast %cst_191 : f32 to vector<64x128xf32>
    %282 = arith.maximumf %280, %281 : vector<64x128xf32>
    %c14 = arith.constant 14 : index
    %c0_192 = arith.constant 0 : index
    %c0_193 = arith.constant 0 : index
    %283 = vector.load %arg2[%c14, %c0_192, %c0_193] : memref<18x64x64xbf16, #tpu.memory_space<vmem>>, vector<1x64x64xbf16>
    %284 = vector.shape_cast %283 : vector<1x64x64xbf16> to vector<64x64xbf16>
    %c14_194 = arith.constant 14 : index
    %c0_195 = arith.constant 0 : index
    %c0_196 = arith.constant 0 : index
    %285 = vector.load %arg3[%c14_194, %c0_195, %c0_196] : memref<18x64x64xbf16, #tpu.memory_space<vmem>>, vector<1x64x64xbf16>
    %286 = vector.shape_cast %285 : vector<1x64x64xbf16> to vector<64x64xbf16>
    %c14_197 = arith.constant 14 : index
    %c0_198 = arith.constant 0 : index
    %c0_199 = arith.constant 0 : index
    %287 = vector.load %arg4[%c14_197, %c0_198, %c0_199] : memref<18x64x1xf32, #tpu.memory_space<vmem>>, vector<1x64x1xf32>
    %288 = vector.shape_cast %287 : vector<1x64x1xf32> to vector<64x1xf32>
    %c2_i32_200 = arith.constant 2 : i32
    %289 = tpu.dynamic_rotate %282 by %c2_i32_200 dim 1 : vector<64x128xf32>, i32 -> vector<64x128xf32>
    %290 = vector.broadcast %246 : vector<1x128xf32> to vector<64x128xf32>
    %291 = arith.mulf %289, %290 : vector<64x128xf32>
    %292 = arith.truncf %282 : vector<64x128xf32> to vector<64x128xbf16>
    %cst_201 = arith.constant dense<0.000000e+00> : vector<64x128xf32>
    %293 = tpu.matmul %284, %292, %cst_201 {dimension_numbers = #tpu.dot_dimension_numbers<[1], [0], [0], [1], [0, 0, 1, 1], [], []>} : vector<64x64xbf16>, vector<64x128xbf16>, vector<64x128xf32> -> vector<64x128xf32>
    %294 = arith.truncf %291 : vector<64x128xf32> to vector<64x128xbf16>
    %cst_202 = arith.constant dense<0.000000e+00> : vector<64x128xf32>
    %295 = tpu.matmul %286, %294, %cst_202 {dimension_numbers = #tpu.dot_dimension_numbers<[1], [0], [0], [1], [0, 0, 1, 1], [], []>} : vector<64x64xbf16>, vector<64x128xbf16>, vector<64x128xf32> -> vector<64x128xf32>
    %296 = arith.addf %293, %295 : vector<64x128xf32>
    %297 = vector.broadcast %288 : vector<64x1xf32> to vector<64x128xf32>
    %298 = arith.addf %296, %297 : vector<64x128xf32>
    %cst_203 = arith.constant 0.000000e+00 : f32
    %299 = vector.broadcast %cst_203 : f32 to vector<64x128xf32>
    %300 = arith.maximumf %298, %299 : vector<64x128xf32>
    %301 = arith.addf %300, %244 : vector<64x128xf32>
    %cst_204 = arith.constant 0.000000e+00 : f32
    %302 = vector.broadcast %cst_204 : f32 to vector<64x128xf32>
    %303 = arith.maximumf %301, %302 : vector<64x128xf32>
    %c2_205 = arith.constant 2 : index
    %c0_206 = arith.constant 0 : index
    %c0_207 = arith.constant 0 : index
    %304 = vector.load %arg1[%c2_205, %c0_206, %c0_207] : memref<3x1x128xf32, #tpu.memory_space<vmem>>, vector<1x1x128xf32>
    %305 = vector.shape_cast %304 : vector<1x1x128xf32> to vector<1x128xf32>
    %c15 = arith.constant 15 : index
    %c0_208 = arith.constant 0 : index
    %c0_209 = arith.constant 0 : index
    %306 = vector.load %arg2[%c15, %c0_208, %c0_209] : memref<18x64x64xbf16, #tpu.memory_space<vmem>>, vector<1x64x64xbf16>
    %307 = vector.shape_cast %306 : vector<1x64x64xbf16> to vector<64x64xbf16>
    %c15_210 = arith.constant 15 : index
    %c0_211 = arith.constant 0 : index
    %c0_212 = arith.constant 0 : index
    %308 = vector.load %arg3[%c15_210, %c0_211, %c0_212] : memref<18x64x64xbf16, #tpu.memory_space<vmem>>, vector<1x64x64xbf16>
    %309 = vector.shape_cast %308 : vector<1x64x64xbf16> to vector<64x64xbf16>
    %c15_213 = arith.constant 15 : index
    %c0_214 = arith.constant 0 : index
    %c0_215 = arith.constant 0 : index
    %310 = vector.load %arg4[%c15_213, %c0_214, %c0_215] : memref<18x64x1xf32, #tpu.memory_space<vmem>>, vector<1x64x1xf32>
    %311 = vector.shape_cast %310 : vector<1x64x1xf32> to vector<64x1xf32>
    %c4_i32_216 = arith.constant 4 : i32
    %312 = tpu.dynamic_rotate %303 by %c4_i32_216 dim 1 : vector<64x128xf32>, i32 -> vector<64x128xf32>
    %313 = vector.broadcast %305 : vector<1x128xf32> to vector<64x128xf32>
    %314 = arith.mulf %312, %313 : vector<64x128xf32>
    %315 = arith.truncf %303 : vector<64x128xf32> to vector<64x128xbf16>
    %cst_217 = arith.constant dense<0.000000e+00> : vector<64x128xf32>
    %316 = tpu.matmul %307, %315, %cst_217 {dimension_numbers = #tpu.dot_dimension_numbers<[1], [0], [0], [1], [0, 0, 1, 1], [], []>} : vector<64x64xbf16>, vector<64x128xbf16>, vector<64x128xf32> -> vector<64x128xf32>
    %317 = arith.truncf %314 : vector<64x128xf32> to vector<64x128xbf16>
    %cst_218 = arith.constant dense<0.000000e+00> : vector<64x128xf32>
    %318 = tpu.matmul %309, %317, %cst_218 {dimension_numbers = #tpu.dot_dimension_numbers<[1], [0], [0], [1], [0, 0, 1, 1], [], []>} : vector<64x64xbf16>, vector<64x128xbf16>, vector<64x128xf32> -> vector<64x128xf32>
    %319 = arith.addf %316, %318 : vector<64x128xf32>
    %320 = vector.broadcast %311 : vector<64x1xf32> to vector<64x128xf32>
    %321 = arith.addf %319, %320 : vector<64x128xf32>
    %cst_219 = arith.constant 0.000000e+00 : f32
    %322 = vector.broadcast %cst_219 : f32 to vector<64x128xf32>
    %323 = arith.maximumf %321, %322 : vector<64x128xf32>
    %c16 = arith.constant 16 : index
    %c0_220 = arith.constant 0 : index
    %c0_221 = arith.constant 0 : index
    %324 = vector.load %arg2[%c16, %c0_220, %c0_221] : memref<18x64x64xbf16, #tpu.memory_space<vmem>>, vector<1x64x64xbf16>
    %325 = vector.shape_cast %324 : vector<1x64x64xbf16> to vector<64x64xbf16>
    %c16_222 = arith.constant 16 : index
    %c0_223 = arith.constant 0 : index
    %c0_224 = arith.constant 0 : index
    %326 = vector.load %arg3[%c16_222, %c0_223, %c0_224] : memref<18x64x64xbf16, #tpu.memory_space<vmem>>, vector<1x64x64xbf16>
    %327 = vector.shape_cast %326 : vector<1x64x64xbf16> to vector<64x64xbf16>
    %c16_225 = arith.constant 16 : index
    %c0_226 = arith.constant 0 : index
    %c0_227 = arith.constant 0 : index
    %328 = vector.load %arg4[%c16_225, %c0_226, %c0_227] : memref<18x64x1xf32, #tpu.memory_space<vmem>>, vector<1x64x1xf32>
    %329 = vector.shape_cast %328 : vector<1x64x1xf32> to vector<64x1xf32>
    %c4_i32_228 = arith.constant 4 : i32
    %330 = tpu.dynamic_rotate %323 by %c4_i32_228 dim 1 : vector<64x128xf32>, i32 -> vector<64x128xf32>
    %331 = vector.broadcast %305 : vector<1x128xf32> to vector<64x128xf32>
    %332 = arith.mulf %330, %331 : vector<64x128xf32>
    %333 = arith.truncf %323 : vector<64x128xf32> to vector<64x128xbf16>
    %cst_229 = arith.constant dense<0.000000e+00> : vector<64x128xf32>
    %334 = tpu.matmul %325, %333, %cst_229 {dimension_numbers = #tpu.dot_dimension_numbers<[1], [0], [0], [1], [0, 0, 1, 1], [], []>} : vector<64x64xbf16>, vector<64x128xbf16>, vector<64x128xf32> -> vector<64x128xf32>
    %335 = arith.truncf %332 : vector<64x128xf32> to vector<64x128xbf16>
    %cst_230 = arith.constant dense<0.000000e+00> : vector<64x128xf32>
    %336 = tpu.matmul %327, %335, %cst_230 {dimension_numbers = #tpu.dot_dimension_numbers<[1], [0], [0], [1], [0, 0, 1, 1], [], []>} : vector<64x64xbf16>, vector<64x128xbf16>, vector<64x128xf32> -> vector<64x128xf32>
    %337 = arith.addf %334, %336 : vector<64x128xf32>
    %338 = vector.broadcast %329 : vector<64x1xf32> to vector<64x128xf32>
    %339 = arith.addf %337, %338 : vector<64x128xf32>
    %cst_231 = arith.constant 0.000000e+00 : f32
    %340 = vector.broadcast %cst_231 : f32 to vector<64x128xf32>
    %341 = arith.maximumf %339, %340 : vector<64x128xf32>
    %c17 = arith.constant 17 : index
    %c0_232 = arith.constant 0 : index
    %c0_233 = arith.constant 0 : index
    %342 = vector.load %arg2[%c17, %c0_232, %c0_233] : memref<18x64x64xbf16, #tpu.memory_space<vmem>>, vector<1x64x64xbf16>
    %343 = vector.shape_cast %342 : vector<1x64x64xbf16> to vector<64x64xbf16>
    %c17_234 = arith.constant 17 : index
    %c0_235 = arith.constant 0 : index
    %c0_236 = arith.constant 0 : index
    %344 = vector.load %arg3[%c17_234, %c0_235, %c0_236] : memref<18x64x64xbf16, #tpu.memory_space<vmem>>, vector<1x64x64xbf16>
    %345 = vector.shape_cast %344 : vector<1x64x64xbf16> to vector<64x64xbf16>
    %c17_237 = arith.constant 17 : index
    %c0_238 = arith.constant 0 : index
    %c0_239 = arith.constant 0 : index
    %346 = vector.load %arg4[%c17_237, %c0_238, %c0_239] : memref<18x64x1xf32, #tpu.memory_space<vmem>>, vector<1x64x1xf32>
    %347 = vector.shape_cast %346 : vector<1x64x1xf32> to vector<64x1xf32>
    %c4_i32_240 = arith.constant 4 : i32
    %348 = tpu.dynamic_rotate %341 by %c4_i32_240 dim 1 : vector<64x128xf32>, i32 -> vector<64x128xf32>
    %349 = vector.broadcast %305 : vector<1x128xf32> to vector<64x128xf32>
    %350 = arith.mulf %348, %349 : vector<64x128xf32>
    %351 = arith.truncf %341 : vector<64x128xf32> to vector<64x128xbf16>
    %cst_241 = arith.constant dense<0.000000e+00> : vector<64x128xf32>
    %352 = tpu.matmul %343, %351, %cst_241 {dimension_numbers = #tpu.dot_dimension_numbers<[1], [0], [0], [1], [0, 0, 1, 1], [], []>} : vector<64x64xbf16>, vector<64x128xbf16>, vector<64x128xf32> -> vector<64x128xf32>
    %353 = arith.truncf %350 : vector<64x128xf32> to vector<64x128xbf16>
    %cst_242 = arith.constant dense<0.000000e+00> : vector<64x128xf32>
    %354 = tpu.matmul %345, %353, %cst_242 {dimension_numbers = #tpu.dot_dimension_numbers<[1], [0], [0], [1], [0, 0, 1, 1], [], []>} : vector<64x64xbf16>, vector<64x128xbf16>, vector<64x128xf32> -> vector<64x128xf32>
    %355 = arith.addf %352, %354 : vector<64x128xf32>
    %356 = vector.broadcast %347 : vector<64x1xf32> to vector<64x128xf32>
    %357 = arith.addf %355, %356 : vector<64x128xf32>
    %cst_243 = arith.constant 0.000000e+00 : f32
    %358 = vector.broadcast %cst_243 : f32 to vector<64x128xf32>
    %359 = arith.maximumf %357, %358 : vector<64x128xf32>
    %360 = arith.addf %359, %303 : vector<64x128xf32>
    %cst_244 = arith.constant 0.000000e+00 : f32
    %361 = vector.broadcast %cst_244 : f32 to vector<64x128xf32>
    %362 = arith.maximumf %360, %361 : vector<64x128xf32>
    %c0_245 = arith.constant 0 : index
    %c0_246 = arith.constant 0 : index
    %c0_247 = arith.constant 0 : index
    %363 = vector.load %arg1[%c0_245, %c0_246, %c0_247] : memref<3x1x128xf32, #tpu.memory_space<vmem>>, vector<1x1x128xf32>
    %364 = vector.shape_cast %363 : vector<1x1x128xf32> to vector<1x128xf32>
    %c9_248 = arith.constant 9 : index
    %c0_249 = arith.constant 0 : index
    %c0_250 = arith.constant 0 : index
    %365 = vector.load %arg2[%c9_248, %c0_249, %c0_250] : memref<18x64x64xbf16, #tpu.memory_space<vmem>>, vector<1x64x64xbf16>
    %366 = vector.shape_cast %365 : vector<1x64x64xbf16> to vector<64x64xbf16>
    %c9_251 = arith.constant 9 : index
    %c0_252 = arith.constant 0 : index
    %c0_253 = arith.constant 0 : index
    %367 = vector.load %arg3[%c9_251, %c0_252, %c0_253] : memref<18x64x64xbf16, #tpu.memory_space<vmem>>, vector<1x64x64xbf16>
    %368 = vector.shape_cast %367 : vector<1x64x64xbf16> to vector<64x64xbf16>
    %c9_254 = arith.constant 9 : index
    %c0_255 = arith.constant 0 : index
    %c0_256 = arith.constant 0 : index
    %369 = vector.load %arg4[%c9_254, %c0_255, %c0_256] : memref<18x64x1xf32, #tpu.memory_space<vmem>>, vector<1x64x1xf32>
    %370 = vector.shape_cast %369 : vector<1x64x1xf32> to vector<64x1xf32>
    %c1_i32_257 = arith.constant 1 : i32
    %371 = tpu.dynamic_rotate %362 by %c1_i32_257 dim 1 : vector<64x128xf32>, i32 -> vector<64x128xf32>
    %372 = vector.broadcast %364 : vector<1x128xf32> to vector<64x128xf32>
    %373 = arith.mulf %371, %372 : vector<64x128xf32>
    %374 = arith.truncf %362 : vector<64x128xf32> to vector<64x128xbf16>
    %cst_258 = arith.constant dense<0.000000e+00> : vector<64x128xf32>
    %375 = tpu.matmul %366, %374, %cst_258 {dimension_numbers = #tpu.dot_dimension_numbers<[1], [0], [0], [1], [0, 0, 1, 1], [], []>} : vector<64x64xbf16>, vector<64x128xbf16>, vector<64x128xf32> -> vector<64x128xf32>
    %376 = arith.truncf %373 : vector<64x128xf32> to vector<64x128xbf16>
    %cst_259 = arith.constant dense<0.000000e+00> : vector<64x128xf32>
    %377 = tpu.matmul %368, %376, %cst_259 {dimension_numbers = #tpu.dot_dimension_numbers<[1], [0], [0], [1], [0, 0, 1, 1], [], []>} : vector<64x64xbf16>, vector<64x128xbf16>, vector<64x128xf32> -> vector<64x128xf32>
    %378 = arith.addf %375, %377 : vector<64x128xf32>
    %379 = vector.broadcast %370 : vector<64x1xf32> to vector<64x128xf32>
    %380 = arith.addf %378, %379 : vector<64x128xf32>
    %cst_260 = arith.constant 0.000000e+00 : f32
    %381 = vector.broadcast %cst_260 : f32 to vector<64x128xf32>
    %382 = arith.maximumf %380, %381 : vector<64x128xf32>
    %c10_261 = arith.constant 10 : index
    %c0_262 = arith.constant 0 : index
    %c0_263 = arith.constant 0 : index
    %383 = vector.load %arg2[%c10_261, %c0_262, %c0_263] : memref<18x64x64xbf16, #tpu.memory_space<vmem>>, vector<1x64x64xbf16>
    %384 = vector.shape_cast %383 : vector<1x64x64xbf16> to vector<64x64xbf16>
    %c10_264 = arith.constant 10 : index
    %c0_265 = arith.constant 0 : index
    %c0_266 = arith.constant 0 : index
    %385 = vector.load %arg3[%c10_264, %c0_265, %c0_266] : memref<18x64x64xbf16, #tpu.memory_space<vmem>>, vector<1x64x64xbf16>
    %386 = vector.shape_cast %385 : vector<1x64x64xbf16> to vector<64x64xbf16>
    %c10_267 = arith.constant 10 : index
    %c0_268 = arith.constant 0 : index
    %c0_269 = arith.constant 0 : index
    %387 = vector.load %arg4[%c10_267, %c0_268, %c0_269] : memref<18x64x1xf32, #tpu.memory_space<vmem>>, vector<1x64x1xf32>
    %388 = vector.shape_cast %387 : vector<1x64x1xf32> to vector<64x1xf32>
    %c1_i32_270 = arith.constant 1 : i32
    %389 = tpu.dynamic_rotate %382 by %c1_i32_270 dim 1 : vector<64x128xf32>, i32 -> vector<64x128xf32>
    %390 = vector.broadcast %364 : vector<1x128xf32> to vector<64x128xf32>
    %391 = arith.mulf %389, %390 : vector<64x128xf32>
    %392 = arith.truncf %382 : vector<64x128xf32> to vector<64x128xbf16>
    %cst_271 = arith.constant dense<0.000000e+00> : vector<64x128xf32>
    %393 = tpu.matmul %384, %392, %cst_271 {dimension_numbers = #tpu.dot_dimension_numbers<[1], [0], [0], [1], [0, 0, 1, 1], [], []>} : vector<64x64xbf16>, vector<64x128xbf16>, vector<64x128xf32> -> vector<64x128xf32>
    %394 = arith.truncf %391 : vector<64x128xf32> to vector<64x128xbf16>
    %cst_272 = arith.constant dense<0.000000e+00> : vector<64x128xf32>
    %395 = tpu.matmul %386, %394, %cst_272 {dimension_numbers = #tpu.dot_dimension_numbers<[1], [0], [0], [1], [0, 0, 1, 1], [], []>} : vector<64x64xbf16>, vector<64x128xbf16>, vector<64x128xf32> -> vector<64x128xf32>
    %396 = arith.addf %393, %395 : vector<64x128xf32>
    %397 = vector.broadcast %388 : vector<64x1xf32> to vector<64x128xf32>
    %398 = arith.addf %396, %397 : vector<64x128xf32>
    %cst_273 = arith.constant 0.000000e+00 : f32
    %399 = vector.broadcast %cst_273 : f32 to vector<64x128xf32>
    %400 = arith.maximumf %398, %399 : vector<64x128xf32>
    %c11_274 = arith.constant 11 : index
    %c0_275 = arith.constant 0 : index
    %c0_276 = arith.constant 0 : index
    %401 = vector.load %arg2[%c11_274, %c0_275, %c0_276] : memref<18x64x64xbf16, #tpu.memory_space<vmem>>, vector<1x64x64xbf16>
    %402 = vector.shape_cast %401 : vector<1x64x64xbf16> to vector<64x64xbf16>
    %c11_277 = arith.constant 11 : index
    %c0_278 = arith.constant 0 : index
    %c0_279 = arith.constant 0 : index
    %403 = vector.load %arg3[%c11_277, %c0_278, %c0_279] : memref<18x64x64xbf16, #tpu.memory_space<vmem>>, vector<1x64x64xbf16>
    %404 = vector.shape_cast %403 : vector<1x64x64xbf16> to vector<64x64xbf16>
    %c11_280 = arith.constant 11 : index
    %c0_281 = arith.constant 0 : index
    %c0_282 = arith.constant 0 : index
    %405 = vector.load %arg4[%c11_280, %c0_281, %c0_282] : memref<18x64x1xf32, #tpu.memory_space<vmem>>, vector<1x64x1xf32>
    %406 = vector.shape_cast %405 : vector<1x64x1xf32> to vector<64x1xf32>
    %c1_i32_283 = arith.constant 1 : i32
    %407 = tpu.dynamic_rotate %400 by %c1_i32_283 dim 1 : vector<64x128xf32>, i32 -> vector<64x128xf32>
    %408 = vector.broadcast %364 : vector<1x128xf32> to vector<64x128xf32>
    %409 = arith.mulf %407, %408 : vector<64x128xf32>
    %410 = arith.truncf %400 : vector<64x128xf32> to vector<64x128xbf16>
    %cst_284 = arith.constant dense<0.000000e+00> : vector<64x128xf32>
    %411 = tpu.matmul %402, %410, %cst_284 {dimension_numbers = #tpu.dot_dimension_numbers<[1], [0], [0], [1], [0, 0, 1, 1], [], []>} : vector<64x64xbf16>, vector<64x128xbf16>, vector<64x128xf32> -> vector<64x128xf32>
    %412 = arith.truncf %409 : vector<64x128xf32> to vector<64x128xbf16>
    %cst_285 = arith.constant dense<0.000000e+00> : vector<64x128xf32>
    %413 = tpu.matmul %404, %412, %cst_285 {dimension_numbers = #tpu.dot_dimension_numbers<[1], [0], [0], [1], [0, 0, 1, 1], [], []>} : vector<64x64xbf16>, vector<64x128xbf16>, vector<64x128xf32> -> vector<64x128xf32>
    %414 = arith.addf %411, %413 : vector<64x128xf32>
    %415 = vector.broadcast %406 : vector<64x1xf32> to vector<64x128xf32>
    %416 = arith.addf %414, %415 : vector<64x128xf32>
    %cst_286 = arith.constant 0.000000e+00 : f32
    %417 = vector.broadcast %cst_286 : f32 to vector<64x128xf32>
    %418 = arith.maximumf %416, %417 : vector<64x128xf32>
    %419 = arith.addf %418, %362 : vector<64x128xf32>
    %cst_287 = arith.constant 0.000000e+00 : f32
    %420 = vector.broadcast %cst_287 : f32 to vector<64x128xf32>
    %421 = arith.maximumf %419, %420 : vector<64x128xf32>
    %c1_288 = arith.constant 1 : index
    %c0_289 = arith.constant 0 : index
    %c0_290 = arith.constant 0 : index
    %422 = vector.load %arg1[%c1_288, %c0_289, %c0_290] : memref<3x1x128xf32, #tpu.memory_space<vmem>>, vector<1x1x128xf32>
    %423 = vector.shape_cast %422 : vector<1x1x128xf32> to vector<1x128xf32>
    %c12_291 = arith.constant 12 : index
    %c0_292 = arith.constant 0 : index
    %c0_293 = arith.constant 0 : index
    %424 = vector.load %arg2[%c12_291, %c0_292, %c0_293] : memref<18x64x64xbf16, #tpu.memory_space<vmem>>, vector<1x64x64xbf16>
    %425 = vector.shape_cast %424 : vector<1x64x64xbf16> to vector<64x64xbf16>
    %c12_294 = arith.constant 12 : index
    %c0_295 = arith.constant 0 : index
    %c0_296 = arith.constant 0 : index
    %426 = vector.load %arg3[%c12_294, %c0_295, %c0_296] : memref<18x64x64xbf16, #tpu.memory_space<vmem>>, vector<1x64x64xbf16>
    %427 = vector.shape_cast %426 : vector<1x64x64xbf16> to vector<64x64xbf16>
    %c12_297 = arith.constant 12 : index
    %c0_298 = arith.constant 0 : index
    %c0_299 = arith.constant 0 : index
    %428 = vector.load %arg4[%c12_297, %c0_298, %c0_299] : memref<18x64x1xf32, #tpu.memory_space<vmem>>, vector<1x64x1xf32>
    %429 = vector.shape_cast %428 : vector<1x64x1xf32> to vector<64x1xf32>
    %c2_i32_300 = arith.constant 2 : i32
    %430 = tpu.dynamic_rotate %421 by %c2_i32_300 dim 1 : vector<64x128xf32>, i32 -> vector<64x128xf32>
    %431 = vector.broadcast %423 : vector<1x128xf32> to vector<64x128xf32>
    %432 = arith.mulf %430, %431 : vector<64x128xf32>
    %433 = arith.truncf %421 : vector<64x128xf32> to vector<64x128xbf16>
    %cst_301 = arith.constant dense<0.000000e+00> : vector<64x128xf32>
    %434 = tpu.matmul %425, %433, %cst_301 {dimension_numbers = #tpu.dot_dimension_numbers<[1], [0], [0], [1], [0, 0, 1, 1], [], []>} : vector<64x64xbf16>, vector<64x128xbf16>, vector<64x128xf32> -> vector<64x128xf32>
    %435 = arith.truncf %432 : vector<64x128xf32> to vector<64x128xbf16>
    %cst_302 = arith.constant dense<0.000000e+00> : vector<64x128xf32>
    %436 = tpu.matmul %427, %435, %cst_302 {dimension_numbers = #tpu.dot_dimension_numbers<[1], [0], [0], [1], [0, 0, 1, 1], [], []>} : vector<64x64xbf16>, vector<64x128xbf16>, vector<64x128xf32> -> vector<64x128xf32>
    %437 = arith.addf %434, %436 : vector<64x128xf32>
    %438 = vector.broadcast %429 : vector<64x1xf32> to vector<64x128xf32>
    %439 = arith.addf %437, %438 : vector<64x128xf32>
    %cst_303 = arith.constant 0.000000e+00 : f32
    %440 = vector.broadcast %cst_303 : f32 to vector<64x128xf32>
    %441 = arith.maximumf %439, %440 : vector<64x128xf32>
    %c13_304 = arith.constant 13 : index
    %c0_305 = arith.constant 0 : index
    %c0_306 = arith.constant 0 : index
    %442 = vector.load %arg2[%c13_304, %c0_305, %c0_306] : memref<18x64x64xbf16, #tpu.memory_space<vmem>>, vector<1x64x64xbf16>
    %443 = vector.shape_cast %442 : vector<1x64x64xbf16> to vector<64x64xbf16>
    %c13_307 = arith.constant 13 : index
    %c0_308 = arith.constant 0 : index
    %c0_309 = arith.constant 0 : index
    %444 = vector.load %arg3[%c13_307, %c0_308, %c0_309] : memref<18x64x64xbf16, #tpu.memory_space<vmem>>, vector<1x64x64xbf16>
    %445 = vector.shape_cast %444 : vector<1x64x64xbf16> to vector<64x64xbf16>
    %c13_310 = arith.constant 13 : index
    %c0_311 = arith.constant 0 : index
    %c0_312 = arith.constant 0 : index
    %446 = vector.load %arg4[%c13_310, %c0_311, %c0_312] : memref<18x64x1xf32, #tpu.memory_space<vmem>>, vector<1x64x1xf32>
    %447 = vector.shape_cast %446 : vector<1x64x1xf32> to vector<64x1xf32>
    %c2_i32_313 = arith.constant 2 : i32
    %448 = tpu.dynamic_rotate %441 by %c2_i32_313 dim 1 : vector<64x128xf32>, i32 -> vector<64x128xf32>
    %449 = vector.broadcast %423 : vector<1x128xf32> to vector<64x128xf32>
    %450 = arith.mulf %448, %449 : vector<64x128xf32>
    %451 = arith.truncf %441 : vector<64x128xf32> to vector<64x128xbf16>
    %cst_314 = arith.constant dense<0.000000e+00> : vector<64x128xf32>
    %452 = tpu.matmul %443, %451, %cst_314 {dimension_numbers = #tpu.dot_dimension_numbers<[1], [0], [0], [1], [0, 0, 1, 1], [], []>} : vector<64x64xbf16>, vector<64x128xbf16>, vector<64x128xf32> -> vector<64x128xf32>
    %453 = arith.truncf %450 : vector<64x128xf32> to vector<64x128xbf16>
    %cst_315 = arith.constant dense<0.000000e+00> : vector<64x128xf32>
    %454 = tpu.matmul %445, %453, %cst_315 {dimension_numbers = #tpu.dot_dimension_numbers<[1], [0], [0], [1], [0, 0, 1, 1], [], []>} : vector<64x64xbf16>, vector<64x128xbf16>, vector<64x128xf32> -> vector<64x128xf32>
    %455 = arith.addf %452, %454 : vector<64x128xf32>
    %456 = vector.broadcast %447 : vector<64x1xf32> to vector<64x128xf32>
    %457 = arith.addf %455, %456 : vector<64x128xf32>
    %cst_316 = arith.constant 0.000000e+00 : f32
    %458 = vector.broadcast %cst_316 : f32 to vector<64x128xf32>
    %459 = arith.maximumf %457, %458 : vector<64x128xf32>
    %c14_317 = arith.constant 14 : index
    %c0_318 = arith.constant 0 : index
    %c0_319 = arith.constant 0 : index
    %460 = vector.load %arg2[%c14_317, %c0_318, %c0_319] : memref<18x64x64xbf16, #tpu.memory_space<vmem>>, vector<1x64x64xbf16>
    %461 = vector.shape_cast %460 : vector<1x64x64xbf16> to vector<64x64xbf16>
    %c14_320 = arith.constant 14 : index
    %c0_321 = arith.constant 0 : index
    %c0_322 = arith.constant 0 : index
    %462 = vector.load %arg3[%c14_320, %c0_321, %c0_322] : memref<18x64x64xbf16, #tpu.memory_space<vmem>>, vector<1x64x64xbf16>
    %463 = vector.shape_cast %462 : vector<1x64x64xbf16> to vector<64x64xbf16>
    %c14_323 = arith.constant 14 : index
    %c0_324 = arith.constant 0 : index
    %c0_325 = arith.constant 0 : index
    %464 = vector.load %arg4[%c14_323, %c0_324, %c0_325] : memref<18x64x1xf32, #tpu.memory_space<vmem>>, vector<1x64x1xf32>
    %465 = vector.shape_cast %464 : vector<1x64x1xf32> to vector<64x1xf32>
    %c2_i32_326 = arith.constant 2 : i32
    %466 = tpu.dynamic_rotate %459 by %c2_i32_326 dim 1 : vector<64x128xf32>, i32 -> vector<64x128xf32>
    %467 = vector.broadcast %423 : vector<1x128xf32> to vector<64x128xf32>
    %468 = arith.mulf %466, %467 : vector<64x128xf32>
    %469 = arith.truncf %459 : vector<64x128xf32> to vector<64x128xbf16>
    %cst_327 = arith.constant dense<0.000000e+00> : vector<64x128xf32>
    %470 = tpu.matmul %461, %469, %cst_327 {dimension_numbers = #tpu.dot_dimension_numbers<[1], [0], [0], [1], [0, 0, 1, 1], [], []>} : vector<64x64xbf16>, vector<64x128xbf16>, vector<64x128xf32> -> vector<64x128xf32>
    %471 = arith.truncf %468 : vector<64x128xf32> to vector<64x128xbf16>
    %cst_328 = arith.constant dense<0.000000e+00> : vector<64x128xf32>
    %472 = tpu.matmul %463, %471, %cst_328 {dimension_numbers = #tpu.dot_dimension_numbers<[1], [0], [0], [1], [0, 0, 1, 1], [], []>} : vector<64x64xbf16>, vector<64x128xbf16>, vector<64x128xf32> -> vector<64x128xf32>
    %473 = arith.addf %470, %472 : vector<64x128xf32>
    %474 = vector.broadcast %465 : vector<64x1xf32> to vector<64x128xf32>
    %475 = arith.addf %473, %474 : vector<64x128xf32>
    %cst_329 = arith.constant 0.000000e+00 : f32
    %476 = vector.broadcast %cst_329 : f32 to vector<64x128xf32>
    %477 = arith.maximumf %475, %476 : vector<64x128xf32>
    %478 = arith.addf %477, %421 : vector<64x128xf32>
    %cst_330 = arith.constant 0.000000e+00 : f32
    %479 = vector.broadcast %cst_330 : f32 to vector<64x128xf32>
    %480 = arith.maximumf %478, %479 : vector<64x128xf32>
    %c2_331 = arith.constant 2 : index
    %c0_332 = arith.constant 0 : index
    %c0_333 = arith.constant 0 : index
    %481 = vector.load %arg1[%c2_331, %c0_332, %c0_333] : memref<3x1x128xf32, #tpu.memory_space<vmem>>, vector<1x1x128xf32>
    %482 = vector.shape_cast %481 : vector<1x1x128xf32> to vector<1x128xf32>
    %c15_334 = arith.constant 15 : index
    %c0_335 = arith.constant 0 : index
    %c0_336 = arith.constant 0 : index
    %483 = vector.load %arg2[%c15_334, %c0_335, %c0_336] : memref<18x64x64xbf16, #tpu.memory_space<vmem>>, vector<1x64x64xbf16>
    %484 = vector.shape_cast %483 : vector<1x64x64xbf16> to vector<64x64xbf16>
    %c15_337 = arith.constant 15 : index
    %c0_338 = arith.constant 0 : index
    %c0_339 = arith.constant 0 : index
    %485 = vector.load %arg3[%c15_337, %c0_338, %c0_339] : memref<18x64x64xbf16, #tpu.memory_space<vmem>>, vector<1x64x64xbf16>
    %486 = vector.shape_cast %485 : vector<1x64x64xbf16> to vector<64x64xbf16>
    %c15_340 = arith.constant 15 : index
    %c0_341 = arith.constant 0 : index
    %c0_342 = arith.constant 0 : index
    %487 = vector.load %arg4[%c15_340, %c0_341, %c0_342] : memref<18x64x1xf32, #tpu.memory_space<vmem>>, vector<1x64x1xf32>
    %488 = vector.shape_cast %487 : vector<1x64x1xf32> to vector<64x1xf32>
    %c4_i32_343 = arith.constant 4 : i32
    %489 = tpu.dynamic_rotate %480 by %c4_i32_343 dim 1 : vector<64x128xf32>, i32 -> vector<64x128xf32>
    %490 = vector.broadcast %482 : vector<1x128xf32> to vector<64x128xf32>
    %491 = arith.mulf %489, %490 : vector<64x128xf32>
    %492 = arith.truncf %480 : vector<64x128xf32> to vector<64x128xbf16>
    %cst_344 = arith.constant dense<0.000000e+00> : vector<64x128xf32>
    %493 = tpu.matmul %484, %492, %cst_344 {dimension_numbers = #tpu.dot_dimension_numbers<[1], [0], [0], [1], [0, 0, 1, 1], [], []>} : vector<64x64xbf16>, vector<64x128xbf16>, vector<64x128xf32> -> vector<64x128xf32>
    %494 = arith.truncf %491 : vector<64x128xf32> to vector<64x128xbf16>
    %cst_345 = arith.constant dense<0.000000e+00> : vector<64x128xf32>
    %495 = tpu.matmul %486, %494, %cst_345 {dimension_numbers = #tpu.dot_dimension_numbers<[1], [0], [0], [1], [0, 0, 1, 1], [], []>} : vector<64x64xbf16>, vector<64x128xbf16>, vector<64x128xf32> -> vector<64x128xf32>
    %496 = arith.addf %493, %495 : vector<64x128xf32>
    %497 = vector.broadcast %488 : vector<64x1xf32> to vector<64x128xf32>
    %498 = arith.addf %496, %497 : vector<64x128xf32>
    %cst_346 = arith.constant 0.000000e+00 : f32
    %499 = vector.broadcast %cst_346 : f32 to vector<64x128xf32>
    %500 = arith.maximumf %498, %499 : vector<64x128xf32>
    %c16_347 = arith.constant 16 : index
    %c0_348 = arith.constant 0 : index
    %c0_349 = arith.constant 0 : index
    %501 = vector.load %arg2[%c16_347, %c0_348, %c0_349] : memref<18x64x64xbf16, #tpu.memory_space<vmem>>, vector<1x64x64xbf16>
    %502 = vector.shape_cast %501 : vector<1x64x64xbf16> to vector<64x64xbf16>
    %c16_350 = arith.constant 16 : index
    %c0_351 = arith.constant 0 : index
    %c0_352 = arith.constant 0 : index
    %503 = vector.load %arg3[%c16_350, %c0_351, %c0_352] : memref<18x64x64xbf16, #tpu.memory_space<vmem>>, vector<1x64x64xbf16>
    %504 = vector.shape_cast %503 : vector<1x64x64xbf16> to vector<64x64xbf16>
    %c16_353 = arith.constant 16 : index
    %c0_354 = arith.constant 0 : index
    %c0_355 = arith.constant 0 : index
    %505 = vector.load %arg4[%c16_353, %c0_354, %c0_355] : memref<18x64x1xf32, #tpu.memory_space<vmem>>, vector<1x64x1xf32>
    %506 = vector.shape_cast %505 : vector<1x64x1xf32> to vector<64x1xf32>
    %c4_i32_356 = arith.constant 4 : i32
    %507 = tpu.dynamic_rotate %500 by %c4_i32_356 dim 1 : vector<64x128xf32>, i32 -> vector<64x128xf32>
    %508 = vector.broadcast %482 : vector<1x128xf32> to vector<64x128xf32>
    %509 = arith.mulf %507, %508 : vector<64x128xf32>
    %510 = arith.truncf %500 : vector<64x128xf32> to vector<64x128xbf16>
    %cst_357 = arith.constant dense<0.000000e+00> : vector<64x128xf32>
    %511 = tpu.matmul %502, %510, %cst_357 {dimension_numbers = #tpu.dot_dimension_numbers<[1], [0], [0], [1], [0, 0, 1, 1], [], []>} : vector<64x64xbf16>, vector<64x128xbf16>, vector<64x128xf32> -> vector<64x128xf32>
    %512 = arith.truncf %509 : vector<64x128xf32> to vector<64x128xbf16>
    %cst_358 = arith.constant dense<0.000000e+00> : vector<64x128xf32>
    %513 = tpu.matmul %504, %512, %cst_358 {dimension_numbers = #tpu.dot_dimension_numbers<[1], [0], [0], [1], [0, 0, 1, 1], [], []>} : vector<64x64xbf16>, vector<64x128xbf16>, vector<64x128xf32> -> vector<64x128xf32>
    %514 = arith.addf %511, %513 : vector<64x128xf32>
    %515 = vector.broadcast %506 : vector<64x1xf32> to vector<64x128xf32>
    %516 = arith.addf %514, %515 : vector<64x128xf32>
    %cst_359 = arith.constant 0.000000e+00 : f32
    %517 = vector.broadcast %cst_359 : f32 to vector<64x128xf32>
    %518 = arith.maximumf %516, %517 : vector<64x128xf32>
    %c17_360 = arith.constant 17 : index
    %c0_361 = arith.constant 0 : index
    %c0_362 = arith.constant 0 : index
    %519 = vector.load %arg2[%c17_360, %c0_361, %c0_362] : memref<18x64x64xbf16, #tpu.memory_space<vmem>>, vector<1x64x64xbf16>
    %520 = vector.shape_cast %519 : vector<1x64x64xbf16> to vector<64x64xbf16>
    %c17_363 = arith.constant 17 : index
    %c0_364 = arith.constant 0 : index
    %c0_365 = arith.constant 0 : index
    %521 = vector.load %arg3[%c17_363, %c0_364, %c0_365] : memref<18x64x64xbf16, #tpu.memory_space<vmem>>, vector<1x64x64xbf16>
    %522 = vector.shape_cast %521 : vector<1x64x64xbf16> to vector<64x64xbf16>
    %c17_366 = arith.constant 17 : index
    %c0_367 = arith.constant 0 : index
    %c0_368 = arith.constant 0 : index
    %523 = vector.load %arg4[%c17_366, %c0_367, %c0_368] : memref<18x64x1xf32, #tpu.memory_space<vmem>>, vector<1x64x1xf32>
    %524 = vector.shape_cast %523 : vector<1x64x1xf32> to vector<64x1xf32>
    %c4_i32_369 = arith.constant 4 : i32
    %525 = tpu.dynamic_rotate %518 by %c4_i32_369 dim 1 : vector<64x128xf32>, i32 -> vector<64x128xf32>
    %526 = vector.broadcast %482 : vector<1x128xf32> to vector<64x128xf32>
    %527 = arith.mulf %525, %526 : vector<64x128xf32>
    %528 = arith.truncf %518 : vector<64x128xf32> to vector<64x128xbf16>
    %cst_370 = arith.constant dense<0.000000e+00> : vector<64x128xf32>
    %529 = tpu.matmul %520, %528, %cst_370 {dimension_numbers = #tpu.dot_dimension_numbers<[1], [0], [0], [1], [0, 0, 1, 1], [], []>} : vector<64x64xbf16>, vector<64x128xbf16>, vector<64x128xf32> -> vector<64x128xf32>
    %530 = arith.truncf %527 : vector<64x128xf32> to vector<64x128xbf16>
    %cst_371 = arith.constant dense<0.000000e+00> : vector<64x128xf32>
    %531 = tpu.matmul %522, %530, %cst_371 {dimension_numbers = #tpu.dot_dimension_numbers<[1], [0], [0], [1], [0, 0, 1, 1], [], []>} : vector<64x64xbf16>, vector<64x128xbf16>, vector<64x128xf32> -> vector<64x128xf32>
    %532 = arith.addf %529, %531 : vector<64x128xf32>
    %533 = vector.broadcast %524 : vector<64x1xf32> to vector<64x128xf32>
    %534 = arith.addf %532, %533 : vector<64x128xf32>
    %cst_372 = arith.constant 0.000000e+00 : f32
    %535 = vector.broadcast %cst_372 : f32 to vector<64x128xf32>
    %536 = arith.maximumf %534, %535 : vector<64x128xf32>
    %537 = arith.addf %536, %480 : vector<64x128xf32>
    %cst_373 = arith.constant 0.000000e+00 : f32
    %538 = vector.broadcast %cst_373 : f32 to vector<64x128xf32>
    %539 = arith.maximumf %537, %538 : vector<64x128xf32>
    %c0_374 = arith.constant 0 : index
    %c0_375 = arith.constant 0 : index
    %540 = vector.load %arg7[%c0_374, %c0_375] : memref<64x128xf32, #tpu.memory_space<vmem>>, vector<64x128xf32>
    %541 = arith.mulf %539, %540 : vector<64x128xf32>
    %cst_376 = arith.constant dense<0.000000e+00> : vector<128xf32>
    %542 = vector.multi_reduction <add>, %541, %cst_376 [0] : vector<64x128xf32> to vector<128xf32>
    %543 = vector.shape_cast %542 : vector<128xf32> to vector<1x128xf32>
    %c0_377 = arith.constant 0 : index
    %c0_378 = arith.constant 0 : index
    %544 = vector.load %arg8[%c0_377, %c0_378] : memref<128x2xf32, #tpu.memory_space<vmem>>, vector<128x2xf32>
    %cst_379 = arith.constant dense<0.000000e+00> : vector<1x2xf32>
    %545 = tpu.matmul %543, %544, %cst_379 {dimension_numbers = #tpu.dot_dimension_numbers<[1], [0], [0], [1], [0, 0, 1, 1], [], []>} : vector<1x128xf32>, vector<128x2xf32>, vector<1x2xf32> -> vector<1x2xf32>
    %c0_380 = arith.constant 0 : index
    %c0_381 = arith.constant 0 : index
    %546 = memref.load %arg9[%c0_380, %c0_381] : memref<1x1xf32, #tpu.memory_space<smem>>
    %547 = vector.broadcast %546 : f32 to vector<1x2xf32>
    %548 = arith.addf %545, %547 : vector<1x2xf32>
    %cst_382 = arith.constant 0.000000e+00 : f32
    %549 = vector.broadcast %cst_382 : f32 to vector<1x2xf32>
    %550 = arith.subf %549, %548 : vector<1x2xf32>
    %551 = math.exp %550 : vector<1x2xf32>
    %cst_383 = arith.constant 1.000000e+00 : f32
    %552 = vector.broadcast %cst_383 : f32 to vector<1x2xf32>
    %553 = arith.addf %552, %551 : vector<1x2xf32>
    %cst_384 = arith.constant 1.000000e+00 : f32
    %554 = vector.broadcast %cst_384 : f32 to vector<1x2xf32>
    %555 = arith.divf %554, %553 : vector<1x2xf32>
    %c0_385 = arith.constant 0 : index
    %c0_386 = arith.constant 0 : index
    %556 = vector.load %arg10[%c0_385, %c0_386] : memref<1x2xf32, #tpu.memory_space<vmem>>, vector<1x2xf32>
    tpu.vector_store %arg10[%c0_385, %c0_386], %555 {strides = array<i32>} : memref<1x2xf32, #tpu.memory_space<vmem>>, vector<1x2xf32>,
    return
  }
}

</mosaic_0001>

<llo_original>
// kernel: forward.1
$region0: #{forward.1}
  #allocation0 [shape = 'u32[]', space=smem, size = 0x4, offset = 0x4, fixed_abs, tag = 'smem constant byte address 0x4 - core index']
  #allocation1 [shape = 'u32[144,128]{1,0:T(1,128)}', space=vmem, size = 0x12000, scoped, tag = 'internal scratch']
  #allocation2 [shape = 'f32[1,1]{1,0:T(1,128)S(6)}', space=smem, size = 0x200, scoped, tag = 'scoped memory for forward.1']
  %s0 = inlined_call_operand.vmem [shape: f32[64,128], index: 0, kind: input, shape index: {}]
  %s1 = inlined_call_operand.vmem [shape: f32[3,1,128], index: 1, kind: input, shape index: {}]
  %s2 = inlined_call_operand.hbm [shape: bf16[18,64,64], index: 2, kind: input, shape index: {}]
  %s3 = inlined_call_operand.hbm [shape: bf16[18,64,64], index: 3, kind: input, shape index: {}]
  %s4 = inlined_call_operand.hbm [shape: f32[18,64,1], index: 4, kind: input, shape index: {}]
  %s5 = inlined_call_operand.hbm [shape: bf16[1,64,64], index: 5, kind: input, shape index: {}]
  %s6 = inlined_call_operand.hbm [shape: f32[1,64,1], index: 6, kind: input, shape index: {}]
  %s7 = inlined_call_operand.vmem [shape: f32[64,128], index: 7, kind: input, shape index: {}]
  %s8 = inlined_call_operand.hbm [shape: f32[128,2], index: 8, kind: input, shape index: {}]
  %s9 = inlined_call_operand.<no memory space> [shape: f32[1,1], index: 9, kind: input, shape index: {}]
  %s10 = inlined_call_operand.hbm [shape: f32[1,2], index: 10, kind: output, shape index: {}]
  %s11 = sld [smem:[#allocation0]]
  $region74: #{forward.1} parent=0
    _
  %s13 = ssub.s32 1, %s11
  %s14 = scalar_select 0, %s13, %s11
  %15 = sst [smem:[#allocation2]] %s9
  $region1: #{forward.1} parent=0
    #allocation3 [shape = 'u8[294912]{0}', space=vmem, size = 0x48000, scoped, tag = 'input window, operand 2, single buffered']
    #allocation4 [shape = 's32[1]{0}', space=sflag, size = 0x4, scoped, tag = 'scoped memory for forward.1']
    #allocation5 [shape = 's32[1]{0}', space=sflag, size = 0x4, scoped, tag = 'scoped memory for forward.1']
    #allocation6 [shape = 'u8[294912]{0}', space=vmem, size = 0x48000, scoped, tag = 'input window, operand 3, single buffered']
    #allocation7 [shape = 's32[1]{0}', space=sflag, size = 0x4, scoped, tag = 'scoped memory for forward.1']
    #allocation8 [shape = 'u8[589824]{0}', space=vmem, size = 0x90000, scoped, tag = 'input window, operand 4, single buffered']
    #allocation9 [shape = 'u8[16384]{0}', space=vmem, size = 0x4000, scoped, tag = 'input window, operand 5, single buffered']
    #allocation10 [shape = 's32[1]{0}', space=sflag, size = 0x4, scoped, tag = 'scoped memory for forward.1']
    #allocation11 [shape = 'u8[32768]{0}', space=vmem, size = 0x8000, scoped, tag = 'input window, operand 6, single buffered']
    #allocation12 [shape = 'u8[65536]{0}', space=vmem, size = 0x10000, scoped, tag = 'input window, operand 8, single buffered']
    #allocation13 [shape = 's32[1]{0}', space=sflag, size = 0x4, scoped, tag = 'scoped memory for forward.1']
    #allocation14 [shape = 'u8[512]{0}', space=vmem, size = 0x400, scoped, tag = 'output window, operand 0, single buffered']
    %16 = vsyncpa [#allocation4], 0
    %17 = vsyncpa [#allocation7], 0
    %18 = vsyncpa [#allocation10], 0
    %19 = vsyncpa [#allocation13], 0
    %20 = vsyncpa [#allocation5], 0
    // Predicated region
    $region2: #{forward.1} parent=1 // pred_check
      _
    $region3: #{forward.1} parent=1 // pred_check_branch
      %22 = sbr.rel (0) target = $region5
    $region4: #{forward.1} parent=1 // pred_region
      _
    $region5: #{forward.1} parent=1 // pred_fallthru
      _
    // Predicated region
    $region6: #{forward.1} parent=1 // pred_check
      _
    $region7: #{forward.1} parent=1 // pred_check_branch
      %24 = sbr.rel (0) target = $region9
    $region8: #{forward.1} parent=1 // pred_region
      _
    $region9: #{forward.1} parent=1 // pred_fallthru
      _
    // Predicated region
    $region10: #{forward.1} parent=1 // pred_check
      _
    $region11: #{forward.1} parent=1 // pred_check_branch
      %26 = sbr.rel (0) target = $region13
    $region12: #{forward.1} parent=1 // pred_region
      %s28 = ssub.s32 9216, 9216
      %29 = vsyncadd [#allocation4], %s28
      %s30 = sshll.u32 [#allocation3], 4
      %s31 = int_to_ptr.vmem [resolvable:$true] %s30
      %36 = dma.hbm_to_vmem [thread:$0]  %s2, 9216, %s31, [#allocation4], 64, 64, 4
    $region13: #{forward.1} parent=1 // pred_fallthru
      _
    // Predicated region
    $region14: #{forward.1} parent=1 // pred_check
      _
    $region15: #{forward.1} parent=1 // pred_check_branch
      %38 = sbr.rel (0) target = $region17
    $region16: #{forward.1} parent=1 // pred_region
      %s40 = ssub.s32 9216, 9216
      %41 = vsyncadd [#allocation7], %s40
      %s42 = sshll.u32 [#allocation6], 4
      %s43 = int_to_ptr.vmem [resolvable:$true] %s42
      %48 = dma.hbm_to_vmem [thread:$0]  %s3, 9216, %s43, [#allocation7], 64, 64, 4
    $region17: #{forward.1} parent=1 // pred_fallthru
      _
    // Predicated region
    $region18: #{forward.1} parent=1 // pred_check
      _
    $region19: #{forward.1} parent=1 // pred_check_branch
      %50 = sbr.rel (0) target = $region21
    $region20: #{forward.1} parent=1 // pred_region
      %s52 = ssub.s32 18432, 18432
      %53 = vsyncadd [#allocation7], %s52
      %s54 = sshll.u32 [#allocation8], 4
      %s55 = int_to_ptr.vmem [resolvable:$true] %s54
      %60 = dma.hbm_to_vmem [thread:$0]  %s4, 18432, %s55, [#allocation7], 128, 128, 8
    $region21: #{forward.1} parent=1 // pred_fallthru
      _
    // Predicated region
    $region22: #{forward.1} parent=1 // pred_check
      _
    $region23: #{forward.1} parent=1 // pred_check_branch
      %62 = sbr.rel (0) target = $region25
    $region24: #{forward.1} parent=1 // pred_region
      %s64 = ssub.s32 512, 512
      %65 = vsyncadd [#allocation10], %s64
      %s66 = sshll.u32 [#allocation9], 4
      %s67 = int_to_ptr.vmem [resolvable:$true] %s66
      %72 = dma.hbm_to_vmem [thread:$0]  %s5, 512, %s67, [#allocation10], 64, 64, 4
    $region25: #{forward.1} parent=1 // pred_fallthru
      _
    // Predicated region
    $region26: #{forward.1} parent=1 // pred_check
      _
    $region27: #{forward.1} parent=1 // pred_check_branch
      %74 = sbr.rel (0) target = $region29
    $region28: #{forward.1} parent=1 // pred_region
      %s76 = ssub.s32 1024, 1024
      %77 = vsyncadd [#allocation10], %s76
      %s78 = sshll.u32 [#allocation11], 4
      %s79 = int_to_ptr.vmem [resolvable:$true] %s78
      %84 = dma.hbm_to_vmem [thread:$0]  %s6, 1024, %s79, [#allocation10], 128, 128, 8
    $region29: #{forward.1} parent=1 // pred_fallthru
      _
    // Predicated region
    $region30: #{forward.1} parent=1 // pred_check
      _
    $region31: #{forward.1} parent=1 // pred_check_branch
      %86 = sbr.rel (0) target = $region33
    $region32: #{forward.1} parent=1 // pred_region
      _
    $region33: #{forward.1} parent=1 // pred_fallthru
      _
    // Predicated region
    $region34: #{forward.1} parent=1 // pred_check
      _
    $region35: #{forward.1} parent=1 // pred_check_branch
      %88 = sbr.rel (0) target = $region37
    $region36: #{forward.1} parent=1 // pred_region
      %s90 = ssub.s32 2048, 2048
      %91 = vsyncadd [#allocation13], %s90
      %s92 = sshll.u32 [#allocation12], 4
      %s93 = int_to_ptr.vmem [resolvable:$true] %s92
      %98 = dma.hbm_to_vmem [thread:$0]  %s8, 2048, %s93, [#allocation13], 128, 128, 8
    $region37: #{forward.1} parent=1 // pred_fallthru
      _
    // Predicated region
    $region38: #{forward.1} parent=1 // pred_check
      _
    $region39: #{forward.1} parent=1 // pred_check_branch
      %100 = sbr.rel (0) target = $region41
    $region40: #{forward.1} parent=1 // pred_region
      _
    $region41: #{forward.1} parent=1 // pred_fallthru
      _
    // Predicated region
    $region42: #{forward.1} parent=1 // pred_check
      _
    $region43: #{forward.1} parent=1 // pred_check_branch
      %102 = sbr.rel (0) target = $region45
    $region44: #{forward.1} parent=1 // pred_region
      %103 = dma.done [#allocation4], 9216
    $region45: #{forward.1} parent=1 // pred_fallthru
      _
    // Predicated region
    $region46: #{forward.1} parent=1 // pred_check
      _
    $region47: #{forward.1} parent=1 // pred_check_branch
      %105 = sbr.rel (0) target = $region49
    $region48: #{forward.1} parent=1 // pred_region
      %106 = dma.done [#allocation7], 9216
    $region49: #{forward.1} parent=1 // pred_fallthru
      _
    // Predicated region
    $region50: #{forward.1} parent=1 // pred_check
      _
    $region51: #{forward.1} parent=1 // pred_check_branch
      %108 = sbr.rel (0) target = $region53
    $region52: #{forward.1} parent=1 // pred_region
      %109 = dma.done [#allocation7], 18432
    $region53: #{forward.1} parent=1 // pred_fallthru
      _
    // Predicated region
    $region54: #{forward.1} parent=1 // pred_check
      _
    $region55: #{forward.1} parent=1 // pred_check_branch
      %111 = sbr.rel (0) target = $region57
    $region56: #{forward.1} parent=1 // pred_region
      %112 = dma.done [#allocation10], 512
    $region57: #{forward.1} parent=1 // pred_fallthru
      _
    // Predicated region
    $region58: #{forward.1} parent=1 // pred_check
      _
    $region59: #{forward.1} parent=1 // pred_check_branch
      %114 = sbr.rel (0) target = $region61
    $region60: #{forward.1} parent=1 // pred_region
      %115 = dma.done [#allocation10], 1024
    $region61: #{forward.1} parent=1 // pred_fallthru
      _
    // Predicated region
    $region62: #{forward.1} parent=1 // pred_check
      _
    $region63: #{forward.1} parent=1 // pred_check_branch
      %117 = sbr.rel (0) target = $region65
    $region64: #{forward.1} parent=1 // pred_region
      %118 = dma.done [#allocation13], 2048
    $region65: #{forward.1} parent=1 // pred_fallthru
      _
    %v120 = vld [vmem:[%s0] sm:$0xff]
    %v121 = vld [vmem:[%s0 + $0x8] sm:$0xff]
    %v122 = vld [vmem:[%s0 + $0x10] sm:$0xff]
    %v123 = vld [vmem:[%s0 + $0x18] sm:$0xff]
    %v124 = vld [vmem:[%s0 + $0x20] sm:$0xff]
    %v125 = vld [vmem:[%s0 + $0x28] sm:$0xff]
    %v126 = vld [vmem:[%s0 + $0x30] sm:$0xff]
    %v127 = vld [vmem:[%s0 + $0x38] sm:$0xff]
    %v128 = vld [vmem:[%s1] sm:$0x1]
    %v129 = vld [vmem:[#allocation3] sm:$0xf]
    %v130 = vld [vmem:[#allocation3 + $0x4] sm:$0xf]
    %v131 = vld [vmem:[#allocation3 + $0x8] sm:$0xf]
    %v132 = vld [vmem:[#allocation3 + $0xc] sm:$0xf]
    %v133 = vld [vmem:[#allocation3 + $0x10] sm:$0xf]
    %v134 = vld [vmem:[#allocation3 + $0x14] sm:$0xf]
    %v135 = vld [vmem:[#allocation3 + $0x18] sm:$0xf]
    %v136 = vld [vmem:[#allocation3 + $0x1c] sm:$0xf]
    %v137 = vld [vmem:[#allocation6] sm:$0xf]
    %v138 = vld [vmem:[#allocation6 + $0x4] sm:$0xf]
    %v139 = vld [vmem:[#allocation6 + $0x8] sm:$0xf]
    %v140 = vld [vmem:[#allocation6 + $0xc] sm:$0xf]
    %v141 = vld [vmem:[#allocation6 + $0x10] sm:$0xf]
    %v142 = vld [vmem:[#allocation6 + $0x14] sm:$0xf]
    %v143 = vld [vmem:[#allocation6 + $0x18] sm:$0xf]
    %v144 = vld [vmem:[#allocation6 + $0x1c] sm:$0xf]
    %v145 = vld [vmem:[#allocation8] sm:$0xff]
    %v146 = vld [vmem:[#allocation8 + $0x8] sm:$0xff]
    %v147 = vld [vmem:[#allocation8 + $0x10] sm:$0xff]
    %v148 = vld [vmem:[#allocation8 + $0x18] sm:$0xff]
    %v149 = vld [vmem:[#allocation8 + $0x20] sm:$0xff]
    %v150 = vld [vmem:[#allocation8 + $0x28] sm:$0xff]
    %v151 = vld [vmem:[#allocation8 + $0x30] sm:$0xff]
    %v152 = vld [vmem:[#allocation8 + $0x38] sm:$0xff]
    %153 = vrot.lane.b32.xlu0 %v120, 1
    %v154 = vpop.permute.xlu0 %153
    %155 = vrot.lane.b32.xlu0 %v121, 1
    %v156 = vpop.permute.xlu0 %155
    %157 = vrot.lane.b32.xlu0 %v122, 1
    %v158 = vpop.permute.xlu0 %157
    %159 = vrot.lane.b32.xlu0 %v123, 1
    %v160 = vpop.permute.xlu0 %159
    %161 = vrot.lane.b32.xlu0 %v124, 1
    %v162 = vpop.permute.xlu0 %161
    %163 = vrot.lane.b32.xlu0 %v125, 1
    %v164 = vpop.permute.xlu0 %163
    %165 = vrot.lane.b32.xlu0 %v126, 1
    %v166 = vpop.permute.xlu0 %165
    %167 = vrot.lane.b32.xlu0 %v127, 1
    %v168 = vpop.permute.xlu0 %167
    %v170 = vlaneseq
    %v171 = vshrl.u32 %v170, 7
    %v172 = vsub.s32 0, %v171
    %v173 = vrot.slane %v128, %v172
    %v175 = vmul.f32 %v154, %v173
    %v176 = vmul.f32 %v156, %v173
    %v177 = vmul.f32 %v158, %v173
    %v178 = vmul.f32 %v160, %v173
    %v179 = vmul.f32 %v162, %v173
    %v180 = vmul.f32 %v164, %v173
    %v181 = vmul.f32 %v166, %v173
    %v182 = vmul.f32 %v168, %v173
    %v183 = vpack.c.bf16 %v121, %v120
    %v184 = vpack.c.bf16 %v123, %v122
    %v185 = vpack.c.bf16 %v125, %v124
    %v186 = vpack.c.bf16 %v127, %v126
    %v187 = vpack.c.bf16 %v176, %v175
    %v188 = vpack.c.bf16 %v178, %v177
    %v189 = vpack.c.bf16 %v180, %v179
    %v190 = vpack.c.bf16 %v182, %v181
    %v199 = vunpack.c.l.b16 %v137
    %v200 = vunpack.c.l.b16 %v138
    %v201 = vunpack.c.l.b16 %v139
    %v202 = vunpack.c.l.b16 %v140
    %v203 = vunpack.c.l.b16 %v141
    %v204 = vunpack.c.l.b16 %v142
    %v205 = vunpack.c.l.b16 %v143
    %v206 = vunpack.c.l.b16 %v144
    %v207 = vpack.c.b16 %v200, %v199
    %v208 = vpack.c.b16 %v202, %v201
    %v209 = vpack.c.b16 %v204, %v203
    %v210 = vpack.c.b16 %v206, %v205
    %vm211 = vcmask 523264
    %v213 = vsel %vm211, %v207, 0
    %v216 = vsel %vm211, %v208, 0
    %v219 = vsel %vm211, %v209, 0
    %v222 = vsel %vm211, %v210, 0
    %224 = vmatprep.subr.bf16.mxu0 0
    %225 = vmatpush1.bf16.msra.mxu0 0
    %226 = vmatprep.subr.bf16.mxu0 0
    %227 = vmatpush1.bf16.msra.mxu0 0
    %228 = vmatprep.subr.bf16.mxu0 0
    %229 = vmatpush1.bf16.msra.mxu0 0
    %230 = vmatprep.subr.bf16.mxu0 0
    %231 = vmatpush1.bf16.msra.mxu0 0
    %232 = vmatprep.subr.bf16.mxu0 0
    %233 = vmatpush1.bf16.msra.mxu0 %v190
    %234 = vmatprep.subr.bf16.mxu0 0
    %235 = vmatpush1.bf16.msra.mxu0 %v189
    %236 = vmatprep.subr.bf16.mxu0 0
    %237 = vmatpush1.bf16.msra.mxu0 %v188
    %238 = vmatprep.subr.bf16.mxu0 0
    %239 = vmatpush1.bf16.msra.mxu0 %v187
    %240 = vmatprep.subr.bf16.mxu0 0
    %241 = vmatpush2.bf16.msra.mxu0 0
    %242 = vmatprep.subr.bf16.mxu0 0
    %243 = vmatpush2.bf16.msra.mxu0 0
    %244 = vmatprep.subr.bf16.mxu0 0
    %245 = vmatpush2.bf16.msra.mxu0 0
    %246 = vmatprep.subr.bf16.mxu0 0
    %247 = vmatpush2.bf16.msra.mxu0 0
    %248 = vmatprep.subr.bf16.mxu0 0
    %249 = vmatpush2.bf16.msra.mxu0 0
    %250 = vmatprep.subr.bf16.mxu0 0
    %251 = vmatpush2.bf16.msra.mxu0 0
    %252 = vmatprep.subr.bf16.mxu0 0
    %253 = vmatpush2.bf16.msra.mxu0 0
    %254 = vmatprep.subr.bf16.mxu0 0
    %255 = vmatpush2.bf16.msra.mxu0 0
    %256 = vmatprep.mubr.bf16.mxu0 0
    %257 = vmatmul.mubr.bf16.gmra.mxu0 %v213
    %v258 = vpop.f32.mrf.mxu0
    %v259 = vadd.f32 0.0, %v258
    %v260 = vpop.f32.mrf.mxu0
    %v261 = vpop.f32.mrf.mxu0
    %v262 = vadd.f32 0.0, %v261
    %v263 = vpop.f32.mrf.mxu0
    %264 = vmatprep.mubr.bf16.mxu0 0
    %265 = vmatmul.mubr.bf16.gmra.mxu0 %v216
    %v266 = vpop.f32.mrf.mxu0
    %v267 = vadd.f32 0.0, %v266
    %v268 = vpop.f32.mrf.mxu0
    %v269 = vpop.f32.mrf.mxu0
    %v270 = vadd.f32 0.0, %v269
    %v271 = vpop.f32.mrf.mxu0
    %272 = vmatprep.mubr.bf16.mxu0 0
    %273 = vmatmul.mubr.bf16.gmra.mxu0 %v219
    %v274 = vpop.f32.mrf.mxu0
    %v275 = vadd.f32 0.0, %v274
    %v276 = vpop.f32.mrf.mxu0
    %v277 = vpop.f32.mrf.mxu0
    %v278 = vadd.f32 0.0, %v277
    %v279 = vpop.f32.mrf.mxu0
    %280 = vmatprep.mubr.bf16.mxu0 0
    %281 = vmatmul.mubr.bf16.gmra.mxu0 %v222
    %v282 = vpop.f32.mrf.mxu0
    %v283 = vadd.f32 0.0, %v282
    %v284 = vpop.f32.mrf.mxu0
    %v285 = vpop.f32.mrf.mxu0
    %v286 = vadd.f32 0.0, %v285
    %v287 = vpop.f32.mrf.mxu0
    %288 = vdwg.mxu0
    %v297 = vunpack.c.l.b16 %v129
    %v298 = vunpack.c.l.b16 %v130
    %v299 = vunpack.c.l.b16 %v131
    %v300 = vunpack.c.l.b16 %v132
    %v301 = vunpack.c.l.b16 %v133
    %v302 = vunpack.c.l.b16 %v134
    %v303 = vunpack.c.l.b16 %v135
    %v304 = vunpack.c.l.b16 %v136
    %v305 = vpack.c.b16 %v298, %v297
    %v306 = vpack.c.b16 %v300, %v299
    %v307 = vpack.c.b16 %v302, %v301
    %v308 = vpack.c.b16 %v304, %v303
    %v310 = vsel %vm211, %v305, 0
    %v313 = vsel %vm211, %v306, 0
    %v316 = vsel %vm211, %v307, 0
    %v319 = vsel %vm211, %v308, 0
    %321 = vmatprep.subr.bf16.mxu0 0
    %322 = vmatpush1.bf16.msra.mxu0 0
    %323 = vmatprep.subr.bf16.mxu0 0
    %324 = vmatpush1.bf16.msra.mxu0 0
    %325 = vmatprep.subr.bf16.mxu0 0
    %326 = vmatpush1.bf16.msra.mxu0 0
    %327 = vmatprep.subr.bf16.mxu0 0
    %328 = vmatpush1.bf16.msra.mxu0 0
    %329 = vmatprep.subr.bf16.mxu0 0
    %330 = vmatpush1.bf16.msra.mxu0 %v186
    %331 = vmatprep.subr.bf16.mxu0 0
    %332 = vmatpush1.bf16.msra.mxu0 %v185
    %333 = vmatprep.subr.bf16.mxu0 0
    %334 = vmatpush1.bf16.msra.mxu0 %v184
    %335 = vmatprep.subr.bf16.mxu0 0
    %336 = vmatpush1.bf16.msra.mxu0 %v183
    %337 = vmatprep.subr.bf16.mxu0 0
    %338 = vmatpush2.bf16.msra.mxu0 0
    %339 = vmatprep.subr.bf16.mxu0 0
    %340 = vmatpush2.bf16.msra.mxu0 0
    %341 = vmatprep.subr.bf16.mxu0 0
    %342 = vmatpush2.bf16.msra.mxu0 0
    %343 = vmatprep.subr.bf16.mxu0 0
    %344 = vmatpush2.bf16.msra.mxu0 0
    %345 = vmatprep.subr.bf16.mxu0 0
    %346 = vmatpush2.bf16.msra.mxu0 0
    %347 = vmatprep.subr.bf16.mxu0 0
    %348 = vmatpush2.bf16.msra.mxu0 0
    %349 = vmatprep.subr.bf16.mxu0 0
    %350 = vmatpush2.bf16.msra.mxu0 0
    %351 = vmatprep.subr.bf16.mxu0 0
    %352 = vmatpush2.bf16.msra.mxu0 0
    %353 = vmatprep.mubr.bf16.mxu0 0
    %354 = vmatmul.mubr.bf16.gmra.mxu0 %v310
    %v355 = vpop.f32.mrf.mxu0
    %v356 = vadd.f32 %v259, %v355
    %v357 = vpop.f32.mrf.mxu0
    %v358 = vpop.f32.mrf.mxu0
    %v359 = vadd.f32 %v262, %v358
    %v360 = vpop.f32.mrf.mxu0
    %361 = vmatprep.mubr.bf16.mxu0 0
    %362 = vmatmul.mubr.bf16.gmra.mxu0 %v313
    %v363 = vpop.f32.mrf.mxu0
    %v364 = vadd.f32 %v267, %v363
    %v365 = vpop.f32.mrf.mxu0
    %v366 = vpop.f32.mrf.mxu0
    %v367 = vadd.f32 %v270, %v366
    %v368 = vpop.f32.mrf.mxu0
    %369 = vmatprep.mubr.bf16.mxu0 0
    %370 = vmatmul.mubr.bf16.gmra.mxu0 %v316
    %v371 = vpop.f32.mrf.mxu0
    %v372 = vadd.f32 %v275, %v371
    %v373 = vpop.f32.mrf.mxu0
    %v374 = vpop.f32.mrf.mxu0
    %v375 = vadd.f32 %v278, %v374
    %v376 = vpop.f32.mrf.mxu0
    %377 = vmatprep.mubr.bf16.mxu0 0
    %378 = vmatmul.mubr.bf16.gmra.mxu0 %v319
    %v379 = vpop.f32.mrf.mxu0
    %v380 = vadd.f32 %v283, %v379
    %v381 = vpop.f32.mrf.mxu0
    %v382 = vpop.f32.mrf.mxu0
    %v383 = vadd.f32 %v286, %v382
    %v384 = vpop.f32.mrf.mxu0
    %385 = vdwg.mxu0
    %387 = vset.pattern.permute.xlu0 0
    %388 = vperm.xlu0 %387, %v145
    %v389 = vpop.permute.xlu0 %388
    %392 = vset.pattern.permute.xlu0 0
    %393 = vperm.xlu0 %392, %v146
    %v394 = vpop.permute.xlu0 %393
    %397 = vset.pattern.permute.xlu0 0
    %398 = vperm.xlu0 %397, %v147
    %v399 = vpop.permute.xlu0 %398
    %402 = vset.pattern.permute.xlu0 0
    %403 = vperm.xlu0 %402, %v148
    %v404 = vpop.permute.xlu0 %403
    %407 = vset.pattern.permute.xlu0 0
    %408 = vperm.xlu0 %407, %v149
    %v409 = vpop.permute.xlu0 %408
    %412 = vset.pattern.permute.xlu0 0
    %413 = vperm.xlu0 %412, %v150
    %v414 = vpop.permute.xlu0 %413
    %417 = vset.pattern.permute.xlu0 0
    %418 = vperm.xlu0 %417, %v151
    %v419 = vpop.permute.xlu0 %418
    %422 = vset.pattern.permute.xlu0 0
    %423 = vperm.xlu0 %422, %v152
    %v424 = vpop.permute.xlu0 %423
    %v426 = vadd.f32 %v356, %v389
    %v427 = vadd.f32 %v359, %v394
    %v428 = vadd.f32 %v364, %v399
    %v429 = vadd.f32 %v367, %v404
    %v430 = vadd.f32 %v372, %v409
    %v431 = vadd.f32 %v375, %v414
    %v432 = vadd.f32 %v380, %v419
    %v433 = vadd.f32 %v383, %v424
    %v434 = vmax.f32 %v426, 0.0
    %v435 = vmax.f32 %v427, 0.0
    %v436 = vmax.f32 %v428, 0.0
    %v437 = vmax.f32 %v429, 0.0
    %v438 = vmax.f32 %v430, 0.0
    %v439 = vmax.f32 %v431, 0.0
    %v440 = vmax.f32 %v432, 0.0
    %v441 = vmax.f32 %v433, 0.0
    %s442 = scalar_lea.vmem [#allocation3], 32
    %v443 = vld [vmem:[%s442] sm:$0xf]
    %v444 = vld [vmem:[%s442 + $0x4] sm:$0xf]
    %v445 = vld [vmem:[%s442 + $0x8] sm:$0xf]
    %v446 = vld [vmem:[%s442 + $0xc] sm:$0xf]
    %v447 = vld [vmem:[%s442 + $0x10] sm:$0xf]
    %v448 = vld [vmem:[%s442 + $0x14] sm:$0xf]
    %v449 = vld [vmem:[%s442 + $0x18] sm:$0xf]
    %v450 = vld [vmem:[%s442 + $0x1c] sm:$0xf]
    %s451 = scalar_lea.vmem [#allocation6], 32
    %v452 = vld [vmem:[%s451] sm:$0xf]
    %v453 = vld [vmem:[%s451 + $0x4] sm:$0xf]
    %v454 = vld [vmem:[%s451 + $0x8] sm:$0xf]
    %v455 = vld [vmem:[%s451 + $0xc] sm:$0xf]
    %v456 = vld [vmem:[%s451 + $0x10] sm:$0xf]
    %v457 = vld [vmem:[%s451 + $0x14] sm:$0xf]
    %v458 = vld [vmem:[%s451 + $0x18] sm:$0xf]
    %v459 = vld [vmem:[%s451 + $0x1c] sm:$0xf]
    %s460 = scalar_lea.vmem [#allocation8], 64
    %v461 = vld [vmem:[%s460] sm:$0xff]
    %v462 = vld [vmem:[%s460 + $0x8] sm:$0xff]
    %v463 = vld [vmem:[%s460 + $0x10] sm:$0xff]
    %v464 = vld [vmem:[%s460 + $0x18] sm:$0xff]
    %v465 = vld [vmem:[%s460 + $0x20] sm:$0xff]
    %v466 = vld [vmem:[%s460 + $0x28] sm:$0xff]
    %v467 = vld [vmem:[%s460 + $0x30] sm:$0xff]
    %v468 = vld [vmem:[%s460 + $0x38] sm:$0xff]
    %469 = vrot.lane.b32.xlu0 %v434, 1
    %v470 = vpop.permute.xlu0 %469
    %471 = vrot.lane.b32.xlu0 %v435, 1
    %v472 = vpop.permute.xlu0 %471
    %473 = vrot.lane.b32.xlu0 %v436, 1
    %v474 = vpop.permute.xlu0 %473
    %475 = vrot.lane.b32.xlu0 %v437, 1
    %v476 = vpop.permute.xlu0 %475
    %477 = vrot.lane.b32.xlu0 %v438, 1
    %v478 = vpop.permute.xlu0 %477
    %479 = vrot.lane.b32.xlu0 %v439, 1
    %v480 = vpop.permute.xlu0 %479
    %481 = vrot.lane.b32.xlu0 %v440, 1
    %v482 = vpop.permute.xlu0 %481
    %483 = vrot.lane.b32.xlu0 %v441, 1
    %v484 = vpop.permute.xlu0 %483
    %v485 = vmul.f32 %v470, %v173
    %v486 = vmul.f32 %v472, %v173
    %v487 = vmul.f32 %v474, %v173
    %v488 = vmul.f32 %v476, %v173
    %v489 = vmul.f32 %v478, %v173
    %v490 = vmul.f32 %v480, %v173
    %v491 = vmul.f32 %v482, %v173
    %v492 = vmul.f32 %v484, %v173
    %v493 = vpack.c.bf16 %v435, %v434
    %v494 = vpack.c.bf16 %v437, %v436
    %v495 = vpack.c.bf16 %v439, %v438
    %v496 = vpack.c.bf16 %v441, %v440
    %v497 = vpack.c.bf16 %v486, %v485
    %v498 = vpack.c.bf16 %v488, %v487
    %v499 = vpack.c.bf16 %v490, %v489
    %v500 = vpack.c.bf16 %v492, %v491
    %v509 = vunpack.c.l.b16 %v452
    %v510 = vunpack.c.l.b16 %v453
    %v511 = vunpack.c.l.b16 %v454
    %v512 = vunpack.c.l.b16 %v455
    %v513 = vunpack.c.l.b16 %v456
    %v514 = vunpack.c.l.b16 %v457
    %v515 = vunpack.c.l.b16 %v458
    %v516 = vunpack.c.l.b16 %v459
    %v517 = vpack.c.b16 %v510, %v509
    %v518 = vpack.c.b16 %v512, %v511
    %v519 = vpack.c.b16 %v514, %v513
    %v520 = vpack.c.b16 %v516, %v515
    %v522 = vsel %vm211, %v517, 0
    %v525 = vsel %vm211, %v518, 0
    %v528 = vsel %vm211, %v519, 0
    %v531 = vsel %vm211, %v520, 0
    %533 = vmatprep.subr.bf16.mxu0 0
    %534 = vmatpush1.bf16.msra.mxu0 0
    %535 = vmatprep.subr.bf16.mxu0 0
    %536 = vmatpush1.bf16.msra.mxu0 0
    %537 = vmatprep.subr.bf16.mxu0 0
    %538 = vmatpush1.bf16.msra.mxu0 0
    %539 = vmatprep.subr.bf16.mxu0 0
    %540 = vmatpush1.bf16.msra.mxu0 0
    %541 = vmatprep.subr.bf16.mxu0 0
    %542 = vmatpush1.bf16.msra.mxu0 %v500
    %543 = vmatprep.subr.bf16.mxu0 0
    %544 = vmatpush1.bf16.msra.mxu0 %v499
    %545 = vmatprep.subr.bf16.mxu0 0
    %546 = vmatpush1.bf16.msra.mxu0 %v498
    %547 = vmatprep.subr.bf16.mxu0 0
    %548 = vmatpush1.bf16.msra.mxu0 %v497
    %549 = vmatprep.subr.bf16.mxu0 0
    %550 = vmatpush2.bf16.msra.mxu0 0
    %551 = vmatprep.subr.bf16.mxu0 0
    %552 = vmatpush2.bf16.msra.mxu0 0
    %553 = vmatprep.subr.bf16.mxu0 0
    %554 = vmatpush2.bf16.msra.mxu0 0
    %555 = vmatprep.subr.bf16.mxu0 0
    %556 = vmatpush2.bf16.msra.mxu0 0
    %557 = vmatprep.subr.bf16.mxu0 0
    %558 = vmatpush2.bf16.msra.mxu0 0
    %559 = vmatprep.subr.bf16.mxu0 0
    %560 = vmatpush2.bf16.msra.mxu0 0
    %561 = vmatprep.subr.bf16.mxu0 0
    %562 = vmatpush2.bf16.msra.mxu0 0
    %563 = vmatprep.subr.bf16.mxu0 0
    %564 = vmatpush2.bf16.msra.mxu0 0
    %565 = vmatprep.mubr.bf16.mxu0 0
    %566 = vmatmul.mubr.bf16.gmra.mxu0 %v522
    %v567 = vpop.f32.mrf.mxu0
    %v568 = vadd.f32 0.0, %v567
    %v569 = vpop.f32.mrf.mxu0
    %v570 = vpop.f32.mrf.mxu0
    %v571 = vadd.f32 0.0, %v570
    %v572 = vpop.f32.mrf.mxu0
    %573 = vmatprep.mubr.bf16.mxu0 0
    %574 = vmatmul.mubr.bf16.gmra.mxu0 %v525
    %v575 = vpop.f32.mrf.mxu0
    %v576 = vadd.f32 0.0, %v575
    %v577 = vpop.f32.mrf.mxu0
    %v578 = vpop.f32.mrf.mxu0
    %v579 = vadd.f32 0.0, %v578
    %v580 = vpop.f32.mrf.mxu0
    %581 = vmatprep.mubr.bf16.mxu0 0
    %582 = vmatmul.mubr.bf16.gmra.mxu0 %v528
    %v583 = vpop.f32.mrf.mxu0
    %v584 = vadd.f32 0.0, %v583
    %v585 = vpop.f32.mrf.mxu0
    %v586 = vpop.f32.mrf.mxu0
    %v587 = vadd.f32 0.0, %v586
    %v588 = vpop.f32.mrf.mxu0
    %589 = vmatprep.mubr.bf16.mxu0 0
    %590 = vmatmul.mubr.bf16.gmra.mxu0 %v531
    %v591 = vpop.f32.mrf.mxu0
    %v592 = vadd.f32 0.0, %v591
    %v593 = vpop.f32.mrf.mxu0
    %v594 = vpop.f32.mrf.mxu0
    %v595 = vadd.f32 0.0, %v594
    %v596 = vpop.f32.mrf.mxu0
    %597 = vdwg.mxu0
    %v606 = vunpack.c.l.b16 %v443
    %v607 = vunpack.c.l.b16 %v444
    %v608 = vunpack.c.l.b16 %v445
    %v609 = vunpack.c.l.b16 %v446
    %v610 = vunpack.c.l.b16 %v447
    %v611 = vunpack.c.l.b16 %v448
    %v612 = vunpack.c.l.b16 %v449
    %v613 = vunpack.c.l.b16 %v450
    %v614 = vpack.c.b16 %v607, %v606
    %v615 = vpack.c.b16 %v609, %v608
    %v616 = vpack.c.b16 %v611, %v610
    %v617 = vpack.c.b16 %v613, %v612
    %v619 = vsel %vm211, %v614, 0
    %v622 = vsel %vm211, %v615, 0
    %v625 = vsel %vm211, %v616, 0
    %v628 = vsel %vm211, %v617, 0
    %630 = vmatprep.subr.bf16.mxu0 0
    %631 = vmatpush1.bf16.msra.mxu0 0
    %632 = vmatprep.subr.bf16.mxu0 0
    %633 = vmatpush1.bf16.msra.mxu0 0
    %634 = vmatprep.subr.bf16.mxu0 0
    %635 = vmatpush1.bf16.msra.mxu0 0
    %636 = vmatprep.subr.bf16.mxu0 0
    %637 = vmatpush1.bf16.msra.mxu0 0
    %638 = vmatprep.subr.bf16.mxu0 0
    %639 = vmatpush1.bf16.msra.mxu0 %v496
    %640 = vmatprep.subr.bf16.mxu0 0
    %641 = vmatpush1.bf16.msra.mxu0 %v495
    %642 = vmatprep.subr.bf16.mxu0 0
    %643 = vmatpush1.bf16.msra.mxu0 %v494
    %644 = vmatprep.subr.bf16.mxu0 0
    %645 = vmatpush1.bf16.msra.mxu0 %v493
    %646 = vmatprep.subr.bf16.mxu0 0
    %647 = vmatpush2.bf16.msra.mxu0 0
    %648 = vmatprep.subr.bf16.mxu0 0
    %649 = vmatpush2.bf16.msra.mxu0 0
    %650 = vmatprep.subr.bf16.mxu0 0
    %651 = vmatpush2.bf16.msra.mxu0 0
    %652 = vmatprep.subr.bf16.mxu0 0
    %653 = vmatpush2.bf16.msra.mxu0 0
    %654 = vmatprep.subr.bf16.mxu0 0
    %655 = vmatpush2.bf16.msra.mxu0 0
    %656 = vmatprep.subr.bf16.mxu0 0
    %657 = vmatpush2.bf16.msra.mxu0 0
    %658 = vmatprep.subr.bf16.mxu0 0
    %659 = vmatpush2.bf16.msra.mxu0 0
    %660 = vmatprep.subr.bf16.mxu0 0
    %661 = vmatpush2.bf16.msra.mxu0 0
    %662 = vmatprep.mubr.bf16.mxu0 0
    %663 = vmatmul.mubr.bf16.gmra.mxu0 %v619
    %v664 = vpop.f32.mrf.mxu0
    %v665 = vadd.f32 %v568, %v664
    %v666 = vpop.f32.mrf.mxu0
    %v667 = vpop.f32.mrf.mxu0
    %v668 = vadd.f32 %v571, %v667
    %v669 = vpop.f32.mrf.mxu0
    %670 = vmatprep.mubr.bf16.mxu0 0
    %671 = vmatmul.mubr.bf16.gmra.mxu0 %v622
    %v672 = vpop.f32.mrf.mxu0
    %v673 = vadd.f32 %v576, %v672
    %v674 = vpop.f32.mrf.mxu0
    %v675 = vpop.f32.mrf.mxu0
    %v676 = vadd.f32 %v579, %v675
    %v677 = vpop.f32.mrf.mxu0
    %678 = vmatprep.mubr.bf16.mxu0 0
    %679 = vmatmul.mubr.bf16.gmra.mxu0 %v625
    %v680 = vpop.f32.mrf.mxu0
    %v681 = vadd.f32 %v584, %v680
    %v682 = vpop.f32.mrf.mxu0
    %v683 = vpop.f32.mrf.mxu0
    %v684 = vadd.f32 %v587, %v683
    %v685 = vpop.f32.mrf.mxu0
    %686 = vmatprep.mubr.bf16.mxu0 0
    %687 = vmatmul.mubr.bf16.gmra.mxu0 %v628
    %v688 = vpop.f32.mrf.mxu0
    %v689 = vadd.f32 %v592, %v688
    %v690 = vpop.f32.mrf.mxu0
    %v691 = vpop.f32.mrf.mxu0
    %v692 = vadd.f32 %v595, %v691
    %v693 = vpop.f32.mrf.mxu0
    %694 = vdwg.mxu0
    %696 = vset.pattern.permute.xlu0 0
    %697 = vperm.xlu0 %696, %v461
    %v698 = vpop.permute.xlu0 %697
    %701 = vset.pattern.permute.xlu0 0
    %702 = vperm.xlu0 %701, %v462
    %v703 = vpop.permute.xlu0 %702
    %706 = vset.pattern.permute.xlu0 0
    %707 = vperm.xlu0 %706, %v463
    %v708 = vpop.permute.xlu0 %707
    %711 = vset.pattern.permute.xlu0 0
    %712 = vperm.xlu0 %711, %v464
    %v713 = vpop.permute.xlu0 %712
    %716 = vset.pattern.permute.xlu0 0
    %717 = vperm.xlu0 %716, %v465
    %v718 = vpop.permute.xlu0 %717
    %721 = vset.pattern.permute.xlu0 0
    %722 = vperm.xlu0 %721, %v466
    %v723 = vpop.permute.xlu0 %722
    %726 = vset.pattern.permute.xlu0 0
    %727 = vperm.xlu0 %726, %v467
    %v728 = vpop.permute.xlu0 %727
    %731 = vset.pattern.permute.xlu0 0
    %732 = vperm.xlu0 %731, %v468
    %v733 = vpop.permute.xlu0 %732
    %v735 = vadd.f32 %v665, %v698
    %v736 = vadd.f32 %v668, %v703
    %v737 = vadd.f32 %v673, %v708
    %v738 = vadd.f32 %v676, %v713
    %v739 = vadd.f32 %v681, %v718
    %v740 = vadd.f32 %v684, %v723
    %v741 = vadd.f32 %v689, %v728
    %v742 = vadd.f32 %v692, %v733
    %v743 = vmax.f32 %v735, 0.0
    %v744 = vmax.f32 %v736, 0.0
    %v745 = vmax.f32 %v737, 0.0
    %v746 = vmax.f32 %v738, 0.0
    %v747 = vmax.f32 %v739, 0.0
    %v748 = vmax.f32 %v740, 0.0
    %v749 = vmax.f32 %v741, 0.0
    %v750 = vmax.f32 %v742, 0.0
    %s751 = scalar_lea.vmem [#allocation3], 64
    %v752 = vld [vmem:[%s751] sm:$0xf]
    %v753 = vld [vmem:[%s751 + $0x4] sm:$0xf]
    %v754 = vld [vmem:[%s751 + $0x8] sm:$0xf]
    %v755 = vld [vmem:[%s751 + $0xc] sm:$0xf]
    %v756 = vld [vmem:[%s751 + $0x10] sm:$0xf]
    %v757 = vld [vmem:[%s751 + $0x14] sm:$0xf]
    %v758 = vld [vmem:[%s751 + $0x18] sm:$0xf]
    %v759 = vld [vmem:[%s751 + $0x1c] sm:$0xf]
    %s760 = scalar_lea.vmem [#allocation6], 64
    %v761 = vld [vmem:[%s760] sm:$0xf]
    %v762 = vld [vmem:[%s760 + $0x4] sm:$0xf]
    %v763 = vld [vmem:[%s760 + $0x8] sm:$0xf]
    %v764 = vld [vmem:[%s760 + $0xc] sm:$0xf]
    %v765 = vld [vmem:[%s760 + $0x10] sm:$0xf]
    %v766 = vld [vmem:[%s760 + $0x14] sm:$0xf]
    %v767 = vld [vmem:[%s760 + $0x18] sm:$0xf]
    %v768 = vld [vmem:[%s760 + $0x1c] sm:$0xf]
    %s769 = scalar_lea.vmem [#allocation8], 128
    %v770 = vld [vmem:[%s769] sm:$0xff]
    %v771 = vld [vmem:[%s769 + $0x8] sm:$0xff]
    %v772 = vld [vmem:[%s769 + $0x10] sm:$0xff]
    %v773 = vld [vmem:[%s769 + $0x18] sm:$0xff]
    %v774 = vld [vmem:[%s769 + $0x20] sm:$0xff]
    %v775 = vld [vmem:[%s769 + $0x28] sm:$0xff]
    %v776 = vld [vmem:[%s769 + $0x30] sm:$0xff]
    %v777 = vld [vmem:[%s769 + $0x38] sm:$0xff]
    %778 = vrot.lane.b32.xlu0 %v743, 1
    %v779 = vpop.permute.xlu0 %778
    %780 = vrot.lane.b32.xlu0 %v744, 1
    %v781 = vpop.permute.xlu0 %780
    %782 = vrot.lane.b32.xlu0 %v745, 1
    %v783 = vpop.permute.xlu0 %782
    %784 = vrot.lane.b32.xlu0 %v746, 1
    %v785 = vpop.permute.xlu0 %784
    %786 = vrot.lane.b32.xlu0 %v747, 1
    %v787 = vpop.permute.xlu0 %786
    %788 = vrot.lane.b32.xlu0 %v748, 1
    %v789 = vpop.permute.xlu0 %788
    %790 = vrot.lane.b32.xlu0 %v749, 1
    %v791 = vpop.permute.xlu0 %790
    %792 = vrot.lane.b32.xlu0 %v750, 1
    %v793 = vpop.permute.xlu0 %792
    %v794 = vmul.f32 %v779, %v173
    %v795 = vmul.f32 %v781, %v173
    %v796 = vmul.f32 %v783, %v173
    %v797 = vmul.f32 %v785, %v173
    %v798 = vmul.f32 %v787, %v173
    %v799 = vmul.f32 %v789, %v173
    %v800 = vmul.f32 %v791, %v173
    %v801 = vmul.f32 %v793, %v173
    %v802 = vpack.c.bf16 %v744, %v743
    %v803 = vpack.c.bf16 %v746, %v745
    %v804 = vpack.c.bf16 %v748, %v747
    %v805 = vpack.c.bf16 %v750, %v749
    %v806 = vpack.c.bf16 %v795, %v794
    %v807 = vpack.c.bf16 %v797, %v796
    %v808 = vpack.c.bf16 %v799, %v798
    %v809 = vpack.c.bf16 %v801, %v800
    %v818 = vunpack.c.l.b16 %v761
    %v819 = vunpack.c.l.b16 %v762
    %v820 = vunpack.c.l.b16 %v763
    %v821 = vunpack.c.l.b16 %v764
    %v822 = vunpack.c.l.b16 %v765
    %v823 = vunpack.c.l.b16 %v766
    %v824 = vunpack.c.l.b16 %v767
    %v825 = vunpack.c.l.b16 %v768
    %v826 = vpack.c.b16 %v819, %v818
    %v827 = vpack.c.b16 %v821, %v820
    %v828 = vpack.c.b16 %v823, %v822
    %v829 = vpack.c.b16 %v825, %v824
    %v831 = vsel %vm211, %v826, 0
    %v834 = vsel %vm211, %v827, 0
    %v837 = vsel %vm211, %v828, 0
    %v840 = vsel %vm211, %v829, 0
    %842 = vmatprep.subr.bf16.mxu0 0
    %843 = vmatpush1.bf16.msra.mxu0 0
    %844 = vmatprep.subr.bf16.mxu0 0
    %845 = vmatpush1.bf16.msra.mxu0 0
    %846 = vmatprep.subr.bf16.mxu0 0
    %847 = vmatpush1.bf16.msra.mxu0 0
    %848 = vmatprep.subr.bf16.mxu0 0
    %849 = vmatpush1.bf16.msra.mxu0 0
    %850 = vmatprep.subr.bf16.mxu0 0
    %851 = vmatpush1.bf16.msra.mxu0 %v809
    %852 = vmatprep.subr.bf16.mxu0 0
    %853 = vmatpush1.bf16.msra.mxu0 %v808
    %854 = vmatprep.subr.bf16.mxu0 0
    %855 = vmatpush1.bf16.msra.mxu0 %v807
    %856 = vmatprep.subr.bf16.mxu0 0
    %857 = vmatpush1.bf16.msra.mxu0 %v806
    %858 = vmatprep.subr.bf16.mxu0 0
    %859 = vmatpush2.bf16.msra.mxu0 0
    %860 = vmatprep.subr.bf16.mxu0 0
    %861 = vmatpush2.bf16.msra.mxu0 0
    %862 = vmatprep.subr.bf16.mxu0 0
    %863 = vmatpush2.bf16.msra.mxu0 0
    %864 = vmatprep.subr.bf16.mxu0 0
    %865 = vmatpush2.bf16.msra.mxu0 0
    %866 = vmatprep.subr.bf16.mxu0 0
    %867 = vmatpush2.bf16.msra.mxu0 0
    %868 = vmatprep.subr.bf16.mxu0 0
    %869 = vmatpush2.bf16.msra.mxu0 0
    %870 = vmatprep.subr.bf16.mxu0 0
    %871 = vmatpush2.bf16.msra.mxu0 0
    %872 = vmatprep.subr.bf16.mxu0 0
    %873 = vmatpush2.bf16.msra.mxu0 0
    %874 = vmatprep.mubr.bf16.mxu0 0
    %875 = vmatmul.mubr.bf16.gmra.mxu0 %v831
    %v876 = vpop.f32.mrf.mxu0
    %v877 = vadd.f32 0.0, %v876
    %v878 = vpop.f32.mrf.mxu0
    %v879 = vpop.f32.mrf.mxu0
    %v880 = vadd.f32 0.0, %v879
    %v881 = vpop.f32.mrf.mxu0
    %882 = vmatprep.mubr.bf16.mxu0 0
    %883 = vmatmul.mubr.bf16.gmra.mxu0 %v834
    %v884 = vpop.f32.mrf.mxu0
    %v885 = vadd.f32 0.0, %v884
    %v886 = vpop.f32.mrf.mxu0
    %v887 = vpop.f32.mrf.mxu0
    %v888 = vadd.f32 0.0, %v887
    %v889 = vpop.f32.mrf.mxu0
    %890 = vmatprep.mubr.bf16.mxu0 0
    %891 = vmatmul.mubr.bf16.gmra.mxu0 %v837
    %v892 = vpop.f32.mrf.mxu0
    %v893 = vadd.f32 0.0, %v892
    %v894 = vpop.f32.mrf.mxu0
    %v895 = vpop.f32.mrf.mxu0
    %v896 = vadd.f32 0.0, %v895
    %v897 = vpop.f32.mrf.mxu0
    %898 = vmatprep.mubr.bf16.mxu0 0
    %899 = vmatmul.mubr.bf16.gmra.mxu0 %v840
    %v900 = vpop.f32.mrf.mxu0
    %v901 = vadd.f32 0.0, %v900
    %v902 = vpop.f32.mrf.mxu0
    %v903 = vpop.f32.mrf.mxu0
    %v904 = vadd.f32 0.0, %v903
    %v905 = vpop.f32.mrf.mxu0
    %906 = vdwg.mxu0
    %v915 = vunpack.c.l.b16 %v752
    %v916 = vunpack.c.l.b16 %v753
    %v917 = vunpack.c.l.b16 %v754
    %v918 = vunpack.c.l.b16 %v755
    %v919 = vunpack.c.l.b16 %v756
    %v920 = vunpack.c.l.b16 %v757
    %v921 = vunpack.c.l.b16 %v758
    %v922 = vunpack.c.l.b16 %v759
    %v923 = vpack.c.b16 %v916, %v915
    %v924 = vpack.c.b16 %v918, %v917
    %v925 = vpack.c.b16 %v920, %v919
    %v926 = vpack.c.b16 %v922, %v921
    %v928 = vsel %vm211, %v923, 0
    %v931 = vsel %vm211, %v924, 0
    %v934 = vsel %vm211, %v925, 0
    %v937 = vsel %vm211, %v926, 0
    %939 = vmatprep.subr.bf16.mxu0 0
    %940 = vmatpush1.bf16.msra.mxu0 0
    %941 = vmatprep.subr.bf16.mxu0 0
    %942 = vmatpush1.bf16.msra.mxu0 0
    %943 = vmatprep.subr.bf16.mxu0 0
    %944 = vmatpush1.bf16.msra.mxu0 0
    %945 = vmatprep.subr.bf16.mxu0 0
    %946 = vmatpush1.bf16.msra.mxu0 0
    %947 = vmatprep.subr.bf16.mxu0 0
    %948 = vmatpush1.bf16.msra.mxu0 %v805
    %949 = vmatprep.subr.bf16.mxu0 0
    %950 = vmatpush1.bf16.msra.mxu0 %v804
    %951 = vmatprep.subr.bf16.mxu0 0
    %952 = vmatpush1.bf16.msra.mxu0 %v803
    %953 = vmatprep.subr.bf16.mxu0 0
    %954 = vmatpush1.bf16.msra.mxu0 %v802
    %955 = vmatprep.subr.bf16.mxu0 0
    %956 = vmatpush2.bf16.msra.mxu0 0
    %957 = vmatprep.subr.bf16.mxu0 0
    %958 = vmatpush2.bf16.msra.mxu0 0
    %959 = vmatprep.subr.bf16.mxu0 0
    %960 = vmatpush2.bf16.msra.mxu0 0
    %961 = vmatprep.subr.bf16.mxu0 0
    %962 = vmatpush2.bf16.msra.mxu0 0
    %963 = vmatprep.subr.bf16.mxu0 0
    %964 = vmatpush2.bf16.msra.mxu0 0
    %965 = vmatprep.subr.bf16.mxu0 0
    %966 = vmatpush2.bf16.msra.mxu0 0
    %967 = vmatprep.subr.bf16.mxu0 0
    %968 = vmatpush2.bf16.msra.mxu0 0
    %969 = vmatprep.subr.bf16.mxu0 0
    %970 = vmatpush2.bf16.msra.mxu0 0
    %971 = vmatprep.mubr.bf16.mxu0 0
    %972 = vmatmul.mubr.bf16.gmra.mxu0 %v928
    %v973 = vpop.f32.mrf.mxu0
    %v974 = vadd.f32 %v877, %v973
    %v975 = vpop.f32.mrf.mxu0
    %v976 = vpop.f32.mrf.mxu0
    %v977 = vadd.f32 %v880, %v976
    %v978 = vpop.f32.mrf.mxu0
    %979 = vmatprep.mubr.bf16.mxu0 0
    %980 = vmatmul.mubr.bf16.gmra.mxu0 %v931
    %v981 = vpop.f32.mrf.mxu0
    %v982 = vadd.f32 %v885, %v981
    %v983 = vpop.f32.mrf.mxu0
    %v984 = vpop.f32.mrf.mxu0
    %v985 = vadd.f32 %v888, %v984
    %v986 = vpop.f32.mrf.mxu0
    %987 = vmatprep.mubr.bf16.mxu0 0
    %988 = vmatmul.mubr.bf16.gmra.mxu0 %v934
    %v989 = vpop.f32.mrf.mxu0
    %v990 = vadd.f32 %v893, %v989
    %v991 = vpop.f32.mrf.mxu0
    %v992 = vpop.f32.mrf.mxu0
    %v993 = vadd.f32 %v896, %v992
    %v994 = vpop.f32.mrf.mxu0
    %995 = vmatprep.mubr.bf16.mxu0 0
    %996 = vmatmul.mubr.bf16.gmra.mxu0 %v937
    %v997 = vpop.f32.mrf.mxu0
    %v998 = vadd.f32 %v901, %v997
    %v999 = vpop.f32.mrf.mxu0
    %v1000 = vpop.f32.mrf.mxu0
    %v1001 = vadd.f32 %v904, %v1000
    %v1002 = vpop.f32.mrf.mxu0
    %1003 = vdwg.mxu0
    %1005 = vset.pattern.permute.xlu0 0
    %1006 = vperm.xlu0 %1005, %v770
    %v1007 = vpop.permute.xlu0 %1006
    %1010 = vset.pattern.permute.xlu0 0
    %1011 = vperm.xlu0 %1010, %v771
    %v1012 = vpop.permute.xlu0 %1011
    %1015 = vset.pattern.permute.xlu0 0
    %1016 = vperm.xlu0 %1015, %v772
    %v1017 = vpop.permute.xlu0 %1016
    %1020 = vset.pattern.permute.xlu0 0
    %1021 = vperm.xlu0 %1020, %v773
    %v1022 = vpop.permute.xlu0 %1021
    %1025 = vset.pattern.permute.xlu0 0
    %1026 = vperm.xlu0 %1025, %v774
    %v1027 = vpop.permute.xlu0 %1026
    %1030 = vset.pattern.permute.xlu0 0
    %1031 = vperm.xlu0 %1030, %v775
    %v1032 = vpop.permute.xlu0 %1031
    %1035 = vset.pattern.permute.xlu0 0
    %1036 = vperm.xlu0 %1035, %v776
    %v1037 = vpop.permute.xlu0 %1036
    %1040 = vset.pattern.permute.xlu0 0
    %1041 = vperm.xlu0 %1040, %v777
    %v1042 = vpop.permute.xlu0 %1041
    %v1044 = vadd.f32 %v974, %v1007
    %v1045 = vadd.f32 %v977, %v1012
    %v1046 = vadd.f32 %v982, %v1017
    %v1047 = vadd.f32 %v985, %v1022
    %v1048 = vadd.f32 %v990, %v1027
    %v1049 = vadd.f32 %v993, %v1032
    %v1050 = vadd.f32 %v998, %v1037
    %v1051 = vadd.f32 %v1001, %v1042
    %v1052 = vmax.f32 %v1044, 0.0
    %v1053 = vmax.f32 %v1045, 0.0
    %v1054 = vmax.f32 %v1046, 0.0
    %v1055 = vmax.f32 %v1047, 0.0
    %v1056 = vmax.f32 %v1048, 0.0
    %v1057 = vmax.f32 %v1049, 0.0
    %v1058 = vmax.f32 %v1050, 0.0
    %v1059 = vmax.f32 %v1051, 0.0
    %v1060 = vld [vmem:[#allocation9] sm:$0xf]
    %v1061 = vld [vmem:[#allocation9 + $0x4] sm:$0xf]
    %v1062 = vld [vmem:[#allocation9 + $0x8] sm:$0xf]
    %v1063 = vld [vmem:[#allocation9 + $0xc] sm:$0xf]
    %v1064 = vld [vmem:[#allocation9 + $0x10] sm:$0xf]
    %v1065 = vld [vmem:[#allocation9 + $0x14] sm:$0xf]
    %v1066 = vld [vmem:[#allocation9 + $0x18] sm:$0xf]
    %v1067 = vld [vmem:[#allocation9 + $0x1c] sm:$0xf]
    %v1068 = vld [vmem:[#allocation11] sm:$0xff]
    %v1069 = vld [vmem:[#allocation11 + $0x8] sm:$0xff]
    %v1070 = vld [vmem:[#allocation11 + $0x10] sm:$0xff]
    %v1071 = vld [vmem:[#allocation11 + $0x18] sm:$0xff]
    %v1072 = vld [vmem:[#allocation11 + $0x20] sm:$0xff]
    %v1073 = vld [vmem:[#allocation11 + $0x28] sm:$0xff]
    %v1074 = vld [vmem:[#allocation11 + $0x30] sm:$0xff]
    %v1075 = vld [vmem:[#allocation11 + $0x38] sm:$0xff]
    %1077 = vset.pattern.permute.xlu0 0
    %1078 = vperm.xlu0 %1077, %v1068
    %v1079 = vpop.permute.xlu0 %1078
    %1082 = vset.pattern.permute.xlu0 0
    %1083 = vperm.xlu0 %1082, %v1069
    %v1084 = vpop.permute.xlu0 %1083
    %1087 = vset.pattern.permute.xlu0 0
    %1088 = vperm.xlu0 %1087, %v1070
    %v1089 = vpop.permute.xlu0 %1088
    %1092 = vset.pattern.permute.xlu0 0
    %1093 = vperm.xlu0 %1092, %v1071
    %v1094 = vpop.permute.xlu0 %1093
    %1097 = vset.pattern.permute.xlu0 0
    %1098 = vperm.xlu0 %1097, %v1072
    %v1099 = vpop.permute.xlu0 %1098
    %1102 = vset.pattern.permute.xlu0 0
    %1103 = vperm.xlu0 %1102, %v1073
    %v1104 = vpop.permute.xlu0 %1103
    %1107 = vset.pattern.permute.xlu0 0
    %1108 = vperm.xlu0 %1107, %v1074
    %v1109 = vpop.permute.xlu0 %1108
    %1112 = vset.pattern.permute.xlu0 0
    %1113 = vperm.xlu0 %1112, %v1075
    %v1114 = vpop.permute.xlu0 %1113
    %v1124 = vunpack.c.l.b16 %v1060
    %v1125 = vunpack.c.l.b16 %v1061
    %v1126 = vunpack.c.l.b16 %v1062
    %v1127 = vunpack.c.l.b16 %v1063
    %v1128 = vunpack.c.l.b16 %v1064
    %v1129 = vunpack.c.l.b16 %v1065
    %v1130 = vunpack.c.l.b16 %v1066
    %v1131 = vunpack.c.l.b16 %v1067
    %v1132 = vpack.c.b16 %v1125, %v1124
    %v1133 = vpack.c.b16 %v1127, %v1126
    %v1134 = vpack.c.b16 %v1129, %v1128
    %v1135 = vpack.c.b16 %v1131, %v1130
    %v1137 = vsel %vm211, %v1132, 0
    %v1140 = vsel %vm211, %v1133, 0
    %v1143 = vsel %vm211, %v1134, 0
    %v1146 = vsel %vm211, %v1135, 0
    %1148 = vmatprep.subr.bf16.mxu0 0
    %1149 = vmatpush1.bf16.msra.mxu0 0
    %1150 = vmatprep.subr.bf16.mxu0 0
    %1151 = vmatpush1.bf16.msra.mxu0 0
    %1152 = vmatprep.subr.bf16.mxu0 0
    %1153 = vmatpush1.bf16.msra.mxu0 0
    %1154 = vmatprep.subr.bf16.mxu0 0
    %1155 = vmatpush1.bf16.msra.mxu0 0
    %1156 = vmatprep.subr.bf16.mxu0 0
    %1157 = vmatpush1.bf16.msra.mxu0 %v186
    %1158 = vmatprep.subr.bf16.mxu0 0
    %1159 = vmatpush1.bf16.msra.mxu0 %v185
    %1160 = vmatprep.subr.bf16.mxu0 0
    %1161 = vmatpush1.bf16.msra.mxu0 %v184
    %1162 = vmatprep.subr.bf16.mxu0 0
    %1163 = vmatpush1.bf16.msra.mxu0 %v183
    %1164 = vmatprep.subr.bf16.mxu0 0
    %1165 = vmatpush2.bf16.msra.mxu0 0
    %1166 = vmatprep.subr.bf16.mxu0 0
    %1167 = vmatpush2.bf16.msra.mxu0 0
    %1168 = vmatprep.subr.bf16.mxu0 0
    %1169 = vmatpush2.bf16.msra.mxu0 0
    %1170 = vmatprep.subr.bf16.mxu0 0
    %1171 = vmatpush2.bf16.msra.mxu0 0
    %1172 = vmatprep.subr.bf16.mxu0 0
    %1173 = vmatpush2.bf16.msra.mxu0 0
    %1174 = vmatprep.subr.bf16.mxu0 0
    %1175 = vmatpush2.bf16.msra.mxu0 0
    %1176 = vmatprep.subr.bf16.mxu0 0
    %1177 = vmatpush2.bf16.msra.mxu0 0
    %1178 = vmatprep.subr.bf16.mxu0 0
    %1179 = vmatpush2.bf16.msra.mxu0 0
    %1180 = vmatprep.mubr.bf16.mxu0 0
    %1181 = vmatmul.mubr.bf16.gmra.mxu0 %v1137
    %v1182 = vpop.f32.mrf.mxu0
    %v1183 = vadd.f32 %v1079, %v1182
    %v1184 = vpop.f32.mrf.mxu0
    %v1185 = vpop.f32.mrf.mxu0
    %v1186 = vadd.f32 %v1084, %v1185
    %v1187 = vpop.f32.mrf.mxu0
    %1188 = vmatprep.mubr.bf16.mxu0 0
    %1189 = vmatmul.mubr.bf16.gmra.mxu0 %v1140
    %v1190 = vpop.f32.mrf.mxu0
    %v1191 = vadd.f32 %v1089, %v1190
    %v1192 = vpop.f32.mrf.mxu0
    %v1193 = vpop.f32.mrf.mxu0
    %v1194 = vadd.f32 %v1094, %v1193
    %v1195 = vpop.f32.mrf.mxu0
    %1196 = vmatprep.mubr.bf16.mxu0 0
    %1197 = vmatmul.mubr.bf16.gmra.mxu0 %v1143
    %v1198 = vpop.f32.mrf.mxu0
    %v1199 = vadd.f32 %v1099, %v1198
    %v1200 = vpop.f32.mrf.mxu0
    %v1201 = vpop.f32.mrf.mxu0
    %v1202 = vadd.f32 %v1104, %v1201
    %v1203 = vpop.f32.mrf.mxu0
    %1204 = vmatprep.mubr.bf16.mxu0 0
    %1205 = vmatmul.mubr.bf16.gmra.mxu0 %v1146
    %v1206 = vpop.f32.mrf.mxu0
    %v1207 = vadd.f32 %v1109, %v1206
    %v1208 = vpop.f32.mrf.mxu0
    %v1209 = vpop.f32.mrf.mxu0
    %v1210 = vadd.f32 %v1114, %v1209
    %v1211 = vpop.f32.mrf.mxu0
    %1212 = vdwg.mxu0
    %v1213 = vadd.f32 %v1052, %v1183
    %v1214 = vadd.f32 %v1053, %v1186
    %v1215 = vadd.f32 %v1054, %v1191
    %v1216 = vadd.f32 %v1055, %v1194
    %v1217 = vadd.f32 %v1056, %v1199
    %v1218 = vadd.f32 %v1057, %v1202
    %v1219 = vadd.f32 %v1058, %v1207
    %v1220 = vadd.f32 %v1059, %v1210
    %v1221 = vmax.f32 %v1213, 0.0
    %v1222 = vmax.f32 %v1214, 0.0
    %v1223 = vmax.f32 %v1215, 0.0
    %v1224 = vmax.f32 %v1216, 0.0
    %v1225 = vmax.f32 %v1217, 0.0
    %v1226 = vmax.f32 %v1218, 0.0
    %v1227 = vmax.f32 %v1219, 0.0
    %v1228 = vmax.f32 %v1220, 0.0
    %s1229 = scalar_lea.vmem %s1, 1
    %v1230 = vld [vmem:[%s1229] sm:$0x1]
    %s1231 = scalar_lea.vmem [#allocation3], 96
    %v1232 = vld [vmem:[%s1231] sm:$0xf]
    %v1233 = vld [vmem:[%s1231 + $0x4] sm:$0xf]
    %v1234 = vld [vmem:[%s1231 + $0x8] sm:$0xf]
    %v1235 = vld [vmem:[%s1231 + $0xc] sm:$0xf]
    %v1236 = vld [vmem:[%s1231 + $0x10] sm:$0xf]
    %v1237 = vld [vmem:[%s1231 + $0x14] sm:$0xf]
    %v1238 = vld [vmem:[%s1231 + $0x18] sm:$0xf]
    %v1239 = vld [vmem:[%s1231 + $0x1c] sm:$0xf]
    %s1240 = scalar_lea.vmem [#allocation6], 96
    %v1241 = vld [vmem:[%s1240] sm:$0xf]
    %v1242 = vld [vmem:[%s1240 + $0x4] sm:$0xf]
    %v1243 = vld [vmem:[%s1240 + $0x8] sm:$0xf]
    %v1244 = vld [vmem:[%s1240 + $0xc] sm:$0xf]
    %v1245 = vld [vmem:[%s1240 + $0x10] sm:$0xf]
    %v1246 = vld [vmem:[%s1240 + $0x14] sm:$0xf]
    %v1247 = vld [vmem:[%s1240 + $0x18] sm:$0xf]
    %v1248 = vld [vmem:[%s1240 + $0x1c] sm:$0xf]
    %s1249 = scalar_lea.vmem [#allocation8], 192
    %v1250 = vld [vmem:[%s1249] sm:$0xff]
    %v1251 = vld [vmem:[%s1249 + $0x8] sm:$0xff]
    %v1252 = vld [vmem:[%s1249 + $0x10] sm:$0xff]
    %v1253 = vld [vmem:[%s1249 + $0x18] sm:$0xff]
    %v1254 = vld [vmem:[%s1249 + $0x20] sm:$0xff]
    %v1255 = vld [vmem:[%s1249 + $0x28] sm:$0xff]
    %v1256 = vld [vmem:[%s1249 + $0x30] sm:$0xff]
    %v1257 = vld [vmem:[%s1249 + $0x38] sm:$0xff]
    %1258 = vrot.lane.b32.xlu0 %v1221, 2
    %v1259 = vpop.permute.xlu0 %1258
    %1260 = vrot.lane.b32.xlu0 %v1222, 2
    %v1261 = vpop.permute.xlu0 %1260
    %1262 = vrot.lane.b32.xlu0 %v1223, 2
    %v1263 = vpop.permute.xlu0 %1262
    %1264 = vrot.lane.b32.xlu0 %v1224, 2
    %v1265 = vpop.permute.xlu0 %1264
    %1266 = vrot.lane.b32.xlu0 %v1225, 2
    %v1267 = vpop.permute.xlu0 %1266
    %1268 = vrot.lane.b32.xlu0 %v1226, 2
    %v1269 = vpop.permute.xlu0 %1268
    %1270 = vrot.lane.b32.xlu0 %v1227, 2
    %v1271 = vpop.permute.xlu0 %1270
    %1272 = vrot.lane.b32.xlu0 %v1228, 2
    %v1273 = vpop.permute.xlu0 %1272
    %v1275 = vlaneseq
    %v1276 = vshrl.u32 %v1275, 7
    %v1277 = vsub.s32 0, %v1276
    %v1278 = vrot.slane %v1230, %v1277
    %v1280 = vmul.f32 %v1259, %v1278
    %v1281 = vmul.f32 %v1261, %v1278
    %v1282 = vmul.f32 %v1263, %v1278
    %v1283 = vmul.f32 %v1265, %v1278
    %v1284 = vmul.f32 %v1267, %v1278
    %v1285 = vmul.f32 %v1269, %v1278
    %v1286 = vmul.f32 %v1271, %v1278
    %v1287 = vmul.f32 %v1273, %v1278
    %v1288 = vpack.c.bf16 %v1222, %v1221
    %v1289 = vpack.c.bf16 %v1224, %v1223
    %v1290 = vpack.c.bf16 %v1226, %v1225
    %v1291 = vpack.c.bf16 %v1228, %v1227
    %v1292 = vpack.c.bf16 %v1281, %v1280
    %v1293 = vpack.c.bf16 %v1283, %v1282
    %v1294 = vpack.c.bf16 %v1285, %v1284
    %v1295 = vpack.c.bf16 %v1287, %v1286
    %v1304 = vunpack.c.l.b16 %v1241
    %v1305 = vunpack.c.l.b16 %v1242
    %v1306 = vunpack.c.l.b16 %v1243
    %v1307 = vunpack.c.l.b16 %v1244
    %v1308 = vunpack.c.l.b16 %v1245
    %v1309 = vunpack.c.l.b16 %v1246
    %v1310 = vunpack.c.l.b16 %v1247
    %v1311 = vunpack.c.l.b16 %v1248
    %v1312 = vpack.c.b16 %v1305, %v1304
    %v1313 = vpack.c.b16 %v1307, %v1306
    %v1314 = vpack.c.b16 %v1309, %v1308
    %v1315 = vpack.c.b16 %v1311, %v1310
    %v1317 = vsel %vm211, %v1312, 0
    %v1320 = vsel %vm211, %v1313, 0
    %v1323 = vsel %vm211, %v1314, 0
    %v1326 = vsel %vm211, %v1315, 0
    %1328 = vmatprep.subr.bf16.mxu0 0
    %1329 = vmatpush1.bf16.msra.mxu0 0
    %1330 = vmatprep.subr.bf16.mxu0 0
    %1331 = vmatpush1.bf16.msra.mxu0 0
    %1332 = vmatprep.subr.bf16.mxu0 0
    %1333 = vmatpush1.bf16.msra.mxu0 0
    %1334 = vmatprep.subr.bf16.mxu0 0
    %1335 = vmatpush1.bf16.msra.mxu0 0
    %1336 = vmatprep.subr.bf16.mxu0 0
    %1337 = vmatpush1.bf16.msra.mxu0 %v1295
    %1338 = vmatprep.subr.bf16.mxu0 0
    %1339 = vmatpush1.bf16.msra.mxu0 %v1294
    %1340 = vmatprep.subr.bf16.mxu0 0
    %1341 = vmatpush1.bf16.msra.mxu0 %v1293
    %1342 = vmatprep.subr.bf16.mxu0 0
    %1343 = vmatpush1.bf16.msra.mxu0 %v1292
    %1344 = vmatprep.subr.bf16.mxu0 0
    %1345 = vmatpush2.bf16.msra.mxu0 0
    %1346 = vmatprep.subr.bf16.mxu0 0
    %1347 = vmatpush2.bf16.msra.mxu0 0
    %1348 = vmatprep.subr.bf16.mxu0 0
    %1349 = vmatpush2.bf16.msra.mxu0 0
    %1350 = vmatprep.subr.bf16.mxu0 0
    %1351 = vmatpush2.bf16.msra.mxu0 0
    %1352 = vmatprep.subr.bf16.mxu0 0
    %1353 = vmatpush2.bf16.msra.mxu0 0
    %1354 = vmatprep.subr.bf16.mxu0 0
    %1355 = vmatpush2.bf16.msra.mxu0 0
    %1356 = vmatprep.subr.bf16.mxu0 0
    %1357 = vmatpush2.bf16.msra.mxu0 0
    %1358 = vmatprep.subr.bf16.mxu0 0
    %1359 = vmatpush2.bf16.msra.mxu0 0
    %1360 = vmatprep.mubr.bf16.mxu0 0
    %1361 = vmatmul.mubr.bf16.gmra.mxu0 %v1317
    %v1362 = vpop.f32.mrf.mxu0
    %v1363 = vadd.f32 0.0, %v1362
    %v1364 = vpop.f32.mrf.mxu0
    %v1365 = vpop.f32.mrf.mxu0
    %v1366 = vadd.f32 0.0, %v1365
    %v1367 = vpop.f32.mrf.mxu0
    %1368 = vmatprep.mubr.bf16.mxu0 0
    %1369 = vmatmul.mubr.bf16.gmra.mxu0 %v1320
    %v1370 = vpop.f32.mrf.mxu0
    %v1371 = vadd.f32 0.0, %v1370
    %v1372 = vpop.f32.mrf.mxu0
    %v1373 = vpop.f32.mrf.mxu0
    %v1374 = vadd.f32 0.0, %v1373
    %v1375 = vpop.f32.mrf.mxu0
    %1376 = vmatprep.mubr.bf16.mxu0 0
    %1377 = vmatmul.mubr.bf16.gmra.mxu0 %v1323
    %v1378 = vpop.f32.mrf.mxu0
    %v1379 = vadd.f32 0.0, %v1378
    %v1380 = vpop.f32.mrf.mxu0
    %v1381 = vpop.f32.mrf.mxu0
    %v1382 = vadd.f32 0.0, %v1381
    %v1383 = vpop.f32.mrf.mxu0
    %1384 = vmatprep.mubr.bf16.mxu0 0
    %1385 = vmatmul.mubr.bf16.gmra.mxu0 %v1326
    %v1386 = vpop.f32.mrf.mxu0
    %v1387 = vadd.f32 0.0, %v1386
    %v1388 = vpop.f32.mrf.mxu0
    %v1389 = vpop.f32.mrf.mxu0
    %v1390 = vadd.f32 0.0, %v1389
    %v1391 = vpop.f32.mrf.mxu0
    %1392 = vdwg.mxu0
    %v1401 = vunpack.c.l.b16 %v1232
    %v1402 = vunpack.c.l.b16 %v1233
    %v1403 = vunpack.c.l.b16 %v1234
    %v1404 = vunpack.c.l.b16 %v1235
    %v1405 = vunpack.c.l.b16 %v1236
    %v1406 = vunpack.c.l.b16 %v1237
    %v1407 = vunpack.c.l.b16 %v1238
    %v1408 = vunpack.c.l.b16 %v1239
    %v1409 = vpack.c.b16 %v1402, %v1401
    %v1410 = vpack.c.b16 %v1404, %v1403
    %v1411 = vpack.c.b16 %v1406, %v1405
    %v1412 = vpack.c.b16 %v1408, %v1407
    %v1414 = vsel %vm211, %v1409, 0
    %v1417 = vsel %vm211, %v1410, 0
    %v1420 = vsel %vm211, %v1411, 0
    %v1423 = vsel %vm211, %v1412, 0
    %1425 = vmatprep.subr.bf16.mxu0 0
    %1426 = vmatpush1.bf16.msra.mxu0 0
    %1427 = vmatprep.subr.bf16.mxu0 0
    %1428 = vmatpush1.bf16.msra.mxu0 0
    %1429 = vmatprep.subr.bf16.mxu0 0
    %1430 = vmatpush1.bf16.msra.mxu0 0
    %1431 = vmatprep.subr.bf16.mxu0 0
    %1432 = vmatpush1.bf16.msra.mxu0 0
    %1433 = vmatprep.subr.bf16.mxu0 0
    %1434 = vmatpush1.bf16.msra.mxu0 %v1291
    %1435 = vmatprep.subr.bf16.mxu0 0
    %1436 = vmatpush1.bf16.msra.mxu0 %v1290
    %1437 = vmatprep.subr.bf16.mxu0 0
    %1438 = vmatpush1.bf16.msra.mxu0 %v1289
    %1439 = vmatprep.subr.bf16.mxu0 0
    %1440 = vmatpush1.bf16.msra.mxu0 %v1288
    %1441 = vmatprep.subr.bf16.mxu0 0
    %1442 = vmatpush2.bf16.msra.mxu0 0
    %1443 = vmatprep.subr.bf16.mxu0 0
    %1444 = vmatpush2.bf16.msra.mxu0 0
    %1445 = vmatprep.subr.bf16.mxu0 0
    %1446 = vmatpush2.bf16.msra.mxu0 0
    %1447 = vmatprep.subr.bf16.mxu0 0
    %1448 = vmatpush2.bf16.msra.mxu0 0
    %1449 = vmatprep.subr.bf16.mxu0 0
    %1450 = vmatpush2.bf16.msra.mxu0 0
    %1451 = vmatprep.subr.bf16.mxu0 0
    %1452 = vmatpush2.bf16.msra.mxu0 0
    %1453 = vmatprep.subr.bf16.mxu0 0
    %1454 = vmatpush2.bf16.msra.mxu0 0
    %1455 = vmatprep.subr.bf16.mxu0 0
    %1456 = vmatpush2.bf16.msra.mxu0 0
    %1457 = vmatprep.mubr.bf16.mxu0 0
    %1458 = vmatmul.mubr.bf16.gmra.mxu0 %v1414
    %v1459 = vpop.f32.mrf.mxu0
    %v1460 = vadd.f32 %v1363, %v1459
    %v1461 = vpop.f32.mrf.mxu0
    %v1462 = vpop.f32.mrf.mxu0
    %v1463 = vadd.f32 %v1366, %v1462
    %v1464 = vpop.f32.mrf.mxu0
    %1465 = vmatprep.mubr.bf16.mxu0 0
    %1466 = vmatmul.mubr.bf16.gmra.mxu0 %v1417
    %v1467 = vpop.f32.mrf.mxu0
    %v1468 = vadd.f32 %v1371, %v1467
    %v1469 = vpop.f32.mrf.mxu0
    %v1470 = vpop.f32.mrf.mxu0
    %v1471 = vadd.f32 %v1374, %v1470
    %v1472 = vpop.f32.mrf.mxu0
    %1473 = vmatprep.mubr.bf16.mxu0 0
    %1474 = vmatmul.mubr.bf16.gmra.mxu0 %v1420
    %v1475 = vpop.f32.mrf.mxu0
    %v1476 = vadd.f32 %v1379, %v1475
    %v1477 = vpop.f32.mrf.mxu0
    %v1478 = vpop.f32.mrf.mxu0
    %v1479 = vadd.f32 %v1382, %v1478
    %v1480 = vpop.f32.mrf.mxu0
    %1481 = vmatprep.mubr.bf16.mxu0 0
    %1482 = vmatmul.mubr.bf16.gmra.mxu0 %v1423
    %v1483 = vpop.f32.mrf.mxu0
    %v1484 = vadd.f32 %v1387, %v1483
    %v1485 = vpop.f32.mrf.mxu0
    %v1486 = vpop.f32.mrf.mxu0
    %v1487 = vadd.f32 %v1390, %v1486
    %v1488 = vpop.f32.mrf.mxu0
    %1489 = vdwg.mxu0
    %1491 = vset.pattern.permute.xlu0 0
    %1492 = vperm.xlu0 %1491, %v1250
    %v1493 = vpop.permute.xlu0 %1492
    %1496 = vset.pattern.permute.xlu0 0
    %1497 = vperm.xlu0 %1496, %v1251
    %v1498 = vpop.permute.xlu0 %1497
    %1501 = vset.pattern.permute.xlu0 0
    %1502 = vperm.xlu0 %1501, %v1252
    %v1503 = vpop.permute.xlu0 %1502
    %1506 = vset.pattern.permute.xlu0 0
    %1507 = vperm.xlu0 %1506, %v1253
    %v1508 = vpop.permute.xlu0 %1507
    %1511 = vset.pattern.permute.xlu0 0
    %1512 = vperm.xlu0 %1511, %v1254
    %v1513 = vpop.permute.xlu0 %1512
    %1516 = vset.pattern.permute.xlu0 0
    %1517 = vperm.xlu0 %1516, %v1255
    %v1518 = vpop.permute.xlu0 %1517
    %1521 = vset.pattern.permute.xlu0 0
    %1522 = vperm.xlu0 %1521, %v1256
    %v1523 = vpop.permute.xlu0 %1522
    %1526 = vset.pattern.permute.xlu0 0
    %1527 = vperm.xlu0 %1526, %v1257
    %v1528 = vpop.permute.xlu0 %1527
    %v1530 = vadd.f32 %v1460, %v1493
    %v1531 = vadd.f32 %v1463, %v1498
    %v1532 = vadd.f32 %v1468, %v1503
    %v1533 = vadd.f32 %v1471, %v1508
    %v1534 = vadd.f32 %v1476, %v1513
    %v1535 = vadd.f32 %v1479, %v1518
    %v1536 = vadd.f32 %v1484, %v1523
    %v1537 = vadd.f32 %v1487, %v1528
    %v1538 = vmax.f32 %v1530, 0.0
    %v1539 = vmax.f32 %v1531, 0.0
    %v1540 = vmax.f32 %v1532, 0.0
    %v1541 = vmax.f32 %v1533, 0.0
    %v1542 = vmax.f32 %v1534, 0.0
    %v1543 = vmax.f32 %v1535, 0.0
    %v1544 = vmax.f32 %v1536, 0.0
    %v1545 = vmax.f32 %v1537, 0.0
    %s1546 = scalar_lea.vmem [#allocation3], 128
    %v1547 = vld [vmem:[%s1546] sm:$0xf]
    %v1548 = vld [vmem:[%s1546 + $0x4] sm:$0xf]
    %v1549 = vld [vmem:[%s1546 + $0x8] sm:$0xf]
    %v1550 = vld [vmem:[%s1546 + $0xc] sm:$0xf]
    %v1551 = vld [vmem:[%s1546 + $0x10] sm:$0xf]
    %v1552 = vld [vmem:[%s1546 + $0x14] sm:$0xf]
    %v1553 = vld [vmem:[%s1546 + $0x18] sm:$0xf]
    %v1554 = vld [vmem:[%s1546 + $0x1c] sm:$0xf]
    %s1555 = scalar_lea.vmem [#allocation6], 128
    %v1556 = vld [vmem:[%s1555] sm:$0xf]
    %v1557 = vld [vmem:[%s1555 + $0x4] sm:$0xf]
    %v1558 = vld [vmem:[%s1555 + $0x8] sm:$0xf]
    %v1559 = vld [vmem:[%s1555 + $0xc] sm:$0xf]
    %v1560 = vld [vmem:[%s1555 + $0x10] sm:$0xf]
    %v1561 = vld [vmem:[%s1555 + $0x14] sm:$0xf]
    %v1562 = vld [vmem:[%s1555 + $0x18] sm:$0xf]
    %v1563 = vld [vmem:[%s1555 + $0x1c] sm:$0xf]
    %s1564 = scalar_lea.vmem [#allocation8], 256
    %v1565 = vld [vmem:[%s1564] sm:$0xff]
    %v1566 = vld [vmem:[%s1564 + $0x8] sm:$0xff]
    %v1567 = vld [vmem:[%s1564 + $0x10] sm:$0xff]
    %v1568 = vld [vmem:[%s1564 + $0x18] sm:$0xff]
    %v1569 = vld [vmem:[%s1564 + $0x20] sm:$0xff]
    %v1570 = vld [vmem:[%s1564 + $0x28] sm:$0xff]
    %v1571 = vld [vmem:[%s1564 + $0x30] sm:$0xff]
    %v1572 = vld [vmem:[%s1564 + $0x38] sm:$0xff]
    %1573 = vrot.lane.b32.xlu0 %v1538, 2
    %v1574 = vpop.permute.xlu0 %1573
    %1575 = vrot.lane.b32.xlu0 %v1539, 2
    %v1576 = vpop.permute.xlu0 %1575
    %1577 = vrot.lane.b32.xlu0 %v1540, 2
    %v1578 = vpop.permute.xlu0 %1577
    %1579 = vrot.lane.b32.xlu0 %v1541, 2
    %v1580 = vpop.permute.xlu0 %1579
    %1581 = vrot.lane.b32.xlu0 %v1542, 2
    %v1582 = vpop.permute.xlu0 %1581
    %1583 = vrot.lane.b32.xlu0 %v1543, 2
    %v1584 = vpop.permute.xlu0 %1583
    %1585 = vrot.lane.b32.xlu0 %v1544, 2
    %v1586 = vpop.permute.xlu0 %1585
    %1587 = vrot.lane.b32.xlu0 %v1545, 2
    %v1588 = vpop.permute.xlu0 %1587
    %v1589 = vmul.f32 %v1574, %v1278
    %v1590 = vmul.f32 %v1576, %v1278
    %v1591 = vmul.f32 %v1578, %v1278
    %v1592 = vmul.f32 %v1580, %v1278
    %v1593 = vmul.f32 %v1582, %v1278
    %v1594 = vmul.f32 %v1584, %v1278
    %v1595 = vmul.f32 %v1586, %v1278
    %v1596 = vmul.f32 %v1588, %v1278
    %v1597 = vpack.c.bf16 %v1539, %v1538
    %v1598 = vpack.c.bf16 %v1541, %v1540
    %v1599 = vpack.c.bf16 %v1543, %v1542
    %v1600 = vpack.c.bf16 %v1545, %v1544
    %v1601 = vpack.c.bf16 %v1590, %v1589
    %v1602 = vpack.c.bf16 %v1592, %v1591
    %v1603 = vpack.c.bf16 %v1594, %v1593
    %v1604 = vpack.c.bf16 %v1596, %v1595
    %v1613 = vunpack.c.l.b16 %v1556
    %v1614 = vunpack.c.l.b16 %v1557
    %v1615 = vunpack.c.l.b16 %v1558
    %v1616 = vunpack.c.l.b16 %v1559
    %v1617 = vunpack.c.l.b16 %v1560
    %v1618 = vunpack.c.l.b16 %v1561
    %v1619 = vunpack.c.l.b16 %v1562
    %v1620 = vunpack.c.l.b16 %v1563
    %v1621 = vpack.c.b16 %v1614, %v1613
    %v1622 = vpack.c.b16 %v1616, %v1615
    %v1623 = vpack.c.b16 %v1618, %v1617
    %v1624 = vpack.c.b16 %v1620, %v1619
    %v1626 = vsel %vm211, %v1621, 0
    %v1629 = vsel %vm211, %v1622, 0
    %v1632 = vsel %vm211, %v1623, 0
    %v1635 = vsel %vm211, %v1624, 0
    %1637 = vmatprep.subr.bf16.mxu0 0
    %1638 = vmatpush1.bf16.msra.mxu0 0
    %1639 = vmatprep.subr.bf16.mxu0 0
    %1640 = vmatpush1.bf16.msra.mxu0 0
    %1641 = vmatprep.subr.bf16.mxu0 0
    %1642 = vmatpush1.bf16.msra.mxu0 0
    %1643 = vmatprep.subr.bf16.mxu0 0
    %1644 = vmatpush1.bf16.msra.mxu0 0
    %1645 = vmatprep.subr.bf16.mxu0 0
    %1646 = vmatpush1.bf16.msra.mxu0 %v1604
    %1647 = vmatprep.subr.bf16.mxu0 0
    %1648 = vmatpush1.bf16.msra.mxu0 %v1603
    %1649 = vmatprep.subr.bf16.mxu0 0
    %1650 = vmatpush1.bf16.msra.mxu0 %v1602
    %1651 = vmatprep.subr.bf16.mxu0 0
    %1652 = vmatpush1.bf16.msra.mxu0 %v1601
    %1653 = vmatprep.subr.bf16.mxu0 0
    %1654 = vmatpush2.bf16.msra.mxu0 0
    %1655 = vmatprep.subr.bf16.mxu0 0
    %1656 = vmatpush2.bf16.msra.mxu0 0
    %1657 = vmatprep.subr.bf16.mxu0 0
    %1658 = vmatpush2.bf16.msra.mxu0 0
    %1659 = vmatprep.subr.bf16.mxu0 0
    %1660 = vmatpush2.bf16.msra.mxu0 0
    %1661 = vmatprep.subr.bf16.mxu0 0
    %1662 = vmatpush2.bf16.msra.mxu0 0
    %1663 = vmatprep.subr.bf16.mxu0 0
    %1664 = vmatpush2.bf16.msra.mxu0 0
    %1665 = vmatprep.subr.bf16.mxu0 0
    %1666 = vmatpush2.bf16.msra.mxu0 0
    %1667 = vmatprep.subr.bf16.mxu0 0
    %1668 = vmatpush2.bf16.msra.mxu0 0
    %1669 = vmatprep.mubr.bf16.mxu0 0
    %1670 = vmatmul.mubr.bf16.gmra.mxu0 %v1626
    %v1671 = vpop.f32.mrf.mxu0
    %v1672 = vadd.f32 0.0, %v1671
    %v1673 = vpop.f32.mrf.mxu0
    %v1674 = vpop.f32.mrf.mxu0
    %v1675 = vadd.f32 0.0, %v1674
    %v1676 = vpop.f32.mrf.mxu0
    %1677 = vmatprep.mubr.bf16.mxu0 0
    %1678 = vmatmul.mubr.bf16.gmra.mxu0 %v1629
    %v1679 = vpop.f32.mrf.mxu0
    %v1680 = vadd.f32 0.0, %v1679
    %v1681 = vpop.f32.mrf.mxu0
    %v1682 = vpop.f32.mrf.mxu0
    %v1683 = vadd.f32 0.0, %v1682
    %v1684 = vpop.f32.mrf.mxu0
    %1685 = vmatprep.mubr.bf16.mxu0 0
    %1686 = vmatmul.mubr.bf16.gmra.mxu0 %v1632
    %v1687 = vpop.f32.mrf.mxu0
    %v1688 = vadd.f32 0.0, %v1687
    %v1689 = vpop.f32.mrf.mxu0
    %v1690 = vpop.f32.mrf.mxu0
    %v1691 = vadd.f32 0.0, %v1690
    %v1692 = vpop.f32.mrf.mxu0
    %1693 = vmatprep.mubr.bf16.mxu0 0
    %1694 = vmatmul.mubr.bf16.gmra.mxu0 %v1635
    %v1695 = vpop.f32.mrf.mxu0
    %v1696 = vadd.f32 0.0, %v1695
    %v1697 = vpop.f32.mrf.mxu0
    %v1698 = vpop.f32.mrf.mxu0
    %v1699 = vadd.f32 0.0, %v1698
    %v1700 = vpop.f32.mrf.mxu0
    %1701 = vdwg.mxu0
    %v1710 = vunpack.c.l.b16 %v1547
    %v1711 = vunpack.c.l.b16 %v1548
    %v1712 = vunpack.c.l.b16 %v1549
    %v1713 = vunpack.c.l.b16 %v1550
    %v1714 = vunpack.c.l.b16 %v1551
    %v1715 = vunpack.c.l.b16 %v1552
    %v1716 = vunpack.c.l.b16 %v1553
    %v1717 = vunpack.c.l.b16 %v1554
    %v1718 = vpack.c.b16 %v1711, %v1710
    %v1719 = vpack.c.b16 %v1713, %v1712
    %v1720 = vpack.c.b16 %v1715, %v1714
    %v1721 = vpack.c.b16 %v1717, %v1716
    %v1723 = vsel %vm211, %v1718, 0
    %v1726 = vsel %vm211, %v1719, 0
    %v1729 = vsel %vm211, %v1720, 0
    %v1732 = vsel %vm211, %v1721, 0
    %1734 = vmatprep.subr.bf16.mxu0 0
    %1735 = vmatpush1.bf16.msra.mxu0 0
    %1736 = vmatprep.subr.bf16.mxu0 0
    %1737 = vmatpush1.bf16.msra.mxu0 0
    %1738 = vmatprep.subr.bf16.mxu0 0
    %1739 = vmatpush1.bf16.msra.mxu0 0
    %1740 = vmatprep.subr.bf16.mxu0 0
    %1741 = vmatpush1.bf16.msra.mxu0 0
    %1742 = vmatprep.subr.bf16.mxu0 0
    %1743 = vmatpush1.bf16.msra.mxu0 %v1600
    %1744 = vmatprep.subr.bf16.mxu0 0
    %1745 = vmatpush1.bf16.msra.mxu0 %v1599
    %1746 = vmatprep.subr.bf16.mxu0 0
    %1747 = vmatpush1.bf16.msra.mxu0 %v1598
    %1748 = vmatprep.subr.bf16.mxu0 0
    %1749 = vmatpush1.bf16.msra.mxu0 %v1597
    %1750 = vmatprep.subr.bf16.mxu0 0
    %1751 = vmatpush2.bf16.msra.mxu0 0
    %1752 = vmatprep.subr.bf16.mxu0 0
    %1753 = vmatpush2.bf16.msra.mxu0 0
    %1754 = vmatprep.subr.bf16.mxu0 0
    %1755 = vmatpush2.bf16.msra.mxu0 0
    %1756 = vmatprep.subr.bf16.mxu0 0
    %1757 = vmatpush2.bf16.msra.mxu0 0
    %1758 = vmatprep.subr.bf16.mxu0 0
    %1759 = vmatpush2.bf16.msra.mxu0 0
    %1760 = vmatprep.subr.bf16.mxu0 0
    %1761 = vmatpush2.bf16.msra.mxu0 0
    %1762 = vmatprep.subr.bf16.mxu0 0
    %1763 = vmatpush2.bf16.msra.mxu0 0
    %1764 = vmatprep.subr.bf16.mxu0 0
    %1765 = vmatpush2.bf16.msra.mxu0 0
    %1766 = vmatprep.mubr.bf16.mxu0 0
    %1767 = vmatmul.mubr.bf16.gmra.mxu0 %v1723
    %v1768 = vpop.f32.mrf.mxu0
    %v1769 = vadd.f32 %v1672, %v1768
    %v1770 = vpop.f32.mrf.mxu0
    %v1771 = vpop.f32.mrf.mxu0
    %v1772 = vadd.f32 %v1675, %v1771
    %v1773 = vpop.f32.mrf.mxu0
    %1774 = vmatprep.mubr.bf16.mxu0 0
    %1775 = vmatmul.mubr.bf16.gmra.mxu0 %v1726
    %v1776 = vpop.f32.mrf.mxu0
    %v1777 = vadd.f32 %v1680, %v1776
    %v1778 = vpop.f32.mrf.mxu0
    %v1779 = vpop.f32.mrf.mxu0
    %v1780 = vadd.f32 %v1683, %v1779
    %v1781 = vpop.f32.mrf.mxu0
    %1782 = vmatprep.mubr.bf16.mxu0 0
    %1783 = vmatmul.mubr.bf16.gmra.mxu0 %v1729
    %v1784 = vpop.f32.mrf.mxu0
    %v1785 = vadd.f32 %v1688, %v1784
    %v1786 = vpop.f32.mrf.mxu0
    %v1787 = vpop.f32.mrf.mxu0
    %v1788 = vadd.f32 %v1691, %v1787
    %v1789 = vpop.f32.mrf.mxu0
    %1790 = vmatprep.mubr.bf16.mxu0 0
    %1791 = vmatmul.mubr.bf16.gmra.mxu0 %v1732
    %v1792 = vpop.f32.mrf.mxu0
    %v1793 = vadd.f32 %v1696, %v1792
    %v1794 = vpop.f32.mrf.mxu0
    %v1795 = vpop.f32.mrf.mxu0
    %v1796 = vadd.f32 %v1699, %v1795
    %v1797 = vpop.f32.mrf.mxu0
    %1798 = vdwg.mxu0
    %1800 = vset.pattern.permute.xlu0 0
    %1801 = vperm.xlu0 %1800, %v1565
    %v1802 = vpop.permute.xlu0 %1801
    %1805 = vset.pattern.permute.xlu0 0
    %1806 = vperm.xlu0 %1805, %v1566
    %v1807 = vpop.permute.xlu0 %1806
    %1810 = vset.pattern.permute.xlu0 0
    %1811 = vperm.xlu0 %1810, %v1567
    %v1812 = vpop.permute.xlu0 %1811
    %1815 = vset.pattern.permute.xlu0 0
    %1816 = vperm.xlu0 %1815, %v1568
    %v1817 = vpop.permute.xlu0 %1816
    %1820 = vset.pattern.permute.xlu0 0
    %1821 = vperm.xlu0 %1820, %v1569
    %v1822 = vpop.permute.xlu0 %1821
    %1825 = vset.pattern.permute.xlu0 0
    %1826 = vperm.xlu0 %1825, %v1570
    %v1827 = vpop.permute.xlu0 %1826
    %1830 = vset.pattern.permute.xlu0 0
    %1831 = vperm.xlu0 %1830, %v1571
    %v1832 = vpop.permute.xlu0 %1831
    %1835 = vset.pattern.permute.xlu0 0
    %1836 = vperm.xlu0 %1835, %v1572
    %v1837 = vpop.permute.xlu0 %1836
    %v1839 = vadd.f32 %v1769, %v1802
    %v1840 = vadd.f32 %v1772, %v1807
    %v1841 = vadd.f32 %v1777, %v1812
    %v1842 = vadd.f32 %v1780, %v1817
    %v1843 = vadd.f32 %v1785, %v1822
    %v1844 = vadd.f32 %v1788, %v1827
    %v1845 = vadd.f32 %v1793, %v1832
    %v1846 = vadd.f32 %v1796, %v1837
    %v1847 = vmax.f32 %v1839, 0.0
    %v1848 = vmax.f32 %v1840, 0.0
    %v1849 = vmax.f32 %v1841, 0.0
    %v1850 = vmax.f32 %v1842, 0.0
    %v1851 = vmax.f32 %v1843, 0.0
    %v1852 = vmax.f32 %v1844, 0.0
    %v1853 = vmax.f32 %v1845, 0.0
    %v1854 = vmax.f32 %v1846, 0.0
    %s1855 = scalar_lea.vmem [#allocation3], 160
    %v1856 = vld [vmem:[%s1855] sm:$0xf]
    %v1857 = vld [vmem:[%s1855 + $0x4] sm:$0xf]
    %v1858 = vld [vmem:[%s1855 + $0x8] sm:$0xf]
    %v1859 = vld [vmem:[%s1855 + $0xc] sm:$0xf]
    %v1860 = vld [vmem:[%s1855 + $0x10] sm:$0xf]
    %v1861 = vld [vmem:[%s1855 + $0x14] sm:$0xf]
    %v1862 = vld [vmem:[%s1855 + $0x18] sm:$0xf]
    %v1863 = vld [vmem:[%s1855 + $0x1c] sm:$0xf]
    %s1864 = scalar_lea.vmem [#allocation6], 160
    %v1865 = vld [vmem:[%s1864] sm:$0xf]
    %v1866 = vld [vmem:[%s1864 + $0x4] sm:$0xf]
    %v1867 = vld [vmem:[%s1864 + $0x8] sm:$0xf]
    %v1868 = vld [vmem:[%s1864 + $0xc] sm:$0xf]
    %v1869 = vld [vmem:[%s1864 + $0x10] sm:$0xf]
    %v1870 = vld [vmem:[%s1864 + $0x14] sm:$0xf]
    %v1871 = vld [vmem:[%s1864 + $0x18] sm:$0xf]
    %v1872 = vld [vmem:[%s1864 + $0x1c] sm:$0xf]
    %s1873 = scalar_lea.vmem [#allocation8], 320
    %v1874 = vld [vmem:[%s1873] sm:$0xff]
    %v1875 = vld [vmem:[%s1873 + $0x8] sm:$0xff]
    %v1876 = vld [vmem:[%s1873 + $0x10] sm:$0xff]
    %v1877 = vld [vmem:[%s1873 + $0x18] sm:$0xff]
    %v1878 = vld [vmem:[%s1873 + $0x20] sm:$0xff]
    %v1879 = vld [vmem:[%s1873 + $0x28] sm:$0xff]
    %v1880 = vld [vmem:[%s1873 + $0x30] sm:$0xff]
    %v1881 = vld [vmem:[%s1873 + $0x38] sm:$0xff]
    %1882 = vrot.lane.b32.xlu0 %v1847, 2
    %v1883 = vpop.permute.xlu0 %1882
    %1884 = vrot.lane.b32.xlu0 %v1848, 2
    %v1885 = vpop.permute.xlu0 %1884
    %1886 = vrot.lane.b32.xlu0 %v1849, 2
    %v1887 = vpop.permute.xlu0 %1886
    %1888 = vrot.lane.b32.xlu0 %v1850, 2
    %v1889 = vpop.permute.xlu0 %1888
    %1890 = vrot.lane.b32.xlu0 %v1851, 2
    %v1891 = vpop.permute.xlu0 %1890
    %1892 = vrot.lane.b32.xlu0 %v1852, 2
    %v1893 = vpop.permute.xlu0 %1892
    %1894 = vrot.lane.b32.xlu0 %v1853, 2
    %v1895 = vpop.permute.xlu0 %1894
    %1896 = vrot.lane.b32.xlu0 %v1854, 2
    %v1897 = vpop.permute.xlu0 %1896
    %v1898 = vmul.f32 %v1883, %v1278
    %v1899 = vmul.f32 %v1885, %v1278
    %v1900 = vmul.f32 %v1887, %v1278
    %v1901 = vmul.f32 %v1889, %v1278
    %v1902 = vmul.f32 %v1891, %v1278
    %v1903 = vmul.f32 %v1893, %v1278
    %v1904 = vmul.f32 %v1895, %v1278
    %v1905 = vmul.f32 %v1897, %v1278
    %v1906 = vpack.c.bf16 %v1848, %v1847
    %v1907 = vpack.c.bf16 %v1850, %v1849
    %v1908 = vpack.c.bf16 %v1852, %v1851
    %v1909 = vpack.c.bf16 %v1854, %v1853
    %v1910 = vpack.c.bf16 %v1899, %v1898
    %v1911 = vpack.c.bf16 %v1901, %v1900
    %v1912 = vpack.c.bf16 %v1903, %v1902
    %v1913 = vpack.c.bf16 %v1905, %v1904
    %v1922 = vunpack.c.l.b16 %v1865
    %v1923 = vunpack.c.l.b16 %v1866
    %v1924 = vunpack.c.l.b16 %v1867
    %v1925 = vunpack.c.l.b16 %v1868
    %v1926 = vunpack.c.l.b16 %v1869
    %v1927 = vunpack.c.l.b16 %v1870
    %v1928 = vunpack.c.l.b16 %v1871
    %v1929 = vunpack.c.l.b16 %v1872
    %v1930 = vpack.c.b16 %v1923, %v1922
    %v1931 = vpack.c.b16 %v1925, %v1924
    %v1932 = vpack.c.b16 %v1927, %v1926
    %v1933 = vpack.c.b16 %v1929, %v1928
    %v1935 = vsel %vm211, %v1930, 0
    %v1938 = vsel %vm211, %v1931, 0
    %v1941 = vsel %vm211, %v1932, 0
    %v1944 = vsel %vm211, %v1933, 0
    %1946 = vmatprep.subr.bf16.mxu0 0
    %1947 = vmatpush1.bf16.msra.mxu0 0
    %1948 = vmatprep.subr.bf16.mxu0 0
    %1949 = vmatpush1.bf16.msra.mxu0 0
    %1950 = vmatprep.subr.bf16.mxu0 0
    %1951 = vmatpush1.bf16.msra.mxu0 0
    %1952 = vmatprep.subr.bf16.mxu0 0
    %1953 = vmatpush1.bf16.msra.mxu0 0
    %1954 = vmatprep.subr.bf16.mxu0 0
    %1955 = vmatpush1.bf16.msra.mxu0 %v1913
    %1956 = vmatprep.subr.bf16.mxu0 0
    %1957 = vmatpush1.bf16.msra.mxu0 %v1912
    %1958 = vmatprep.subr.bf16.mxu0 0
    %1959 = vmatpush1.bf16.msra.mxu0 %v1911
    %1960 = vmatprep.subr.bf16.mxu0 0
    %1961 = vmatpush1.bf16.msra.mxu0 %v1910
    %1962 = vmatprep.subr.bf16.mxu0 0
    %1963 = vmatpush2.bf16.msra.mxu0 0
    %1964 = vmatprep.subr.bf16.mxu0 0
    %1965 = vmatpush2.bf16.msra.mxu0 0
    %1966 = vmatprep.subr.bf16.mxu0 0
    %1967 = vmatpush2.bf16.msra.mxu0 0
    %1968 = vmatprep.subr.bf16.mxu0 0
    %1969 = vmatpush2.bf16.msra.mxu0 0
    %1970 = vmatprep.subr.bf16.mxu0 0
    %1971 = vmatpush2.bf16.msra.mxu0 0
    %1972 = vmatprep.subr.bf16.mxu0 0
    %1973 = vmatpush2.bf16.msra.mxu0 0
    %1974 = vmatprep.subr.bf16.mxu0 0
    %1975 = vmatpush2.bf16.msra.mxu0 0
    %1976 = vmatprep.subr.bf16.mxu0 0
    %1977 = vmatpush2.bf16.msra.mxu0 0
    %1978 = vmatprep.mubr.bf16.mxu0 0
    %1979 = vmatmul.mubr.bf16.gmra.mxu0 %v1935
    %v1980 = vpop.f32.mrf.mxu0
    %v1981 = vadd.f32 0.0, %v1980
    %v1982 = vpop.f32.mrf.mxu0
    %v1983 = vpop.f32.mrf.mxu0
    %v1984 = vadd.f32 0.0, %v1983
    %v1985 = vpop.f32.mrf.mxu0
    %1986 = vmatprep.mubr.bf16.mxu0 0
    %1987 = vmatmul.mubr.bf16.gmra.mxu0 %v1938
    %v1988 = vpop.f32.mrf.mxu0
    %v1989 = vadd.f32 0.0, %v1988
    %v1990 = vpop.f32.mrf.mxu0
    %v1991 = vpop.f32.mrf.mxu0
    %v1992 = vadd.f32 0.0, %v1991
    %v1993 = vpop.f32.mrf.mxu0
    %1994 = vmatprep.mubr.bf16.mxu0 0
    %1995 = vmatmul.mubr.bf16.gmra.mxu0 %v1941
    %v1996 = vpop.f32.mrf.mxu0
    %v1997 = vadd.f32 0.0, %v1996
    %v1998 = vpop.f32.mrf.mxu0
    %v1999 = vpop.f32.mrf.mxu0
    %v2000 = vadd.f32 0.0, %v1999
    %v2001 = vpop.f32.mrf.mxu0
    %2002 = vmatprep.mubr.bf16.mxu0 0
    %2003 = vmatmul.mubr.bf16.gmra.mxu0 %v1944
    %v2004 = vpop.f32.mrf.mxu0
    %v2005 = vadd.f32 0.0, %v2004
    %v2006 = vpop.f32.mrf.mxu0
    %v2007 = vpop.f32.mrf.mxu0
    %v2008 = vadd.f32 0.0, %v2007
    %v2009 = vpop.f32.mrf.mxu0
    %2010 = vdwg.mxu0
    %v2019 = vunpack.c.l.b16 %v1856
    %v2020 = vunpack.c.l.b16 %v1857
    %v2021 = vunpack.c.l.b16 %v1858
    %v2022 = vunpack.c.l.b16 %v1859
    %v2023 = vunpack.c.l.b16 %v1860
    %v2024 = vunpack.c.l.b16 %v1861
    %v2025 = vunpack.c.l.b16 %v1862
    %v2026 = vunpack.c.l.b16 %v1863
    %v2027 = vpack.c.b16 %v2020, %v2019
    %v2028 = vpack.c.b16 %v2022, %v2021
    %v2029 = vpack.c.b16 %v2024, %v2023
    %v2030 = vpack.c.b16 %v2026, %v2025
    %v2032 = vsel %vm211, %v2027, 0
    %v2035 = vsel %vm211, %v2028, 0
    %v2038 = vsel %vm211, %v2029, 0
    %v2041 = vsel %vm211, %v2030, 0
    %2043 = vmatprep.subr.bf16.mxu0 0
    %2044 = vmatpush1.bf16.msra.mxu0 0
    %2045 = vmatprep.subr.bf16.mxu0 0
    %2046 = vmatpush1.bf16.msra.mxu0 0
    %2047 = vmatprep.subr.bf16.mxu0 0
    %2048 = vmatpush1.bf16.msra.mxu0 0
    %2049 = vmatprep.subr.bf16.mxu0 0
    %2050 = vmatpush1.bf16.msra.mxu0 0
    %2051 = vmatprep.subr.bf16.mxu0 0
    %2052 = vmatpush1.bf16.msra.mxu0 %v1909
    %2053 = vmatprep.subr.bf16.mxu0 0
    %2054 = vmatpush1.bf16.msra.mxu0 %v1908
    %2055 = vmatprep.subr.bf16.mxu0 0
    %2056 = vmatpush1.bf16.msra.mxu0 %v1907
    %2057 = vmatprep.subr.bf16.mxu0 0
    %2058 = vmatpush1.bf16.msra.mxu0 %v1906
    %2059 = vmatprep.subr.bf16.mxu0 0
    %2060 = vmatpush2.bf16.msra.mxu0 0
    %2061 = vmatprep.subr.bf16.mxu0 0
    %2062 = vmatpush2.bf16.msra.mxu0 0
    %2063 = vmatprep.subr.bf16.mxu0 0
    %2064 = vmatpush2.bf16.msra.mxu0 0
    %2065 = vmatprep.subr.bf16.mxu0 0
    %2066 = vmatpush2.bf16.msra.mxu0 0
    %2067 = vmatprep.subr.bf16.mxu0 0
    %2068 = vmatpush2.bf16.msra.mxu0 0
    %2069 = vmatprep.subr.bf16.mxu0 0
    %2070 = vmatpush2.bf16.msra.mxu0 0
    %2071 = vmatprep.subr.bf16.mxu0 0
    %2072 = vmatpush2.bf16.msra.mxu0 0
    %2073 = vmatprep.subr.bf16.mxu0 0
    %2074 = vmatpush2.bf16.msra.mxu0 0
    %2075 = vmatprep.mubr.bf16.mxu0 0
    %2076 = vmatmul.mubr.bf16.gmra.mxu0 %v2032
    %v2077 = vpop.f32.mrf.mxu0
    %v2078 = vadd.f32 %v1981, %v2077
    %v2079 = vpop.f32.mrf.mxu0
    %v2080 = vpop.f32.mrf.mxu0
    %v2081 = vadd.f32 %v1984, %v2080
    %v2082 = vpop.f32.mrf.mxu0
    %2083 = vmatprep.mubr.bf16.mxu0 0
    %2084 = vmatmul.mubr.bf16.gmra.mxu0 %v2035
    %v2085 = vpop.f32.mrf.mxu0
    %v2086 = vadd.f32 %v1989, %v2085
    %v2087 = vpop.f32.mrf.mxu0
    %v2088 = vpop.f32.mrf.mxu0
    %v2089 = vadd.f32 %v1992, %v2088
    %v2090 = vpop.f32.mrf.mxu0
    %2091 = vmatprep.mubr.bf16.mxu0 0
    %2092 = vmatmul.mubr.bf16.gmra.mxu0 %v2038
    %v2093 = vpop.f32.mrf.mxu0
    %v2094 = vadd.f32 %v1997, %v2093
    %v2095 = vpop.f32.mrf.mxu0
    %v2096 = vpop.f32.mrf.mxu0
    %v2097 = vadd.f32 %v2000, %v2096
    %v2098 = vpop.f32.mrf.mxu0
    %2099 = vmatprep.mubr.bf16.mxu0 0
    %2100 = vmatmul.mubr.bf16.gmra.mxu0 %v2041
    %v2101 = vpop.f32.mrf.mxu0
    %v2102 = vadd.f32 %v2005, %v2101
    %v2103 = vpop.f32.mrf.mxu0
    %v2104 = vpop.f32.mrf.mxu0
    %v2105 = vadd.f32 %v2008, %v2104
    %v2106 = vpop.f32.mrf.mxu0
    %2107 = vdwg.mxu0
    %2109 = vset.pattern.permute.xlu0 0
    %2110 = vperm.xlu0 %2109, %v1874
    %v2111 = vpop.permute.xlu0 %2110
    %2114 = vset.pattern.permute.xlu0 0
    %2115 = vperm.xlu0 %2114, %v1875
    %v2116 = vpop.permute.xlu0 %2115
    %2119 = vset.pattern.permute.xlu0 0
    %2120 = vperm.xlu0 %2119, %v1876
    %v2121 = vpop.permute.xlu0 %2120
    %2124 = vset.pattern.permute.xlu0 0
    %2125 = vperm.xlu0 %2124, %v1877
    %v2126 = vpop.permute.xlu0 %2125
    %2129 = vset.pattern.permute.xlu0 0
    %2130 = vperm.xlu0 %2129, %v1878
    %v2131 = vpop.permute.xlu0 %2130
    %2134 = vset.pattern.permute.xlu0 0
    %2135 = vperm.xlu0 %2134, %v1879
    %v2136 = vpop.permute.xlu0 %2135
    %2139 = vset.pattern.permute.xlu0 0
    %2140 = vperm.xlu0 %2139, %v1880
    %v2141 = vpop.permute.xlu0 %2140
    %2144 = vset.pattern.permute.xlu0 0
    %2145 = vperm.xlu0 %2144, %v1881
    %v2146 = vpop.permute.xlu0 %2145
    %v2148 = vadd.f32 %v2078, %v2111
    %v2149 = vadd.f32 %v2081, %v2116
    %v2150 = vadd.f32 %v2086, %v2121
    %v2151 = vadd.f32 %v2089, %v2126
    %v2152 = vadd.f32 %v2094, %v2131
    %v2153 = vadd.f32 %v2097, %v2136
    %v2154 = vadd.f32 %v2102, %v2141
    %v2155 = vadd.f32 %v2105, %v2146
    %v2156 = vmax.f32 %v2148, 0.0
    %v2157 = vmax.f32 %v2149, 0.0
    %v2158 = vmax.f32 %v2150, 0.0
    %v2159 = vmax.f32 %v2151, 0.0
    %v2160 = vmax.f32 %v2152, 0.0
    %v2161 = vmax.f32 %v2153, 0.0
    %v2162 = vmax.f32 %v2154, 0.0
    %v2163 = vmax.f32 %v2155, 0.0
    %v2164 = vadd.f32 %v2156, %v1221
    %v2165 = vadd.f32 %v2157, %v1222
    %v2166 = vadd.f32 %v2158, %v1223
    %v2167 = vadd.f32 %v2159, %v1224
    %v2168 = vadd.f32 %v2160, %v1225
    %v2169 = vadd.f32 %v2161, %v1226
    %v2170 = vadd.f32 %v2162, %v1227
    %v2171 = vadd.f32 %v2163, %v1228
    %v2172 = vmax.f32 %v2164, 0.0
    %v2173 = vmax.f32 %v2165, 0.0
    %v2174 = vmax.f32 %v2166, 0.0
    %v2175 = vmax.f32 %v2167, 0.0
    %v2176 = vmax.f32 %v2168, 0.0
    %v2177 = vmax.f32 %v2169, 0.0
    %v2178 = vmax.f32 %v2170, 0.0
    %v2179 = vmax.f32 %v2171, 0.0
    %s2180 = scalar_lea.vmem %s1, 2
    %v2181 = vld [vmem:[%s2180] sm:$0x1]
    %s2182 = scalar_lea.vmem [#allocation3], 192
    %v2183 = vld [vmem:[%s2182] sm:$0xf]
    %v2184 = vld [vmem:[%s2182 + $0x4] sm:$0xf]
    %v2185 = vld [vmem:[%s2182 + $0x8] sm:$0xf]
    %v2186 = vld [vmem:[%s2182 + $0xc] sm:$0xf]
    %v2187 = vld [vmem:[%s2182 + $0x10] sm:$0xf]
    %v2188 = vld [vmem:[%s2182 + $0x14] sm:$0xf]
    %v2189 = vld [vmem:[%s2182 + $0x18] sm:$0xf]
    %v2190 = vld [vmem:[%s2182 + $0x1c] sm:$0xf]
    %s2191 = scalar_lea.vmem [#allocation6], 192
    %v2192 = vld [vmem:[%s2191] sm:$0xf]
    %v2193 = vld [vmem:[%s2191 + $0x4] sm:$0xf]
    %v2194 = vld [vmem:[%s2191 + $0x8] sm:$0xf]
    %v2195 = vld [vmem:[%s2191 + $0xc] sm:$0xf]
    %v2196 = vld [vmem:[%s2191 + $0x10] sm:$0xf]
    %v2197 = vld [vmem:[%s2191 + $0x14] sm:$0xf]
    %v2198 = vld [vmem:[%s2191 + $0x18] sm:$0xf]
    %v2199 = vld [vmem:[%s2191 + $0x1c] sm:$0xf]
    %s2200 = scalar_lea.vmem [#allocation8], 384
    %v2201 = vld [vmem:[%s2200] sm:$0xff]
    %v2202 = vld [vmem:[%s2200 + $0x8] sm:$0xff]
    %v2203 = vld [vmem:[%s2200 + $0x10] sm:$0xff]
    %v2204 = vld [vmem:[%s2200 + $0x18] sm:$0xff]
    %v2205 = vld [vmem:[%s2200 + $0x20] sm:$0xff]
    %v2206 = vld [vmem:[%s2200 + $0x28] sm:$0xff]
    %v2207 = vld [vmem:[%s2200 + $0x30] sm:$0xff]
    %v2208 = vld [vmem:[%s2200 + $0x38] sm:$0xff]
    %2209 = vrot.lane.b32.xlu0 %v2172, 4
    %v2210 = vpop.permute.xlu0 %2209
    %2211 = vrot.lane.b32.xlu0 %v2173, 4
    %v2212 = vpop.permute.xlu0 %2211
    %2213 = vrot.lane.b32.xlu0 %v2174, 4
    %v2214 = vpop.permute.xlu0 %2213
    %2215 = vrot.lane.b32.xlu0 %v2175, 4
    %v2216 = vpop.permute.xlu0 %2215
    %2217 = vrot.lane.b32.xlu0 %v2176, 4
    %v2218 = vpop.permute.xlu0 %2217
    %2219 = vrot.lane.b32.xlu0 %v2177, 4
    %v2220 = vpop.permute.xlu0 %2219
    %2221 = vrot.lane.b32.xlu0 %v2178, 4
    %v2222 = vpop.permute.xlu0 %2221
    %2223 = vrot.lane.b32.xlu0 %v2179, 4
    %v2224 = vpop.permute.xlu0 %2223
    %v2226 = vlaneseq
    %v2227 = vshrl.u32 %v2226, 7
    %v2228 = vsub.s32 0, %v2227
    %v2229 = vrot.slane %v2181, %v2228
    %v2231 = vmul.f32 %v2210, %v2229
    %v2232 = vmul.f32 %v2212, %v2229
    %v2233 = vmul.f32 %v2214, %v2229
    %v2234 = vmul.f32 %v2216, %v2229
    %v2235 = vmul.f32 %v2218, %v2229
    %v2236 = vmul.f32 %v2220, %v2229
    %v2237 = vmul.f32 %v2222, %v2229
    %v2238 = vmul.f32 %v2224, %v2229
    %v2239 = vpack.c.bf16 %v2173, %v2172
    %v2240 = vpack.c.bf16 %v2175, %v2174
    %v2241 = vpack.c.bf16 %v2177, %v2176
    %v2242 = vpack.c.bf16 %v2179, %v2178
    %v2243 = vpack.c.bf16 %v2232, %v2231
    %v2244 = vpack.c.bf16 %v2234, %v2233
    %v2245 = vpack.c.bf16 %v2236, %v2235
    %v2246 = vpack.c.bf16 %v2238, %v2237
    %v2255 = vunpack.c.l.b16 %v2192
    %v2256 = vunpack.c.l.b16 %v2193
    %v2257 = vunpack.c.l.b16 %v2194
    %v2258 = vunpack.c.l.b16 %v2195
    %v2259 = vunpack.c.l.b16 %v2196
    %v2260 = vunpack.c.l.b16 %v2197
    %v2261 = vunpack.c.l.b16 %v2198
    %v2262 = vunpack.c.l.b16 %v2199
    %v2263 = vpack.c.b16 %v2256, %v2255
    %v2264 = vpack.c.b16 %v2258, %v2257
    %v2265 = vpack.c.b16 %v2260, %v2259
    %v2266 = vpack.c.b16 %v2262, %v2261
    %v2268 = vsel %vm211, %v2263, 0
    %v2271 = vsel %vm211, %v2264, 0
    %v2274 = vsel %vm211, %v2265, 0
    %v2277 = vsel %vm211, %v2266, 0
    %2279 = vmatprep.subr.bf16.mxu0 0
    %2280 = vmatpush1.bf16.msra.mxu0 0
    %2281 = vmatprep.subr.bf16.mxu0 0
    %2282 = vmatpush1.bf16.msra.mxu0 0
    %2283 = vmatprep.subr.bf16.mxu0 0
    %2284 = vmatpush1.bf16.msra.mxu0 0
    %2285 = vmatprep.subr.bf16.mxu0 0
    %2286 = vmatpush1.bf16.msra.mxu0 0
    %2287 = vmatprep.subr.bf16.mxu0 0
    %2288 = vmatpush1.bf16.msra.mxu0 %v2246
    %2289 = vmatprep.subr.bf16.mxu0 0
    %2290 = vmatpush1.bf16.msra.mxu0 %v2245
    %2291 = vmatprep.subr.bf16.mxu0 0
    %2292 = vmatpush1.bf16.msra.mxu0 %v2244
    %2293 = vmatprep.subr.bf16.mxu0 0
    %2294 = vmatpush1.bf16.msra.mxu0 %v2243
    %2295 = vmatprep.subr.bf16.mxu0 0
    %2296 = vmatpush2.bf16.msra.mxu0 0
    %2297 = vmatprep.subr.bf16.mxu0 0
    %2298 = vmatpush2.bf16.msra.mxu0 0
    %2299 = vmatprep.subr.bf16.mxu0 0
    %2300 = vmatpush2.bf16.msra.mxu0 0
    %2301 = vmatprep.subr.bf16.mxu0 0
    %2302 = vmatpush2.bf16.msra.mxu0 0
    %2303 = vmatprep.subr.bf16.mxu0 0
    %2304 = vmatpush2.bf16.msra.mxu0 0
    %2305 = vmatprep.subr.bf16.mxu0 0
    %2306 = vmatpush2.bf16.msra.mxu0 0
    %2307 = vmatprep.subr.bf16.mxu0 0
    %2308 = vmatpush2.bf16.msra.mxu0 0
    %2309 = vmatprep.subr.bf16.mxu0 0
    %2310 = vmatpush2.bf16.msra.mxu0 0
    %2311 = vmatprep.mubr.bf16.mxu0 0
    %2312 = vmatmul.mubr.bf16.gmra.mxu0 %v2268
    %v2313 = vpop.f32.mrf.mxu0
    %v2314 = vadd.f32 0.0, %v2313
    %v2315 = vpop.f32.mrf.mxu0
    %v2316 = vpop.f32.mrf.mxu0
    %v2317 = vadd.f32 0.0, %v2316
    %v2318 = vpop.f32.mrf.mxu0
    %2319 = vmatprep.mubr.bf16.mxu0 0
    %2320 = vmatmul.mubr.bf16.gmra.mxu0 %v2271
    %v2321 = vpop.f32.mrf.mxu0
    %v2322 = vadd.f32 0.0, %v2321
    %v2323 = vpop.f32.mrf.mxu0
    %v2324 = vpop.f32.mrf.mxu0
    %v2325 = vadd.f32 0.0, %v2324
    %v2326 = vpop.f32.mrf.mxu0
    %2327 = vmatprep.mubr.bf16.mxu0 0
    %2328 = vmatmul.mubr.bf16.gmra.mxu0 %v2274
    %v2329 = vpop.f32.mrf.mxu0
    %v2330 = vadd.f32 0.0, %v2329
    %v2331 = vpop.f32.mrf.mxu0
    %v2332 = vpop.f32.mrf.mxu0
    %v2333 = vadd.f32 0.0, %v2332
    %v2334 = vpop.f32.mrf.mxu0
    %2335 = vmatprep.mubr.bf16.mxu0 0
    %2336 = vmatmul.mubr.bf16.gmra.mxu0 %v2277
    %v2337 = vpop.f32.mrf.mxu0
    %v2338 = vadd.f32 0.0, %v2337
    %v2339 = vpop.f32.mrf.mxu0
    %v2340 = vpop.f32.mrf.mxu0
    %v2341 = vadd.f32 0.0, %v2340
    %v2342 = vpop.f32.mrf.mxu0
    %2343 = vdwg.mxu0
    %v2352 = vunpack.c.l.b16 %v2183
    %v2353 = vunpack.c.l.b16 %v2184
    %v2354 = vunpack.c.l.b16 %v2185
    %v2355 = vunpack.c.l.b16 %v2186
    %v2356 = vunpack.c.l.b16 %v2187
    %v2357 = vunpack.c.l.b16 %v2188
    %v2358 = vunpack.c.l.b16 %v2189
    %v2359 = vunpack.c.l.b16 %v2190
    %v2360 = vpack.c.b16 %v2353, %v2352
    %v2361 = vpack.c.b16 %v2355, %v2354
    %v2362 = vpack.c.b16 %v2357, %v2356
    %v2363 = vpack.c.b16 %v2359, %v2358
    %v2365 = vsel %vm211, %v2360, 0
    %v2368 = vsel %vm211, %v2361, 0
    %v2371 = vsel %vm211, %v2362, 0
    %v2374 = vsel %vm211, %v2363, 0
    %2376 = vmatprep.subr.bf16.mxu0 0
    %2377 = vmatpush1.bf16.msra.mxu0 0
    %2378 = vmatprep.subr.bf16.mxu0 0
    %2379 = vmatpush1.bf16.msra.mxu0 0
    %2380 = vmatprep.subr.bf16.mxu0 0
    %2381 = vmatpush1.bf16.msra.mxu0 0
    %2382 = vmatprep.subr.bf16.mxu0 0
    %2383 = vmatpush1.bf16.msra.mxu0 0
    %2384 = vmatprep.subr.bf16.mxu0 0
    %2385 = vmatpush1.bf16.msra.mxu0 %v2242
    %2386 = vmatprep.subr.bf16.mxu0 0
    %2387 = vmatpush1.bf16.msra.mxu0 %v2241
    %2388 = vmatprep.subr.bf16.mxu0 0
    %2389 = vmatpush1.bf16.msra.mxu0 %v2240
    %2390 = vmatprep.subr.bf16.mxu0 0
    %2391 = vmatpush1.bf16.msra.mxu0 %v2239
    %2392 = vmatprep.subr.bf16.mxu0 0
    %2393 = vmatpush2.bf16.msra.mxu0 0
    %2394 = vmatprep.subr.bf16.mxu0 0
    %2395 = vmatpush2.bf16.msra.mxu0 0
    %2396 = vmatprep.subr.bf16.mxu0 0
    %2397 = vmatpush2.bf16.msra.mxu0 0
    %2398 = vmatprep.subr.bf16.mxu0 0
    %2399 = vmatpush2.bf16.msra.mxu0 0
    %2400 = vmatprep.subr.bf16.mxu0 0
    %2401 = vmatpush2.bf16.msra.mxu0 0
    %2402 = vmatprep.subr.bf16.mxu0 0
    %2403 = vmatpush2.bf16.msra.mxu0 0
    %2404 = vmatprep.subr.bf16.mxu0 0
    %2405 = vmatpush2.bf16.msra.mxu0 0
    %2406 = vmatprep.subr.bf16.mxu0 0
    %2407 = vmatpush2.bf16.msra.mxu0 0
    %2408 = vmatprep.mubr.bf16.mxu0 0
    %2409 = vmatmul.mubr.bf16.gmra.mxu0 %v2365
    %v2410 = vpop.f32.mrf.mxu0
    %v2411 = vadd.f32 %v2314, %v2410
    %v2412 = vpop.f32.mrf.mxu0
    %v2413 = vpop.f32.mrf.mxu0
    %v2414 = vadd.f32 %v2317, %v2413
    %v2415 = vpop.f32.mrf.mxu0
    %2416 = vmatprep.mubr.bf16.mxu0 0
    %2417 = vmatmul.mubr.bf16.gmra.mxu0 %v2368
    %v2418 = vpop.f32.mrf.mxu0
    %v2419 = vadd.f32 %v2322, %v2418
    %v2420 = vpop.f32.mrf.mxu0
    %v2421 = vpop.f32.mrf.mxu0
    %v2422 = vadd.f32 %v2325, %v2421
    %v2423 = vpop.f32.mrf.mxu0
    %2424 = vmatprep.mubr.bf16.mxu0 0
    %2425 = vmatmul.mubr.bf16.gmra.mxu0 %v2371
    %v2426 = vpop.f32.mrf.mxu0
    %v2427 = vadd.f32 %v2330, %v2426
    %v2428 = vpop.f32.mrf.mxu0
    %v2429 = vpop.f32.mrf.mxu0
    %v2430 = vadd.f32 %v2333, %v2429
    %v2431 = vpop.f32.mrf.mxu0
    %2432 = vmatprep.mubr.bf16.mxu0 0
    %2433 = vmatmul.mubr.bf16.gmra.mxu0 %v2374
    %v2434 = vpop.f32.mrf.mxu0
    %v2435 = vadd.f32 %v2338, %v2434
    %v2436 = vpop.f32.mrf.mxu0
    %v2437 = vpop.f32.mrf.mxu0
    %v2438 = vadd.f32 %v2341, %v2437
    %v2439 = vpop.f32.mrf.mxu0
    %2440 = vdwg.mxu0
    %2442 = vset.pattern.permute.xlu0 0
    %2443 = vperm.xlu0 %2442, %v2201
    %v2444 = vpop.permute.xlu0 %2443
    %2447 = vset.pattern.permute.xlu0 0
    %2448 = vperm.xlu0 %2447, %v2202
    %v2449 = vpop.permute.xlu0 %2448
    %2452 = vset.pattern.permute.xlu0 0
    %2453 = vperm.xlu0 %2452, %v2203
    %v2454 = vpop.permute.xlu0 %2453
    %2457 = vset.pattern.permute.xlu0 0
    %2458 = vperm.xlu0 %2457, %v2204
    %v2459 = vpop.permute.xlu0 %2458
    %2462 = vset.pattern.permute.xlu0 0
    %2463 = vperm.xlu0 %2462, %v2205
    %v2464 = vpop.permute.xlu0 %2463
    %2467 = vset.pattern.permute.xlu0 0
    %2468 = vperm.xlu0 %2467, %v2206
    %v2469 = vpop.permute.xlu0 %2468
    %2472 = vset.pattern.permute.xlu0 0
    %2473 = vperm.xlu0 %2472, %v2207
    %v2474 = vpop.permute.xlu0 %2473
    %2477 = vset.pattern.permute.xlu0 0
    %2478 = vperm.xlu0 %2477, %v2208
    %v2479 = vpop.permute.xlu0 %2478
    %v2481 = vadd.f32 %v2411, %v2444
    %v2482 = vadd.f32 %v2414, %v2449
    %v2483 = vadd.f32 %v2419, %v2454
    %v2484 = vadd.f32 %v2422, %v2459
    %v2485 = vadd.f32 %v2427, %v2464
    %v2486 = vadd.f32 %v2430, %v2469
    %v2487 = vadd.f32 %v2435, %v2474
    %v2488 = vadd.f32 %v2438, %v2479
    %v2489 = vmax.f32 %v2481, 0.0
    %v2490 = vmax.f32 %v2482, 0.0
    %v2491 = vmax.f32 %v2483, 0.0
    %v2492 = vmax.f32 %v2484, 0.0
    %v2493 = vmax.f32 %v2485, 0.0
    %v2494 = vmax.f32 %v2486, 0.0
    %v2495 = vmax.f32 %v2487, 0.0
    %v2496 = vmax.f32 %v2488, 0.0
    %s2497 = scalar_lea.vmem [#allocation3], 224
    %v2498 = vld [vmem:[%s2497] sm:$0xf]
    %v2499 = vld [vmem:[%s2497 + $0x4] sm:$0xf]
    %v2500 = vld [vmem:[%s2497 + $0x8] sm:$0xf]
    %v2501 = vld [vmem:[%s2497 + $0xc] sm:$0xf]
    %v2502 = vld [vmem:[%s2497 + $0x10] sm:$0xf]
    %v2503 = vld [vmem:[%s2497 + $0x14] sm:$0xf]
    %v2504 = vld [vmem:[%s2497 + $0x18] sm:$0xf]
    %v2505 = vld [vmem:[%s2497 + $0x1c] sm:$0xf]
    %s2506 = scalar_lea.vmem [#allocation6], 224
    %v2507 = vld [vmem:[%s2506] sm:$0xf]
    %v2508 = vld [vmem:[%s2506 + $0x4] sm:$0xf]
    %v2509 = vld [vmem:[%s2506 + $0x8] sm:$0xf]
    %v2510 = vld [vmem:[%s2506 + $0xc] sm:$0xf]
    %v2511 = vld [vmem:[%s2506 + $0x10] sm:$0xf]
    %v2512 = vld [vmem:[%s2506 + $0x14] sm:$0xf]
    %v2513 = vld [vmem:[%s2506 + $0x18] sm:$0xf]
    %v2514 = vld [vmem:[%s2506 + $0x1c] sm:$0xf]
    %s2515 = scalar_lea.vmem [#allocation8], 448
    %v2516 = vld [vmem:[%s2515] sm:$0xff]
    %v2517 = vld [vmem:[%s2515 + $0x8] sm:$0xff]
    %v2518 = vld [vmem:[%s2515 + $0x10] sm:$0xff]
    %v2519 = vld [vmem:[%s2515 + $0x18] sm:$0xff]
    %v2520 = vld [vmem:[%s2515 + $0x20] sm:$0xff]
    %v2521 = vld [vmem:[%s2515 + $0x28] sm:$0xff]
    %v2522 = vld [vmem:[%s2515 + $0x30] sm:$0xff]
    %v2523 = vld [vmem:[%s2515 + $0x38] sm:$0xff]
    %2524 = vrot.lane.b32.xlu0 %v2489, 4
    %v2525 = vpop.permute.xlu0 %2524
    %2526 = vrot.lane.b32.xlu0 %v2490, 4
    %v2527 = vpop.permute.xlu0 %2526
    %2528 = vrot.lane.b32.xlu0 %v2491, 4
    %v2529 = vpop.permute.xlu0 %2528
    %2530 = vrot.lane.b32.xlu0 %v2492, 4
    %v2531 = vpop.permute.xlu0 %2530
    %2532 = vrot.lane.b32.xlu0 %v2493, 4
    %v2533 = vpop.permute.xlu0 %2532
    %2534 = vrot.lane.b32.xlu0 %v2494, 4
    %v2535 = vpop.permute.xlu0 %2534
    %2536 = vrot.lane.b32.xlu0 %v2495, 4
    %v2537 = vpop.permute.xlu0 %2536
    %2538 = vrot.lane.b32.xlu0 %v2496, 4
    %v2539 = vpop.permute.xlu0 %2538
    %v2540 = vmul.f32 %v2525, %v2229
    %v2541 = vmul.f32 %v2527, %v2229
    %v2542 = vmul.f32 %v2529, %v2229
    %v2543 = vmul.f32 %v2531, %v2229
    %v2544 = vmul.f32 %v2533, %v2229
    %v2545 = vmul.f32 %v2535, %v2229
    %v2546 = vmul.f32 %v2537, %v2229
    %v2547 = vmul.f32 %v2539, %v2229
    %v2548 = vpack.c.bf16 %v2490, %v2489
    %v2549 = vpack.c.bf16 %v2492, %v2491
    %v2550 = vpack.c.bf16 %v2494, %v2493
    %v2551 = vpack.c.bf16 %v2496, %v2495
    %v2552 = vpack.c.bf16 %v2541, %v2540
    %v2553 = vpack.c.bf16 %v2543, %v2542
    %v2554 = vpack.c.bf16 %v2545, %v2544
    %v2555 = vpack.c.bf16 %v2547, %v2546
    %v2564 = vunpack.c.l.b16 %v2507
    %v2565 = vunpack.c.l.b16 %v2508
    %v2566 = vunpack.c.l.b16 %v2509
    %v2567 = vunpack.c.l.b16 %v2510
    %v2568 = vunpack.c.l.b16 %v2511
    %v2569 = vunpack.c.l.b16 %v2512
    %v2570 = vunpack.c.l.b16 %v2513
    %v2571 = vunpack.c.l.b16 %v2514
    %v2572 = vpack.c.b16 %v2565, %v2564
    %v2573 = vpack.c.b16 %v2567, %v2566
    %v2574 = vpack.c.b16 %v2569, %v2568
    %v2575 = vpack.c.b16 %v2571, %v2570
    %v2577 = vsel %vm211, %v2572, 0
    %v2580 = vsel %vm211, %v2573, 0
    %v2583 = vsel %vm211, %v2574, 0
    %v2586 = vsel %vm211, %v2575, 0
    %2588 = vmatprep.subr.bf16.mxu0 0
    %2589 = vmatpush1.bf16.msra.mxu0 0
    %2590 = vmatprep.subr.bf16.mxu0 0
    %2591 = vmatpush1.bf16.msra.mxu0 0
    %2592 = vmatprep.subr.bf16.mxu0 0
    %2593 = vmatpush1.bf16.msra.mxu0 0
    %2594 = vmatprep.subr.bf16.mxu0 0
    %2595 = vmatpush1.bf16.msra.mxu0 0
    %2596 = vmatprep.subr.bf16.mxu0 0
    %2597 = vmatpush1.bf16.msra.mxu0 %v2555
    %2598 = vmatprep.subr.bf16.mxu0 0
    %2599 = vmatpush1.bf16.msra.mxu0 %v2554
    %2600 = vmatprep.subr.bf16.mxu0 0
    %2601 = vmatpush1.bf16.msra.mxu0 %v2553
    %2602 = vmatprep.subr.bf16.mxu0 0
    %2603 = vmatpush1.bf16.msra.mxu0 %v2552
    %2604 = vmatprep.subr.bf16.mxu0 0
    %2605 = vmatpush2.bf16.msra.mxu0 0
    %2606 = vmatprep.subr.bf16.mxu0 0
    %2607 = vmatpush2.bf16.msra.mxu0 0
    %2608 = vmatprep.subr.bf16.mxu0 0
    %2609 = vmatpush2.bf16.msra.mxu0 0
    %2610 = vmatprep.subr.bf16.mxu0 0
    %2611 = vmatpush2.bf16.msra.mxu0 0
    %2612 = vmatprep.subr.bf16.mxu0 0
    %2613 = vmatpush2.bf16.msra.mxu0 0
    %2614 = vmatprep.subr.bf16.mxu0 0
    %2615 = vmatpush2.bf16.msra.mxu0 0
    %2616 = vmatprep.subr.bf16.mxu0 0
    %2617 = vmatpush2.bf16.msra.mxu0 0
    %2618 = vmatprep.subr.bf16.mxu0 0
    %2619 = vmatpush2.bf16.msra.mxu0 0
    %2620 = vmatprep.mubr.bf16.mxu0 0
    %2621 = vmatmul.mubr.bf16.gmra.mxu0 %v2577
    %v2622 = vpop.f32.mrf.mxu0
    %v2623 = vadd.f32 0.0, %v2622
    %v2624 = vpop.f32.mrf.mxu0
    %v2625 = vpop.f32.mrf.mxu0
    %v2626 = vadd.f32 0.0, %v2625
    %v2627 = vpop.f32.mrf.mxu0
    %2628 = vmatprep.mubr.bf16.mxu0 0
    %2629 = vmatmul.mubr.bf16.gmra.mxu0 %v2580
    %v2630 = vpop.f32.mrf.mxu0
    %v2631 = vadd.f32 0.0, %v2630
    %v2632 = vpop.f32.mrf.mxu0
    %v2633 = vpop.f32.mrf.mxu0
    %v2634 = vadd.f32 0.0, %v2633
    %v2635 = vpop.f32.mrf.mxu0
    %2636 = vmatprep.mubr.bf16.mxu0 0
    %2637 = vmatmul.mubr.bf16.gmra.mxu0 %v2583
    %v2638 = vpop.f32.mrf.mxu0
    %v2639 = vadd.f32 0.0, %v2638
    %v2640 = vpop.f32.mrf.mxu0
    %v2641 = vpop.f32.mrf.mxu0
    %v2642 = vadd.f32 0.0, %v2641
    %v2643 = vpop.f32.mrf.mxu0
    %2644 = vmatprep.mubr.bf16.mxu0 0
    %2645 = vmatmul.mubr.bf16.gmra.mxu0 %v2586
    %v2646 = vpop.f32.mrf.mxu0
    %v2647 = vadd.f32 0.0, %v2646
    %v2648 = vpop.f32.mrf.mxu0
    %v2649 = vpop.f32.mrf.mxu0
    %v2650 = vadd.f32 0.0, %v2649
    %v2651 = vpop.f32.mrf.mxu0
    %2652 = vdwg.mxu0
    %v2661 = vunpack.c.l.b16 %v2498
    %v2662 = vunpack.c.l.b16 %v2499
    %v2663 = vunpack.c.l.b16 %v2500
    %v2664 = vunpack.c.l.b16 %v2501
    %v2665 = vunpack.c.l.b16 %v2502
    %v2666 = vunpack.c.l.b16 %v2503
    %v2667 = vunpack.c.l.b16 %v2504
    %v2668 = vunpack.c.l.b16 %v2505
    %v2669 = vpack.c.b16 %v2662, %v2661
    %v2670 = vpack.c.b16 %v2664, %v2663
    %v2671 = vpack.c.b16 %v2666, %v2665
    %v2672 = vpack.c.b16 %v2668, %v2667
    %v2674 = vsel %vm211, %v2669, 0
    %v2677 = vsel %vm211, %v2670, 0
    %v2680 = vsel %vm211, %v2671, 0
    %v2683 = vsel %vm211, %v2672, 0
    %2685 = vmatprep.subr.bf16.mxu0 0
    %2686 = vmatpush1.bf16.msra.mxu0 0
    %2687 = vmatprep.subr.bf16.mxu0 0
    %2688 = vmatpush1.bf16.msra.mxu0 0
    %2689 = vmatprep.subr.bf16.mxu0 0
    %2690 = vmatpush1.bf16.msra.mxu0 0
    %2691 = vmatprep.subr.bf16.mxu0 0
    %2692 = vmatpush1.bf16.msra.mxu0 0
    %2693 = vmatprep.subr.bf16.mxu0 0
    %2694 = vmatpush1.bf16.msra.mxu0 %v2551
    %2695 = vmatprep.subr.bf16.mxu0 0
    %2696 = vmatpush1.bf16.msra.mxu0 %v2550
    %2697 = vmatprep.subr.bf16.mxu0 0
    %2698 = vmatpush1.bf16.msra.mxu0 %v2549
    %2699 = vmatprep.subr.bf16.mxu0 0
    %2700 = vmatpush1.bf16.msra.mxu0 %v2548
    %2701 = vmatprep.subr.bf16.mxu0 0
    %2702 = vmatpush2.bf16.msra.mxu0 0
    %2703 = vmatprep.subr.bf16.mxu0 0
    %2704 = vmatpush2.bf16.msra.mxu0 0
    %2705 = vmatprep.subr.bf16.mxu0 0
    %2706 = vmatpush2.bf16.msra.mxu0 0
    %2707 = vmatprep.subr.bf16.mxu0 0
    %2708 = vmatpush2.bf16.msra.mxu0 0
    %2709 = vmatprep.subr.bf16.mxu0 0
    %2710 = vmatpush2.bf16.msra.mxu0 0
    %2711 = vmatprep.subr.bf16.mxu0 0
    %2712 = vmatpush2.bf16.msra.mxu0 0
    %2713 = vmatprep.subr.bf16.mxu0 0
    %2714 = vmatpush2.bf16.msra.mxu0 0
    %2715 = vmatprep.subr.bf16.mxu0 0
    %2716 = vmatpush2.bf16.msra.mxu0 0
    %2717 = vmatprep.mubr.bf16.mxu0 0
    %2718 = vmatmul.mubr.bf16.gmra.mxu0 %v2674
    %v2719 = vpop.f32.mrf.mxu0
    %v2720 = vadd.f32 %v2623, %v2719
    %v2721 = vpop.f32.mrf.mxu0
    %v2722 = vpop.f32.mrf.mxu0
    %v2723 = vadd.f32 %v2626, %v2722
    %v2724 = vpop.f32.mrf.mxu0
    %2725 = vmatprep.mubr.bf16.mxu0 0
    %2726 = vmatmul.mubr.bf16.gmra.mxu0 %v2677
    %v2727 = vpop.f32.mrf.mxu0
    %v2728 = vadd.f32 %v2631, %v2727
    %v2729 = vpop.f32.mrf.mxu0
    %v2730 = vpop.f32.mrf.mxu0
    %v2731 = vadd.f32 %v2634, %v2730
    %v2732 = vpop.f32.mrf.mxu0
    %2733 = vmatprep.mubr.bf16.mxu0 0
    %2734 = vmatmul.mubr.bf16.gmra.mxu0 %v2680
    %v2735 = vpop.f32.mrf.mxu0
    %v2736 = vadd.f32 %v2639, %v2735
    %v2737 = vpop.f32.mrf.mxu0
    %v2738 = vpop.f32.mrf.mxu0
    %v2739 = vadd.f32 %v2642, %v2738
    %v2740 = vpop.f32.mrf.mxu0
    %2741 = vmatprep.mubr.bf16.mxu0 0
    %2742 = vmatmul.mubr.bf16.gmra.mxu0 %v2683
    %v2743 = vpop.f32.mrf.mxu0
    %v2744 = vadd.f32 %v2647, %v2743
    %v2745 = vpop.f32.mrf.mxu0
    %v2746 = vpop.f32.mrf.mxu0
    %v2747 = vadd.f32 %v2650, %v2746
    %v2748 = vpop.f32.mrf.mxu0
    %2749 = vdwg.mxu0
    %2751 = vset.pattern.permute.xlu0 0
    %2752 = vperm.xlu0 %2751, %v2516
    %v2753 = vpop.permute.xlu0 %2752
    %2756 = vset.pattern.permute.xlu0 0
    %2757 = vperm.xlu0 %2756, %v2517
    %v2758 = vpop.permute.xlu0 %2757
    %2761 = vset.pattern.permute.xlu0 0
    %2762 = vperm.xlu0 %2761, %v2518
    %v2763 = vpop.permute.xlu0 %2762
    %2766 = vset.pattern.permute.xlu0 0
    %2767 = vperm.xlu0 %2766, %v2519
    %v2768 = vpop.permute.xlu0 %2767
    %2771 = vset.pattern.permute.xlu0 0
    %2772 = vperm.xlu0 %2771, %v2520
    %v2773 = vpop.permute.xlu0 %2772
    %2776 = vset.pattern.permute.xlu0 0
    %2777 = vperm.xlu0 %2776, %v2521
    %v2778 = vpop.permute.xlu0 %2777
    %2781 = vset.pattern.permute.xlu0 0
    %2782 = vperm.xlu0 %2781, %v2522
    %v2783 = vpop.permute.xlu0 %2782
    %2786 = vset.pattern.permute.xlu0 0
    %2787 = vperm.xlu0 %2786, %v2523
    %v2788 = vpop.permute.xlu0 %2787
    %v2790 = vadd.f32 %v2720, %v2753
    %v2791 = vadd.f32 %v2723, %v2758
    %v2792 = vadd.f32 %v2728, %v2763
    %v2793 = vadd.f32 %v2731, %v2768
    %v2794 = vadd.f32 %v2736, %v2773
    %v2795 = vadd.f32 %v2739, %v2778
    %v2796 = vadd.f32 %v2744, %v2783
    %v2797 = vadd.f32 %v2747, %v2788
    %v2798 = vmax.f32 %v2790, 0.0
    %v2799 = vmax.f32 %v2791, 0.0
    %v2800 = vmax.f32 %v2792, 0.0
    %v2801 = vmax.f32 %v2793, 0.0
    %v2802 = vmax.f32 %v2794, 0.0
    %v2803 = vmax.f32 %v2795, 0.0
    %v2804 = vmax.f32 %v2796, 0.0
    %v2805 = vmax.f32 %v2797, 0.0
    %s2806 = scalar_lea.vmem [#allocation3], 256
    %v2807 = vld [vmem:[%s2806] sm:$0xf]
    %v2808 = vld [vmem:[%s2806 + $0x4] sm:$0xf]
    %v2809 = vld [vmem:[%s2806 + $0x8] sm:$0xf]
    %v2810 = vld [vmem:[%s2806 + $0xc] sm:$0xf]
    %v2811 = vld [vmem:[%s2806 + $0x10] sm:$0xf]
    %v2812 = vld [vmem:[%s2806 + $0x14] sm:$0xf]
    %v2813 = vld [vmem:[%s2806 + $0x18] sm:$0xf]
    %v2814 = vld [vmem:[%s2806 + $0x1c] sm:$0xf]
    %s2815 = scalar_lea.vmem [#allocation6], 256
    %v2816 = vld [vmem:[%s2815] sm:$0xf]
    %v2817 = vld [vmem:[%s2815 + $0x4] sm:$0xf]
    %v2818 = vld [vmem:[%s2815 + $0x8] sm:$0xf]
    %v2819 = vld [vmem:[%s2815 + $0xc] sm:$0xf]
    %v2820 = vld [vmem:[%s2815 + $0x10] sm:$0xf]
    %v2821 = vld [vmem:[%s2815 + $0x14] sm:$0xf]
    %v2822 = vld [vmem:[%s2815 + $0x18] sm:$0xf]
    %v2823 = vld [vmem:[%s2815 + $0x1c] sm:$0xf]
    %s2824 = scalar_lea.vmem [#allocation8], 512
    %v2825 = vld [vmem:[%s2824] sm:$0xff]
    %v2826 = vld [vmem:[%s2824 + $0x8] sm:$0xff]
    %v2827 = vld [vmem:[%s2824 + $0x10] sm:$0xff]
    %v2828 = vld [vmem:[%s2824 + $0x18] sm:$0xff]
    %v2829 = vld [vmem:[%s2824 + $0x20] sm:$0xff]
    %v2830 = vld [vmem:[%s2824 + $0x28] sm:$0xff]
    %v2831 = vld [vmem:[%s2824 + $0x30] sm:$0xff]
    %v2832 = vld [vmem:[%s2824 + $0x38] sm:$0xff]
    %2833 = vrot.lane.b32.xlu0 %v2798, 4
    %v2834 = vpop.permute.xlu0 %2833
    %2835 = vrot.lane.b32.xlu0 %v2799, 4
    %v2836 = vpop.permute.xlu0 %2835
    %2837 = vrot.lane.b32.xlu0 %v2800, 4
    %v2838 = vpop.permute.xlu0 %2837
    %2839 = vrot.lane.b32.xlu0 %v2801, 4
    %v2840 = vpop.permute.xlu0 %2839
    %2841 = vrot.lane.b32.xlu0 %v2802, 4
    %v2842 = vpop.permute.xlu0 %2841
    %2843 = vrot.lane.b32.xlu0 %v2803, 4
    %v2844 = vpop.permute.xlu0 %2843
    %2845 = vrot.lane.b32.xlu0 %v2804, 4
    %v2846 = vpop.permute.xlu0 %2845
    %2847 = vrot.lane.b32.xlu0 %v2805, 4
    %v2848 = vpop.permute.xlu0 %2847
    %v2849 = vmul.f32 %v2834, %v2229
    %v2850 = vmul.f32 %v2836, %v2229
    %v2851 = vmul.f32 %v2838, %v2229
    %v2852 = vmul.f32 %v2840, %v2229
    %v2853 = vmul.f32 %v2842, %v2229
    %v2854 = vmul.f32 %v2844, %v2229
    %v2855 = vmul.f32 %v2846, %v2229
    %v2856 = vmul.f32 %v2848, %v2229
    %v2857 = vpack.c.bf16 %v2799, %v2798
    %v2858 = vpack.c.bf16 %v2801, %v2800
    %v2859 = vpack.c.bf16 %v2803, %v2802
    %v2860 = vpack.c.bf16 %v2805, %v2804
    %v2861 = vpack.c.bf16 %v2850, %v2849
    %v2862 = vpack.c.bf16 %v2852, %v2851
    %v2863 = vpack.c.bf16 %v2854, %v2853
    %v2864 = vpack.c.bf16 %v2856, %v2855
    %v2873 = vunpack.c.l.b16 %v2816
    %v2874 = vunpack.c.l.b16 %v2817
    %v2875 = vunpack.c.l.b16 %v2818
    %v2876 = vunpack.c.l.b16 %v2819
    %v2877 = vunpack.c.l.b16 %v2820
    %v2878 = vunpack.c.l.b16 %v2821
    %v2879 = vunpack.c.l.b16 %v2822
    %v2880 = vunpack.c.l.b16 %v2823
    %v2881 = vpack.c.b16 %v2874, %v2873
    %v2882 = vpack.c.b16 %v2876, %v2875
    %v2883 = vpack.c.b16 %v2878, %v2877
    %v2884 = vpack.c.b16 %v2880, %v2879
    %v2886 = vsel %vm211, %v2881, 0
    %v2889 = vsel %vm211, %v2882, 0
    %v2892 = vsel %vm211, %v2883, 0
    %v2895 = vsel %vm211, %v2884, 0
    %2897 = vmatprep.subr.bf16.mxu0 0
    %2898 = vmatpush1.bf16.msra.mxu0 0
    %2899 = vmatprep.subr.bf16.mxu0 0
    %2900 = vmatpush1.bf16.msra.mxu0 0
    %2901 = vmatprep.subr.bf16.mxu0 0
    %2902 = vmatpush1.bf16.msra.mxu0 0
    %2903 = vmatprep.subr.bf16.mxu0 0
    %2904 = vmatpush1.bf16.msra.mxu0 0
    %2905 = vmatprep.subr.bf16.mxu0 0
    %2906 = vmatpush1.bf16.msra.mxu0 %v2864
    %2907 = vmatprep.subr.bf16.mxu0 0
    %2908 = vmatpush1.bf16.msra.mxu0 %v2863
    %2909 = vmatprep.subr.bf16.mxu0 0
    %2910 = vmatpush1.bf16.msra.mxu0 %v2862
    %2911 = vmatprep.subr.bf16.mxu0 0
    %2912 = vmatpush1.bf16.msra.mxu0 %v2861
    %2913 = vmatprep.subr.bf16.mxu0 0
    %2914 = vmatpush2.bf16.msra.mxu0 0
    %2915 = vmatprep.subr.bf16.mxu0 0
    %2916 = vmatpush2.bf16.msra.mxu0 0
    %2917 = vmatprep.subr.bf16.mxu0 0
    %2918 = vmatpush2.bf16.msra.mxu0 0
    %2919 = vmatprep.subr.bf16.mxu0 0
    %2920 = vmatpush2.bf16.msra.mxu0 0
    %2921 = vmatprep.subr.bf16.mxu0 0
    %2922 = vmatpush2.bf16.msra.mxu0 0
    %2923 = vmatprep.subr.bf16.mxu0 0
    %2924 = vmatpush2.bf16.msra.mxu0 0
    %2925 = vmatprep.subr.bf16.mxu0 0
    %2926 = vmatpush2.bf16.msra.mxu0 0
    %2927 = vmatprep.subr.bf16.mxu0 0
    %2928 = vmatpush2.bf16.msra.mxu0 0
    %2929 = vmatprep.mubr.bf16.mxu0 0
    %2930 = vmatmul.mubr.bf16.gmra.mxu0 %v2886
    %v2931 = vpop.f32.mrf.mxu0
    %v2932 = vadd.f32 0.0, %v2931
    %v2933 = vpop.f32.mrf.mxu0
    %v2934 = vpop.f32.mrf.mxu0
    %v2935 = vadd.f32 0.0, %v2934
    %v2936 = vpop.f32.mrf.mxu0
    %2937 = vmatprep.mubr.bf16.mxu0 0
    %2938 = vmatmul.mubr.bf16.gmra.mxu0 %v2889
    %v2939 = vpop.f32.mrf.mxu0
    %v2940 = vadd.f32 0.0, %v2939
    %v2941 = vpop.f32.mrf.mxu0
    %v2942 = vpop.f32.mrf.mxu0
    %v2943 = vadd.f32 0.0, %v2942
    %v2944 = vpop.f32.mrf.mxu0
    %2945 = vmatprep.mubr.bf16.mxu0 0
    %2946 = vmatmul.mubr.bf16.gmra.mxu0 %v2892
    %v2947 = vpop.f32.mrf.mxu0
    %v2948 = vadd.f32 0.0, %v2947
    %v2949 = vpop.f32.mrf.mxu0
    %v2950 = vpop.f32.mrf.mxu0
    %v2951 = vadd.f32 0.0, %v2950
    %v2952 = vpop.f32.mrf.mxu0
    %2953 = vmatprep.mubr.bf16.mxu0 0
    %2954 = vmatmul.mubr.bf16.gmra.mxu0 %v2895
    %v2955 = vpop.f32.mrf.mxu0
    %v2956 = vadd.f32 0.0, %v2955
    %v2957 = vpop.f32.mrf.mxu0
    %v2958 = vpop.f32.mrf.mxu0
    %v2959 = vadd.f32 0.0, %v2958
    %v2960 = vpop.f32.mrf.mxu0
    %2961 = vdwg.mxu0
    %v2970 = vunpack.c.l.b16 %v2807
    %v2971 = vunpack.c.l.b16 %v2808
    %v2972 = vunpack.c.l.b16 %v2809
    %v2973 = vunpack.c.l.b16 %v2810
    %v2974 = vunpack.c.l.b16 %v2811
    %v2975 = vunpack.c.l.b16 %v2812
    %v2976 = vunpack.c.l.b16 %v2813
    %v2977 = vunpack.c.l.b16 %v2814
    %v2978 = vpack.c.b16 %v2971, %v2970
    %v2979 = vpack.c.b16 %v2973, %v2972
    %v2980 = vpack.c.b16 %v2975, %v2974
    %v2981 = vpack.c.b16 %v2977, %v2976
    %v2983 = vsel %vm211, %v2978, 0
    %v2986 = vsel %vm211, %v2979, 0
    %v2989 = vsel %vm211, %v2980, 0
    %v2992 = vsel %vm211, %v2981, 0
    %2994 = vmatprep.subr.bf16.mxu0 0
    %2995 = vmatpush1.bf16.msra.mxu0 0
    %2996 = vmatprep.subr.bf16.mxu0 0
    %2997 = vmatpush1.bf16.msra.mxu0 0
    %2998 = vmatprep.subr.bf16.mxu0 0
    %2999 = vmatpush1.bf16.msra.mxu0 0
    %3000 = vmatprep.subr.bf16.mxu0 0
    %3001 = vmatpush1.bf16.msra.mxu0 0
    %3002 = vmatprep.subr.bf16.mxu0 0
    %3003 = vmatpush1.bf16.msra.mxu0 %v2860
    %3004 = vmatprep.subr.bf16.mxu0 0
    %3005 = vmatpush1.bf16.msra.mxu0 %v2859
    %3006 = vmatprep.subr.bf16.mxu0 0
    %3007 = vmatpush1.bf16.msra.mxu0 %v2858
    %3008 = vmatprep.subr.bf16.mxu0 0
    %3009 = vmatpush1.bf16.msra.mxu0 %v2857
    %3010 = vmatprep.subr.bf16.mxu0 0
    %3011 = vmatpush2.bf16.msra.mxu0 0
    %3012 = vmatprep.subr.bf16.mxu0 0
    %3013 = vmatpush2.bf16.msra.mxu0 0
    %3014 = vmatprep.subr.bf16.mxu0 0
    %3015 = vmatpush2.bf16.msra.mxu0 0
    %3016 = vmatprep.subr.bf16.mxu0 0
    %3017 = vmatpush2.bf16.msra.mxu0 0
    %3018 = vmatprep.subr.bf16.mxu0 0
    %3019 = vmatpush2.bf16.msra.mxu0 0
    %3020 = vmatprep.subr.bf16.mxu0 0
    %3021 = vmatpush2.bf16.msra.mxu0 0
    %3022 = vmatprep.subr.bf16.mxu0 0
    %3023 = vmatpush2.bf16.msra.mxu0 0
    %3024 = vmatprep.subr.bf16.mxu0 0
    %3025 = vmatpush2.bf16.msra.mxu0 0
    %3026 = vmatprep.mubr.bf16.mxu0 0
    %3027 = vmatmul.mubr.bf16.gmra.mxu0 %v2983
    %v3028 = vpop.f32.mrf.mxu0
    %v3029 = vadd.f32 %v2932, %v3028
    %v3030 = vpop.f32.mrf.mxu0
    %v3031 = vpop.f32.mrf.mxu0
    %v3032 = vadd.f32 %v2935, %v3031
    %v3033 = vpop.f32.mrf.mxu0
    %3034 = vmatprep.mubr.bf16.mxu0 0
    %3035 = vmatmul.mubr.bf16.gmra.mxu0 %v2986
    %v3036 = vpop.f32.mrf.mxu0
    %v3037 = vadd.f32 %v2940, %v3036
    %v3038 = vpop.f32.mrf.mxu0
    %v3039 = vpop.f32.mrf.mxu0
    %v3040 = vadd.f32 %v2943, %v3039
    %v3041 = vpop.f32.mrf.mxu0
    %3042 = vmatprep.mubr.bf16.mxu0 0
    %3043 = vmatmul.mubr.bf16.gmra.mxu0 %v2989
    %v3044 = vpop.f32.mrf.mxu0
    %v3045 = vadd.f32 %v2948, %v3044
    %v3046 = vpop.f32.mrf.mxu0
    %v3047 = vpop.f32.mrf.mxu0
    %v3048 = vadd.f32 %v2951, %v3047
    %v3049 = vpop.f32.mrf.mxu0
    %3050 = vmatprep.mubr.bf16.mxu0 0
    %3051 = vmatmul.mubr.bf16.gmra.mxu0 %v2992
    %v3052 = vpop.f32.mrf.mxu0
    %v3053 = vadd.f32 %v2956, %v3052
    %v3054 = vpop.f32.mrf.mxu0
    %v3055 = vpop.f32.mrf.mxu0
    %v3056 = vadd.f32 %v2959, %v3055
    %v3057 = vpop.f32.mrf.mxu0
    %3058 = vdwg.mxu0
    %3060 = vset.pattern.permute.xlu0 0
    %3061 = vperm.xlu0 %3060, %v2825
    %v3062 = vpop.permute.xlu0 %3061
    %3065 = vset.pattern.permute.xlu0 0
    %3066 = vperm.xlu0 %3065, %v2826
    %v3067 = vpop.permute.xlu0 %3066
    %3070 = vset.pattern.permute.xlu0 0
    %3071 = vperm.xlu0 %3070, %v2827
    %v3072 = vpop.permute.xlu0 %3071
    %3075 = vset.pattern.permute.xlu0 0
    %3076 = vperm.xlu0 %3075, %v2828
    %v3077 = vpop.permute.xlu0 %3076
    %3080 = vset.pattern.permute.xlu0 0
    %3081 = vperm.xlu0 %3080, %v2829
    %v3082 = vpop.permute.xlu0 %3081
    %3085 = vset.pattern.permute.xlu0 0
    %3086 = vperm.xlu0 %3085, %v2830
    %v3087 = vpop.permute.xlu0 %3086
    %3090 = vset.pattern.permute.xlu0 0
    %3091 = vperm.xlu0 %3090, %v2831
    %v3092 = vpop.permute.xlu0 %3091
    %3095 = vset.pattern.permute.xlu0 0
    %3096 = vperm.xlu0 %3095, %v2832
    %v3097 = vpop.permute.xlu0 %3096
    %v3099 = vadd.f32 %v3029, %v3062
    %v3100 = vadd.f32 %v3032, %v3067
    %v3101 = vadd.f32 %v3037, %v3072
    %v3102 = vadd.f32 %v3040, %v3077
    %v3103 = vadd.f32 %v3045, %v3082
    %v3104 = vadd.f32 %v3048, %v3087
    %v3105 = vadd.f32 %v3053, %v3092
    %v3106 = vadd.f32 %v3056, %v3097
    %v3107 = vmax.f32 %v3099, 0.0
    %v3108 = vmax.f32 %v3100, 0.0
    %v3109 = vmax.f32 %v3101, 0.0
    %v3110 = vmax.f32 %v3102, 0.0
    %v3111 = vmax.f32 %v3103, 0.0
    %v3112 = vmax.f32 %v3104, 0.0
    %v3113 = vmax.f32 %v3105, 0.0
    %v3114 = vmax.f32 %v3106, 0.0
    %v3115 = vadd.f32 %v3107, %v2172
    %v3116 = vadd.f32 %v3108, %v2173
    %v3117 = vadd.f32 %v3109, %v2174
    %v3118 = vadd.f32 %v3110, %v2175
    %v3119 = vadd.f32 %v3111, %v2176
    %v3120 = vadd.f32 %v3112, %v2177
    %v3121 = vadd.f32 %v3113, %v2178
    %v3122 = vadd.f32 %v3114, %v2179
    %v3123 = vmax.f32 %v3115, 0.0
    %v3124 = vmax.f32 %v3116, 0.0
    %v3125 = vmax.f32 %v3117, 0.0
    %v3126 = vmax.f32 %v3118, 0.0
    %v3127 = vmax.f32 %v3119, 0.0
    %v3128 = vmax.f32 %v3120, 0.0
    %v3129 = vmax.f32 %v3121, 0.0
    %v3130 = vmax.f32 %v3122, 0.0
    %s3131 = scalar_lea.vmem [#allocation3], 288
    %v3132 = vld [vmem:[%s3131] sm:$0xf]
    %v3133 = vld [vmem:[%s3131 + $0x4] sm:$0xf]
    %v3134 = vld [vmem:[%s3131 + $0x8] sm:$0xf]
    %v3135 = vld [vmem:[%s3131 + $0xc] sm:$0xf]
    %v3136 = vld [vmem:[%s3131 + $0x10] sm:$0xf]
    %v3137 = vld [vmem:[%s3131 + $0x14] sm:$0xf]
    %v3138 = vld [vmem:[%s3131 + $0x18] sm:$0xf]
    %v3139 = vld [vmem:[%s3131 + $0x1c] sm:$0xf]
    %s3140 = scalar_lea.vmem [#allocation6], 288
    %v3141 = vld [vmem:[%s3140] sm:$0xf]
    %v3142 = vld [vmem:[%s3140 + $0x4] sm:$0xf]
    %v3143 = vld [vmem:[%s3140 + $0x8] sm:$0xf]
    %v3144 = vld [vmem:[%s3140 + $0xc] sm:$0xf]
    %v3145 = vld [vmem:[%s3140 + $0x10] sm:$0xf]
    %v3146 = vld [vmem:[%s3140 + $0x14] sm:$0xf]
    %v3147 = vld [vmem:[%s3140 + $0x18] sm:$0xf]
    %v3148 = vld [vmem:[%s3140 + $0x1c] sm:$0xf]
    %s3149 = scalar_lea.vmem [#allocation8], 576
    %v3150 = vld [vmem:[%s3149] sm:$0xff]
    %v3151 = vld [vmem:[%s3149 + $0x8] sm:$0xff]
    %v3152 = vld [vmem:[%s3149 + $0x10] sm:$0xff]
    %v3153 = vld [vmem:[%s3149 + $0x18] sm:$0xff]
    %v3154 = vld [vmem:[%s3149 + $0x20] sm:$0xff]
    %v3155 = vld [vmem:[%s3149 + $0x28] sm:$0xff]
    %v3156 = vld [vmem:[%s3149 + $0x30] sm:$0xff]
    %v3157 = vld [vmem:[%s3149 + $0x38] sm:$0xff]
    %3158 = vrot.lane.b32.xlu0 %v3123, 1
    %v3159 = vpop.permute.xlu0 %3158
    %3160 = vrot.lane.b32.xlu0 %v3124, 1
    %v3161 = vpop.permute.xlu0 %3160
    %3162 = vrot.lane.b32.xlu0 %v3125, 1
    %v3163 = vpop.permute.xlu0 %3162
    %3164 = vrot.lane.b32.xlu0 %v3126, 1
    %v3165 = vpop.permute.xlu0 %3164
    %3166 = vrot.lane.b32.xlu0 %v3127, 1
    %v3167 = vpop.permute.xlu0 %3166
    %3168 = vrot.lane.b32.xlu0 %v3128, 1
    %v3169 = vpop.permute.xlu0 %3168
    %3170 = vrot.lane.b32.xlu0 %v3129, 1
    %v3171 = vpop.permute.xlu0 %3170
    %3172 = vrot.lane.b32.xlu0 %v3130, 1
    %v3173 = vpop.permute.xlu0 %3172
    %v3174 = vmul.f32 %v3159, %v173
    %v3175 = vmul.f32 %v3161, %v173
    %v3176 = vmul.f32 %v3163, %v173
    %v3177 = vmul.f32 %v3165, %v173
    %v3178 = vmul.f32 %v3167, %v173
    %v3179 = vmul.f32 %v3169, %v173
    %v3180 = vmul.f32 %v3171, %v173
    %v3181 = vmul.f32 %v3173, %v173
    %v3182 = vpack.c.bf16 %v3124, %v3123
    %v3183 = vpack.c.bf16 %v3126, %v3125
    %v3184 = vpack.c.bf16 %v3128, %v3127
    %v3185 = vpack.c.bf16 %v3130, %v3129
    %v3186 = vpack.c.bf16 %v3175, %v3174
    %v3187 = vpack.c.bf16 %v3177, %v3176
    %v3188 = vpack.c.bf16 %v3179, %v3178
    %v3189 = vpack.c.bf16 %v3181, %v3180
    %v3198 = vunpack.c.l.b16 %v3141
    %v3199 = vunpack.c.l.b16 %v3142
    %v3200 = vunpack.c.l.b16 %v3143
    %v3201 = vunpack.c.l.b16 %v3144
    %v3202 = vunpack.c.l.b16 %v3145
    %v3203 = vunpack.c.l.b16 %v3146
    %v3204 = vunpack.c.l.b16 %v3147
    %v3205 = vunpack.c.l.b16 %v3148
    %v3206 = vpack.c.b16 %v3199, %v3198
    %v3207 = vpack.c.b16 %v3201, %v3200
    %v3208 = vpack.c.b16 %v3203, %v3202
    %v3209 = vpack.c.b16 %v3205, %v3204
    %v3211 = vsel %vm211, %v3206, 0
    %v3214 = vsel %vm211, %v3207, 0
    %v3217 = vsel %vm211, %v3208, 0
    %v3220 = vsel %vm211, %v3209, 0
    %3222 = vmatprep.subr.bf16.mxu0 0
    %3223 = vmatpush1.bf16.msra.mxu0 0
    %3224 = vmatprep.subr.bf16.mxu0 0
    %3225 = vmatpush1.bf16.msra.mxu0 0
    %3226 = vmatprep.subr.bf16.mxu0 0
    %3227 = vmatpush1.bf16.msra.mxu0 0
    %3228 = vmatprep.subr.bf16.mxu0 0
    %3229 = vmatpush1.bf16.msra.mxu0 0
    %3230 = vmatprep.subr.bf16.mxu0 0
    %3231 = vmatpush1.bf16.msra.mxu0 %v3189
    %3232 = vmatprep.subr.bf16.mxu0 0
    %3233 = vmatpush1.bf16.msra.mxu0 %v3188
    %3234 = vmatprep.subr.bf16.mxu0 0
    %3235 = vmatpush1.bf16.msra.mxu0 %v3187
    %3236 = vmatprep.subr.bf16.mxu0 0
    %3237 = vmatpush1.bf16.msra.mxu0 %v3186
    %3238 = vmatprep.subr.bf16.mxu0 0
    %3239 = vmatpush2.bf16.msra.mxu0 0
    %3240 = vmatprep.subr.bf16.mxu0 0
    %3241 = vmatpush2.bf16.msra.mxu0 0
    %3242 = vmatprep.subr.bf16.mxu0 0
    %3243 = vmatpush2.bf16.msra.mxu0 0
    %3244 = vmatprep.subr.bf16.mxu0 0
    %3245 = vmatpush2.bf16.msra.mxu0 0
    %3246 = vmatprep.subr.bf16.mxu0 0
    %3247 = vmatpush2.bf16.msra.mxu0 0
    %3248 = vmatprep.subr.bf16.mxu0 0
    %3249 = vmatpush2.bf16.msra.mxu0 0
    %3250 = vmatprep.subr.bf16.mxu0 0
    %3251 = vmatpush2.bf16.msra.mxu0 0
    %3252 = vmatprep.subr.bf16.mxu0 0
    %3253 = vmatpush2.bf16.msra.mxu0 0
    %3254 = vmatprep.mubr.bf16.mxu0 0
    %3255 = vmatmul.mubr.bf16.gmra.mxu0 %v3211
    %v3256 = vpop.f32.mrf.mxu0
    %v3257 = vadd.f32 0.0, %v3256
    %v3258 = vpop.f32.mrf.mxu0
    %v3259 = vpop.f32.mrf.mxu0
    %v3260 = vadd.f32 0.0, %v3259
    %v3261 = vpop.f32.mrf.mxu0
    %3262 = vmatprep.mubr.bf16.mxu0 0
    %3263 = vmatmul.mubr.bf16.gmra.mxu0 %v3214
    %v3264 = vpop.f32.mrf.mxu0
    %v3265 = vadd.f32 0.0, %v3264
    %v3266 = vpop.f32.mrf.mxu0
    %v3267 = vpop.f32.mrf.mxu0
    %v3268 = vadd.f32 0.0, %v3267
    %v3269 = vpop.f32.mrf.mxu0
    %3270 = vmatprep.mubr.bf16.mxu0 0
    %3271 = vmatmul.mubr.bf16.gmra.mxu0 %v3217
    %v3272 = vpop.f32.mrf.mxu0
    %v3273 = vadd.f32 0.0, %v3272
    %v3274 = vpop.f32.mrf.mxu0
    %v3275 = vpop.f32.mrf.mxu0
    %v3276 = vadd.f32 0.0, %v3275
    %v3277 = vpop.f32.mrf.mxu0
    %3278 = vmatprep.mubr.bf16.mxu0 0
    %3279 = vmatmul.mubr.bf16.gmra.mxu0 %v3220
    %v3280 = vpop.f32.mrf.mxu0
    %v3281 = vadd.f32 0.0, %v3280
    %v3282 = vpop.f32.mrf.mxu0
    %v3283 = vpop.f32.mrf.mxu0
    %v3284 = vadd.f32 0.0, %v3283
    %v3285 = vpop.f32.mrf.mxu0
    %3286 = vdwg.mxu0
    %v3295 = vunpack.c.l.b16 %v3132
    %v3296 = vunpack.c.l.b16 %v3133
    %v3297 = vunpack.c.l.b16 %v3134
    %v3298 = vunpack.c.l.b16 %v3135
    %v3299 = vunpack.c.l.b16 %v3136
    %v3300 = vunpack.c.l.b16 %v3137
    %v3301 = vunpack.c.l.b16 %v3138
    %v3302 = vunpack.c.l.b16 %v3139
    %v3303 = vpack.c.b16 %v3296, %v3295
    %v3304 = vpack.c.b16 %v3298, %v3297
    %v3305 = vpack.c.b16 %v3300, %v3299
    %v3306 = vpack.c.b16 %v3302, %v3301
    %v3308 = vsel %vm211, %v3303, 0
    %v3311 = vsel %vm211, %v3304, 0
    %v3314 = vsel %vm211, %v3305, 0
    %v3317 = vsel %vm211, %v3306, 0
    %3319 = vmatprep.subr.bf16.mxu0 0
    %3320 = vmatpush1.bf16.msra.mxu0 0
    %3321 = vmatprep.subr.bf16.mxu0 0
    %3322 = vmatpush1.bf16.msra.mxu0 0
    %3323 = vmatprep.subr.bf16.mxu0 0
    %3324 = vmatpush1.bf16.msra.mxu0 0
    %3325 = vmatprep.subr.bf16.mxu0 0
    %3326 = vmatpush1.bf16.msra.mxu0 0
    %3327 = vmatprep.subr.bf16.mxu0 0
    %3328 = vmatpush1.bf16.msra.mxu0 %v3185
    %3329 = vmatprep.subr.bf16.mxu0 0
    %3330 = vmatpush1.bf16.msra.mxu0 %v3184
    %3331 = vmatprep.subr.bf16.mxu0 0
    %3332 = vmatpush1.bf16.msra.mxu0 %v3183
    %3333 = vmatprep.subr.bf16.mxu0 0
    %3334 = vmatpush1.bf16.msra.mxu0 %v3182
    %3335 = vmatprep.subr.bf16.mxu0 0
    %3336 = vmatpush2.bf16.msra.mxu0 0
    %3337 = vmatprep.subr.bf16.mxu0 0
    %3338 = vmatpush2.bf16.msra.mxu0 0
    %3339 = vmatprep.subr.bf16.mxu0 0
    %3340 = vmatpush2.bf16.msra.mxu0 0
    %3341 = vmatprep.subr.bf16.mxu0 0
    %3342 = vmatpush2.bf16.msra.mxu0 0
    %3343 = vmatprep.subr.bf16.mxu0 0
    %3344 = vmatpush2.bf16.msra.mxu0 0
    %3345 = vmatprep.subr.bf16.mxu0 0
    %3346 = vmatpush2.bf16.msra.mxu0 0
    %3347 = vmatprep.subr.bf16.mxu0 0
    %3348 = vmatpush2.bf16.msra.mxu0 0
    %3349 = vmatprep.subr.bf16.mxu0 0
    %3350 = vmatpush2.bf16.msra.mxu0 0
    %3351 = vmatprep.mubr.bf16.mxu0 0
    %3352 = vmatmul.mubr.bf16.gmra.mxu0 %v3308
    %v3353 = vpop.f32.mrf.mxu0
    %v3354 = vadd.f32 %v3257, %v3353
    %v3355 = vpop.f32.mrf.mxu0
    %v3356 = vpop.f32.mrf.mxu0
    %v3357 = vadd.f32 %v3260, %v3356
    %v3358 = vpop.f32.mrf.mxu0
    %3359 = vmatprep.mubr.bf16.mxu0 0
    %3360 = vmatmul.mubr.bf16.gmra.mxu0 %v3311
    %v3361 = vpop.f32.mrf.mxu0
    %v3362 = vadd.f32 %v3265, %v3361
    %v3363 = vpop.f32.mrf.mxu0
    %v3364 = vpop.f32.mrf.mxu0
    %v3365 = vadd.f32 %v3268, %v3364
    %v3366 = vpop.f32.mrf.mxu0
    %3367 = vmatprep.mubr.bf16.mxu0 0
    %3368 = vmatmul.mubr.bf16.gmra.mxu0 %v3314
    %v3369 = vpop.f32.mrf.mxu0
    %v3370 = vadd.f32 %v3273, %v3369
    %v3371 = vpop.f32.mrf.mxu0
    %v3372 = vpop.f32.mrf.mxu0
    %v3373 = vadd.f32 %v3276, %v3372
    %v3374 = vpop.f32.mrf.mxu0
    %3375 = vmatprep.mubr.bf16.mxu0 0
    %3376 = vmatmul.mubr.bf16.gmra.mxu0 %v3317
    %v3377 = vpop.f32.mrf.mxu0
    %v3378 = vadd.f32 %v3281, %v3377
    %v3379 = vpop.f32.mrf.mxu0
    %v3380 = vpop.f32.mrf.mxu0
    %v3381 = vadd.f32 %v3284, %v3380
    %v3382 = vpop.f32.mrf.mxu0
    %3383 = vdwg.mxu0
    %3385 = vset.pattern.permute.xlu0 0
    %3386 = vperm.xlu0 %3385, %v3150
    %v3387 = vpop.permute.xlu0 %3386
    %3390 = vset.pattern.permute.xlu0 0
    %3391 = vperm.xlu0 %3390, %v3151
    %v3392 = vpop.permute.xlu0 %3391
    %3395 = vset.pattern.permute.xlu0 0
    %3396 = vperm.xlu0 %3395, %v3152
    %v3397 = vpop.permute.xlu0 %3396
    %3400 = vset.pattern.permute.xlu0 0
    %3401 = vperm.xlu0 %3400, %v3153
    %v3402 = vpop.permute.xlu0 %3401
    %3405 = vset.pattern.permute.xlu0 0
    %3406 = vperm.xlu0 %3405, %v3154
    %v3407 = vpop.permute.xlu0 %3406
    %3410 = vset.pattern.permute.xlu0 0
    %3411 = vperm.xlu0 %3410, %v3155
    %v3412 = vpop.permute.xlu0 %3411
    %3415 = vset.pattern.permute.xlu0 0
    %3416 = vperm.xlu0 %3415, %v3156
    %v3417 = vpop.permute.xlu0 %3416
    %3420 = vset.pattern.permute.xlu0 0
    %3421 = vperm.xlu0 %3420, %v3157
    %v3422 = vpop.permute.xlu0 %3421
    %v3424 = vadd.f32 %v3354, %v3387
    %v3425 = vadd.f32 %v3357, %v3392
    %v3426 = vadd.f32 %v3362, %v3397
    %v3427 = vadd.f32 %v3365, %v3402
    %v3428 = vadd.f32 %v3370, %v3407
    %v3429 = vadd.f32 %v3373, %v3412
    %v3430 = vadd.f32 %v3378, %v3417
    %v3431 = vadd.f32 %v3381, %v3422
    %v3432 = vmax.f32 %v3424, 0.0
    %v3433 = vmax.f32 %v3425, 0.0
    %v3434 = vmax.f32 %v3426, 0.0
    %v3435 = vmax.f32 %v3427, 0.0
    %v3436 = vmax.f32 %v3428, 0.0
    %v3437 = vmax.f32 %v3429, 0.0
    %v3438 = vmax.f32 %v3430, 0.0
    %v3439 = vmax.f32 %v3431, 0.0
    %s3440 = scalar_lea.vmem [#allocation3], 320
    %v3441 = vld [vmem:[%s3440] sm:$0xf]
    %v3442 = vld [vmem:[%s3440 + $0x4] sm:$0xf]
    %v3443 = vld [vmem:[%s3440 + $0x8] sm:$0xf]
    %v3444 = vld [vmem:[%s3440 + $0xc] sm:$0xf]
    %v3445 = vld [vmem:[%s3440 + $0x10] sm:$0xf]
    %v3446 = vld [vmem:[%s3440 + $0x14] sm:$0xf]
    %v3447 = vld [vmem:[%s3440 + $0x18] sm:$0xf]
    %v3448 = vld [vmem:[%s3440 + $0x1c] sm:$0xf]
    %s3449 = scalar_lea.vmem [#allocation6], 320
    %v3450 = vld [vmem:[%s3449] sm:$0xf]
    %v3451 = vld [vmem:[%s3449 + $0x4] sm:$0xf]
    %v3452 = vld [vmem:[%s3449 + $0x8] sm:$0xf]
    %v3453 = vld [vmem:[%s3449 + $0xc] sm:$0xf]
    %v3454 = vld [vmem:[%s3449 + $0x10] sm:$0xf]
    %v3455 = vld [vmem:[%s3449 + $0x14] sm:$0xf]
    %v3456 = vld [vmem:[%s3449 + $0x18] sm:$0xf]
    %v3457 = vld [vmem:[%s3449 + $0x1c] sm:$0xf]
    %s3458 = scalar_lea.vmem [#allocation8], 640
    %v3459 = vld [vmem:[%s3458] sm:$0xff]
    %v3460 = vld [vmem:[%s3458 + $0x8] sm:$0xff]
    %v3461 = vld [vmem:[%s3458 + $0x10] sm:$0xff]
    %v3462 = vld [vmem:[%s3458 + $0x18] sm:$0xff]
    %v3463 = vld [vmem:[%s3458 + $0x20] sm:$0xff]
    %v3464 = vld [vmem:[%s3458 + $0x28] sm:$0xff]
    %v3465 = vld [vmem:[%s3458 + $0x30] sm:$0xff]
    %v3466 = vld [vmem:[%s3458 + $0x38] sm:$0xff]
    %3467 = vrot.lane.b32.xlu0 %v3432, 1
    %v3468 = vpop.permute.xlu0 %3467
    %3469 = vrot.lane.b32.xlu0 %v3433, 1
    %v3470 = vpop.permute.xlu0 %3469
    %3471 = vrot.lane.b32.xlu0 %v3434, 1
    %v3472 = vpop.permute.xlu0 %3471
    %3473 = vrot.lane.b32.xlu0 %v3435, 1
    %v3474 = vpop.permute.xlu0 %3473
    %3475 = vrot.lane.b32.xlu0 %v3436, 1
    %v3476 = vpop.permute.xlu0 %3475
    %3477 = vrot.lane.b32.xlu0 %v3437, 1
    %v3478 = vpop.permute.xlu0 %3477
    %3479 = vrot.lane.b32.xlu0 %v3438, 1
    %v3480 = vpop.permute.xlu0 %3479
    %3481 = vrot.lane.b32.xlu0 %v3439, 1
    %v3482 = vpop.permute.xlu0 %3481
    %v3483 = vmul.f32 %v3468, %v173
    %v3484 = vmul.f32 %v3470, %v173
    %v3485 = vmul.f32 %v3472, %v173
    %v3486 = vmul.f32 %v3474, %v173
    %v3487 = vmul.f32 %v3476, %v173
    %v3488 = vmul.f32 %v3478, %v173
    %v3489 = vmul.f32 %v3480, %v173
    %v3490 = vmul.f32 %v3482, %v173
    %v3491 = vpack.c.bf16 %v3433, %v3432
    %v3492 = vpack.c.bf16 %v3435, %v3434
    %v3493 = vpack.c.bf16 %v3437, %v3436
    %v3494 = vpack.c.bf16 %v3439, %v3438
    %v3495 = vpack.c.bf16 %v3484, %v3483
    %v3496 = vpack.c.bf16 %v3486, %v3485
    %v3497 = vpack.c.bf16 %v3488, %v3487
    %v3498 = vpack.c.bf16 %v3490, %v3489
    %v3507 = vunpack.c.l.b16 %v3450
    %v3508 = vunpack.c.l.b16 %v3451
    %v3509 = vunpack.c.l.b16 %v3452
    %v3510 = vunpack.c.l.b16 %v3453
    %v3511 = vunpack.c.l.b16 %v3454
    %v3512 = vunpack.c.l.b16 %v3455
    %v3513 = vunpack.c.l.b16 %v3456
    %v3514 = vunpack.c.l.b16 %v3457
    %v3515 = vpack.c.b16 %v3508, %v3507
    %v3516 = vpack.c.b16 %v3510, %v3509
    %v3517 = vpack.c.b16 %v3512, %v3511
    %v3518 = vpack.c.b16 %v3514, %v3513
    %v3520 = vsel %vm211, %v3515, 0
    %v3523 = vsel %vm211, %v3516, 0
    %v3526 = vsel %vm211, %v3517, 0
    %v3529 = vsel %vm211, %v3518, 0
    %3531 = vmatprep.subr.bf16.mxu0 0
    %3532 = vmatpush1.bf16.msra.mxu0 0
    %3533 = vmatprep.subr.bf16.mxu0 0
    %3534 = vmatpush1.bf16.msra.mxu0 0
    %3535 = vmatprep.subr.bf16.mxu0 0
    %3536 = vmatpush1.bf16.msra.mxu0 0
    %3537 = vmatprep.subr.bf16.mxu0 0
    %3538 = vmatpush1.bf16.msra.mxu0 0
    %3539 = vmatprep.subr.bf16.mxu0 0
    %3540 = vmatpush1.bf16.msra.mxu0 %v3498
    %3541 = vmatprep.subr.bf16.mxu0 0
    %3542 = vmatpush1.bf16.msra.mxu0 %v3497
    %3543 = vmatprep.subr.bf16.mxu0 0
    %3544 = vmatpush1.bf16.msra.mxu0 %v3496
    %3545 = vmatprep.subr.bf16.mxu0 0
    %3546 = vmatpush1.bf16.msra.mxu0 %v3495
    %3547 = vmatprep.subr.bf16.mxu0 0
    %3548 = vmatpush2.bf16.msra.mxu0 0
    %3549 = vmatprep.subr.bf16.mxu0 0
    %3550 = vmatpush2.bf16.msra.mxu0 0
    %3551 = vmatprep.subr.bf16.mxu0 0
    %3552 = vmatpush2.bf16.msra.mxu0 0
    %3553 = vmatprep.subr.bf16.mxu0 0
    %3554 = vmatpush2.bf16.msra.mxu0 0
    %3555 = vmatprep.subr.bf16.mxu0 0
    %3556 = vmatpush2.bf16.msra.mxu0 0
    %3557 = vmatprep.subr.bf16.mxu0 0
    %3558 = vmatpush2.bf16.msra.mxu0 0
    %3559 = vmatprep.subr.bf16.mxu0 0
    %3560 = vmatpush2.bf16.msra.mxu0 0
    %3561 = vmatprep.subr.bf16.mxu0 0
    %3562 = vmatpush2.bf16.msra.mxu0 0
    %3563 = vmatprep.mubr.bf16.mxu0 0
    %3564 = vmatmul.mubr.bf16.gmra.mxu0 %v3520
    %v3565 = vpop.f32.mrf.mxu0
    %v3566 = vadd.f32 0.0, %v3565
    %v3567 = vpop.f32.mrf.mxu0
    %v3568 = vpop.f32.mrf.mxu0
    %v3569 = vadd.f32 0.0, %v3568
    %v3570 = vpop.f32.mrf.mxu0
    %3571 = vmatprep.mubr.bf16.mxu0 0
    %3572 = vmatmul.mubr.bf16.gmra.mxu0 %v3523
    %v3573 = vpop.f32.mrf.mxu0
    %v3574 = vadd.f32 0.0, %v3573
    %v3575 = vpop.f32.mrf.mxu0
    %v3576 = vpop.f32.mrf.mxu0
    %v3577 = vadd.f32 0.0, %v3576
    %v3578 = vpop.f32.mrf.mxu0
    %3579 = vmatprep.mubr.bf16.mxu0 0
    %3580 = vmatmul.mubr.bf16.gmra.mxu0 %v3526
    %v3581 = vpop.f32.mrf.mxu0
    %v3582 = vadd.f32 0.0, %v3581
    %v3583 = vpop.f32.mrf.mxu0
    %v3584 = vpop.f32.mrf.mxu0
    %v3585 = vadd.f32 0.0, %v3584
    %v3586 = vpop.f32.mrf.mxu0
    %3587 = vmatprep.mubr.bf16.mxu0 0
    %3588 = vmatmul.mubr.bf16.gmra.mxu0 %v3529
    %v3589 = vpop.f32.mrf.mxu0
    %v3590 = vadd.f32 0.0, %v3589
    %v3591 = vpop.f32.mrf.mxu0
    %v3592 = vpop.f32.mrf.mxu0
    %v3593 = vadd.f32 0.0, %v3592
    %v3594 = vpop.f32.mrf.mxu0
    %3595 = vdwg.mxu0
    %v3604 = vunpack.c.l.b16 %v3441
    %v3605 = vunpack.c.l.b16 %v3442
    %v3606 = vunpack.c.l.b16 %v3443
    %v3607 = vunpack.c.l.b16 %v3444
    %v3608 = vunpack.c.l.b16 %v3445
    %v3609 = vunpack.c.l.b16 %v3446
    %v3610 = vunpack.c.l.b16 %v3447
    %v3611 = vunpack.c.l.b16 %v3448
    %v3612 = vpack.c.b16 %v3605, %v3604
    %v3613 = vpack.c.b16 %v3607, %v3606
    %v3614 = vpack.c.b16 %v3609, %v3608
    %v3615 = vpack.c.b16 %v3611, %v3610
    %v3617 = vsel %vm211, %v3612, 0
    %v3620 = vsel %vm211, %v3613, 0
    %v3623 = vsel %vm211, %v3614, 0
    %v3626 = vsel %vm211, %v3615, 0
    %3628 = vmatprep.subr.bf16.mxu0 0
    %3629 = vmatpush1.bf16.msra.mxu0 0
    %3630 = vmatprep.subr.bf16.mxu0 0
    %3631 = vmatpush1.bf16.msra.mxu0 0
    %3632 = vmatprep.subr.bf16.mxu0 0
    %3633 = vmatpush1.bf16.msra.mxu0 0
    %3634 = vmatprep.subr.bf16.mxu0 0
    %3635 = vmatpush1.bf16.msra.mxu0 0
    %3636 = vmatprep.subr.bf16.mxu0 0
    %3637 = vmatpush1.bf16.msra.mxu0 %v3494
    %3638 = vmatprep.subr.bf16.mxu0 0
    %3639 = vmatpush1.bf16.msra.mxu0 %v3493
    %3640 = vmatprep.subr.bf16.mxu0 0
    %3641 = vmatpush1.bf16.msra.mxu0 %v3492
    %3642 = vmatprep.subr.bf16.mxu0 0
    %3643 = vmatpush1.bf16.msra.mxu0 %v3491
    %3644 = vmatprep.subr.bf16.mxu0 0
    %3645 = vmatpush2.bf16.msra.mxu0 0
    %3646 = vmatprep.subr.bf16.mxu0 0
    %3647 = vmatpush2.bf16.msra.mxu0 0
    %3648 = vmatprep.subr.bf16.mxu0 0
    %3649 = vmatpush2.bf16.msra.mxu0 0
    %3650 = vmatprep.subr.bf16.mxu0 0
    %3651 = vmatpush2.bf16.msra.mxu0 0
    %3652 = vmatprep.subr.bf16.mxu0 0
    %3653 = vmatpush2.bf16.msra.mxu0 0
    %3654 = vmatprep.subr.bf16.mxu0 0
    %3655 = vmatpush2.bf16.msra.mxu0 0
    %3656 = vmatprep.subr.bf16.mxu0 0
    %3657 = vmatpush2.bf16.msra.mxu0 0
    %3658 = vmatprep.subr.bf16.mxu0 0
    %3659 = vmatpush2.bf16.msra.mxu0 0
    %3660 = vmatprep.mubr.bf16.mxu0 0
    %3661 = vmatmul.mubr.bf16.gmra.mxu0 %v3617
    %v3662 = vpop.f32.mrf.mxu0
    %v3663 = vadd.f32 %v3566, %v3662
    %v3664 = vpop.f32.mrf.mxu0
    %v3665 = vpop.f32.mrf.mxu0
    %v3666 = vadd.f32 %v3569, %v3665
    %v3667 = vpop.f32.mrf.mxu0
    %3668 = vmatprep.mubr.bf16.mxu0 0
    %3669 = vmatmul.mubr.bf16.gmra.mxu0 %v3620
    %v3670 = vpop.f32.mrf.mxu0
    %v3671 = vadd.f32 %v3574, %v3670
    %v3672 = vpop.f32.mrf.mxu0
    %v3673 = vpop.f32.mrf.mxu0
    %v3674 = vadd.f32 %v3577, %v3673
    %v3675 = vpop.f32.mrf.mxu0
    %3676 = vmatprep.mubr.bf16.mxu0 0
    %3677 = vmatmul.mubr.bf16.gmra.mxu0 %v3623
    %v3678 = vpop.f32.mrf.mxu0
    %v3679 = vadd.f32 %v3582, %v3678
    %v3680 = vpop.f32.mrf.mxu0
    %v3681 = vpop.f32.mrf.mxu0
    %v3682 = vadd.f32 %v3585, %v3681
    %v3683 = vpop.f32.mrf.mxu0
    %3684 = vmatprep.mubr.bf16.mxu0 0
    %3685 = vmatmul.mubr.bf16.gmra.mxu0 %v3626
    %v3686 = vpop.f32.mrf.mxu0
    %v3687 = vadd.f32 %v3590, %v3686
    %v3688 = vpop.f32.mrf.mxu0
    %v3689 = vpop.f32.mrf.mxu0
    %v3690 = vadd.f32 %v3593, %v3689
    %v3691 = vpop.f32.mrf.mxu0
    %3692 = vdwg.mxu0
    %3694 = vset.pattern.permute.xlu0 0
    %3695 = vperm.xlu0 %3694, %v3459
    %v3696 = vpop.permute.xlu0 %3695
    %3699 = vset.pattern.permute.xlu0 0
    %3700 = vperm.xlu0 %3699, %v3460
    %v3701 = vpop.permute.xlu0 %3700
    %3704 = vset.pattern.permute.xlu0 0
    %3705 = vperm.xlu0 %3704, %v3461
    %v3706 = vpop.permute.xlu0 %3705
    %3709 = vset.pattern.permute.xlu0 0
    %3710 = vperm.xlu0 %3709, %v3462
    %v3711 = vpop.permute.xlu0 %3710
    %3714 = vset.pattern.permute.xlu0 0
    %3715 = vperm.xlu0 %3714, %v3463
    %v3716 = vpop.permute.xlu0 %3715
    %3719 = vset.pattern.permute.xlu0 0
    %3720 = vperm.xlu0 %3719, %v3464
    %v3721 = vpop.permute.xlu0 %3720
    %3724 = vset.pattern.permute.xlu0 0
    %3725 = vperm.xlu0 %3724, %v3465
    %v3726 = vpop.permute.xlu0 %3725
    %3729 = vset.pattern.permute.xlu0 0
    %3730 = vperm.xlu0 %3729, %v3466
    %v3731 = vpop.permute.xlu0 %3730
    %v3733 = vadd.f32 %v3663, %v3696
    %v3734 = vadd.f32 %v3666, %v3701
    %v3735 = vadd.f32 %v3671, %v3706
    %v3736 = vadd.f32 %v3674, %v3711
    %v3737 = vadd.f32 %v3679, %v3716
    %v3738 = vadd.f32 %v3682, %v3721
    %v3739 = vadd.f32 %v3687, %v3726
    %v3740 = vadd.f32 %v3690, %v3731
    %v3741 = vmax.f32 %v3733, 0.0
    %v3742 = vmax.f32 %v3734, 0.0
    %v3743 = vmax.f32 %v3735, 0.0
    %v3744 = vmax.f32 %v3736, 0.0
    %v3745 = vmax.f32 %v3737, 0.0
    %v3746 = vmax.f32 %v3738, 0.0
    %v3747 = vmax.f32 %v3739, 0.0
    %v3748 = vmax.f32 %v3740, 0.0
    %s3749 = scalar_lea.vmem [#allocation3], 352
    %v3750 = vld [vmem:[%s3749] sm:$0xf]
    %v3751 = vld [vmem:[%s3749 + $0x4] sm:$0xf]
    %v3752 = vld [vmem:[%s3749 + $0x8] sm:$0xf]
    %v3753 = vld [vmem:[%s3749 + $0xc] sm:$0xf]
    %v3754 = vld [vmem:[%s3749 + $0x10] sm:$0xf]
    %v3755 = vld [vmem:[%s3749 + $0x14] sm:$0xf]
    %v3756 = vld [vmem:[%s3749 + $0x18] sm:$0xf]
    %v3757 = vld [vmem:[%s3749 + $0x1c] sm:$0xf]
    %s3758 = scalar_lea.vmem [#allocation6], 352
    %v3759 = vld [vmem:[%s3758] sm:$0xf]
    %v3760 = vld [vmem:[%s3758 + $0x4] sm:$0xf]
    %v3761 = vld [vmem:[%s3758 + $0x8] sm:$0xf]
    %v3762 = vld [vmem:[%s3758 + $0xc] sm:$0xf]
    %v3763 = vld [vmem:[%s3758 + $0x10] sm:$0xf]
    %v3764 = vld [vmem:[%s3758 + $0x14] sm:$0xf]
    %v3765 = vld [vmem:[%s3758 + $0x18] sm:$0xf]
    %v3766 = vld [vmem:[%s3758 + $0x1c] sm:$0xf]
    %s3767 = scalar_lea.vmem [#allocation8], 704
    %v3768 = vld [vmem:[%s3767] sm:$0xff]
    %v3769 = vld [vmem:[%s3767 + $0x8] sm:$0xff]
    %v3770 = vld [vmem:[%s3767 + $0x10] sm:$0xff]
    %v3771 = vld [vmem:[%s3767 + $0x18] sm:$0xff]
    %v3772 = vld [vmem:[%s3767 + $0x20] sm:$0xff]
    %v3773 = vld [vmem:[%s3767 + $0x28] sm:$0xff]
    %v3774 = vld [vmem:[%s3767 + $0x30] sm:$0xff]
    %v3775 = vld [vmem:[%s3767 + $0x38] sm:$0xff]
    %3776 = vrot.lane.b32.xlu0 %v3741, 1
    %v3777 = vpop.permute.xlu0 %3776
    %3778 = vrot.lane.b32.xlu0 %v3742, 1
    %v3779 = vpop.permute.xlu0 %3778
    %3780 = vrot.lane.b32.xlu0 %v3743, 1
    %v3781 = vpop.permute.xlu0 %3780
    %3782 = vrot.lane.b32.xlu0 %v3744, 1
    %v3783 = vpop.permute.xlu0 %3782
    %3784 = vrot.lane.b32.xlu0 %v3745, 1
    %v3785 = vpop.permute.xlu0 %3784
    %3786 = vrot.lane.b32.xlu0 %v3746, 1
    %v3787 = vpop.permute.xlu0 %3786
    %3788 = vrot.lane.b32.xlu0 %v3747, 1
    %v3789 = vpop.permute.xlu0 %3788
    %3790 = vrot.lane.b32.xlu0 %v3748, 1
    %v3791 = vpop.permute.xlu0 %3790
    %v3792 = vmul.f32 %v3777, %v173
    %v3793 = vmul.f32 %v3779, %v173
    %v3794 = vmul.f32 %v3781, %v173
    %v3795 = vmul.f32 %v3783, %v173
    %v3796 = vmul.f32 %v3785, %v173
    %v3797 = vmul.f32 %v3787, %v173
    %v3798 = vmul.f32 %v3789, %v173
    %v3799 = vmul.f32 %v3791, %v173
    %v3800 = vpack.c.bf16 %v3742, %v3741
    %v3801 = vpack.c.bf16 %v3744, %v3743
    %v3802 = vpack.c.bf16 %v3746, %v3745
    %v3803 = vpack.c.bf16 %v3748, %v3747
    %v3804 = vpack.c.bf16 %v3793, %v3792
    %v3805 = vpack.c.bf16 %v3795, %v3794
    %v3806 = vpack.c.bf16 %v3797, %v3796
    %v3807 = vpack.c.bf16 %v3799, %v3798
    %v3816 = vunpack.c.l.b16 %v3759
    %v3817 = vunpack.c.l.b16 %v3760
    %v3818 = vunpack.c.l.b16 %v3761
    %v3819 = vunpack.c.l.b16 %v3762
    %v3820 = vunpack.c.l.b16 %v3763
    %v3821 = vunpack.c.l.b16 %v3764
    %v3822 = vunpack.c.l.b16 %v3765
    %v3823 = vunpack.c.l.b16 %v3766
    %v3824 = vpack.c.b16 %v3817, %v3816
    %v3825 = vpack.c.b16 %v3819, %v3818
    %v3826 = vpack.c.b16 %v3821, %v3820
    %v3827 = vpack.c.b16 %v3823, %v3822
    %v3829 = vsel %vm211, %v3824, 0
    %v3832 = vsel %vm211, %v3825, 0
    %v3835 = vsel %vm211, %v3826, 0
    %v3838 = vsel %vm211, %v3827, 0
    %3840 = vmatprep.subr.bf16.mxu0 0
    %3841 = vmatpush1.bf16.msra.mxu0 0
    %3842 = vmatprep.subr.bf16.mxu0 0
    %3843 = vmatpush1.bf16.msra.mxu0 0
    %3844 = vmatprep.subr.bf16.mxu0 0
    %3845 = vmatpush1.bf16.msra.mxu0 0
    %3846 = vmatprep.subr.bf16.mxu0 0
    %3847 = vmatpush1.bf16.msra.mxu0 0
    %3848 = vmatprep.subr.bf16.mxu0 0
    %3849 = vmatpush1.bf16.msra.mxu0 %v3807
    %3850 = vmatprep.subr.bf16.mxu0 0
    %3851 = vmatpush1.bf16.msra.mxu0 %v3806
    %3852 = vmatprep.subr.bf16.mxu0 0
    %3853 = vmatpush1.bf16.msra.mxu0 %v3805
    %3854 = vmatprep.subr.bf16.mxu0 0
    %3855 = vmatpush1.bf16.msra.mxu0 %v3804
    %3856 = vmatprep.subr.bf16.mxu0 0
    %3857 = vmatpush2.bf16.msra.mxu0 0
    %3858 = vmatprep.subr.bf16.mxu0 0
    %3859 = vmatpush2.bf16.msra.mxu0 0
    %3860 = vmatprep.subr.bf16.mxu0 0
    %3861 = vmatpush2.bf16.msra.mxu0 0
    %3862 = vmatprep.subr.bf16.mxu0 0
    %3863 = vmatpush2.bf16.msra.mxu0 0
    %3864 = vmatprep.subr.bf16.mxu0 0
    %3865 = vmatpush2.bf16.msra.mxu0 0
    %3866 = vmatprep.subr.bf16.mxu0 0
    %3867 = vmatpush2.bf16.msra.mxu0 0
    %3868 = vmatprep.subr.bf16.mxu0 0
    %3869 = vmatpush2.bf16.msra.mxu0 0
    %3870 = vmatprep.subr.bf16.mxu0 0
    %3871 = vmatpush2.bf16.msra.mxu0 0
    %3872 = vmatprep.mubr.bf16.mxu0 0
    %3873 = vmatmul.mubr.bf16.gmra.mxu0 %v3829
    %v3874 = vpop.f32.mrf.mxu0
    %v3875 = vadd.f32 0.0, %v3874
    %v3876 = vpop.f32.mrf.mxu0
    %v3877 = vpop.f32.mrf.mxu0
    %v3878 = vadd.f32 0.0, %v3877
    %v3879 = vpop.f32.mrf.mxu0
    %3880 = vmatprep.mubr.bf16.mxu0 0
    %3881 = vmatmul.mubr.bf16.gmra.mxu0 %v3832
    %v3882 = vpop.f32.mrf.mxu0
    %v3883 = vadd.f32 0.0, %v3882
    %v3884 = vpop.f32.mrf.mxu0
    %v3885 = vpop.f32.mrf.mxu0
    %v3886 = vadd.f32 0.0, %v3885
    %v3887 = vpop.f32.mrf.mxu0
    %3888 = vmatprep.mubr.bf16.mxu0 0
    %3889 = vmatmul.mubr.bf16.gmra.mxu0 %v3835
    %v3890 = vpop.f32.mrf.mxu0
    %v3891 = vadd.f32 0.0, %v3890
    %v3892 = vpop.f32.mrf.mxu0
    %v3893 = vpop.f32.mrf.mxu0
    %v3894 = vadd.f32 0.0, %v3893
    %v3895 = vpop.f32.mrf.mxu0
    %3896 = vmatprep.mubr.bf16.mxu0 0
    %3897 = vmatmul.mubr.bf16.gmra.mxu0 %v3838
    %v3898 = vpop.f32.mrf.mxu0
    %v3899 = vadd.f32 0.0, %v3898
    %v3900 = vpop.f32.mrf.mxu0
    %v3901 = vpop.f32.mrf.mxu0
    %v3902 = vadd.f32 0.0, %v3901
    %v3903 = vpop.f32.mrf.mxu0
    %3904 = vdwg.mxu0
    %v3913 = vunpack.c.l.b16 %v3750
    %v3914 = vunpack.c.l.b16 %v3751
    %v3915 = vunpack.c.l.b16 %v3752
    %v3916 = vunpack.c.l.b16 %v3753
    %v3917 = vunpack.c.l.b16 %v3754
    %v3918 = vunpack.c.l.b16 %v3755
    %v3919 = vunpack.c.l.b16 %v3756
    %v3920 = vunpack.c.l.b16 %v3757
    %v3921 = vpack.c.b16 %v3914, %v3913
    %v3922 = vpack.c.b16 %v3916, %v3915
    %v3923 = vpack.c.b16 %v3918, %v3917
    %v3924 = vpack.c.b16 %v3920, %v3919
    %v3926 = vsel %vm211, %v3921, 0
    %v3929 = vsel %vm211, %v3922, 0
    %v3932 = vsel %vm211, %v3923, 0
    %v3935 = vsel %vm211, %v3924, 0
    %3937 = vmatprep.subr.bf16.mxu0 0
    %3938 = vmatpush1.bf16.msra.mxu0 0
    %3939 = vmatprep.subr.bf16.mxu0 0
    %3940 = vmatpush1.bf16.msra.mxu0 0
    %3941 = vmatprep.subr.bf16.mxu0 0
    %3942 = vmatpush1.bf16.msra.mxu0 0
    %3943 = vmatprep.subr.bf16.mxu0 0
    %3944 = vmatpush1.bf16.msra.mxu0 0
    %3945 = vmatprep.subr.bf16.mxu0 0
    %3946 = vmatpush1.bf16.msra.mxu0 %v3803
    %3947 = vmatprep.subr.bf16.mxu0 0
    %3948 = vmatpush1.bf16.msra.mxu0 %v3802
    %3949 = vmatprep.subr.bf16.mxu0 0
    %3950 = vmatpush1.bf16.msra.mxu0 %v3801
    %3951 = vmatprep.subr.bf16.mxu0 0
    %3952 = vmatpush1.bf16.msra.mxu0 %v3800
    %3953 = vmatprep.subr.bf16.mxu0 0
    %3954 = vmatpush2.bf16.msra.mxu0 0
    %3955 = vmatprep.subr.bf16.mxu0 0
    %3956 = vmatpush2.bf16.msra.mxu0 0
    %3957 = vmatprep.subr.bf16.mxu0 0
    %3958 = vmatpush2.bf16.msra.mxu0 0
    %3959 = vmatprep.subr.bf16.mxu0 0
    %3960 = vmatpush2.bf16.msra.mxu0 0
    %3961 = vmatprep.subr.bf16.mxu0 0
    %3962 = vmatpush2.bf16.msra.mxu0 0
    %3963 = vmatprep.subr.bf16.mxu0 0
    %3964 = vmatpush2.bf16.msra.mxu0 0
    %3965 = vmatprep.subr.bf16.mxu0 0
    %3966 = vmatpush2.bf16.msra.mxu0 0
    %3967 = vmatprep.subr.bf16.mxu0 0
    %3968 = vmatpush2.bf16.msra.mxu0 0
    %3969 = vmatprep.mubr.bf16.mxu0 0
    %3970 = vmatmul.mubr.bf16.gmra.mxu0 %v3926
    %v3971 = vpop.f32.mrf.mxu0
    %v3972 = vadd.f32 %v3875, %v3971
    %v3973 = vpop.f32.mrf.mxu0
    %v3974 = vpop.f32.mrf.mxu0
    %v3975 = vadd.f32 %v3878, %v3974
    %v3976 = vpop.f32.mrf.mxu0
    %3977 = vmatprep.mubr.bf16.mxu0 0
    %3978 = vmatmul.mubr.bf16.gmra.mxu0 %v3929
    %v3979 = vpop.f32.mrf.mxu0
    %v3980 = vadd.f32 %v3883, %v3979
    %v3981 = vpop.f32.mrf.mxu0
    %v3982 = vpop.f32.mrf.mxu0
    %v3983 = vadd.f32 %v3886, %v3982
    %v3984 = vpop.f32.mrf.mxu0
    %3985 = vmatprep.mubr.bf16.mxu0 0
    %3986 = vmatmul.mubr.bf16.gmra.mxu0 %v3932
    %v3987 = vpop.f32.mrf.mxu0
    %v3988 = vadd.f32 %v3891, %v3987
    %v3989 = vpop.f32.mrf.mxu0
    %v3990 = vpop.f32.mrf.mxu0
    %v3991 = vadd.f32 %v3894, %v3990
    %v3992 = vpop.f32.mrf.mxu0
    %3993 = vmatprep.mubr.bf16.mxu0 0
    %3994 = vmatmul.mubr.bf16.gmra.mxu0 %v3935
    %v3995 = vpop.f32.mrf.mxu0
    %v3996 = vadd.f32 %v3899, %v3995
    %v3997 = vpop.f32.mrf.mxu0
    %v3998 = vpop.f32.mrf.mxu0
    %v3999 = vadd.f32 %v3902, %v3998
    %v4000 = vpop.f32.mrf.mxu0
    %4001 = vdwg.mxu0
    %4003 = vset.pattern.permute.xlu0 0
    %4004 = vperm.xlu0 %4003, %v3768
    %v4005 = vpop.permute.xlu0 %4004
    %4008 = vset.pattern.permute.xlu0 0
    %4009 = vperm.xlu0 %4008, %v3769
    %v4010 = vpop.permute.xlu0 %4009
    %4013 = vset.pattern.permute.xlu0 0
    %4014 = vperm.xlu0 %4013, %v3770
    %v4015 = vpop.permute.xlu0 %4014
    %4018 = vset.pattern.permute.xlu0 0
    %4019 = vperm.xlu0 %4018, %v3771
    %v4020 = vpop.permute.xlu0 %4019
    %4023 = vset.pattern.permute.xlu0 0
    %4024 = vperm.xlu0 %4023, %v3772
    %v4025 = vpop.permute.xlu0 %4024
    %4028 = vset.pattern.permute.xlu0 0
    %4029 = vperm.xlu0 %4028, %v3773
    %v4030 = vpop.permute.xlu0 %4029
    %4033 = vset.pattern.permute.xlu0 0
    %4034 = vperm.xlu0 %4033, %v3774
    %v4035 = vpop.permute.xlu0 %4034
    %4038 = vset.pattern.permute.xlu0 0
    %4039 = vperm.xlu0 %4038, %v3775
    %v4040 = vpop.permute.xlu0 %4039
    %v4042 = vadd.f32 %v3972, %v4005
    %v4043 = vadd.f32 %v3975, %v4010
    %v4044 = vadd.f32 %v3980, %v4015
    %v4045 = vadd.f32 %v3983, %v4020
    %v4046 = vadd.f32 %v3988, %v4025
    %v4047 = vadd.f32 %v3991, %v4030
    %v4048 = vadd.f32 %v3996, %v4035
    %v4049 = vadd.f32 %v3999, %v4040
    %v4050 = vmax.f32 %v4042, 0.0
    %v4051 = vmax.f32 %v4043, 0.0
    %v4052 = vmax.f32 %v4044, 0.0
    %v4053 = vmax.f32 %v4045, 0.0
    %v4054 = vmax.f32 %v4046, 0.0
    %v4055 = vmax.f32 %v4047, 0.0
    %v4056 = vmax.f32 %v4048, 0.0
    %v4057 = vmax.f32 %v4049, 0.0
    %v4058 = vadd.f32 %v4050, %v3123
    %v4059 = vadd.f32 %v4051, %v3124
    %v4060 = vadd.f32 %v4052, %v3125
    %v4061 = vadd.f32 %v4053, %v3126
    %v4062 = vadd.f32 %v4054, %v3127
    %v4063 = vadd.f32 %v4055, %v3128
    %v4064 = vadd.f32 %v4056, %v3129
    %v4065 = vadd.f32 %v4057, %v3130
    %v4066 = vmax.f32 %v4058, 0.0
    %v4067 = vmax.f32 %v4059, 0.0
    %v4068 = vmax.f32 %v4060, 0.0
    %v4069 = vmax.f32 %v4061, 0.0
    %v4070 = vmax.f32 %v4062, 0.0
    %v4071 = vmax.f32 %v4063, 0.0
    %v4072 = vmax.f32 %v4064, 0.0
    %v4073 = vmax.f32 %v4065, 0.0
    %s4074 = scalar_lea.vmem [#allocation3], 384
    %v4075 = vld [vmem:[%s4074] sm:$0xf]
    %v4076 = vld [vmem:[%s4074 + $0x4] sm:$0xf]
    %v4077 = vld [vmem:[%s4074 + $0x8] sm:$0xf]
    %v4078 = vld [vmem:[%s4074 + $0xc] sm:$0xf]
    %v4079 = vld [vmem:[%s4074 + $0x10] sm:$0xf]
    %v4080 = vld [vmem:[%s4074 + $0x14] sm:$0xf]
    %v4081 = vld [vmem:[%s4074 + $0x18] sm:$0xf]
    %v4082 = vld [vmem:[%s4074 + $0x1c] sm:$0xf]
    %s4083 = scalar_lea.vmem [#allocation6], 384
    %v4084 = vld [vmem:[%s4083] sm:$0xf]
    %v4085 = vld [vmem:[%s4083 + $0x4] sm:$0xf]
    %v4086 = vld [vmem:[%s4083 + $0x8] sm:$0xf]
    %v4087 = vld [vmem:[%s4083 + $0xc] sm:$0xf]
    %v4088 = vld [vmem:[%s4083 + $0x10] sm:$0xf]
    %v4089 = vld [vmem:[%s4083 + $0x14] sm:$0xf]
    %v4090 = vld [vmem:[%s4083 + $0x18] sm:$0xf]
    %v4091 = vld [vmem:[%s4083 + $0x1c] sm:$0xf]
    %s4092 = scalar_lea.vmem [#allocation8], 768
    %v4093 = vld [vmem:[%s4092] sm:$0xff]
    %v4094 = vld [vmem:[%s4092 + $0x8] sm:$0xff]
    %v4095 = vld [vmem:[%s4092 + $0x10] sm:$0xff]
    %v4096 = vld [vmem:[%s4092 + $0x18] sm:$0xff]
    %v4097 = vld [vmem:[%s4092 + $0x20] sm:$0xff]
    %v4098 = vld [vmem:[%s4092 + $0x28] sm:$0xff]
    %v4099 = vld [vmem:[%s4092 + $0x30] sm:$0xff]
    %v4100 = vld [vmem:[%s4092 + $0x38] sm:$0xff]
    %4101 = vrot.lane.b32.xlu0 %v4066, 2
    %v4102 = vpop.permute.xlu0 %4101
    %4103 = vrot.lane.b32.xlu0 %v4067, 2
    %v4104 = vpop.permute.xlu0 %4103
    %4105 = vrot.lane.b32.xlu0 %v4068, 2
    %v4106 = vpop.permute.xlu0 %4105
    %4107 = vrot.lane.b32.xlu0 %v4069, 2
    %v4108 = vpop.permute.xlu0 %4107
    %4109 = vrot.lane.b32.xlu0 %v4070, 2
    %v4110 = vpop.permute.xlu0 %4109
    %4111 = vrot.lane.b32.xlu0 %v4071, 2
    %v4112 = vpop.permute.xlu0 %4111
    %4113 = vrot.lane.b32.xlu0 %v4072, 2
    %v4114 = vpop.permute.xlu0 %4113
    %4115 = vrot.lane.b32.xlu0 %v4073, 2
    %v4116 = vpop.permute.xlu0 %4115
    %v4117 = vmul.f32 %v4102, %v1278
    %v4118 = vmul.f32 %v4104, %v1278
    %v4119 = vmul.f32 %v4106, %v1278
    %v4120 = vmul.f32 %v4108, %v1278
    %v4121 = vmul.f32 %v4110, %v1278
    %v4122 = vmul.f32 %v4112, %v1278
    %v4123 = vmul.f32 %v4114, %v1278
    %v4124 = vmul.f32 %v4116, %v1278
    %v4125 = vpack.c.bf16 %v4067, %v4066
    %v4126 = vpack.c.bf16 %v4069, %v4068
    %v4127 = vpack.c.bf16 %v4071, %v4070
    %v4128 = vpack.c.bf16 %v4073, %v4072
    %v4129 = vpack.c.bf16 %v4118, %v4117
    %v4130 = vpack.c.bf16 %v4120, %v4119
    %v4131 = vpack.c.bf16 %v4122, %v4121
    %v4132 = vpack.c.bf16 %v4124, %v4123
    %v4141 = vunpack.c.l.b16 %v4084
    %v4142 = vunpack.c.l.b16 %v4085
    %v4143 = vunpack.c.l.b16 %v4086
    %v4144 = vunpack.c.l.b16 %v4087
    %v4145 = vunpack.c.l.b16 %v4088
    %v4146 = vunpack.c.l.b16 %v4089
    %v4147 = vunpack.c.l.b16 %v4090
    %v4148 = vunpack.c.l.b16 %v4091
    %v4149 = vpack.c.b16 %v4142, %v4141
    %v4150 = vpack.c.b16 %v4144, %v4143
    %v4151 = vpack.c.b16 %v4146, %v4145
    %v4152 = vpack.c.b16 %v4148, %v4147
    %v4154 = vsel %vm211, %v4149, 0
    %v4157 = vsel %vm211, %v4150, 0
    %v4160 = vsel %vm211, %v4151, 0
    %v4163 = vsel %vm211, %v4152, 0
    %4165 = vmatprep.subr.bf16.mxu0 0
    %4166 = vmatpush1.bf16.msra.mxu0 0
    %4167 = vmatprep.subr.bf16.mxu0 0
    %4168 = vmatpush1.bf16.msra.mxu0 0
    %4169 = vmatprep.subr.bf16.mxu0 0
    %4170 = vmatpush1.bf16.msra.mxu0 0
    %4171 = vmatprep.subr.bf16.mxu0 0
    %4172 = vmatpush1.bf16.msra.mxu0 0
    %4173 = vmatprep.subr.bf16.mxu0 0
    %4174 = vmatpush1.bf16.msra.mxu0 %v4132
    %4175 = vmatprep.subr.bf16.mxu0 0
    %4176 = vmatpush1.bf16.msra.mxu0 %v4131
    %4177 = vmatprep.subr.bf16.mxu0 0
    %4178 = vmatpush1.bf16.msra.mxu0 %v4130
    %4179 = vmatprep.subr.bf16.mxu0 0
    %4180 = vmatpush1.bf16.msra.mxu0 %v4129
    %4181 = vmatprep.subr.bf16.mxu0 0
    %4182 = vmatpush2.bf16.msra.mxu0 0
    %4183 = vmatprep.subr.bf16.mxu0 0
    %4184 = vmatpush2.bf16.msra.mxu0 0
    %4185 = vmatprep.subr.bf16.mxu0 0
    %4186 = vmatpush2.bf16.msra.mxu0 0
    %4187 = vmatprep.subr.bf16.mxu0 0
    %4188 = vmatpush2.bf16.msra.mxu0 0
    %4189 = vmatprep.subr.bf16.mxu0 0
    %4190 = vmatpush2.bf16.msra.mxu0 0
    %4191 = vmatprep.subr.bf16.mxu0 0
    %4192 = vmatpush2.bf16.msra.mxu0 0
    %4193 = vmatprep.subr.bf16.mxu0 0
    %4194 = vmatpush2.bf16.msra.mxu0 0
    %4195 = vmatprep.subr.bf16.mxu0 0
    %4196 = vmatpush2.bf16.msra.mxu0 0
    %4197 = vmatprep.mubr.bf16.mxu0 0
    %4198 = vmatmul.mubr.bf16.gmra.mxu0 %v4154
    %v4199 = vpop.f32.mrf.mxu0
    %v4200 = vadd.f32 0.0, %v4199
    %v4201 = vpop.f32.mrf.mxu0
    %v4202 = vpop.f32.mrf.mxu0
    %v4203 = vadd.f32 0.0, %v4202
    %v4204 = vpop.f32.mrf.mxu0
    %4205 = vmatprep.mubr.bf16.mxu0 0
    %4206 = vmatmul.mubr.bf16.gmra.mxu0 %v4157
    %v4207 = vpop.f32.mrf.mxu0
    %v4208 = vadd.f32 0.0, %v4207
    %v4209 = vpop.f32.mrf.mxu0
    %v4210 = vpop.f32.mrf.mxu0
    %v4211 = vadd.f32 0.0, %v4210
    %v4212 = vpop.f32.mrf.mxu0
    %4213 = vmatprep.mubr.bf16.mxu0 0
    %4214 = vmatmul.mubr.bf16.gmra.mxu0 %v4160
    %v4215 = vpop.f32.mrf.mxu0
    %v4216 = vadd.f32 0.0, %v4215
    %v4217 = vpop.f32.mrf.mxu0
    %v4218 = vpop.f32.mrf.mxu0
    %v4219 = vadd.f32 0.0, %v4218
    %v4220 = vpop.f32.mrf.mxu0
    %4221 = vmatprep.mubr.bf16.mxu0 0
    %4222 = vmatmul.mubr.bf16.gmra.mxu0 %v4163
    %v4223 = vpop.f32.mrf.mxu0
    %v4224 = vadd.f32 0.0, %v4223
    %v4225 = vpop.f32.mrf.mxu0
    %v4226 = vpop.f32.mrf.mxu0
    %v4227 = vadd.f32 0.0, %v4226
    %v4228 = vpop.f32.mrf.mxu0
    %4229 = vdwg.mxu0
    %v4238 = vunpack.c.l.b16 %v4075
    %v4239 = vunpack.c.l.b16 %v4076
    %v4240 = vunpack.c.l.b16 %v4077
    %v4241 = vunpack.c.l.b16 %v4078
    %v4242 = vunpack.c.l.b16 %v4079
    %v4243 = vunpack.c.l.b16 %v4080
    %v4244 = vunpack.c.l.b16 %v4081
    %v4245 = vunpack.c.l.b16 %v4082
    %v4246 = vpack.c.b16 %v4239, %v4238
    %v4247 = vpack.c.b16 %v4241, %v4240
    %v4248 = vpack.c.b16 %v4243, %v4242
    %v4249 = vpack.c.b16 %v4245, %v4244
    %v4251 = vsel %vm211, %v4246, 0
    %v4254 = vsel %vm211, %v4247, 0
    %v4257 = vsel %vm211, %v4248, 0
    %v4260 = vsel %vm211, %v4249, 0
    %4262 = vmatprep.subr.bf16.mxu0 0
    %4263 = vmatpush1.bf16.msra.mxu0 0
    %4264 = vmatprep.subr.bf16.mxu0 0
    %4265 = vmatpush1.bf16.msra.mxu0 0
    %4266 = vmatprep.subr.bf16.mxu0 0
    %4267 = vmatpush1.bf16.msra.mxu0 0
    %4268 = vmatprep.subr.bf16.mxu0 0
    %4269 = vmatpush1.bf16.msra.mxu0 0
    %4270 = vmatprep.subr.bf16.mxu0 0
    %4271 = vmatpush1.bf16.msra.mxu0 %v4128
    %4272 = vmatprep.subr.bf16.mxu0 0
    %4273 = vmatpush1.bf16.msra.mxu0 %v4127
    %4274 = vmatprep.subr.bf16.mxu0 0
    %4275 = vmatpush1.bf16.msra.mxu0 %v4126
    %4276 = vmatprep.subr.bf16.mxu0 0
    %4277 = vmatpush1.bf16.msra.mxu0 %v4125
    %4278 = vmatprep.subr.bf16.mxu0 0
    %4279 = vmatpush2.bf16.msra.mxu0 0
    %4280 = vmatprep.subr.bf16.mxu0 0
    %4281 = vmatpush2.bf16.msra.mxu0 0
    %4282 = vmatprep.subr.bf16.mxu0 0
    %4283 = vmatpush2.bf16.msra.mxu0 0
    %4284 = vmatprep.subr.bf16.mxu0 0
    %4285 = vmatpush2.bf16.msra.mxu0 0
    %4286 = vmatprep.subr.bf16.mxu0 0
    %4287 = vmatpush2.bf16.msra.mxu0 0
    %4288 = vmatprep.subr.bf16.mxu0 0
    %4289 = vmatpush2.bf16.msra.mxu0 0
    %4290 = vmatprep.subr.bf16.mxu0 0
    %4291 = vmatpush2.bf16.msra.mxu0 0
    %4292 = vmatprep.subr.bf16.mxu0 0
    %4293 = vmatpush2.bf16.msra.mxu0 0
    %4294 = vmatprep.mubr.bf16.mxu0 0
    %4295 = vmatmul.mubr.bf16.gmra.mxu0 %v4251
    %v4296 = vpop.f32.mrf.mxu0
    %v4297 = vadd.f32 %v4200, %v4296
    %v4298 = vpop.f32.mrf.mxu0
    %v4299 = vpop.f32.mrf.mxu0
    %v4300 = vadd.f32 %v4203, %v4299
    %v4301 = vpop.f32.mrf.mxu0
    %4302 = vmatprep.mubr.bf16.mxu0 0
    %4303 = vmatmul.mubr.bf16.gmra.mxu0 %v4254
    %v4304 = vpop.f32.mrf.mxu0
    %v4305 = vadd.f32 %v4208, %v4304
    %v4306 = vpop.f32.mrf.mxu0
    %v4307 = vpop.f32.mrf.mxu0
    %v4308 = vadd.f32 %v4211, %v4307
    %v4309 = vpop.f32.mrf.mxu0
    %4310 = vmatprep.mubr.bf16.mxu0 0
    %4311 = vmatmul.mubr.bf16.gmra.mxu0 %v4257
    %v4312 = vpop.f32.mrf.mxu0
    %v4313 = vadd.f32 %v4216, %v4312
    %v4314 = vpop.f32.mrf.mxu0
    %v4315 = vpop.f32.mrf.mxu0
    %v4316 = vadd.f32 %v4219, %v4315
    %v4317 = vpop.f32.mrf.mxu0
    %4318 = vmatprep.mubr.bf16.mxu0 0
    %4319 = vmatmul.mubr.bf16.gmra.mxu0 %v4260
    %v4320 = vpop.f32.mrf.mxu0
    %v4321 = vadd.f32 %v4224, %v4320
    %v4322 = vpop.f32.mrf.mxu0
    %v4323 = vpop.f32.mrf.mxu0
    %v4324 = vadd.f32 %v4227, %v4323
    %v4325 = vpop.f32.mrf.mxu0
    %4326 = vdwg.mxu0
    %4328 = vset.pattern.permute.xlu0 0
    %4329 = vperm.xlu0 %4328, %v4093
    %v4330 = vpop.permute.xlu0 %4329
    %4333 = vset.pattern.permute.xlu0 0
    %4334 = vperm.xlu0 %4333, %v4094
    %v4335 = vpop.permute.xlu0 %4334
    %4338 = vset.pattern.permute.xlu0 0
    %4339 = vperm.xlu0 %4338, %v4095
    %v4340 = vpop.permute.xlu0 %4339
    %4343 = vset.pattern.permute.xlu0 0
    %4344 = vperm.xlu0 %4343, %v4096
    %v4345 = vpop.permute.xlu0 %4344
    %4348 = vset.pattern.permute.xlu0 0
    %4349 = vperm.xlu0 %4348, %v4097
    %v4350 = vpop.permute.xlu0 %4349
    %4353 = vset.pattern.permute.xlu0 0
    %4354 = vperm.xlu0 %4353, %v4098
    %v4355 = vpop.permute.xlu0 %4354
    %4358 = vset.pattern.permute.xlu0 0
    %4359 = vperm.xlu0 %4358, %v4099
    %v4360 = vpop.permute.xlu0 %4359
    %4363 = vset.pattern.permute.xlu0 0
    %4364 = vperm.xlu0 %4363, %v4100
    %v4365 = vpop.permute.xlu0 %4364
    %v4367 = vadd.f32 %v4297, %v4330
    %v4368 = vadd.f32 %v4300, %v4335
    %v4369 = vadd.f32 %v4305, %v4340
    %v4370 = vadd.f32 %v4308, %v4345
    %v4371 = vadd.f32 %v4313, %v4350
    %v4372 = vadd.f32 %v4316, %v4355
    %v4373 = vadd.f32 %v4321, %v4360
    %v4374 = vadd.f32 %v4324, %v4365
    %v4375 = vmax.f32 %v4367, 0.0
    %v4376 = vmax.f32 %v4368, 0.0
    %v4377 = vmax.f32 %v4369, 0.0
    %v4378 = vmax.f32 %v4370, 0.0
    %v4379 = vmax.f32 %v4371, 0.0
    %v4380 = vmax.f32 %v4372, 0.0
    %v4381 = vmax.f32 %v4373, 0.0
    %v4382 = vmax.f32 %v4374, 0.0
    %s4383 = scalar_lea.vmem [#allocation3], 416
    %v4384 = vld [vmem:[%s4383] sm:$0xf]
    %v4385 = vld [vmem:[%s4383 + $0x4] sm:$0xf]
    %v4386 = vld [vmem:[%s4383 + $0x8] sm:$0xf]
    %v4387 = vld [vmem:[%s4383 + $0xc] sm:$0xf]
    %v4388 = vld [vmem:[%s4383 + $0x10] sm:$0xf]
    %v4389 = vld [vmem:[%s4383 + $0x14] sm:$0xf]
    %v4390 = vld [vmem:[%s4383 + $0x18] sm:$0xf]
    %v4391 = vld [vmem:[%s4383 + $0x1c] sm:$0xf]
    %s4392 = scalar_lea.vmem [#allocation6], 416
    %v4393 = vld [vmem:[%s4392] sm:$0xf]
    %v4394 = vld [vmem:[%s4392 + $0x4] sm:$0xf]
    %v4395 = vld [vmem:[%s4392 + $0x8] sm:$0xf]
    %v4396 = vld [vmem:[%s4392 + $0xc] sm:$0xf]
    %v4397 = vld [vmem:[%s4392 + $0x10] sm:$0xf]
    %v4398 = vld [vmem:[%s4392 + $0x14] sm:$0xf]
    %v4399 = vld [vmem:[%s4392 + $0x18] sm:$0xf]
    %v4400 = vld [vmem:[%s4392 + $0x1c] sm:$0xf]
    %s4401 = scalar_lea.vmem [#allocation8], 832
    %v4402 = vld [vmem:[%s4401] sm:$0xff]
    %v4403 = vld [vmem:[%s4401 + $0x8] sm:$0xff]
    %v4404 = vld [vmem:[%s4401 + $0x10] sm:$0xff]
    %v4405 = vld [vmem:[%s4401 + $0x18] sm:$0xff]
    %v4406 = vld [vmem:[%s4401 + $0x20] sm:$0xff]
    %v4407 = vld [vmem:[%s4401 + $0x28] sm:$0xff]
    %v4408 = vld [vmem:[%s4401 + $0x30] sm:$0xff]
    %v4409 = vld [vmem:[%s4401 + $0x38] sm:$0xff]
    %4410 = vrot.lane.b32.xlu0 %v4375, 2
    %v4411 = vpop.permute.xlu0 %4410
    %4412 = vrot.lane.b32.xlu0 %v4376, 2
    %v4413 = vpop.permute.xlu0 %4412
    %4414 = vrot.lane.b32.xlu0 %v4377, 2
    %v4415 = vpop.permute.xlu0 %4414
    %4416 = vrot.lane.b32.xlu0 %v4378, 2
    %v4417 = vpop.permute.xlu0 %4416
    %4418 = vrot.lane.b32.xlu0 %v4379, 2
    %v4419 = vpop.permute.xlu0 %4418
    %4420 = vrot.lane.b32.xlu0 %v4380, 2
    %v4421 = vpop.permute.xlu0 %4420
    %4422 = vrot.lane.b32.xlu0 %v4381, 2
    %v4423 = vpop.permute.xlu0 %4422
    %4424 = vrot.lane.b32.xlu0 %v4382, 2
    %v4425 = vpop.permute.xlu0 %4424
    %v4426 = vmul.f32 %v4411, %v1278
    %v4427 = vmul.f32 %v4413, %v1278
    %v4428 = vmul.f32 %v4415, %v1278
    %v4429 = vmul.f32 %v4417, %v1278
    %v4430 = vmul.f32 %v4419, %v1278
    %v4431 = vmul.f32 %v4421, %v1278
    %v4432 = vmul.f32 %v4423, %v1278
    %v4433 = vmul.f32 %v4425, %v1278
    %v4434 = vpack.c.bf16 %v4376, %v4375
    %v4435 = vpack.c.bf16 %v4378, %v4377
    %v4436 = vpack.c.bf16 %v4380, %v4379
    %v4437 = vpack.c.bf16 %v4382, %v4381
    %v4438 = vpack.c.bf16 %v4427, %v4426
    %v4439 = vpack.c.bf16 %v4429, %v4428
    %v4440 = vpack.c.bf16 %v4431, %v4430
    %v4441 = vpack.c.bf16 %v4433, %v4432
    %v4450 = vunpack.c.l.b16 %v4393
    %v4451 = vunpack.c.l.b16 %v4394
    %v4452 = vunpack.c.l.b16 %v4395
    %v4453 = vunpack.c.l.b16 %v4396
    %v4454 = vunpack.c.l.b16 %v4397
    %v4455 = vunpack.c.l.b16 %v4398
    %v4456 = vunpack.c.l.b16 %v4399
    %v4457 = vunpack.c.l.b16 %v4400
    %v4458 = vpack.c.b16 %v4451, %v4450
    %v4459 = vpack.c.b16 %v4453, %v4452
    %v4460 = vpack.c.b16 %v4455, %v4454
    %v4461 = vpack.c.b16 %v4457, %v4456
    %v4463 = vsel %vm211, %v4458, 0
    %v4466 = vsel %vm211, %v4459, 0
    %v4469 = vsel %vm211, %v4460, 0
    %v4472 = vsel %vm211, %v4461, 0
    %4474 = vmatprep.subr.bf16.mxu0 0
    %4475 = vmatpush1.bf16.msra.mxu0 0
    %4476 = vmatprep.subr.bf16.mxu0 0
    %4477 = vmatpush1.bf16.msra.mxu0 0
    %4478 = vmatprep.subr.bf16.mxu0 0
    %4479 = vmatpush1.bf16.msra.mxu0 0
    %4480 = vmatprep.subr.bf16.mxu0 0
    %4481 = vmatpush1.bf16.msra.mxu0 0
    %4482 = vmatprep.subr.bf16.mxu0 0
    %4483 = vmatpush1.bf16.msra.mxu0 %v4441
    %4484 = vmatprep.subr.bf16.mxu0 0
    %4485 = vmatpush1.bf16.msra.mxu0 %v4440
    %4486 = vmatprep.subr.bf16.mxu0 0
    %4487 = vmatpush1.bf16.msra.mxu0 %v4439
    %4488 = vmatprep.subr.bf16.mxu0 0
    %4489 = vmatpush1.bf16.msra.mxu0 %v4438
    %4490 = vmatprep.subr.bf16.mxu0 0
    %4491 = vmatpush2.bf16.msra.mxu0 0
    %4492 = vmatprep.subr.bf16.mxu0 0
    %4493 = vmatpush2.bf16.msra.mxu0 0
    %4494 = vmatprep.subr.bf16.mxu0 0
    %4495 = vmatpush2.bf16.msra.mxu0 0
    %4496 = vmatprep.subr.bf16.mxu0 0
    %4497 = vmatpush2.bf16.msra.mxu0 0
    %4498 = vmatprep.subr.bf16.mxu0 0
    %4499 = vmatpush2.bf16.msra.mxu0 0
    %4500 = vmatprep.subr.bf16.mxu0 0
    %4501 = vmatpush2.bf16.msra.mxu0 0
    %4502 = vmatprep.subr.bf16.mxu0 0
    %4503 = vmatpush2.bf16.msra.mxu0 0
    %4504 = vmatprep.subr.bf16.mxu0 0
    %4505 = vmatpush2.bf16.msra.mxu0 0
    %4506 = vmatprep.mubr.bf16.mxu0 0
    %4507 = vmatmul.mubr.bf16.gmra.mxu0 %v4463
    %v4508 = vpop.f32.mrf.mxu0
    %v4509 = vadd.f32 0.0, %v4508
    %v4510 = vpop.f32.mrf.mxu0
    %v4511 = vpop.f32.mrf.mxu0
    %v4512 = vadd.f32 0.0, %v4511
    %v4513 = vpop.f32.mrf.mxu0
    %4514 = vmatprep.mubr.bf16.mxu0 0
    %4515 = vmatmul.mubr.bf16.gmra.mxu0 %v4466
    %v4516 = vpop.f32.mrf.mxu0
    %v4517 = vadd.f32 0.0, %v4516
    %v4518 = vpop.f32.mrf.mxu0
    %v4519 = vpop.f32.mrf.mxu0
    %v4520 = vadd.f32 0.0, %v4519
    %v4521 = vpop.f32.mrf.mxu0
    %4522 = vmatprep.mubr.bf16.mxu0 0
    %4523 = vmatmul.mubr.bf16.gmra.mxu0 %v4469
    %v4524 = vpop.f32.mrf.mxu0
    %v4525 = vadd.f32 0.0, %v4524
    %v4526 = vpop.f32.mrf.mxu0
    %v4527 = vpop.f32.mrf.mxu0
    %v4528 = vadd.f32 0.0, %v4527
    %v4529 = vpop.f32.mrf.mxu0
    %4530 = vmatprep.mubr.bf16.mxu0 0
    %4531 = vmatmul.mubr.bf16.gmra.mxu0 %v4472
    %v4532 = vpop.f32.mrf.mxu0
    %v4533 = vadd.f32 0.0, %v4532
    %v4534 = vpop.f32.mrf.mxu0
    %v4535 = vpop.f32.mrf.mxu0
    %v4536 = vadd.f32 0.0, %v4535
    %v4537 = vpop.f32.mrf.mxu0
    %4538 = vdwg.mxu0
    %v4547 = vunpack.c.l.b16 %v4384
    %v4548 = vunpack.c.l.b16 %v4385
    %v4549 = vunpack.c.l.b16 %v4386
    %v4550 = vunpack.c.l.b16 %v4387
    %v4551 = vunpack.c.l.b16 %v4388
    %v4552 = vunpack.c.l.b16 %v4389
    %v4553 = vunpack.c.l.b16 %v4390
    %v4554 = vunpack.c.l.b16 %v4391
    %v4555 = vpack.c.b16 %v4548, %v4547
    %v4556 = vpack.c.b16 %v4550, %v4549
    %v4557 = vpack.c.b16 %v4552, %v4551
    %v4558 = vpack.c.b16 %v4554, %v4553
    %v4560 = vsel %vm211, %v4555, 0
    %v4563 = vsel %vm211, %v4556, 0
    %v4566 = vsel %vm211, %v4557, 0
    %v4569 = vsel %vm211, %v4558, 0
    %4571 = vmatprep.subr.bf16.mxu0 0
    %4572 = vmatpush1.bf16.msra.mxu0 0
    %4573 = vmatprep.subr.bf16.mxu0 0
    %4574 = vmatpush1.bf16.msra.mxu0 0
    %4575 = vmatprep.subr.bf16.mxu0 0
    %4576 = vmatpush1.bf16.msra.mxu0 0
    %4577 = vmatprep.subr.bf16.mxu0 0
    %4578 = vmatpush1.bf16.msra.mxu0 0
    %4579 = vmatprep.subr.bf16.mxu0 0
    %4580 = vmatpush1.bf16.msra.mxu0 %v4437
    %4581 = vmatprep.subr.bf16.mxu0 0
    %4582 = vmatpush1.bf16.msra.mxu0 %v4436
    %4583 = vmatprep.subr.bf16.mxu0 0
    %4584 = vmatpush1.bf16.msra.mxu0 %v4435
    %4585 = vmatprep.subr.bf16.mxu0 0
    %4586 = vmatpush1.bf16.msra.mxu0 %v4434
    %4587 = vmatprep.subr.bf16.mxu0 0
    %4588 = vmatpush2.bf16.msra.mxu0 0
    %4589 = vmatprep.subr.bf16.mxu0 0
    %4590 = vmatpush2.bf16.msra.mxu0 0
    %4591 = vmatprep.subr.bf16.mxu0 0
    %4592 = vmatpush2.bf16.msra.mxu0 0
    %4593 = vmatprep.subr.bf16.mxu0 0
    %4594 = vmatpush2.bf16.msra.mxu0 0
    %4595 = vmatprep.subr.bf16.mxu0 0
    %4596 = vmatpush2.bf16.msra.mxu0 0
    %4597 = vmatprep.subr.bf16.mxu0 0
    %4598 = vmatpush2.bf16.msra.mxu0 0
    %4599 = vmatprep.subr.bf16.mxu0 0
    %4600 = vmatpush2.bf16.msra.mxu0 0
    %4601 = vmatprep.subr.bf16.mxu0 0
    %4602 = vmatpush2.bf16.msra.mxu0 0
    %4603 = vmatprep.mubr.bf16.mxu0 0
    %4604 = vmatmul.mubr.bf16.gmra.mxu0 %v4560
    %v4605 = vpop.f32.mrf.mxu0
    %v4606 = vadd.f32 %v4509, %v4605
    %v4607 = vpop.f32.mrf.mxu0
    %v4608 = vpop.f32.mrf.mxu0
    %v4609 = vadd.f32 %v4512, %v4608
    %v4610 = vpop.f32.mrf.mxu0
    %4611 = vmatprep.mubr.bf16.mxu0 0
    %4612 = vmatmul.mubr.bf16.gmra.mxu0 %v4563
    %v4613 = vpop.f32.mrf.mxu0
    %v4614 = vadd.f32 %v4517, %v4613
    %v4615 = vpop.f32.mrf.mxu0
    %v4616 = vpop.f32.mrf.mxu0
    %v4617 = vadd.f32 %v4520, %v4616
    %v4618 = vpop.f32.mrf.mxu0
    %4619 = vmatprep.mubr.bf16.mxu0 0
    %4620 = vmatmul.mubr.bf16.gmra.mxu0 %v4566
    %v4621 = vpop.f32.mrf.mxu0
    %v4622 = vadd.f32 %v4525, %v4621
    %v4623 = vpop.f32.mrf.mxu0
    %v4624 = vpop.f32.mrf.mxu0
    %v4625 = vadd.f32 %v4528, %v4624
    %v4626 = vpop.f32.mrf.mxu0
    %4627 = vmatprep.mubr.bf16.mxu0 0
    %4628 = vmatmul.mubr.bf16.gmra.mxu0 %v4569
    %v4629 = vpop.f32.mrf.mxu0
    %v4630 = vadd.f32 %v4533, %v4629
    %v4631 = vpop.f32.mrf.mxu0
    %v4632 = vpop.f32.mrf.mxu0
    %v4633 = vadd.f32 %v4536, %v4632
    %v4634 = vpop.f32.mrf.mxu0
    %4635 = vdwg.mxu0
    %4637 = vset.pattern.permute.xlu0 0
    %4638 = vperm.xlu0 %4637, %v4402
    %v4639 = vpop.permute.xlu0 %4638
    %4642 = vset.pattern.permute.xlu0 0
    %4643 = vperm.xlu0 %4642, %v4403
    %v4644 = vpop.permute.xlu0 %4643
    %4647 = vset.pattern.permute.xlu0 0
    %4648 = vperm.xlu0 %4647, %v4404
    %v4649 = vpop.permute.xlu0 %4648
    %4652 = vset.pattern.permute.xlu0 0
    %4653 = vperm.xlu0 %4652, %v4405
    %v4654 = vpop.permute.xlu0 %4653
    %4657 = vset.pattern.permute.xlu0 0
    %4658 = vperm.xlu0 %4657, %v4406
    %v4659 = vpop.permute.xlu0 %4658
    %4662 = vset.pattern.permute.xlu0 0
    %4663 = vperm.xlu0 %4662, %v4407
    %v4664 = vpop.permute.xlu0 %4663
    %4667 = vset.pattern.permute.xlu0 0
    %4668 = vperm.xlu0 %4667, %v4408
    %v4669 = vpop.permute.xlu0 %4668
    %4672 = vset.pattern.permute.xlu0 0
    %4673 = vperm.xlu0 %4672, %v4409
    %v4674 = vpop.permute.xlu0 %4673
    %v4676 = vadd.f32 %v4606, %v4639
    %v4677 = vadd.f32 %v4609, %v4644
    %v4678 = vadd.f32 %v4614, %v4649
    %v4679 = vadd.f32 %v4617, %v4654
    %v4680 = vadd.f32 %v4622, %v4659
    %v4681 = vadd.f32 %v4625, %v4664
    %v4682 = vadd.f32 %v4630, %v4669
    %v4683 = vadd.f32 %v4633, %v4674
    %v4684 = vmax.f32 %v4676, 0.0
    %v4685 = vmax.f32 %v4677, 0.0
    %v4686 = vmax.f32 %v4678, 0.0
    %v4687 = vmax.f32 %v4679, 0.0
    %v4688 = vmax.f32 %v4680, 0.0
    %v4689 = vmax.f32 %v4681, 0.0
    %v4690 = vmax.f32 %v4682, 0.0
    %v4691 = vmax.f32 %v4683, 0.0
    %s4692 = scalar_lea.vmem [#allocation3], 448
    %v4693 = vld [vmem:[%s4692] sm:$0xf]
    %v4694 = vld [vmem:[%s4692 + $0x4] sm:$0xf]
    %v4695 = vld [vmem:[%s4692 + $0x8] sm:$0xf]
    %v4696 = vld [vmem:[%s4692 + $0xc] sm:$0xf]
    %v4697 = vld [vmem:[%s4692 + $0x10] sm:$0xf]
    %v4698 = vld [vmem:[%s4692 + $0x14] sm:$0xf]
    %v4699 = vld [vmem:[%s4692 + $0x18] sm:$0xf]
    %v4700 = vld [vmem:[%s4692 + $0x1c] sm:$0xf]
    %s4701 = scalar_lea.vmem [#allocation6], 448
    %v4702 = vld [vmem:[%s4701] sm:$0xf]
    %v4703 = vld [vmem:[%s4701 + $0x4] sm:$0xf]
    %v4704 = vld [vmem:[%s4701 + $0x8] sm:$0xf]
    %v4705 = vld [vmem:[%s4701 + $0xc] sm:$0xf]
    %v4706 = vld [vmem:[%s4701 + $0x10] sm:$0xf]
    %v4707 = vld [vmem:[%s4701 + $0x14] sm:$0xf]
    %v4708 = vld [vmem:[%s4701 + $0x18] sm:$0xf]
    %v4709 = vld [vmem:[%s4701 + $0x1c] sm:$0xf]
    %s4710 = scalar_lea.vmem [#allocation8], 896
    %v4711 = vld [vmem:[%s4710] sm:$0xff]
    %v4712 = vld [vmem:[%s4710 + $0x8] sm:$0xff]
    %v4713 = vld [vmem:[%s4710 + $0x10] sm:$0xff]
    %v4714 = vld [vmem:[%s4710 + $0x18] sm:$0xff]
    %v4715 = vld [vmem:[%s4710 + $0x20] sm:$0xff]
    %v4716 = vld [vmem:[%s4710 + $0x28] sm:$0xff]
    %v4717 = vld [vmem:[%s4710 + $0x30] sm:$0xff]
    %v4718 = vld [vmem:[%s4710 + $0x38] sm:$0xff]
    %4719 = vrot.lane.b32.xlu0 %v4684, 2
    %v4720 = vpop.permute.xlu0 %4719
    %4721 = vrot.lane.b32.xlu0 %v4685, 2
    %v4722 = vpop.permute.xlu0 %4721
    %4723 = vrot.lane.b32.xlu0 %v4686, 2
    %v4724 = vpop.permute.xlu0 %4723
    %4725 = vrot.lane.b32.xlu0 %v4687, 2
    %v4726 = vpop.permute.xlu0 %4725
    %4727 = vrot.lane.b32.xlu0 %v4688, 2
    %v4728 = vpop.permute.xlu0 %4727
    %4729 = vrot.lane.b32.xlu0 %v4689, 2
    %v4730 = vpop.permute.xlu0 %4729
    %4731 = vrot.lane.b32.xlu0 %v4690, 2
    %v4732 = vpop.permute.xlu0 %4731
    %4733 = vrot.lane.b32.xlu0 %v4691, 2
    %v4734 = vpop.permute.xlu0 %4733
    %v4735 = vmul.f32 %v4720, %v1278
    %v4736 = vmul.f32 %v4722, %v1278
    %v4737 = vmul.f32 %v4724, %v1278
    %v4738 = vmul.f32 %v4726, %v1278
    %v4739 = vmul.f32 %v4728, %v1278
    %v4740 = vmul.f32 %v4730, %v1278
    %v4741 = vmul.f32 %v4732, %v1278
    %v4742 = vmul.f32 %v4734, %v1278
    %v4743 = vpack.c.bf16 %v4685, %v4684
    %v4744 = vpack.c.bf16 %v4687, %v4686
    %v4745 = vpack.c.bf16 %v4689, %v4688
    %v4746 = vpack.c.bf16 %v4691, %v4690
    %v4747 = vpack.c.bf16 %v4736, %v4735
    %v4748 = vpack.c.bf16 %v4738, %v4737
    %v4749 = vpack.c.bf16 %v4740, %v4739
    %v4750 = vpack.c.bf16 %v4742, %v4741
    %v4759 = vunpack.c.l.b16 %v4702
    %v4760 = vunpack.c.l.b16 %v4703
    %v4761 = vunpack.c.l.b16 %v4704
    %v4762 = vunpack.c.l.b16 %v4705
    %v4763 = vunpack.c.l.b16 %v4706
    %v4764 = vunpack.c.l.b16 %v4707
    %v4765 = vunpack.c.l.b16 %v4708
    %v4766 = vunpack.c.l.b16 %v4709
    %v4767 = vpack.c.b16 %v4760, %v4759
    %v4768 = vpack.c.b16 %v4762, %v4761
    %v4769 = vpack.c.b16 %v4764, %v4763
    %v4770 = vpack.c.b16 %v4766, %v4765
    %v4772 = vsel %vm211, %v4767, 0
    %v4775 = vsel %vm211, %v4768, 0
    %v4778 = vsel %vm211, %v4769, 0
    %v4781 = vsel %vm211, %v4770, 0
    %4783 = vmatprep.subr.bf16.mxu0 0
    %4784 = vmatpush1.bf16.msra.mxu0 0
    %4785 = vmatprep.subr.bf16.mxu0 0
    %4786 = vmatpush1.bf16.msra.mxu0 0
    %4787 = vmatprep.subr.bf16.mxu0 0
    %4788 = vmatpush1.bf16.msra.mxu0 0
    %4789 = vmatprep.subr.bf16.mxu0 0
    %4790 = vmatpush1.bf16.msra.mxu0 0
    %4791 = vmatprep.subr.bf16.mxu0 0
    %4792 = vmatpush1.bf16.msra.mxu0 %v4750
    %4793 = vmatprep.subr.bf16.mxu0 0
    %4794 = vmatpush1.bf16.msra.mxu0 %v4749
    %4795 = vmatprep.subr.bf16.mxu0 0
    %4796 = vmatpush1.bf16.msra.mxu0 %v4748
    %4797 = vmatprep.subr.bf16.mxu0 0
    %4798 = vmatpush1.bf16.msra.mxu0 %v4747
    %4799 = vmatprep.subr.bf16.mxu0 0
    %4800 = vmatpush2.bf16.msra.mxu0 0
    %4801 = vmatprep.subr.bf16.mxu0 0
    %4802 = vmatpush2.bf16.msra.mxu0 0
    %4803 = vmatprep.subr.bf16.mxu0 0
    %4804 = vmatpush2.bf16.msra.mxu0 0
    %4805 = vmatprep.subr.bf16.mxu0 0
    %4806 = vmatpush2.bf16.msra.mxu0 0
    %4807 = vmatprep.subr.bf16.mxu0 0
    %4808 = vmatpush2.bf16.msra.mxu0 0
    %4809 = vmatprep.subr.bf16.mxu0 0
    %4810 = vmatpush2.bf16.msra.mxu0 0
    %4811 = vmatprep.subr.bf16.mxu0 0
    %4812 = vmatpush2.bf16.msra.mxu0 0
    %4813 = vmatprep.subr.bf16.mxu0 0
    %4814 = vmatpush2.bf16.msra.mxu0 0
    %4815 = vmatprep.mubr.bf16.mxu0 0
    %4816 = vmatmul.mubr.bf16.gmra.mxu0 %v4772
    %v4817 = vpop.f32.mrf.mxu0
    %v4818 = vadd.f32 0.0, %v4817
    %v4819 = vpop.f32.mrf.mxu0
    %v4820 = vpop.f32.mrf.mxu0
    %v4821 = vadd.f32 0.0, %v4820
    %v4822 = vpop.f32.mrf.mxu0
    %4823 = vmatprep.mubr.bf16.mxu0 0
    %4824 = vmatmul.mubr.bf16.gmra.mxu0 %v4775
    %v4825 = vpop.f32.mrf.mxu0
    %v4826 = vadd.f32 0.0, %v4825
    %v4827 = vpop.f32.mrf.mxu0
    %v4828 = vpop.f32.mrf.mxu0
    %v4829 = vadd.f32 0.0, %v4828
    %v4830 = vpop.f32.mrf.mxu0
    %4831 = vmatprep.mubr.bf16.mxu0 0
    %4832 = vmatmul.mubr.bf16.gmra.mxu0 %v4778
    %v4833 = vpop.f32.mrf.mxu0
    %v4834 = vadd.f32 0.0, %v4833
    %v4835 = vpop.f32.mrf.mxu0
    %v4836 = vpop.f32.mrf.mxu0
    %v4837 = vadd.f32 0.0, %v4836
    %v4838 = vpop.f32.mrf.mxu0
    %4839 = vmatprep.mubr.bf16.mxu0 0
    %4840 = vmatmul.mubr.bf16.gmra.mxu0 %v4781
    %v4841 = vpop.f32.mrf.mxu0
    %v4842 = vadd.f32 0.0, %v4841
    %v4843 = vpop.f32.mrf.mxu0
    %v4844 = vpop.f32.mrf.mxu0
    %v4845 = vadd.f32 0.0, %v4844
    %v4846 = vpop.f32.mrf.mxu0
    %4847 = vdwg.mxu0
    %v4856 = vunpack.c.l.b16 %v4693
    %v4857 = vunpack.c.l.b16 %v4694
    %v4858 = vunpack.c.l.b16 %v4695
    %v4859 = vunpack.c.l.b16 %v4696
    %v4860 = vunpack.c.l.b16 %v4697
    %v4861 = vunpack.c.l.b16 %v4698
    %v4862 = vunpack.c.l.b16 %v4699
    %v4863 = vunpack.c.l.b16 %v4700
    %v4864 = vpack.c.b16 %v4857, %v4856
    %v4865 = vpack.c.b16 %v4859, %v4858
    %v4866 = vpack.c.b16 %v4861, %v4860
    %v4867 = vpack.c.b16 %v4863, %v4862
    %v4869 = vsel %vm211, %v4864, 0
    %v4872 = vsel %vm211, %v4865, 0
    %v4875 = vsel %vm211, %v4866, 0
    %v4878 = vsel %vm211, %v4867, 0
    %4880 = vmatprep.subr.bf16.mxu0 0
    %4881 = vmatpush1.bf16.msra.mxu0 0
    %4882 = vmatprep.subr.bf16.mxu0 0
    %4883 = vmatpush1.bf16.msra.mxu0 0
    %4884 = vmatprep.subr.bf16.mxu0 0
    %4885 = vmatpush1.bf16.msra.mxu0 0
    %4886 = vmatprep.subr.bf16.mxu0 0
    %4887 = vmatpush1.bf16.msra.mxu0 0
    %4888 = vmatprep.subr.bf16.mxu0 0
    %4889 = vmatpush1.bf16.msra.mxu0 %v4746
    %4890 = vmatprep.subr.bf16.mxu0 0
    %4891 = vmatpush1.bf16.msra.mxu0 %v4745
    %4892 = vmatprep.subr.bf16.mxu0 0
    %4893 = vmatpush1.bf16.msra.mxu0 %v4744
    %4894 = vmatprep.subr.bf16.mxu0 0
    %4895 = vmatpush1.bf16.msra.mxu0 %v4743
    %4896 = vmatprep.subr.bf16.mxu0 0
    %4897 = vmatpush2.bf16.msra.mxu0 0
    %4898 = vmatprep.subr.bf16.mxu0 0
    %4899 = vmatpush2.bf16.msra.mxu0 0
    %4900 = vmatprep.subr.bf16.mxu0 0
    %4901 = vmatpush2.bf16.msra.mxu0 0
    %4902 = vmatprep.subr.bf16.mxu0 0
    %4903 = vmatpush2.bf16.msra.mxu0 0
    %4904 = vmatprep.subr.bf16.mxu0 0
    %4905 = vmatpush2.bf16.msra.mxu0 0
    %4906 = vmatprep.subr.bf16.mxu0 0
    %4907 = vmatpush2.bf16.msra.mxu0 0
    %4908 = vmatprep.subr.bf16.mxu0 0
    %4909 = vmatpush2.bf16.msra.mxu0 0
    %4910 = vmatprep.subr.bf16.mxu0 0
    %4911 = vmatpush2.bf16.msra.mxu0 0
    %4912 = vmatprep.mubr.bf16.mxu0 0
    %4913 = vmatmul.mubr.bf16.gmra.mxu0 %v4869
    %v4914 = vpop.f32.mrf.mxu0
    %v4915 = vadd.f32 %v4818, %v4914
    %v4916 = vpop.f32.mrf.mxu0
    %v4917 = vpop.f32.mrf.mxu0
    %v4918 = vadd.f32 %v4821, %v4917
    %v4919 = vpop.f32.mrf.mxu0
    %4920 = vmatprep.mubr.bf16.mxu0 0
    %4921 = vmatmul.mubr.bf16.gmra.mxu0 %v4872
    %v4922 = vpop.f32.mrf.mxu0
    %v4923 = vadd.f32 %v4826, %v4922
    %v4924 = vpop.f32.mrf.mxu0
    %v4925 = vpop.f32.mrf.mxu0
    %v4926 = vadd.f32 %v4829, %v4925
    %v4927 = vpop.f32.mrf.mxu0
    %4928 = vmatprep.mubr.bf16.mxu0 0
    %4929 = vmatmul.mubr.bf16.gmra.mxu0 %v4875
    %v4930 = vpop.f32.mrf.mxu0
    %v4931 = vadd.f32 %v4834, %v4930
    %v4932 = vpop.f32.mrf.mxu0
    %v4933 = vpop.f32.mrf.mxu0
    %v4934 = vadd.f32 %v4837, %v4933
    %v4935 = vpop.f32.mrf.mxu0
    %4936 = vmatprep.mubr.bf16.mxu0 0
    %4937 = vmatmul.mubr.bf16.gmra.mxu0 %v4878
    %v4938 = vpop.f32.mrf.mxu0
    %v4939 = vadd.f32 %v4842, %v4938
    %v4940 = vpop.f32.mrf.mxu0
    %v4941 = vpop.f32.mrf.mxu0
    %v4942 = vadd.f32 %v4845, %v4941
    %v4943 = vpop.f32.mrf.mxu0
    %4944 = vdwg.mxu0
    %4946 = vset.pattern.permute.xlu0 0
    %4947 = vperm.xlu0 %4946, %v4711
    %v4948 = vpop.permute.xlu0 %4947
    %4951 = vset.pattern.permute.xlu0 0
    %4952 = vperm.xlu0 %4951, %v4712
    %v4953 = vpop.permute.xlu0 %4952
    %4956 = vset.pattern.permute.xlu0 0
    %4957 = vperm.xlu0 %4956, %v4713
    %v4958 = vpop.permute.xlu0 %4957
    %4961 = vset.pattern.permute.xlu0 0
    %4962 = vperm.xlu0 %4961, %v4714
    %v4963 = vpop.permute.xlu0 %4962
    %4966 = vset.pattern.permute.xlu0 0
    %4967 = vperm.xlu0 %4966, %v4715
    %v4968 = vpop.permute.xlu0 %4967
    %4971 = vset.pattern.permute.xlu0 0
    %4972 = vperm.xlu0 %4971, %v4716
    %v4973 = vpop.permute.xlu0 %4972
    %4976 = vset.pattern.permute.xlu0 0
    %4977 = vperm.xlu0 %4976, %v4717
    %v4978 = vpop.permute.xlu0 %4977
    %4981 = vset.pattern.permute.xlu0 0
    %4982 = vperm.xlu0 %4981, %v4718
    %v4983 = vpop.permute.xlu0 %4982
    %v4985 = vadd.f32 %v4915, %v4948
    %v4986 = vadd.f32 %v4918, %v4953
    %v4987 = vadd.f32 %v4923, %v4958
    %v4988 = vadd.f32 %v4926, %v4963
    %v4989 = vadd.f32 %v4931, %v4968
    %v4990 = vadd.f32 %v4934, %v4973
    %v4991 = vadd.f32 %v4939, %v4978
    %v4992 = vadd.f32 %v4942, %v4983
    %v4993 = vmax.f32 %v4985, 0.0
    %v4994 = vmax.f32 %v4986, 0.0
    %v4995 = vmax.f32 %v4987, 0.0
    %v4996 = vmax.f32 %v4988, 0.0
    %v4997 = vmax.f32 %v4989, 0.0
    %v4998 = vmax.f32 %v4990, 0.0
    %v4999 = vmax.f32 %v4991, 0.0
    %v5000 = vmax.f32 %v4992, 0.0
    %v5001 = vadd.f32 %v4993, %v4066
    %v5002 = vadd.f32 %v4994, %v4067
    %v5003 = vadd.f32 %v4995, %v4068
    %v5004 = vadd.f32 %v4996, %v4069
    %v5005 = vadd.f32 %v4997, %v4070
    %v5006 = vadd.f32 %v4998, %v4071
    %v5007 = vadd.f32 %v4999, %v4072
    %v5008 = vadd.f32 %v5000, %v4073
    %v5009 = vmax.f32 %v5001, 0.0
    %v5010 = vmax.f32 %v5002, 0.0
    %v5011 = vmax.f32 %v5003, 0.0
    %v5012 = vmax.f32 %v5004, 0.0
    %v5013 = vmax.f32 %v5005, 0.0
    %v5014 = vmax.f32 %v5006, 0.0
    %v5015 = vmax.f32 %v5007, 0.0
    %v5016 = vmax.f32 %v5008, 0.0
    %s5017 = scalar_lea.vmem [#allocation3], 480
    %v5018 = vld [vmem:[%s5017] sm:$0xf]
    %v5019 = vld [vmem:[%s5017 + $0x4] sm:$0xf]
    %v5020 = vld [vmem:[%s5017 + $0x8] sm:$0xf]
    %v5021 = vld [vmem:[%s5017 + $0xc] sm:$0xf]
    %v5022 = vld [vmem:[%s5017 + $0x10] sm:$0xf]
    %v5023 = vld [vmem:[%s5017 + $0x14] sm:$0xf]
    %v5024 = vld [vmem:[%s5017 + $0x18] sm:$0xf]
    %v5025 = vld [vmem:[%s5017 + $0x1c] sm:$0xf]
    %s5026 = scalar_lea.vmem [#allocation6], 480
    %v5027 = vld [vmem:[%s5026] sm:$0xf]
    %v5028 = vld [vmem:[%s5026 + $0x4] sm:$0xf]
    %v5029 = vld [vmem:[%s5026 + $0x8] sm:$0xf]
    %v5030 = vld [vmem:[%s5026 + $0xc] sm:$0xf]
    %v5031 = vld [vmem:[%s5026 + $0x10] sm:$0xf]
    %v5032 = vld [vmem:[%s5026 + $0x14] sm:$0xf]
    %v5033 = vld [vmem:[%s5026 + $0x18] sm:$0xf]
    %v5034 = vld [vmem:[%s5026 + $0x1c] sm:$0xf]
    %s5035 = scalar_lea.vmem [#allocation8], 960
    %v5036 = vld [vmem:[%s5035] sm:$0xff]
    %v5037 = vld [vmem:[%s5035 + $0x8] sm:$0xff]
    %v5038 = vld [vmem:[%s5035 + $0x10] sm:$0xff]
    %v5039 = vld [vmem:[%s5035 + $0x18] sm:$0xff]
    %v5040 = vld [vmem:[%s5035 + $0x20] sm:$0xff]
    %v5041 = vld [vmem:[%s5035 + $0x28] sm:$0xff]
    %v5042 = vld [vmem:[%s5035 + $0x30] sm:$0xff]
    %v5043 = vld [vmem:[%s5035 + $0x38] sm:$0xff]
    %5044 = vrot.lane.b32.xlu0 %v5009, 4
    %v5045 = vpop.permute.xlu0 %5044
    %5046 = vrot.lane.b32.xlu0 %v5010, 4
    %v5047 = vpop.permute.xlu0 %5046
    %5048 = vrot.lane.b32.xlu0 %v5011, 4
    %v5049 = vpop.permute.xlu0 %5048
    %5050 = vrot.lane.b32.xlu0 %v5012, 4
    %v5051 = vpop.permute.xlu0 %5050
    %5052 = vrot.lane.b32.xlu0 %v5013, 4
    %v5053 = vpop.permute.xlu0 %5052
    %5054 = vrot.lane.b32.xlu0 %v5014, 4
    %v5055 = vpop.permute.xlu0 %5054
    %5056 = vrot.lane.b32.xlu0 %v5015, 4
    %v5057 = vpop.permute.xlu0 %5056
    %5058 = vrot.lane.b32.xlu0 %v5016, 4
    %v5059 = vpop.permute.xlu0 %5058
    %v5060 = vmul.f32 %v5045, %v2229
    %v5061 = vmul.f32 %v5047, %v2229
    %v5062 = vmul.f32 %v5049, %v2229
    %v5063 = vmul.f32 %v5051, %v2229
    %v5064 = vmul.f32 %v5053, %v2229
    %v5065 = vmul.f32 %v5055, %v2229
    %v5066 = vmul.f32 %v5057, %v2229
    %v5067 = vmul.f32 %v5059, %v2229
    %v5068 = vpack.c.bf16 %v5010, %v5009
    %v5069 = vpack.c.bf16 %v5012, %v5011
    %v5070 = vpack.c.bf16 %v5014, %v5013
    %v5071 = vpack.c.bf16 %v5016, %v5015
    %v5072 = vpack.c.bf16 %v5061, %v5060
    %v5073 = vpack.c.bf16 %v5063, %v5062
    %v5074 = vpack.c.bf16 %v5065, %v5064
    %v5075 = vpack.c.bf16 %v5067, %v5066
    %v5084 = vunpack.c.l.b16 %v5027
    %v5085 = vunpack.c.l.b16 %v5028
    %v5086 = vunpack.c.l.b16 %v5029
    %v5087 = vunpack.c.l.b16 %v5030
    %v5088 = vunpack.c.l.b16 %v5031
    %v5089 = vunpack.c.l.b16 %v5032
    %v5090 = vunpack.c.l.b16 %v5033
    %v5091 = vunpack.c.l.b16 %v5034
    %v5092 = vpack.c.b16 %v5085, %v5084
    %v5093 = vpack.c.b16 %v5087, %v5086
    %v5094 = vpack.c.b16 %v5089, %v5088
    %v5095 = vpack.c.b16 %v5091, %v5090
    %v5097 = vsel %vm211, %v5092, 0
    %v5100 = vsel %vm211, %v5093, 0
    %v5103 = vsel %vm211, %v5094, 0
    %v5106 = vsel %vm211, %v5095, 0
    %5108 = vmatprep.subr.bf16.mxu0 0
    %5109 = vmatpush1.bf16.msra.mxu0 0
    %5110 = vmatprep.subr.bf16.mxu0 0
    %5111 = vmatpush1.bf16.msra.mxu0 0
    %5112 = vmatprep.subr.bf16.mxu0 0
    %5113 = vmatpush1.bf16.msra.mxu0 0
    %5114 = vmatprep.subr.bf16.mxu0 0
    %5115 = vmatpush1.bf16.msra.mxu0 0
    %5116 = vmatprep.subr.bf16.mxu0 0
    %5117 = vmatpush1.bf16.msra.mxu0 %v5075
    %5118 = vmatprep.subr.bf16.mxu0 0
    %5119 = vmatpush1.bf16.msra.mxu0 %v5074
    %5120 = vmatprep.subr.bf16.mxu0 0
    %5121 = vmatpush1.bf16.msra.mxu0 %v5073
    %5122 = vmatprep.subr.bf16.mxu0 0
    %5123 = vmatpush1.bf16.msra.mxu0 %v5072
    %5124 = vmatprep.subr.bf16.mxu0 0
    %5125 = vmatpush2.bf16.msra.mxu0 0
    %5126 = vmatprep.subr.bf16.mxu0 0
    %5127 = vmatpush2.bf16.msra.mxu0 0
    %5128 = vmatprep.subr.bf16.mxu0 0
    %5129 = vmatpush2.bf16.msra.mxu0 0
    %5130 = vmatprep.subr.bf16.mxu0 0
    %5131 = vmatpush2.bf16.msra.mxu0 0
    %5132 = vmatprep.subr.bf16.mxu0 0
    %5133 = vmatpush2.bf16.msra.mxu0 0
    %5134 = vmatprep.subr.bf16.mxu0 0
    %5135 = vmatpush2.bf16.msra.mxu0 0
    %5136 = vmatprep.subr.bf16.mxu0 0
    %5137 = vmatpush2.bf16.msra.mxu0 0
    %5138 = vmatprep.subr.bf16.mxu0 0
    %5139 = vmatpush2.bf16.msra.mxu0 0
    %5140 = vmatprep.mubr.bf16.mxu0 0
    %5141 = vmatmul.mubr.bf16.gmra.mxu0 %v5097
    %v5142 = vpop.f32.mrf.mxu0
    %v5143 = vadd.f32 0.0, %v5142
    %v5144 = vpop.f32.mrf.mxu0
    %v5145 = vpop.f32.mrf.mxu0
    %v5146 = vadd.f32 0.0, %v5145
    %v5147 = vpop.f32.mrf.mxu0
    %5148 = vmatprep.mubr.bf16.mxu0 0
    %5149 = vmatmul.mubr.bf16.gmra.mxu0 %v5100
    %v5150 = vpop.f32.mrf.mxu0
    %v5151 = vadd.f32 0.0, %v5150
    %v5152 = vpop.f32.mrf.mxu0
    %v5153 = vpop.f32.mrf.mxu0
    %v5154 = vadd.f32 0.0, %v5153
    %v5155 = vpop.f32.mrf.mxu0
    %5156 = vmatprep.mubr.bf16.mxu0 0
    %5157 = vmatmul.mubr.bf16.gmra.mxu0 %v5103
    %v5158 = vpop.f32.mrf.mxu0
    %v5159 = vadd.f32 0.0, %v5158
    %v5160 = vpop.f32.mrf.mxu0
    %v5161 = vpop.f32.mrf.mxu0
    %v5162 = vadd.f32 0.0, %v5161
    %v5163 = vpop.f32.mrf.mxu0
    %5164 = vmatprep.mubr.bf16.mxu0 0
    %5165 = vmatmul.mubr.bf16.gmra.mxu0 %v5106
    %v5166 = vpop.f32.mrf.mxu0
    %v5167 = vadd.f32 0.0, %v5166
    %v5168 = vpop.f32.mrf.mxu0
    %v5169 = vpop.f32.mrf.mxu0
    %v5170 = vadd.f32 0.0, %v5169
    %v5171 = vpop.f32.mrf.mxu0
    %5172 = vdwg.mxu0
    %v5181 = vunpack.c.l.b16 %v5018
    %v5182 = vunpack.c.l.b16 %v5019
    %v5183 = vunpack.c.l.b16 %v5020
    %v5184 = vunpack.c.l.b16 %v5021
    %v5185 = vunpack.c.l.b16 %v5022
    %v5186 = vunpack.c.l.b16 %v5023
    %v5187 = vunpack.c.l.b16 %v5024
    %v5188 = vunpack.c.l.b16 %v5025
    %v5189 = vpack.c.b16 %v5182, %v5181
    %v5190 = vpack.c.b16 %v5184, %v5183
    %v5191 = vpack.c.b16 %v5186, %v5185
    %v5192 = vpack.c.b16 %v5188, %v5187
    %v5194 = vsel %vm211, %v5189, 0
    %v5197 = vsel %vm211, %v5190, 0
    %v5200 = vsel %vm211, %v5191, 0
    %v5203 = vsel %vm211, %v5192, 0
    %5205 = vmatprep.subr.bf16.mxu0 0
    %5206 = vmatpush1.bf16.msra.mxu0 0
    %5207 = vmatprep.subr.bf16.mxu0 0
    %5208 = vmatpush1.bf16.msra.mxu0 0
    %5209 = vmatprep.subr.bf16.mxu0 0
    %5210 = vmatpush1.bf16.msra.mxu0 0
    %5211 = vmatprep.subr.bf16.mxu0 0
    %5212 = vmatpush1.bf16.msra.mxu0 0
    %5213 = vmatprep.subr.bf16.mxu0 0
    %5214 = vmatpush1.bf16.msra.mxu0 %v5071
    %5215 = vmatprep.subr.bf16.mxu0 0
    %5216 = vmatpush1.bf16.msra.mxu0 %v5070
    %5217 = vmatprep.subr.bf16.mxu0 0
    %5218 = vmatpush1.bf16.msra.mxu0 %v5069
    %5219 = vmatprep.subr.bf16.mxu0 0
    %5220 = vmatpush1.bf16.msra.mxu0 %v5068
    %5221 = vmatprep.subr.bf16.mxu0 0
    %5222 = vmatpush2.bf16.msra.mxu0 0
    %5223 = vmatprep.subr.bf16.mxu0 0
    %5224 = vmatpush2.bf16.msra.mxu0 0
    %5225 = vmatprep.subr.bf16.mxu0 0
    %5226 = vmatpush2.bf16.msra.mxu0 0
    %5227 = vmatprep.subr.bf16.mxu0 0
    %5228 = vmatpush2.bf16.msra.mxu0 0
    %5229 = vmatprep.subr.bf16.mxu0 0
    %5230 = vmatpush2.bf16.msra.mxu0 0
    %5231 = vmatprep.subr.bf16.mxu0 0
    %5232 = vmatpush2.bf16.msra.mxu0 0
    %5233 = vmatprep.subr.bf16.mxu0 0
    %5234 = vmatpush2.bf16.msra.mxu0 0
    %5235 = vmatprep.subr.bf16.mxu0 0
    %5236 = vmatpush2.bf16.msra.mxu0 0
    %5237 = vmatprep.mubr.bf16.mxu0 0
    %5238 = vmatmul.mubr.bf16.gmra.mxu0 %v5194
    %v5239 = vpop.f32.mrf.mxu0
    %v5240 = vadd.f32 %v5143, %v5239
    %v5241 = vpop.f32.mrf.mxu0
    %v5242 = vpop.f32.mrf.mxu0
    %v5243 = vadd.f32 %v5146, %v5242
    %v5244 = vpop.f32.mrf.mxu0
    %5245 = vmatprep.mubr.bf16.mxu0 0
    %5246 = vmatmul.mubr.bf16.gmra.mxu0 %v5197
    %v5247 = vpop.f32.mrf.mxu0
    %v5248 = vadd.f32 %v5151, %v5247
    %v5249 = vpop.f32.mrf.mxu0
    %v5250 = vpop.f32.mrf.mxu0
    %v5251 = vadd.f32 %v5154, %v5250
    %v5252 = vpop.f32.mrf.mxu0
    %5253 = vmatprep.mubr.bf16.mxu0 0
    %5254 = vmatmul.mubr.bf16.gmra.mxu0 %v5200
    %v5255 = vpop.f32.mrf.mxu0
    %v5256 = vadd.f32 %v5159, %v5255
    %v5257 = vpop.f32.mrf.mxu0
    %v5258 = vpop.f32.mrf.mxu0
    %v5259 = vadd.f32 %v5162, %v5258
    %v5260 = vpop.f32.mrf.mxu0
    %5261 = vmatprep.mubr.bf16.mxu0 0
    %5262 = vmatmul.mubr.bf16.gmra.mxu0 %v5203
    %v5263 = vpop.f32.mrf.mxu0
    %v5264 = vadd.f32 %v5167, %v5263
    %v5265 = vpop.f32.mrf.mxu0
    %v5266 = vpop.f32.mrf.mxu0
    %v5267 = vadd.f32 %v5170, %v5266
    %v5268 = vpop.f32.mrf.mxu0
    %5269 = vdwg.mxu0
    %5271 = vset.pattern.permute.xlu0 0
    %5272 = vperm.xlu0 %5271, %v5036
    %v5273 = vpop.permute.xlu0 %5272
    %5276 = vset.pattern.permute.xlu0 0
    %5277 = vperm.xlu0 %5276, %v5037
    %v5278 = vpop.permute.xlu0 %5277
    %5281 = vset.pattern.permute.xlu0 0
    %5282 = vperm.xlu0 %5281, %v5038
    %v5283 = vpop.permute.xlu0 %5282
    %5286 = vset.pattern.permute.xlu0 0
    %5287 = vperm.xlu0 %5286, %v5039
    %v5288 = vpop.permute.xlu0 %5287
    %5291 = vset.pattern.permute.xlu0 0
    %5292 = vperm.xlu0 %5291, %v5040
    %v5293 = vpop.permute.xlu0 %5292
    %5296 = vset.pattern.permute.xlu0 0
    %5297 = vperm.xlu0 %5296, %v5041
    %v5298 = vpop.permute.xlu0 %5297
    %5301 = vset.pattern.permute.xlu0 0
    %5302 = vperm.xlu0 %5301, %v5042
    %v5303 = vpop.permute.xlu0 %5302
    %5306 = vset.pattern.permute.xlu0 0
    %5307 = vperm.xlu0 %5306, %v5043
    %v5308 = vpop.permute.xlu0 %5307
    %v5310 = vadd.f32 %v5240, %v5273
    %v5311 = vadd.f32 %v5243, %v5278
    %v5312 = vadd.f32 %v5248, %v5283
    %v5313 = vadd.f32 %v5251, %v5288
    %v5314 = vadd.f32 %v5256, %v5293
    %v5315 = vadd.f32 %v5259, %v5298
    %v5316 = vadd.f32 %v5264, %v5303
    %v5317 = vadd.f32 %v5267, %v5308
    %v5318 = vmax.f32 %v5310, 0.0
    %v5319 = vmax.f32 %v5311, 0.0
    %v5320 = vmax.f32 %v5312, 0.0
    %v5321 = vmax.f32 %v5313, 0.0
    %v5322 = vmax.f32 %v5314, 0.0
    %v5323 = vmax.f32 %v5315, 0.0
    %v5324 = vmax.f32 %v5316, 0.0
    %v5325 = vmax.f32 %v5317, 0.0
    %s5326 = scalar_lea.vmem [#allocation3], 512
    %v5327 = vld [vmem:[%s5326] sm:$0xf]
    %v5328 = vld [vmem:[%s5326 + $0x4] sm:$0xf]
    %v5329 = vld [vmem:[%s5326 + $0x8] sm:$0xf]
    %v5330 = vld [vmem:[%s5326 + $0xc] sm:$0xf]
    %v5331 = vld [vmem:[%s5326 + $0x10] sm:$0xf]
    %v5332 = vld [vmem:[%s5326 + $0x14] sm:$0xf]
    %v5333 = vld [vmem:[%s5326 + $0x18] sm:$0xf]
    %v5334 = vld [vmem:[%s5326 + $0x1c] sm:$0xf]
    %s5335 = scalar_lea.vmem [#allocation6], 512
    %v5336 = vld [vmem:[%s5335] sm:$0xf]
    %v5337 = vld [vmem:[%s5335 + $0x4] sm:$0xf]
    %v5338 = vld [vmem:[%s5335 + $0x8] sm:$0xf]
    %v5339 = vld [vmem:[%s5335 + $0xc] sm:$0xf]
    %v5340 = vld [vmem:[%s5335 + $0x10] sm:$0xf]
    %v5341 = vld [vmem:[%s5335 + $0x14] sm:$0xf]
    %v5342 = vld [vmem:[%s5335 + $0x18] sm:$0xf]
    %v5343 = vld [vmem:[%s5335 + $0x1c] sm:$0xf]
    %s5344 = scalar_lea.vmem [#allocation8], 1024
    %v5345 = vld [vmem:[%s5344] sm:$0xff]
    %v5346 = vld [vmem:[%s5344 + $0x8] sm:$0xff]
    %v5347 = vld [vmem:[%s5344 + $0x10] sm:$0xff]
    %v5348 = vld [vmem:[%s5344 + $0x18] sm:$0xff]
    %v5349 = vld [vmem:[%s5344 + $0x20] sm:$0xff]
    %v5350 = vld [vmem:[%s5344 + $0x28] sm:$0xff]
    %v5351 = vld [vmem:[%s5344 + $0x30] sm:$0xff]
    %v5352 = vld [vmem:[%s5344 + $0x38] sm:$0xff]
    %5353 = vrot.lane.b32.xlu0 %v5318, 4
    %v5354 = vpop.permute.xlu0 %5353
    %5355 = vrot.lane.b32.xlu0 %v5319, 4
    %v5356 = vpop.permute.xlu0 %5355
    %5357 = vrot.lane.b32.xlu0 %v5320, 4
    %v5358 = vpop.permute.xlu0 %5357
    %5359 = vrot.lane.b32.xlu0 %v5321, 4
    %v5360 = vpop.permute.xlu0 %5359
    %5361 = vrot.lane.b32.xlu0 %v5322, 4
    %v5362 = vpop.permute.xlu0 %5361
    %5363 = vrot.lane.b32.xlu0 %v5323, 4
    %v5364 = vpop.permute.xlu0 %5363
    %5365 = vrot.lane.b32.xlu0 %v5324, 4
    %v5366 = vpop.permute.xlu0 %5365
    %5367 = vrot.lane.b32.xlu0 %v5325, 4
    %v5368 = vpop.permute.xlu0 %5367
    %v5369 = vmul.f32 %v5354, %v2229
    %v5370 = vmul.f32 %v5356, %v2229
    %v5371 = vmul.f32 %v5358, %v2229
    %v5372 = vmul.f32 %v5360, %v2229
    %v5373 = vmul.f32 %v5362, %v2229
    %v5374 = vmul.f32 %v5364, %v2229
    %v5375 = vmul.f32 %v5366, %v2229
    %v5376 = vmul.f32 %v5368, %v2229
    %v5377 = vpack.c.bf16 %v5319, %v5318
    %v5378 = vpack.c.bf16 %v5321, %v5320
    %v5379 = vpack.c.bf16 %v5323, %v5322
    %v5380 = vpack.c.bf16 %v5325, %v5324
    %v5381 = vpack.c.bf16 %v5370, %v5369
    %v5382 = vpack.c.bf16 %v5372, %v5371
    %v5383 = vpack.c.bf16 %v5374, %v5373
    %v5384 = vpack.c.bf16 %v5376, %v5375
    %v5393 = vunpack.c.l.b16 %v5336
    %v5394 = vunpack.c.l.b16 %v5337
    %v5395 = vunpack.c.l.b16 %v5338
    %v5396 = vunpack.c.l.b16 %v5339
    %v5397 = vunpack.c.l.b16 %v5340
    %v5398 = vunpack.c.l.b16 %v5341
    %v5399 = vunpack.c.l.b16 %v5342
    %v5400 = vunpack.c.l.b16 %v5343
    %v5401 = vpack.c.b16 %v5394, %v5393
    %v5402 = vpack.c.b16 %v5396, %v5395
    %v5403 = vpack.c.b16 %v5398, %v5397
    %v5404 = vpack.c.b16 %v5400, %v5399
    %v5406 = vsel %vm211, %v5401, 0
    %v5409 = vsel %vm211, %v5402, 0
    %v5412 = vsel %vm211, %v5403, 0
    %v5415 = vsel %vm211, %v5404, 0
    %5417 = vmatprep.subr.bf16.mxu0 0
    %5418 = vmatpush1.bf16.msra.mxu0 0
    %5419 = vmatprep.subr.bf16.mxu0 0
    %5420 = vmatpush1.bf16.msra.mxu0 0
    %5421 = vmatprep.subr.bf16.mxu0 0
    %5422 = vmatpush1.bf16.msra.mxu0 0
    %5423 = vmatprep.subr.bf16.mxu0 0
    %5424 = vmatpush1.bf16.msra.mxu0 0
    %5425 = vmatprep.subr.bf16.mxu0 0
    %5426 = vmatpush1.bf16.msra.mxu0 %v5384
    %5427 = vmatprep.subr.bf16.mxu0 0
    %5428 = vmatpush1.bf16.msra.mxu0 %v5383
    %5429 = vmatprep.subr.bf16.mxu0 0
    %5430 = vmatpush1.bf16.msra.mxu0 %v5382
    %5431 = vmatprep.subr.bf16.mxu0 0
    %5432 = vmatpush1.bf16.msra.mxu0 %v5381
    %5433 = vmatprep.subr.bf16.mxu0 0
    %5434 = vmatpush2.bf16.msra.mxu0 0
    %5435 = vmatprep.subr.bf16.mxu0 0
    %5436 = vmatpush2.bf16.msra.mxu0 0
    %5437 = vmatprep.subr.bf16.mxu0 0
    %5438 = vmatpush2.bf16.msra.mxu0 0
    %5439 = vmatprep.subr.bf16.mxu0 0
    %5440 = vmatpush2.bf16.msra.mxu0 0
    %5441 = vmatprep.subr.bf16.mxu0 0
    %5442 = vmatpush2.bf16.msra.mxu0 0
    %5443 = vmatprep.subr.bf16.mxu0 0
    %5444 = vmatpush2.bf16.msra.mxu0 0
    %5445 = vmatprep.subr.bf16.mxu0 0
    %5446 = vmatpush2.bf16.msra.mxu0 0
    %5447 = vmatprep.subr.bf16.mxu0 0
    %5448 = vmatpush2.bf16.msra.mxu0 0
    %5449 = vmatprep.mubr.bf16.mxu0 0
    %5450 = vmatmul.mubr.bf16.gmra.mxu0 %v5406
    %v5451 = vpop.f32.mrf.mxu0
    %v5452 = vadd.f32 0.0, %v5451
    %v5453 = vpop.f32.mrf.mxu0
    %v5454 = vpop.f32.mrf.mxu0
    %v5455 = vadd.f32 0.0, %v5454
    %v5456 = vpop.f32.mrf.mxu0
    %5457 = vmatprep.mubr.bf16.mxu0 0
    %5458 = vmatmul.mubr.bf16.gmra.mxu0 %v5409
    %v5459 = vpop.f32.mrf.mxu0
    %v5460 = vadd.f32 0.0, %v5459
    %v5461 = vpop.f32.mrf.mxu0
    %v5462 = vpop.f32.mrf.mxu0
    %v5463 = vadd.f32 0.0, %v5462
    %v5464 = vpop.f32.mrf.mxu0
    %5465 = vmatprep.mubr.bf16.mxu0 0
    %5466 = vmatmul.mubr.bf16.gmra.mxu0 %v5412
    %v5467 = vpop.f32.mrf.mxu0
    %v5468 = vadd.f32 0.0, %v5467
    %v5469 = vpop.f32.mrf.mxu0
    %v5470 = vpop.f32.mrf.mxu0
    %v5471 = vadd.f32 0.0, %v5470
    %v5472 = vpop.f32.mrf.mxu0
    %5473 = vmatprep.mubr.bf16.mxu0 0
    %5474 = vmatmul.mubr.bf16.gmra.mxu0 %v5415
    %v5475 = vpop.f32.mrf.mxu0
    %v5476 = vadd.f32 0.0, %v5475
    %v5477 = vpop.f32.mrf.mxu0
    %v5478 = vpop.f32.mrf.mxu0
    %v5479 = vadd.f32 0.0, %v5478
    %v5480 = vpop.f32.mrf.mxu0
    %5481 = vdwg.mxu0
    %v5490 = vunpack.c.l.b16 %v5327
    %v5491 = vunpack.c.l.b16 %v5328
    %v5492 = vunpack.c.l.b16 %v5329
    %v5493 = vunpack.c.l.b16 %v5330
    %v5494 = vunpack.c.l.b16 %v5331
    %v5495 = vunpack.c.l.b16 %v5332
    %v5496 = vunpack.c.l.b16 %v5333
    %v5497 = vunpack.c.l.b16 %v5334
    %v5498 = vpack.c.b16 %v5491, %v5490
    %v5499 = vpack.c.b16 %v5493, %v5492
    %v5500 = vpack.c.b16 %v5495, %v5494
    %v5501 = vpack.c.b16 %v5497, %v5496
    %v5503 = vsel %vm211, %v5498, 0
    %v5506 = vsel %vm211, %v5499, 0
    %v5509 = vsel %vm211, %v5500, 0
    %v5512 = vsel %vm211, %v5501, 0
    %5514 = vmatprep.subr.bf16.mxu0 0
    %5515 = vmatpush1.bf16.msra.mxu0 0
    %5516 = vmatprep.subr.bf16.mxu0 0
    %5517 = vmatpush1.bf16.msra.mxu0 0
    %5518 = vmatprep.subr.bf16.mxu0 0
    %5519 = vmatpush1.bf16.msra.mxu0 0
    %5520 = vmatprep.subr.bf16.mxu0 0
    %5521 = vmatpush1.bf16.msra.mxu0 0
    %5522 = vmatprep.subr.bf16.mxu0 0
    %5523 = vmatpush1.bf16.msra.mxu0 %v5380
    %5524 = vmatprep.subr.bf16.mxu0 0
    %5525 = vmatpush1.bf16.msra.mxu0 %v5379
    %5526 = vmatprep.subr.bf16.mxu0 0
    %5527 = vmatpush1.bf16.msra.mxu0 %v5378
    %5528 = vmatprep.subr.bf16.mxu0 0
    %5529 = vmatpush1.bf16.msra.mxu0 %v5377
    %5530 = vmatprep.subr.bf16.mxu0 0
    %5531 = vmatpush2.bf16.msra.mxu0 0
    %5532 = vmatprep.subr.bf16.mxu0 0
    %5533 = vmatpush2.bf16.msra.mxu0 0
    %5534 = vmatprep.subr.bf16.mxu0 0
    %5535 = vmatpush2.bf16.msra.mxu0 0
    %5536 = vmatprep.subr.bf16.mxu0 0
    %5537 = vmatpush2.bf16.msra.mxu0 0
    %5538 = vmatprep.subr.bf16.mxu0 0
    %5539 = vmatpush2.bf16.msra.mxu0 0
    %5540 = vmatprep.subr.bf16.mxu0 0
    %5541 = vmatpush2.bf16.msra.mxu0 0
    %5542 = vmatprep.subr.bf16.mxu0 0
    %5543 = vmatpush2.bf16.msra.mxu0 0
    %5544 = vmatprep.subr.bf16.mxu0 0
    %5545 = vmatpush2.bf16.msra.mxu0 0
    %5546 = vmatprep.mubr.bf16.mxu0 0
    %5547 = vmatmul.mubr.bf16.gmra.mxu0 %v5503
    %v5548 = vpop.f32.mrf.mxu0
    %v5549 = vadd.f32 %v5452, %v5548
    %v5550 = vpop.f32.mrf.mxu0
    %v5551 = vpop.f32.mrf.mxu0
    %v5552 = vadd.f32 %v5455, %v5551
    %v5553 = vpop.f32.mrf.mxu0
    %5554 = vmatprep.mubr.bf16.mxu0 0
    %5555 = vmatmul.mubr.bf16.gmra.mxu0 %v5506
    %v5556 = vpop.f32.mrf.mxu0
    %v5557 = vadd.f32 %v5460, %v5556
    %v5558 = vpop.f32.mrf.mxu0
    %v5559 = vpop.f32.mrf.mxu0
    %v5560 = vadd.f32 %v5463, %v5559
    %v5561 = vpop.f32.mrf.mxu0
    %5562 = vmatprep.mubr.bf16.mxu0 0
    %5563 = vmatmul.mubr.bf16.gmra.mxu0 %v5509
    %v5564 = vpop.f32.mrf.mxu0
    %v5565 = vadd.f32 %v5468, %v5564
    %v5566 = vpop.f32.mrf.mxu0
    %v5567 = vpop.f32.mrf.mxu0
    %v5568 = vadd.f32 %v5471, %v5567
    %v5569 = vpop.f32.mrf.mxu0
    %5570 = vmatprep.mubr.bf16.mxu0 0
    %5571 = vmatmul.mubr.bf16.gmra.mxu0 %v5512
    %v5572 = vpop.f32.mrf.mxu0
    %v5573 = vadd.f32 %v5476, %v5572
    %v5574 = vpop.f32.mrf.mxu0
    %v5575 = vpop.f32.mrf.mxu0
    %v5576 = vadd.f32 %v5479, %v5575
    %v5577 = vpop.f32.mrf.mxu0
    %5578 = vdwg.mxu0
    %5580 = vset.pattern.permute.xlu0 0
    %5581 = vperm.xlu0 %5580, %v5345
    %v5582 = vpop.permute.xlu0 %5581
    %5585 = vset.pattern.permute.xlu0 0
    %5586 = vperm.xlu0 %5585, %v5346
    %v5587 = vpop.permute.xlu0 %5586
    %5590 = vset.pattern.permute.xlu0 0
    %5591 = vperm.xlu0 %5590, %v5347
    %v5592 = vpop.permute.xlu0 %5591
    %5595 = vset.pattern.permute.xlu0 0
    %5596 = vperm.xlu0 %5595, %v5348
    %v5597 = vpop.permute.xlu0 %5596
    %5600 = vset.pattern.permute.xlu0 0
    %5601 = vperm.xlu0 %5600, %v5349
    %v5602 = vpop.permute.xlu0 %5601
    %5605 = vset.pattern.permute.xlu0 0
    %5606 = vperm.xlu0 %5605, %v5350
    %v5607 = vpop.permute.xlu0 %5606
    %5610 = vset.pattern.permute.xlu0 0
    %5611 = vperm.xlu0 %5610, %v5351
    %v5612 = vpop.permute.xlu0 %5611
    %5615 = vset.pattern.permute.xlu0 0
    %5616 = vperm.xlu0 %5615, %v5352
    %v5617 = vpop.permute.xlu0 %5616
    %v5619 = vadd.f32 %v5549, %v5582
    %v5620 = vadd.f32 %v5552, %v5587
    %v5621 = vadd.f32 %v5557, %v5592
    %v5622 = vadd.f32 %v5560, %v5597
    %v5623 = vadd.f32 %v5565, %v5602
    %v5624 = vadd.f32 %v5568, %v5607
    %v5625 = vadd.f32 %v5573, %v5612
    %v5626 = vadd.f32 %v5576, %v5617
    %v5627 = vmax.f32 %v5619, 0.0
    %v5628 = vmax.f32 %v5620, 0.0
    %v5629 = vmax.f32 %v5621, 0.0
    %v5630 = vmax.f32 %v5622, 0.0
    %v5631 = vmax.f32 %v5623, 0.0
    %v5632 = vmax.f32 %v5624, 0.0
    %v5633 = vmax.f32 %v5625, 0.0
    %v5634 = vmax.f32 %v5626, 0.0
    %s5635 = scalar_lea.vmem [#allocation3], 544
    %v5636 = vld [vmem:[%s5635] sm:$0xf]
    %v5637 = vld [vmem:[%s5635 + $0x4] sm:$0xf]
    %v5638 = vld [vmem:[%s5635 + $0x8] sm:$0xf]
    %v5639 = vld [vmem:[%s5635 + $0xc] sm:$0xf]
    %v5640 = vld [vmem:[%s5635 + $0x10] sm:$0xf]
    %v5641 = vld [vmem:[%s5635 + $0x14] sm:$0xf]
    %v5642 = vld [vmem:[%s5635 + $0x18] sm:$0xf]
    %v5643 = vld [vmem:[%s5635 + $0x1c] sm:$0xf]
    %s5644 = scalar_lea.vmem [#allocation6], 544
    %v5645 = vld [vmem:[%s5644] sm:$0xf]
    %v5646 = vld [vmem:[%s5644 + $0x4] sm:$0xf]
    %v5647 = vld [vmem:[%s5644 + $0x8] sm:$0xf]
    %v5648 = vld [vmem:[%s5644 + $0xc] sm:$0xf]
    %v5649 = vld [vmem:[%s5644 + $0x10] sm:$0xf]
    %v5650 = vld [vmem:[%s5644 + $0x14] sm:$0xf]
    %v5651 = vld [vmem:[%s5644 + $0x18] sm:$0xf]
    %v5652 = vld [vmem:[%s5644 + $0x1c] sm:$0xf]
    %s5653 = scalar_lea.vmem [#allocation8], 1088
    %v5654 = vld [vmem:[%s5653] sm:$0xff]
    %v5655 = vld [vmem:[%s5653 + $0x8] sm:$0xff]
    %v5656 = vld [vmem:[%s5653 + $0x10] sm:$0xff]
    %v5657 = vld [vmem:[%s5653 + $0x18] sm:$0xff]
    %v5658 = vld [vmem:[%s5653 + $0x20] sm:$0xff]
    %v5659 = vld [vmem:[%s5653 + $0x28] sm:$0xff]
    %v5660 = vld [vmem:[%s5653 + $0x30] sm:$0xff]
    %v5661 = vld [vmem:[%s5653 + $0x38] sm:$0xff]
    %5662 = vrot.lane.b32.xlu0 %v5627, 4
    %v5663 = vpop.permute.xlu0 %5662
    %5664 = vrot.lane.b32.xlu0 %v5628, 4
    %v5665 = vpop.permute.xlu0 %5664
    %5666 = vrot.lane.b32.xlu0 %v5629, 4
    %v5667 = vpop.permute.xlu0 %5666
    %5668 = vrot.lane.b32.xlu0 %v5630, 4
    %v5669 = vpop.permute.xlu0 %5668
    %5670 = vrot.lane.b32.xlu0 %v5631, 4
    %v5671 = vpop.permute.xlu0 %5670
    %5672 = vrot.lane.b32.xlu0 %v5632, 4
    %v5673 = vpop.permute.xlu0 %5672
    %5674 = vrot.lane.b32.xlu0 %v5633, 4
    %v5675 = vpop.permute.xlu0 %5674
    %5676 = vrot.lane.b32.xlu0 %v5634, 4
    %v5677 = vpop.permute.xlu0 %5676
    %v5678 = vmul.f32 %v5663, %v2229
    %v5679 = vmul.f32 %v5665, %v2229
    %v5680 = vmul.f32 %v5667, %v2229
    %v5681 = vmul.f32 %v5669, %v2229
    %v5682 = vmul.f32 %v5671, %v2229
    %v5683 = vmul.f32 %v5673, %v2229
    %v5684 = vmul.f32 %v5675, %v2229
    %v5685 = vmul.f32 %v5677, %v2229
    %v5686 = vpack.c.bf16 %v5628, %v5627
    %v5687 = vpack.c.bf16 %v5630, %v5629
    %v5688 = vpack.c.bf16 %v5632, %v5631
    %v5689 = vpack.c.bf16 %v5634, %v5633
    %v5690 = vpack.c.bf16 %v5679, %v5678
    %v5691 = vpack.c.bf16 %v5681, %v5680
    %v5692 = vpack.c.bf16 %v5683, %v5682
    %v5693 = vpack.c.bf16 %v5685, %v5684
    %v5702 = vunpack.c.l.b16 %v5645
    %v5703 = vunpack.c.l.b16 %v5646
    %v5704 = vunpack.c.l.b16 %v5647
    %v5705 = vunpack.c.l.b16 %v5648
    %v5706 = vunpack.c.l.b16 %v5649
    %v5707 = vunpack.c.l.b16 %v5650
    %v5708 = vunpack.c.l.b16 %v5651
    %v5709 = vunpack.c.l.b16 %v5652
    %v5710 = vpack.c.b16 %v5703, %v5702
    %v5711 = vpack.c.b16 %v5705, %v5704
    %v5712 = vpack.c.b16 %v5707, %v5706
    %v5713 = vpack.c.b16 %v5709, %v5708
    %v5715 = vsel %vm211, %v5710, 0
    %v5718 = vsel %vm211, %v5711, 0
    %v5721 = vsel %vm211, %v5712, 0
    %v5724 = vsel %vm211, %v5713, 0
    %5726 = vmatprep.subr.bf16.mxu0 0
    %5727 = vmatpush1.bf16.msra.mxu0 0
    %5728 = vmatprep.subr.bf16.mxu0 0
    %5729 = vmatpush1.bf16.msra.mxu0 0
    %5730 = vmatprep.subr.bf16.mxu0 0
    %5731 = vmatpush1.bf16.msra.mxu0 0
    %5732 = vmatprep.subr.bf16.mxu0 0
    %5733 = vmatpush1.bf16.msra.mxu0 0
    %5734 = vmatprep.subr.bf16.mxu0 0
    %5735 = vmatpush1.bf16.msra.mxu0 %v5693
    %5736 = vmatprep.subr.bf16.mxu0 0
    %5737 = vmatpush1.bf16.msra.mxu0 %v5692
    %5738 = vmatprep.subr.bf16.mxu0 0
    %5739 = vmatpush1.bf16.msra.mxu0 %v5691
    %5740 = vmatprep.subr.bf16.mxu0 0
    %5741 = vmatpush1.bf16.msra.mxu0 %v5690
    %5742 = vmatprep.subr.bf16.mxu0 0
    %5743 = vmatpush2.bf16.msra.mxu0 0
    %5744 = vmatprep.subr.bf16.mxu0 0
    %5745 = vmatpush2.bf16.msra.mxu0 0
    %5746 = vmatprep.subr.bf16.mxu0 0
    %5747 = vmatpush2.bf16.msra.mxu0 0
    %5748 = vmatprep.subr.bf16.mxu0 0
    %5749 = vmatpush2.bf16.msra.mxu0 0
    %5750 = vmatprep.subr.bf16.mxu0 0
    %5751 = vmatpush2.bf16.msra.mxu0 0
    %5752 = vmatprep.subr.bf16.mxu0 0
    %5753 = vmatpush2.bf16.msra.mxu0 0
    %5754 = vmatprep.subr.bf16.mxu0 0
    %5755 = vmatpush2.bf16.msra.mxu0 0
    %5756 = vmatprep.subr.bf16.mxu0 0
    %5757 = vmatpush2.bf16.msra.mxu0 0
    %5758 = vmatprep.mubr.bf16.mxu0 0
    %5759 = vmatmul.mubr.bf16.gmra.mxu0 %v5715
    %v5760 = vpop.f32.mrf.mxu0
    %v5761 = vadd.f32 0.0, %v5760
    %v5762 = vpop.f32.mrf.mxu0
    %v5763 = vpop.f32.mrf.mxu0
    %v5764 = vadd.f32 0.0, %v5763
    %v5765 = vpop.f32.mrf.mxu0
    %5766 = vmatprep.mubr.bf16.mxu0 0
    %5767 = vmatmul.mubr.bf16.gmra.mxu0 %v5718
    %v5768 = vpop.f32.mrf.mxu0
    %v5769 = vadd.f32 0.0, %v5768
    %v5770 = vpop.f32.mrf.mxu0
    %v5771 = vpop.f32.mrf.mxu0
    %v5772 = vadd.f32 0.0, %v5771
    %v5773 = vpop.f32.mrf.mxu0
    %5774 = vmatprep.mubr.bf16.mxu0 0
    %5775 = vmatmul.mubr.bf16.gmra.mxu0 %v5721
    %v5776 = vpop.f32.mrf.mxu0
    %v5777 = vadd.f32 0.0, %v5776
    %v5778 = vpop.f32.mrf.mxu0
    %v5779 = vpop.f32.mrf.mxu0
    %v5780 = vadd.f32 0.0, %v5779
    %v5781 = vpop.f32.mrf.mxu0
    %5782 = vmatprep.mubr.bf16.mxu0 0
    %5783 = vmatmul.mubr.bf16.gmra.mxu0 %v5724
    %v5784 = vpop.f32.mrf.mxu0
    %v5785 = vadd.f32 0.0, %v5784
    %v5786 = vpop.f32.mrf.mxu0
    %v5787 = vpop.f32.mrf.mxu0
    %v5788 = vadd.f32 0.0, %v5787
    %v5789 = vpop.f32.mrf.mxu0
    %5790 = vdwg.mxu0
    %v5799 = vunpack.c.l.b16 %v5636
    %v5800 = vunpack.c.l.b16 %v5637
    %v5801 = vunpack.c.l.b16 %v5638
    %v5802 = vunpack.c.l.b16 %v5639
    %v5803 = vunpack.c.l.b16 %v5640
    %v5804 = vunpack.c.l.b16 %v5641
    %v5805 = vunpack.c.l.b16 %v5642
    %v5806 = vunpack.c.l.b16 %v5643
    %v5807 = vpack.c.b16 %v5800, %v5799
    %v5808 = vpack.c.b16 %v5802, %v5801
    %v5809 = vpack.c.b16 %v5804, %v5803
    %v5810 = vpack.c.b16 %v5806, %v5805
    %v5812 = vsel %vm211, %v5807, 0
    %v5815 = vsel %vm211, %v5808, 0
    %v5818 = vsel %vm211, %v5809, 0
    %v5821 = vsel %vm211, %v5810, 0
    %5823 = vmatprep.subr.bf16.mxu0 0
    %5824 = vmatpush1.bf16.msra.mxu0 0
    %5825 = vmatprep.subr.bf16.mxu0 0
    %5826 = vmatpush1.bf16.msra.mxu0 0
    %5827 = vmatprep.subr.bf16.mxu0 0
    %5828 = vmatpush1.bf16.msra.mxu0 0
    %5829 = vmatprep.subr.bf16.mxu0 0
    %5830 = vmatpush1.bf16.msra.mxu0 0
    %5831 = vmatprep.subr.bf16.mxu0 0
    %5832 = vmatpush1.bf16.msra.mxu0 %v5689
    %5833 = vmatprep.subr.bf16.mxu0 0
    %5834 = vmatpush1.bf16.msra.mxu0 %v5688
    %5835 = vmatprep.subr.bf16.mxu0 0
    %5836 = vmatpush1.bf16.msra.mxu0 %v5687
    %5837 = vmatprep.subr.bf16.mxu0 0
    %5838 = vmatpush1.bf16.msra.mxu0 %v5686
    %5839 = vmatprep.subr.bf16.mxu0 0
    %5840 = vmatpush2.bf16.msra.mxu0 0
    %5841 = vmatprep.subr.bf16.mxu0 0
    %5842 = vmatpush2.bf16.msra.mxu0 0
    %5843 = vmatprep.subr.bf16.mxu0 0
    %5844 = vmatpush2.bf16.msra.mxu0 0
    %5845 = vmatprep.subr.bf16.mxu0 0
    %5846 = vmatpush2.bf16.msra.mxu0 0
    %5847 = vmatprep.subr.bf16.mxu0 0
    %5848 = vmatpush2.bf16.msra.mxu0 0
    %5849 = vmatprep.subr.bf16.mxu0 0
    %5850 = vmatpush2.bf16.msra.mxu0 0
    %5851 = vmatprep.subr.bf16.mxu0 0
    %5852 = vmatpush2.bf16.msra.mxu0 0
    %5853 = vmatprep.subr.bf16.mxu0 0
    %5854 = vmatpush2.bf16.msra.mxu0 0
    %5855 = vmatprep.mubr.bf16.mxu0 0
    %5856 = vmatmul.mubr.bf16.gmra.mxu0 %v5812
    %v5857 = vpop.f32.mrf.mxu0
    %v5858 = vadd.f32 %v5761, %v5857
    %v5859 = vpop.f32.mrf.mxu0
    %v5860 = vpop.f32.mrf.mxu0
    %v5861 = vadd.f32 %v5764, %v5860
    %v5862 = vpop.f32.mrf.mxu0
    %5863 = vmatprep.mubr.bf16.mxu0 0
    %5864 = vmatmul.mubr.bf16.gmra.mxu0 %v5815
    %v5865 = vpop.f32.mrf.mxu0
    %v5866 = vadd.f32 %v5769, %v5865
    %v5867 = vpop.f32.mrf.mxu0
    %v5868 = vpop.f32.mrf.mxu0
    %v5869 = vadd.f32 %v5772, %v5868
    %v5870 = vpop.f32.mrf.mxu0
    %5871 = vmatprep.mubr.bf16.mxu0 0
    %5872 = vmatmul.mubr.bf16.gmra.mxu0 %v5818
    %v5873 = vpop.f32.mrf.mxu0
    %v5874 = vadd.f32 %v5777, %v5873
    %v5875 = vpop.f32.mrf.mxu0
    %v5876 = vpop.f32.mrf.mxu0
    %v5877 = vadd.f32 %v5780, %v5876
    %v5878 = vpop.f32.mrf.mxu0
    %5879 = vmatprep.mubr.bf16.mxu0 0
    %5880 = vmatmul.mubr.bf16.gmra.mxu0 %v5821
    %v5881 = vpop.f32.mrf.mxu0
    %v5882 = vadd.f32 %v5785, %v5881
    %v5883 = vpop.f32.mrf.mxu0
    %v5884 = vpop.f32.mrf.mxu0
    %v5885 = vadd.f32 %v5788, %v5884
    %v5886 = vpop.f32.mrf.mxu0
    %5887 = vdwg.mxu0
    %5889 = vset.pattern.permute.xlu0 0
    %5890 = vperm.xlu0 %5889, %v5654
    %v5891 = vpop.permute.xlu0 %5890
    %5894 = vset.pattern.permute.xlu0 0
    %5895 = vperm.xlu0 %5894, %v5655
    %v5896 = vpop.permute.xlu0 %5895
    %5899 = vset.pattern.permute.xlu0 0
    %5900 = vperm.xlu0 %5899, %v5656
    %v5901 = vpop.permute.xlu0 %5900
    %5904 = vset.pattern.permute.xlu0 0
    %5905 = vperm.xlu0 %5904, %v5657
    %v5906 = vpop.permute.xlu0 %5905
    %5909 = vset.pattern.permute.xlu0 0
    %5910 = vperm.xlu0 %5909, %v5658
    %v5911 = vpop.permute.xlu0 %5910
    %5914 = vset.pattern.permute.xlu0 0
    %5915 = vperm.xlu0 %5914, %v5659
    %v5916 = vpop.permute.xlu0 %5915
    %5919 = vset.pattern.permute.xlu0 0
    %5920 = vperm.xlu0 %5919, %v5660
    %v5921 = vpop.permute.xlu0 %5920
    %5924 = vset.pattern.permute.xlu0 0
    %5925 = vperm.xlu0 %5924, %v5661
    %v5926 = vpop.permute.xlu0 %5925
    %v5928 = vadd.f32 %v5858, %v5891
    %v5929 = vadd.f32 %v5861, %v5896
    %v5930 = vadd.f32 %v5866, %v5901
    %v5931 = vadd.f32 %v5869, %v5906
    %v5932 = vadd.f32 %v5874, %v5911
    %v5933 = vadd.f32 %v5877, %v5916
    %v5934 = vadd.f32 %v5882, %v5921
    %v5935 = vadd.f32 %v5885, %v5926
    %v5936 = vmax.f32 %v5928, 0.0
    %v5937 = vmax.f32 %v5929, 0.0
    %v5938 = vmax.f32 %v5930, 0.0
    %v5939 = vmax.f32 %v5931, 0.0
    %v5940 = vmax.f32 %v5932, 0.0
    %v5941 = vmax.f32 %v5933, 0.0
    %v5942 = vmax.f32 %v5934, 0.0
    %v5943 = vmax.f32 %v5935, 0.0
    %v5944 = vadd.f32 %v5936, %v5009
    %v5945 = vadd.f32 %v5937, %v5010
    %v5946 = vadd.f32 %v5938, %v5011
    %v5947 = vadd.f32 %v5939, %v5012
    %v5948 = vadd.f32 %v5940, %v5013
    %v5949 = vadd.f32 %v5941, %v5014
    %v5950 = vadd.f32 %v5942, %v5015
    %v5951 = vadd.f32 %v5943, %v5016
    %v5952 = vmax.f32 %v5944, 0.0
    %v5953 = vmax.f32 %v5945, 0.0
    %v5954 = vmax.f32 %v5946, 0.0
    %v5955 = vmax.f32 %v5947, 0.0
    %v5956 = vmax.f32 %v5948, 0.0
    %v5957 = vmax.f32 %v5949, 0.0
    %v5958 = vmax.f32 %v5950, 0.0
    %v5959 = vmax.f32 %v5951, 0.0
    %5960 = vrot.lane.b32.xlu0 %v5952, 1
    %v5961 = vpop.permute.xlu0 %5960
    %5962 = vrot.lane.b32.xlu0 %v5953, 1
    %v5963 = vpop.permute.xlu0 %5962
    %5964 = vrot.lane.b32.xlu0 %v5954, 1
    %v5965 = vpop.permute.xlu0 %5964
    %5966 = vrot.lane.b32.xlu0 %v5955, 1
    %v5967 = vpop.permute.xlu0 %5966
    %5968 = vrot.lane.b32.xlu0 %v5956, 1
    %v5969 = vpop.permute.xlu0 %5968
    %5970 = vrot.lane.b32.xlu0 %v5957, 1
    %v5971 = vpop.permute.xlu0 %5970
    %5972 = vrot.lane.b32.xlu0 %v5958, 1
    %v5973 = vpop.permute.xlu0 %5972
    %5974 = vrot.lane.b32.xlu0 %v5959, 1
    %v5975 = vpop.permute.xlu0 %5974
    %v5976 = vmul.f32 %v5961, %v173
    %v5977 = vmul.f32 %v5963, %v173
    %v5978 = vmul.f32 %v5965, %v173
    %v5979 = vmul.f32 %v5967, %v173
    %v5980 = vmul.f32 %v5969, %v173
    %v5981 = vmul.f32 %v5971, %v173
    %v5982 = vmul.f32 %v5973, %v173
    %v5983 = vmul.f32 %v5975, %v173
    %v5984 = vpack.c.bf16 %v5953, %v5952
    %v5985 = vpack.c.bf16 %v5955, %v5954
    %v5986 = vpack.c.bf16 %v5957, %v5956
    %v5987 = vpack.c.bf16 %v5959, %v5958
    %v5988 = vpack.c.bf16 %v5977, %v5976
    %v5989 = vpack.c.bf16 %v5979, %v5978
    %v5990 = vpack.c.bf16 %v5981, %v5980
    %v5991 = vpack.c.bf16 %v5983, %v5982
    %5992 = vmatprep.subr.bf16.mxu0 0
    %5993 = vmatpush1.bf16.msra.mxu0 0
    %5994 = vmatprep.subr.bf16.mxu0 0
    %5995 = vmatpush1.bf16.msra.mxu0 0
    %5996 = vmatprep.subr.bf16.mxu0 0
    %5997 = vmatpush1.bf16.msra.mxu0 0
    %5998 = vmatprep.subr.bf16.mxu0 0
    %5999 = vmatpush1.bf16.msra.mxu0 0
    %6000 = vmatprep.subr.bf16.mxu0 0
    %6001 = vmatpush1.bf16.msra.mxu0 %v5991
    %6002 = vmatprep.subr.bf16.mxu0 0
    %6003 = vmatpush1.bf16.msra.mxu0 %v5990
    %6004 = vmatprep.subr.bf16.mxu0 0
    %6005 = vmatpush1.bf16.msra.mxu0 %v5989
    %6006 = vmatprep.subr.bf16.mxu0 0
    %6007 = vmatpush1.bf16.msra.mxu0 %v5988
    %6008 = vmatprep.subr.bf16.mxu0 0
    %6009 = vmatpush2.bf16.msra.mxu0 0
    %6010 = vmatprep.subr.bf16.mxu0 0
    %6011 = vmatpush2.bf16.msra.mxu0 0
    %6012 = vmatprep.subr.bf16.mxu0 0
    %6013 = vmatpush2.bf16.msra.mxu0 0
    %6014 = vmatprep.subr.bf16.mxu0 0
    %6015 = vmatpush2.bf16.msra.mxu0 0
    %6016 = vmatprep.subr.bf16.mxu0 0
    %6017 = vmatpush2.bf16.msra.mxu0 0
    %6018 = vmatprep.subr.bf16.mxu0 0
    %6019 = vmatpush2.bf16.msra.mxu0 0
    %6020 = vmatprep.subr.bf16.mxu0 0
    %6021 = vmatpush2.bf16.msra.mxu0 0
    %6022 = vmatprep.subr.bf16.mxu0 0
    %6023 = vmatpush2.bf16.msra.mxu0 0
    %6024 = vmatprep.mubr.bf16.mxu0 0
    %6025 = vmatmul.mubr.bf16.gmra.mxu0 %v3211
    %v6026 = vpop.f32.mrf.mxu0
    %v6027 = vadd.f32 0.0, %v6026
    %v6028 = vpop.f32.mrf.mxu0
    %v6029 = vpop.f32.mrf.mxu0
    %v6030 = vadd.f32 0.0, %v6029
    %v6031 = vpop.f32.mrf.mxu0
    %6032 = vmatprep.mubr.bf16.mxu0 0
    %6033 = vmatmul.mubr.bf16.gmra.mxu0 %v3214
    %v6034 = vpop.f32.mrf.mxu0
    %v6035 = vadd.f32 0.0, %v6034
    %v6036 = vpop.f32.mrf.mxu0
    %v6037 = vpop.f32.mrf.mxu0
    %v6038 = vadd.f32 0.0, %v6037
    %v6039 = vpop.f32.mrf.mxu0
    %6040 = vmatprep.mubr.bf16.mxu0 0
    %6041 = vmatmul.mubr.bf16.gmra.mxu0 %v3217
    %v6042 = vpop.f32.mrf.mxu0
    %v6043 = vadd.f32 0.0, %v6042
    %v6044 = vpop.f32.mrf.mxu0
    %v6045 = vpop.f32.mrf.mxu0
    %v6046 = vadd.f32 0.0, %v6045
    %v6047 = vpop.f32.mrf.mxu0
    %6048 = vmatprep.mubr.bf16.mxu0 0
    %6049 = vmatmul.mubr.bf16.gmra.mxu0 %v3220
    %v6050 = vpop.f32.mrf.mxu0
    %v6051 = vadd.f32 0.0, %v6050
    %v6052 = vpop.f32.mrf.mxu0
    %v6053 = vpop.f32.mrf.mxu0
    %v6054 = vadd.f32 0.0, %v6053
    %v6055 = vpop.f32.mrf.mxu0
    %6056 = vdwg.mxu0
    %6057 = vmatprep.subr.bf16.mxu0 0
    %6058 = vmatpush1.bf16.msra.mxu0 0
    %6059 = vmatprep.subr.bf16.mxu0 0
    %6060 = vmatpush1.bf16.msra.mxu0 0
    %6061 = vmatprep.subr.bf16.mxu0 0
    %6062 = vmatpush1.bf16.msra.mxu0 0
    %6063 = vmatprep.subr.bf16.mxu0 0
    %6064 = vmatpush1.bf16.msra.mxu0 0
    %6065 = vmatprep.subr.bf16.mxu0 0
    %6066 = vmatpush1.bf16.msra.mxu0 %v5987
    %6067 = vmatprep.subr.bf16.mxu0 0
    %6068 = vmatpush1.bf16.msra.mxu0 %v5986
    %6069 = vmatprep.subr.bf16.mxu0 0
    %6070 = vmatpush1.bf16.msra.mxu0 %v5985
    %6071 = vmatprep.subr.bf16.mxu0 0
    %6072 = vmatpush1.bf16.msra.mxu0 %v5984
    %6073 = vmatprep.subr.bf16.mxu0 0
    %6074 = vmatpush2.bf16.msra.mxu0 0
    %6075 = vmatprep.subr.bf16.mxu0 0
    %6076 = vmatpush2.bf16.msra.mxu0 0
    %6077 = vmatprep.subr.bf16.mxu0 0
    %6078 = vmatpush2.bf16.msra.mxu0 0
    %6079 = vmatprep.subr.bf16.mxu0 0
    %6080 = vmatpush2.bf16.msra.mxu0 0
    %6081 = vmatprep.subr.bf16.mxu0 0
    %6082 = vmatpush2.bf16.msra.mxu0 0
    %6083 = vmatprep.subr.bf16.mxu0 0
    %6084 = vmatpush2.bf16.msra.mxu0 0
    %6085 = vmatprep.subr.bf16.mxu0 0
    %6086 = vmatpush2.bf16.msra.mxu0 0
    %6087 = vmatprep.subr.bf16.mxu0 0
    %6088 = vmatpush2.bf16.msra.mxu0 0
    %6089 = vmatprep.mubr.bf16.mxu0 0
    %6090 = vmatmul.mubr.bf16.gmra.mxu0 %v3308
    %v6091 = vpop.f32.mrf.mxu0
    %v6092 = vadd.f32 %v6027, %v6091
    %v6093 = vpop.f32.mrf.mxu0
    %v6094 = vpop.f32.mrf.mxu0
    %v6095 = vadd.f32 %v6030, %v6094
    %v6096 = vpop.f32.mrf.mxu0
    %6097 = vmatprep.mubr.bf16.mxu0 0
    %6098 = vmatmul.mubr.bf16.gmra.mxu0 %v3311
    %v6099 = vpop.f32.mrf.mxu0
    %v6100 = vadd.f32 %v6035, %v6099
    %v6101 = vpop.f32.mrf.mxu0
    %v6102 = vpop.f32.mrf.mxu0
    %v6103 = vadd.f32 %v6038, %v6102
    %v6104 = vpop.f32.mrf.mxu0
    %6105 = vmatprep.mubr.bf16.mxu0 0
    %6106 = vmatmul.mubr.bf16.gmra.mxu0 %v3314
    %v6107 = vpop.f32.mrf.mxu0
    %v6108 = vadd.f32 %v6043, %v6107
    %v6109 = vpop.f32.mrf.mxu0
    %v6110 = vpop.f32.mrf.mxu0
    %v6111 = vadd.f32 %v6046, %v6110
    %v6112 = vpop.f32.mrf.mxu0
    %6113 = vmatprep.mubr.bf16.mxu0 0
    %6114 = vmatmul.mubr.bf16.gmra.mxu0 %v3317
    %v6115 = vpop.f32.mrf.mxu0
    %v6116 = vadd.f32 %v6051, %v6115
    %v6117 = vpop.f32.mrf.mxu0
    %v6118 = vpop.f32.mrf.mxu0
    %v6119 = vadd.f32 %v6054, %v6118
    %v6120 = vpop.f32.mrf.mxu0
    %6121 = vdwg.mxu0
    %v6122 = vadd.f32 %v6092, %v3387
    %v6123 = vadd.f32 %v6095, %v3392
    %v6124 = vadd.f32 %v6100, %v3397
    %v6125 = vadd.f32 %v6103, %v3402
    %v6126 = vadd.f32 %v6108, %v3407
    %v6127 = vadd.f32 %v6111, %v3412
    %v6128 = vadd.f32 %v6116, %v3417
    %v6129 = vadd.f32 %v6119, %v3422
    %v6130 = vmax.f32 %v6122, 0.0
    %v6131 = vmax.f32 %v6123, 0.0
    %v6132 = vmax.f32 %v6124, 0.0
    %v6133 = vmax.f32 %v6125, 0.0
    %v6134 = vmax.f32 %v6126, 0.0
    %v6135 = vmax.f32 %v6127, 0.0
    %v6136 = vmax.f32 %v6128, 0.0
    %v6137 = vmax.f32 %v6129, 0.0
    %6138 = vrot.lane.b32.xlu0 %v6130, 1
    %v6139 = vpop.permute.xlu0 %6138
    %6140 = vrot.lane.b32.xlu0 %v6131, 1
    %v6141 = vpop.permute.xlu0 %6140
    %6142 = vrot.lane.b32.xlu0 %v6132, 1
    %v6143 = vpop.permute.xlu0 %6142
    %6144 = vrot.lane.b32.xlu0 %v6133, 1
    %v6145 = vpop.permute.xlu0 %6144
    %6146 = vrot.lane.b32.xlu0 %v6134, 1
    %v6147 = vpop.permute.xlu0 %6146
    %6148 = vrot.lane.b32.xlu0 %v6135, 1
    %v6149 = vpop.permute.xlu0 %6148
    %6150 = vrot.lane.b32.xlu0 %v6136, 1
    %v6151 = vpop.permute.xlu0 %6150
    %6152 = vrot.lane.b32.xlu0 %v6137, 1
    %v6153 = vpop.permute.xlu0 %6152
    %v6154 = vmul.f32 %v6139, %v173
    %v6155 = vmul.f32 %v6141, %v173
    %v6156 = vmul.f32 %v6143, %v173
    %v6157 = vmul.f32 %v6145, %v173
    %v6158 = vmul.f32 %v6147, %v173
    %v6159 = vmul.f32 %v6149, %v173
    %v6160 = vmul.f32 %v6151, %v173
    %v6161 = vmul.f32 %v6153, %v173
    %v6162 = vpack.c.bf16 %v6131, %v6130
    %v6163 = vpack.c.bf16 %v6133, %v6132
    %v6164 = vpack.c.bf16 %v6135, %v6134
    %v6165 = vpack.c.bf16 %v6137, %v6136
    %v6166 = vpack.c.bf16 %v6155, %v6154
    %v6167 = vpack.c.bf16 %v6157, %v6156
    %v6168 = vpack.c.bf16 %v6159, %v6158
    %v6169 = vpack.c.bf16 %v6161, %v6160
    %6170 = vmatprep.subr.bf16.mxu0 0
    %6171 = vmatpush1.bf16.msra.mxu0 0
    %6172 = vmatprep.subr.bf16.mxu0 0
    %6173 = vmatpush1.bf16.msra.mxu0 0
    %6174 = vmatprep.subr.bf16.mxu0 0
    %6175 = vmatpush1.bf16.msra.mxu0 0
    %6176 = vmatprep.subr.bf16.mxu0 0
    %6177 = vmatpush1.bf16.msra.mxu0 0
    %6178 = vmatprep.subr.bf16.mxu0 0
    %6179 = vmatpush1.bf16.msra.mxu0 %v6169
    %6180 = vmatprep.subr.bf16.mxu0 0
    %6181 = vmatpush1.bf16.msra.mxu0 %v6168
    %6182 = vmatprep.subr.bf16.mxu0 0
    %6183 = vmatpush1.bf16.msra.mxu0 %v6167
    %6184 = vmatprep.subr.bf16.mxu0 0
    %6185 = vmatpush1.bf16.msra.mxu0 %v6166
    %6186 = vmatprep.subr.bf16.mxu0 0
    %6187 = vmatpush2.bf16.msra.mxu0 0
    %6188 = vmatprep.subr.bf16.mxu0 0
    %6189 = vmatpush2.bf16.msra.mxu0 0
    %6190 = vmatprep.subr.bf16.mxu0 0
    %6191 = vmatpush2.bf16.msra.mxu0 0
    %6192 = vmatprep.subr.bf16.mxu0 0
    %6193 = vmatpush2.bf16.msra.mxu0 0
    %6194 = vmatprep.subr.bf16.mxu0 0
    %6195 = vmatpush2.bf16.msra.mxu0 0
    %6196 = vmatprep.subr.bf16.mxu0 0
    %6197 = vmatpush2.bf16.msra.mxu0 0
    %6198 = vmatprep.subr.bf16.mxu0 0
    %6199 = vmatpush2.bf16.msra.mxu0 0
    %6200 = vmatprep.subr.bf16.mxu0 0
    %6201 = vmatpush2.bf16.msra.mxu0 0
    %6202 = vmatprep.mubr.bf16.mxu0 0
    %6203 = vmatmul.mubr.bf16.gmra.mxu0 %v3520
    %v6204 = vpop.f32.mrf.mxu0
    %v6205 = vadd.f32 0.0, %v6204
    %v6206 = vpop.f32.mrf.mxu0
    %v6207 = vpop.f32.mrf.mxu0
    %v6208 = vadd.f32 0.0, %v6207
    %v6209 = vpop.f32.mrf.mxu0
    %6210 = vmatprep.mubr.bf16.mxu0 0
    %6211 = vmatmul.mubr.bf16.gmra.mxu0 %v3523
    %v6212 = vpop.f32.mrf.mxu0
    %v6213 = vadd.f32 0.0, %v6212
    %v6214 = vpop.f32.mrf.mxu0
    %v6215 = vpop.f32.mrf.mxu0
    %v6216 = vadd.f32 0.0, %v6215
    %v6217 = vpop.f32.mrf.mxu0
    %6218 = vmatprep.mubr.bf16.mxu0 0
    %6219 = vmatmul.mubr.bf16.gmra.mxu0 %v3526
    %v6220 = vpop.f32.mrf.mxu0
    %v6221 = vadd.f32 0.0, %v6220
    %v6222 = vpop.f32.mrf.mxu0
    %v6223 = vpop.f32.mrf.mxu0
    %v6224 = vadd.f32 0.0, %v6223
    %v6225 = vpop.f32.mrf.mxu0
    %6226 = vmatprep.mubr.bf16.mxu0 0
    %6227 = vmatmul.mubr.bf16.gmra.mxu0 %v3529
    %v6228 = vpop.f32.mrf.mxu0
    %v6229 = vadd.f32 0.0, %v6228
    %v6230 = vpop.f32.mrf.mxu0
    %v6231 = vpop.f32.mrf.mxu0
    %v6232 = vadd.f32 0.0, %v6231
    %v6233 = vpop.f32.mrf.mxu0
    %6234 = vdwg.mxu0
    %6235 = vmatprep.subr.bf16.mxu0 0
    %6236 = vmatpush1.bf16.msra.mxu0 0
    %6237 = vmatprep.subr.bf16.mxu0 0
    %6238 = vmatpush1.bf16.msra.mxu0 0
    %6239 = vmatprep.subr.bf16.mxu0 0
    %6240 = vmatpush1.bf16.msra.mxu0 0
    %6241 = vmatprep.subr.bf16.mxu0 0
    %6242 = vmatpush1.bf16.msra.mxu0 0
    %6243 = vmatprep.subr.bf16.mxu0 0
    %6244 = vmatpush1.bf16.msra.mxu0 %v6165
    %6245 = vmatprep.subr.bf16.mxu0 0
    %6246 = vmatpush1.bf16.msra.mxu0 %v6164
    %6247 = vmatprep.subr.bf16.mxu0 0
    %6248 = vmatpush1.bf16.msra.mxu0 %v6163
    %6249 = vmatprep.subr.bf16.mxu0 0
    %6250 = vmatpush1.bf16.msra.mxu0 %v6162
    %6251 = vmatprep.subr.bf16.mxu0 0
    %6252 = vmatpush2.bf16.msra.mxu0 0
    %6253 = vmatprep.subr.bf16.mxu0 0
    %6254 = vmatpush2.bf16.msra.mxu0 0
    %6255 = vmatprep.subr.bf16.mxu0 0
    %6256 = vmatpush2.bf16.msra.mxu0 0
    %6257 = vmatprep.subr.bf16.mxu0 0
    %6258 = vmatpush2.bf16.msra.mxu0 0
    %6259 = vmatprep.subr.bf16.mxu0 0
    %6260 = vmatpush2.bf16.msra.mxu0 0
    %6261 = vmatprep.subr.bf16.mxu0 0
    %6262 = vmatpush2.bf16.msra.mxu0 0
    %6263 = vmatprep.subr.bf16.mxu0 0
    %6264 = vmatpush2.bf16.msra.mxu0 0
    %6265 = vmatprep.subr.bf16.mxu0 0
    %6266 = vmatpush2.bf16.msra.mxu0 0
    %6267 = vmatprep.mubr.bf16.mxu0 0
    %6268 = vmatmul.mubr.bf16.gmra.mxu0 %v3617
    %v6269 = vpop.f32.mrf.mxu0
    %v6270 = vadd.f32 %v6205, %v6269
    %v6271 = vpop.f32.mrf.mxu0
    %v6272 = vpop.f32.mrf.mxu0
    %v6273 = vadd.f32 %v6208, %v6272
    %v6274 = vpop.f32.mrf.mxu0
    %6275 = vmatprep.mubr.bf16.mxu0 0
    %6276 = vmatmul.mubr.bf16.gmra.mxu0 %v3620
    %v6277 = vpop.f32.mrf.mxu0
    %v6278 = vadd.f32 %v6213, %v6277
    %v6279 = vpop.f32.mrf.mxu0
    %v6280 = vpop.f32.mrf.mxu0
    %v6281 = vadd.f32 %v6216, %v6280
    %v6282 = vpop.f32.mrf.mxu0
    %6283 = vmatprep.mubr.bf16.mxu0 0
    %6284 = vmatmul.mubr.bf16.gmra.mxu0 %v3623
    %v6285 = vpop.f32.mrf.mxu0
    %v6286 = vadd.f32 %v6221, %v6285
    %v6287 = vpop.f32.mrf.mxu0
    %v6288 = vpop.f32.mrf.mxu0
    %v6289 = vadd.f32 %v6224, %v6288
    %v6290 = vpop.f32.mrf.mxu0
    %6291 = vmatprep.mubr.bf16.mxu0 0
    %6292 = vmatmul.mubr.bf16.gmra.mxu0 %v3626
    %v6293 = vpop.f32.mrf.mxu0
    %v6294 = vadd.f32 %v6229, %v6293
    %v6295 = vpop.f32.mrf.mxu0
    %v6296 = vpop.f32.mrf.mxu0
    %v6297 = vadd.f32 %v6232, %v6296
    %v6298 = vpop.f32.mrf.mxu0
    %6299 = vdwg.mxu0
    %v6300 = vadd.f32 %v6270, %v3696
    %v6301 = vadd.f32 %v6273, %v3701
    %v6302 = vadd.f32 %v6278, %v3706
    %v6303 = vadd.f32 %v6281, %v3711
    %v6304 = vadd.f32 %v6286, %v3716
    %v6305 = vadd.f32 %v6289, %v3721
    %v6306 = vadd.f32 %v6294, %v3726
    %v6307 = vadd.f32 %v6297, %v3731
    %v6308 = vmax.f32 %v6300, 0.0
    %v6309 = vmax.f32 %v6301, 0.0
    %v6310 = vmax.f32 %v6302, 0.0
    %v6311 = vmax.f32 %v6303, 0.0
    %v6312 = vmax.f32 %v6304, 0.0
    %v6313 = vmax.f32 %v6305, 0.0
    %v6314 = vmax.f32 %v6306, 0.0
    %v6315 = vmax.f32 %v6307, 0.0
    %6316 = vrot.lane.b32.xlu0 %v6308, 1
    %v6317 = vpop.permute.xlu0 %6316
    %6318 = vrot.lane.b32.xlu0 %v6309, 1
    %v6319 = vpop.permute.xlu0 %6318
    %6320 = vrot.lane.b32.xlu0 %v6310, 1
    %v6321 = vpop.permute.xlu0 %6320
    %6322 = vrot.lane.b32.xlu0 %v6311, 1
    %v6323 = vpop.permute.xlu0 %6322
    %6324 = vrot.lane.b32.xlu0 %v6312, 1
    %v6325 = vpop.permute.xlu0 %6324
    %6326 = vrot.lane.b32.xlu0 %v6313, 1
    %v6327 = vpop.permute.xlu0 %6326
    %6328 = vrot.lane.b32.xlu0 %v6314, 1
    %v6329 = vpop.permute.xlu0 %6328
    %6330 = vrot.lane.b32.xlu0 %v6315, 1
    %v6331 = vpop.permute.xlu0 %6330
    %v6332 = vmul.f32 %v6317, %v173
    %v6333 = vmul.f32 %v6319, %v173
    %v6334 = vmul.f32 %v6321, %v173
    %v6335 = vmul.f32 %v6323, %v173
    %v6336 = vmul.f32 %v6325, %v173
    %v6337 = vmul.f32 %v6327, %v173
    %v6338 = vmul.f32 %v6329, %v173
    %v6339 = vmul.f32 %v6331, %v173
    %v6340 = vpack.c.bf16 %v6309, %v6308
    %v6341 = vpack.c.bf16 %v6311, %v6310
    %v6342 = vpack.c.bf16 %v6313, %v6312
    %v6343 = vpack.c.bf16 %v6315, %v6314
    %v6344 = vpack.c.bf16 %v6333, %v6332
    %v6345 = vpack.c.bf16 %v6335, %v6334
    %v6346 = vpack.c.bf16 %v6337, %v6336
    %v6347 = vpack.c.bf16 %v6339, %v6338
    %6348 = vmatprep.subr.bf16.mxu0 0
    %6349 = vmatpush1.bf16.msra.mxu0 0
    %6350 = vmatprep.subr.bf16.mxu0 0
    %6351 = vmatpush1.bf16.msra.mxu0 0
    %6352 = vmatprep.subr.bf16.mxu0 0
    %6353 = vmatpush1.bf16.msra.mxu0 0
    %6354 = vmatprep.subr.bf16.mxu0 0
    %6355 = vmatpush1.bf16.msra.mxu0 0
    %6356 = vmatprep.subr.bf16.mxu0 0
    %6357 = vmatpush1.bf16.msra.mxu0 %v6347
    %6358 = vmatprep.subr.bf16.mxu0 0
    %6359 = vmatpush1.bf16.msra.mxu0 %v6346
    %6360 = vmatprep.subr.bf16.mxu0 0
    %6361 = vmatpush1.bf16.msra.mxu0 %v6345
    %6362 = vmatprep.subr.bf16.mxu0 0
    %6363 = vmatpush1.bf16.msra.mxu0 %v6344
    %6364 = vmatprep.subr.bf16.mxu0 0
    %6365 = vmatpush2.bf16.msra.mxu0 0
    %6366 = vmatprep.subr.bf16.mxu0 0
    %6367 = vmatpush2.bf16.msra.mxu0 0
    %6368 = vmatprep.subr.bf16.mxu0 0
    %6369 = vmatpush2.bf16.msra.mxu0 0
    %6370 = vmatprep.subr.bf16.mxu0 0
    %6371 = vmatpush2.bf16.msra.mxu0 0
    %6372 = vmatprep.subr.bf16.mxu0 0
    %6373 = vmatpush2.bf16.msra.mxu0 0
    %6374 = vmatprep.subr.bf16.mxu0 0
    %6375 = vmatpush2.bf16.msra.mxu0 0
    %6376 = vmatprep.subr.bf16.mxu0 0
    %6377 = vmatpush2.bf16.msra.mxu0 0
    %6378 = vmatprep.subr.bf16.mxu0 0
    %6379 = vmatpush2.bf16.msra.mxu0 0
    %6380 = vmatprep.mubr.bf16.mxu0 0
    %6381 = vmatmul.mubr.bf16.gmra.mxu0 %v3829
    %v6382 = vpop.f32.mrf.mxu0
    %v6383 = vadd.f32 0.0, %v6382
    %v6384 = vpop.f32.mrf.mxu0
    %v6385 = vpop.f32.mrf.mxu0
    %v6386 = vadd.f32 0.0, %v6385
    %v6387 = vpop.f32.mrf.mxu0
    %6388 = vmatprep.mubr.bf16.mxu0 0
    %6389 = vmatmul.mubr.bf16.gmra.mxu0 %v3832
    %v6390 = vpop.f32.mrf.mxu0
    %v6391 = vadd.f32 0.0, %v6390
    %v6392 = vpop.f32.mrf.mxu0
    %v6393 = vpop.f32.mrf.mxu0
    %v6394 = vadd.f32 0.0, %v6393
    %v6395 = vpop.f32.mrf.mxu0
    %6396 = vmatprep.mubr.bf16.mxu0 0
    %6397 = vmatmul.mubr.bf16.gmra.mxu0 %v3835
    %v6398 = vpop.f32.mrf.mxu0
    %v6399 = vadd.f32 0.0, %v6398
    %v6400 = vpop.f32.mrf.mxu0
    %v6401 = vpop.f32.mrf.mxu0
    %v6402 = vadd.f32 0.0, %v6401
    %v6403 = vpop.f32.mrf.mxu0
    %6404 = vmatprep.mubr.bf16.mxu0 0
    %6405 = vmatmul.mubr.bf16.gmra.mxu0 %v3838
    %v6406 = vpop.f32.mrf.mxu0
    %v6407 = vadd.f32 0.0, %v6406
    %v6408 = vpop.f32.mrf.mxu0
    %v6409 = vpop.f32.mrf.mxu0
    %v6410 = vadd.f32 0.0, %v6409
    %v6411 = vpop.f32.mrf.mxu0
    %6412 = vdwg.mxu0
    %6413 = vmatprep.subr.bf16.mxu0 0
    %6414 = vmatpush1.bf16.msra.mxu0 0
    %6415 = vmatprep.subr.bf16.mxu0 0
    %6416 = vmatpush1.bf16.msra.mxu0 0
    %6417 = vmatprep.subr.bf16.mxu0 0
    %6418 = vmatpush1.bf16.msra.mxu0 0
    %6419 = vmatprep.subr.bf16.mxu0 0
    %6420 = vmatpush1.bf16.msra.mxu0 0
    %6421 = vmatprep.subr.bf16.mxu0 0
    %6422 = vmatpush1.bf16.msra.mxu0 %v6343
    %6423 = vmatprep.subr.bf16.mxu0 0
    %6424 = vmatpush1.bf16.msra.mxu0 %v6342
    %6425 = vmatprep.subr.bf16.mxu0 0
    %6426 = vmatpush1.bf16.msra.mxu0 %v6341
    %6427 = vmatprep.subr.bf16.mxu0 0
    %6428 = vmatpush1.bf16.msra.mxu0 %v6340
    %6429 = vmatprep.subr.bf16.mxu0 0
    %6430 = vmatpush2.bf16.msra.mxu0 0
    %6431 = vmatprep.subr.bf16.mxu0 0
    %6432 = vmatpush2.bf16.msra.mxu0 0
    %6433 = vmatprep.subr.bf16.mxu0 0
    %6434 = vmatpush2.bf16.msra.mxu0 0
    %6435 = vmatprep.subr.bf16.mxu0 0
    %6436 = vmatpush2.bf16.msra.mxu0 0
    %6437 = vmatprep.subr.bf16.mxu0 0
    %6438 = vmatpush2.bf16.msra.mxu0 0
    %6439 = vmatprep.subr.bf16.mxu0 0
    %6440 = vmatpush2.bf16.msra.mxu0 0
    %6441 = vmatprep.subr.bf16.mxu0 0
    %6442 = vmatpush2.bf16.msra.mxu0 0
    %6443 = vmatprep.subr.bf16.mxu0 0
    %6444 = vmatpush2.bf16.msra.mxu0 0
    %6445 = vmatprep.mubr.bf16.mxu0 0
    %6446 = vmatmul.mubr.bf16.gmra.mxu0 %v3926
    %v6447 = vpop.f32.mrf.mxu0
    %v6448 = vadd.f32 %v6383, %v6447
    %v6449 = vpop.f32.mrf.mxu0
    %v6450 = vpop.f32.mrf.mxu0
    %v6451 = vadd.f32 %v6386, %v6450
    %v6452 = vpop.f32.mrf.mxu0
    %6453 = vmatprep.mubr.bf16.mxu0 0
    %6454 = vmatmul.mubr.bf16.gmra.mxu0 %v3929
    %v6455 = vpop.f32.mrf.mxu0
    %v6456 = vadd.f32 %v6391, %v6455
    %v6457 = vpop.f32.mrf.mxu0
    %v6458 = vpop.f32.mrf.mxu0
    %v6459 = vadd.f32 %v6394, %v6458
    %v6460 = vpop.f32.mrf.mxu0
    %6461 = vmatprep.mubr.bf16.mxu0 0
    %6462 = vmatmul.mubr.bf16.gmra.mxu0 %v3932
    %v6463 = vpop.f32.mrf.mxu0
    %v6464 = vadd.f32 %v6399, %v6463
    %v6465 = vpop.f32.mrf.mxu0
    %v6466 = vpop.f32.mrf.mxu0
    %v6467 = vadd.f32 %v6402, %v6466
    %v6468 = vpop.f32.mrf.mxu0
    %6469 = vmatprep.mubr.bf16.mxu0 0
    %6470 = vmatmul.mubr.bf16.gmra.mxu0 %v3935
    %v6471 = vpop.f32.mrf.mxu0
    %v6472 = vadd.f32 %v6407, %v6471
    %v6473 = vpop.f32.mrf.mxu0
    %v6474 = vpop.f32.mrf.mxu0
    %v6475 = vadd.f32 %v6410, %v6474
    %v6476 = vpop.f32.mrf.mxu0
    %6477 = vdwg.mxu0
    %v6478 = vadd.f32 %v6448, %v4005
    %v6479 = vadd.f32 %v6451, %v4010
    %v6480 = vadd.f32 %v6456, %v4015
    %v6481 = vadd.f32 %v6459, %v4020
    %v6482 = vadd.f32 %v6464, %v4025
    %v6483 = vadd.f32 %v6467, %v4030
    %v6484 = vadd.f32 %v6472, %v4035
    %v6485 = vadd.f32 %v6475, %v4040
    %v6486 = vmax.f32 %v6478, 0.0
    %v6487 = vmax.f32 %v6479, 0.0
    %v6488 = vmax.f32 %v6480, 0.0
    %v6489 = vmax.f32 %v6481, 0.0
    %v6490 = vmax.f32 %v6482, 0.0
    %v6491 = vmax.f32 %v6483, 0.0
    %v6492 = vmax.f32 %v6484, 0.0
    %v6493 = vmax.f32 %v6485, 0.0
    %v6494 = vadd.f32 %v6486, %v5952
    %v6495 = vadd.f32 %v6487, %v5953
    %v6496 = vadd.f32 %v6488, %v5954
    %v6497 = vadd.f32 %v6489, %v5955
    %v6498 = vadd.f32 %v6490, %v5956
    %v6499 = vadd.f32 %v6491, %v5957
    %v6500 = vadd.f32 %v6492, %v5958
    %v6501 = vadd.f32 %v6493, %v5959
    %v6502 = vmax.f32 %v6494, 0.0
    %v6503 = vmax.f32 %v6495, 0.0
    %v6504 = vmax.f32 %v6496, 0.0
    %v6505 = vmax.f32 %v6497, 0.0
    %v6506 = vmax.f32 %v6498, 0.0
    %v6507 = vmax.f32 %v6499, 0.0
    %v6508 = vmax.f32 %v6500, 0.0
    %v6509 = vmax.f32 %v6501, 0.0
    %6510 = vrot.lane.b32.xlu0 %v6502, 2
    %v6511 = vpop.permute.xlu0 %6510
    %6512 = vrot.lane.b32.xlu0 %v6503, 2
    %v6513 = vpop.permute.xlu0 %6512
    %6514 = vrot.lane.b32.xlu0 %v6504, 2
    %v6515 = vpop.permute.xlu0 %6514
    %6516 = vrot.lane.b32.xlu0 %v6505, 2
    %v6517 = vpop.permute.xlu0 %6516
    %6518 = vrot.lane.b32.xlu0 %v6506, 2
    %v6519 = vpop.permute.xlu0 %6518
    %6520 = vrot.lane.b32.xlu0 %v6507, 2
    %v6521 = vpop.permute.xlu0 %6520
    %6522 = vrot.lane.b32.xlu0 %v6508, 2
    %v6523 = vpop.permute.xlu0 %6522
    %6524 = vrot.lane.b32.xlu0 %v6509, 2
    %v6525 = vpop.permute.xlu0 %6524
    %v6526 = vmul.f32 %v6511, %v1278
    %v6527 = vmul.f32 %v6513, %v1278
    %v6528 = vmul.f32 %v6515, %v1278
    %v6529 = vmul.f32 %v6517, %v1278
    %v6530 = vmul.f32 %v6519, %v1278
    %v6531 = vmul.f32 %v6521, %v1278
    %v6532 = vmul.f32 %v6523, %v1278
    %v6533 = vmul.f32 %v6525, %v1278
    %v6534 = vpack.c.bf16 %v6503, %v6502
    %v6535 = vpack.c.bf16 %v6505, %v6504
    %v6536 = vpack.c.bf16 %v6507, %v6506
    %v6537 = vpack.c.bf16 %v6509, %v6508
    %v6538 = vpack.c.bf16 %v6527, %v6526
    %v6539 = vpack.c.bf16 %v6529, %v6528
    %v6540 = vpack.c.bf16 %v6531, %v6530
    %v6541 = vpack.c.bf16 %v6533, %v6532
    %6542 = vmatprep.subr.bf16.mxu0 0
    %6543 = vmatpush1.bf16.msra.mxu0 0
    %6544 = vmatprep.subr.bf16.mxu0 0
    %6545 = vmatpush1.bf16.msra.mxu0 0
    %6546 = vmatprep.subr.bf16.mxu0 0
    %6547 = vmatpush1.bf16.msra.mxu0 0
    %6548 = vmatprep.subr.bf16.mxu0 0
    %6549 = vmatpush1.bf16.msra.mxu0 0
    %6550 = vmatprep.subr.bf16.mxu0 0
    %6551 = vmatpush1.bf16.msra.mxu0 %v6541
    %6552 = vmatprep.subr.bf16.mxu0 0
    %6553 = vmatpush1.bf16.msra.mxu0 %v6540
    %6554 = vmatprep.subr.bf16.mxu0 0
    %6555 = vmatpush1.bf16.msra.mxu0 %v6539
    %6556 = vmatprep.subr.bf16.mxu0 0
    %6557 = vmatpush1.bf16.msra.mxu0 %v6538
    %6558 = vmatprep.subr.bf16.mxu0 0
    %6559 = vmatpush2.bf16.msra.mxu0 0
    %6560 = vmatprep.subr.bf16.mxu0 0
    %6561 = vmatpush2.bf16.msra.mxu0 0
    %6562 = vmatprep.subr.bf16.mxu0 0
    %6563 = vmatpush2.bf16.msra.mxu0 0
    %6564 = vmatprep.subr.bf16.mxu0 0
    %6565 = vmatpush2.bf16.msra.mxu0 0
    %6566 = vmatprep.subr.bf16.mxu0 0
    %6567 = vmatpush2.bf16.msra.mxu0 0
    %6568 = vmatprep.subr.bf16.mxu0 0
    %6569 = vmatpush2.bf16.msra.mxu0 0
    %6570 = vmatprep.subr.bf16.mxu0 0
    %6571 = vmatpush2.bf16.msra.mxu0 0
    %6572 = vmatprep.subr.bf16.mxu0 0
    %6573 = vmatpush2.bf16.msra.mxu0 0
    %6574 = vmatprep.mubr.bf16.mxu0 0
    %6575 = vmatmul.mubr.bf16.gmra.mxu0 %v4154
    %v6576 = vpop.f32.mrf.mxu0
    %v6577 = vadd.f32 0.0, %v6576
    %v6578 = vpop.f32.mrf.mxu0
    %v6579 = vpop.f32.mrf.mxu0
    %v6580 = vadd.f32 0.0, %v6579
    %v6581 = vpop.f32.mrf.mxu0
    %6582 = vmatprep.mubr.bf16.mxu0 0
    %6583 = vmatmul.mubr.bf16.gmra.mxu0 %v4157
    %v6584 = vpop.f32.mrf.mxu0
    %v6585 = vadd.f32 0.0, %v6584
    %v6586 = vpop.f32.mrf.mxu0
    %v6587 = vpop.f32.mrf.mxu0
    %v6588 = vadd.f32 0.0, %v6587
    %v6589 = vpop.f32.mrf.mxu0
    %6590 = vmatprep.mubr.bf16.mxu0 0
    %6591 = vmatmul.mubr.bf16.gmra.mxu0 %v4160
    %v6592 = vpop.f32.mrf.mxu0
    %v6593 = vadd.f32 0.0, %v6592
    %v6594 = vpop.f32.mrf.mxu0
    %v6595 = vpop.f32.mrf.mxu0
    %v6596 = vadd.f32 0.0, %v6595
    %v6597 = vpop.f32.mrf.mxu0
    %6598 = vmatprep.mubr.bf16.mxu0 0
    %6599 = vmatmul.mubr.bf16.gmra.mxu0 %v4163
    %v6600 = vpop.f32.mrf.mxu0
    %v6601 = vadd.f32 0.0, %v6600
    %v6602 = vpop.f32.mrf.mxu0
    %v6603 = vpop.f32.mrf.mxu0
    %v6604 = vadd.f32 0.0, %v6603
    %v6605 = vpop.f32.mrf.mxu0
    %6606 = vdwg.mxu0
    %6607 = vmatprep.subr.bf16.mxu0 0
    %6608 = vmatpush1.bf16.msra.mxu0 0
    %6609 = vmatprep.subr.bf16.mxu0 0
    %6610 = vmatpush1.bf16.msra.mxu0 0
    %6611 = vmatprep.subr.bf16.mxu0 0
    %6612 = vmatpush1.bf16.msra.mxu0 0
    %6613 = vmatprep.subr.bf16.mxu0 0
    %6614 = vmatpush1.bf16.msra.mxu0 0
    %6615 = vmatprep.subr.bf16.mxu0 0
    %6616 = vmatpush1.bf16.msra.mxu0 %v6537
    %6617 = vmatprep.subr.bf16.mxu0 0
    %6618 = vmatpush1.bf16.msra.mxu0 %v6536
    %6619 = vmatprep.subr.bf16.mxu0 0
    %6620 = vmatpush1.bf16.msra.mxu0 %v6535
    %6621 = vmatprep.subr.bf16.mxu0 0
    %6622 = vmatpush1.bf16.msra.mxu0 %v6534
    %6623 = vmatprep.subr.bf16.mxu0 0
    %6624 = vmatpush2.bf16.msra.mxu0 0
    %6625 = vmatprep.subr.bf16.mxu0 0
    %6626 = vmatpush2.bf16.msra.mxu0 0
    %6627 = vmatprep.subr.bf16.mxu0 0
    %6628 = vmatpush2.bf16.msra.mxu0 0
    %6629 = vmatprep.subr.bf16.mxu0 0
    %6630 = vmatpush2.bf16.msra.mxu0 0
    %6631 = vmatprep.subr.bf16.mxu0 0
    %6632 = vmatpush2.bf16.msra.mxu0 0
    %6633 = vmatprep.subr.bf16.mxu0 0
    %6634 = vmatpush2.bf16.msra.mxu0 0
    %6635 = vmatprep.subr.bf16.mxu0 0
    %6636 = vmatpush2.bf16.msra.mxu0 0
    %6637 = vmatprep.subr.bf16.mxu0 0
    %6638 = vmatpush2.bf16.msra.mxu0 0
    %6639 = vmatprep.mubr.bf16.mxu0 0
    %6640 = vmatmul.mubr.bf16.gmra.mxu0 %v4251
    %v6641 = vpop.f32.mrf.mxu0
    %v6642 = vadd.f32 %v6577, %v6641
    %v6643 = vpop.f32.mrf.mxu0
    %v6644 = vpop.f32.mrf.mxu0
    %v6645 = vadd.f32 %v6580, %v6644
    %v6646 = vpop.f32.mrf.mxu0
    %6647 = vmatprep.mubr.bf16.mxu0 0
    %6648 = vmatmul.mubr.bf16.gmra.mxu0 %v4254
    %v6649 = vpop.f32.mrf.mxu0
    %v6650 = vadd.f32 %v6585, %v6649
    %v6651 = vpop.f32.mrf.mxu0
    %v6652 = vpop.f32.mrf.mxu0
    %v6653 = vadd.f32 %v6588, %v6652
    %v6654 = vpop.f32.mrf.mxu0
    %6655 = vmatprep.mubr.bf16.mxu0 0
    %6656 = vmatmul.mubr.bf16.gmra.mxu0 %v4257
    %v6657 = vpop.f32.mrf.mxu0
    %v6658 = vadd.f32 %v6593, %v6657
    %v6659 = vpop.f32.mrf.mxu0
    %v6660 = vpop.f32.mrf.mxu0
    %v6661 = vadd.f32 %v6596, %v6660
    %v6662 = vpop.f32.mrf.mxu0
    %6663 = vmatprep.mubr.bf16.mxu0 0
    %6664 = vmatmul.mubr.bf16.gmra.mxu0 %v4260
    %v6665 = vpop.f32.mrf.mxu0
    %v6666 = vadd.f32 %v6601, %v6665
    %v6667 = vpop.f32.mrf.mxu0
    %v6668 = vpop.f32.mrf.mxu0
    %v6669 = vadd.f32 %v6604, %v6668
    %v6670 = vpop.f32.mrf.mxu0
    %6671 = vdwg.mxu0
    %v6672 = vadd.f32 %v6642, %v4330
    %v6673 = vadd.f32 %v6645, %v4335
    %v6674 = vadd.f32 %v6650, %v4340
    %v6675 = vadd.f32 %v6653, %v4345
    %v6676 = vadd.f32 %v6658, %v4350
    %v6677 = vadd.f32 %v6661, %v4355
    %v6678 = vadd.f32 %v6666, %v4360
    %v6679 = vadd.f32 %v6669, %v4365
    %v6680 = vmax.f32 %v6672, 0.0
    %v6681 = vmax.f32 %v6673, 0.0
    %v6682 = vmax.f32 %v6674, 0.0
    %v6683 = vmax.f32 %v6675, 0.0
    %v6684 = vmax.f32 %v6676, 0.0
    %v6685 = vmax.f32 %v6677, 0.0
    %v6686 = vmax.f32 %v6678, 0.0
    %v6687 = vmax.f32 %v6679, 0.0
    %6688 = vrot.lane.b32.xlu0 %v6680, 2
    %v6689 = vpop.permute.xlu0 %6688
    %6690 = vrot.lane.b32.xlu0 %v6681, 2
    %v6691 = vpop.permute.xlu0 %6690
    %6692 = vrot.lane.b32.xlu0 %v6682, 2
    %v6693 = vpop.permute.xlu0 %6692
    %6694 = vrot.lane.b32.xlu0 %v6683, 2
    %v6695 = vpop.permute.xlu0 %6694
    %6696 = vrot.lane.b32.xlu0 %v6684, 2
    %v6697 = vpop.permute.xlu0 %6696
    %6698 = vrot.lane.b32.xlu0 %v6685, 2
    %v6699 = vpop.permute.xlu0 %6698
    %6700 = vrot.lane.b32.xlu0 %v6686, 2
    %v6701 = vpop.permute.xlu0 %6700
    %6702 = vrot.lane.b32.xlu0 %v6687, 2
    %v6703 = vpop.permute.xlu0 %6702
    %v6704 = vmul.f32 %v6689, %v1278
    %v6705 = vmul.f32 %v6691, %v1278
    %v6706 = vmul.f32 %v6693, %v1278
    %v6707 = vmul.f32 %v6695, %v1278
    %v6708 = vmul.f32 %v6697, %v1278
    %v6709 = vmul.f32 %v6699, %v1278
    %v6710 = vmul.f32 %v6701, %v1278
    %v6711 = vmul.f32 %v6703, %v1278
    %v6712 = vpack.c.bf16 %v6681, %v6680
    %v6713 = vpack.c.bf16 %v6683, %v6682
    %v6714 = vpack.c.bf16 %v6685, %v6684
    %v6715 = vpack.c.bf16 %v6687, %v6686
    %v6716 = vpack.c.bf16 %v6705, %v6704
    %v6717 = vpack.c.bf16 %v6707, %v6706
    %v6718 = vpack.c.bf16 %v6709, %v6708
    %v6719 = vpack.c.bf16 %v6711, %v6710
    %6720 = vmatprep.subr.bf16.mxu0 0
    %6721 = vmatpush1.bf16.msra.mxu0 0
    %6722 = vmatprep.subr.bf16.mxu0 0
    %6723 = vmatpush1.bf16.msra.mxu0 0
    %6724 = vmatprep.subr.bf16.mxu0 0
    %6725 = vmatpush1.bf16.msra.mxu0 0
    %6726 = vmatprep.subr.bf16.mxu0 0
    %6727 = vmatpush1.bf16.msra.mxu0 0
    %6728 = vmatprep.subr.bf16.mxu0 0
    %6729 = vmatpush1.bf16.msra.mxu0 %v6719
    %6730 = vmatprep.subr.bf16.mxu0 0
    %6731 = vmatpush1.bf16.msra.mxu0 %v6718
    %6732 = vmatprep.subr.bf16.mxu0 0
    %6733 = vmatpush1.bf16.msra.mxu0 %v6717
    %6734 = vmatprep.subr.bf16.mxu0 0
    %6735 = vmatpush1.bf16.msra.mxu0 %v6716
    %6736 = vmatprep.subr.bf16.mxu0 0
    %6737 = vmatpush2.bf16.msra.mxu0 0
    %6738 = vmatprep.subr.bf16.mxu0 0
    %6739 = vmatpush2.bf16.msra.mxu0 0
    %6740 = vmatprep.subr.bf16.mxu0 0
    %6741 = vmatpush2.bf16.msra.mxu0 0
    %6742 = vmatprep.subr.bf16.mxu0 0
    %6743 = vmatpush2.bf16.msra.mxu0 0
    %6744 = vmatprep.subr.bf16.mxu0 0
    %6745 = vmatpush2.bf16.msra.mxu0 0
    %6746 = vmatprep.subr.bf16.mxu0 0
    %6747 = vmatpush2.bf16.msra.mxu0 0
    %6748 = vmatprep.subr.bf16.mxu0 0
    %6749 = vmatpush2.bf16.msra.mxu0 0
    %6750 = vmatprep.subr.bf16.mxu0 0
    %6751 = vmatpush2.bf16.msra.mxu0 0
    %6752 = vmatprep.mubr.bf16.mxu0 0
    %6753 = vmatmul.mubr.bf16.gmra.mxu0 %v4463
    %v6754 = vpop.f32.mrf.mxu0
    %v6755 = vadd.f32 0.0, %v6754
    %v6756 = vpop.f32.mrf.mxu0
    %v6757 = vpop.f32.mrf.mxu0
    %v6758 = vadd.f32 0.0, %v6757
    %v6759 = vpop.f32.mrf.mxu0
    %6760 = vmatprep.mubr.bf16.mxu0 0
    %6761 = vmatmul.mubr.bf16.gmra.mxu0 %v4466
    %v6762 = vpop.f32.mrf.mxu0
    %v6763 = vadd.f32 0.0, %v6762
    %v6764 = vpop.f32.mrf.mxu0
    %v6765 = vpop.f32.mrf.mxu0
    %v6766 = vadd.f32 0.0, %v6765
    %v6767 = vpop.f32.mrf.mxu0
    %6768 = vmatprep.mubr.bf16.mxu0 0
    %6769 = vmatmul.mubr.bf16.gmra.mxu0 %v4469
    %v6770 = vpop.f32.mrf.mxu0
    %v6771 = vadd.f32 0.0, %v6770
    %v6772 = vpop.f32.mrf.mxu0
    %v6773 = vpop.f32.mrf.mxu0
    %v6774 = vadd.f32 0.0, %v6773
    %v6775 = vpop.f32.mrf.mxu0
    %6776 = vmatprep.mubr.bf16.mxu0 0
    %6777 = vmatmul.mubr.bf16.gmra.mxu0 %v4472
    %v6778 = vpop.f32.mrf.mxu0
    %v6779 = vadd.f32 0.0, %v6778
    %v6780 = vpop.f32.mrf.mxu0
    %v6781 = vpop.f32.mrf.mxu0
    %v6782 = vadd.f32 0.0, %v6781
    %v6783 = vpop.f32.mrf.mxu0
    %6784 = vdwg.mxu0
    %6785 = vmatprep.subr.bf16.mxu0 0
    %6786 = vmatpush1.bf16.msra.mxu0 0
    %6787 = vmatprep.subr.bf16.mxu0 0
    %6788 = vmatpush1.bf16.msra.mxu0 0
    %6789 = vmatprep.subr.bf16.mxu0 0
    %6790 = vmatpush1.bf16.msra.mxu0 0
    %6791 = vmatprep.subr.bf16.mxu0 0
    %6792 = vmatpush1.bf16.msra.mxu0 0
    %6793 = vmatprep.subr.bf16.mxu0 0
    %6794 = vmatpush1.bf16.msra.mxu0 %v6715
    %6795 = vmatprep.subr.bf16.mxu0 0
    %6796 = vmatpush1.bf16.msra.mxu0 %v6714
    %6797 = vmatprep.subr.bf16.mxu0 0
    %6798 = vmatpush1.bf16.msra.mxu0 %v6713
    %6799 = vmatprep.subr.bf16.mxu0 0
    %6800 = vmatpush1.bf16.msra.mxu0 %v6712
    %6801 = vmatprep.subr.bf16.mxu0 0
    %6802 = vmatpush2.bf16.msra.mxu0 0
    %6803 = vmatprep.subr.bf16.mxu0 0
    %6804 = vmatpush2.bf16.msra.mxu0 0
    %6805 = vmatprep.subr.bf16.mxu0 0
    %6806 = vmatpush2.bf16.msra.mxu0 0
    %6807 = vmatprep.subr.bf16.mxu0 0
    %6808 = vmatpush2.bf16.msra.mxu0 0
    %6809 = vmatprep.subr.bf16.mxu0 0
    %6810 = vmatpush2.bf16.msra.mxu0 0
    %6811 = vmatprep.subr.bf16.mxu0 0
    %6812 = vmatpush2.bf16.msra.mxu0 0
    %6813 = vmatprep.subr.bf16.mxu0 0
    %6814 = vmatpush2.bf16.msra.mxu0 0
    %6815 = vmatprep.subr.bf16.mxu0 0
    %6816 = vmatpush2.bf16.msra.mxu0 0
    %6817 = vmatprep.mubr.bf16.mxu0 0
    %6818 = vmatmul.mubr.bf16.gmra.mxu0 %v4560
    %v6819 = vpop.f32.mrf.mxu0
    %v6820 = vadd.f32 %v6755, %v6819
    %v6821 = vpop.f32.mrf.mxu0
    %v6822 = vpop.f32.mrf.mxu0
    %v6823 = vadd.f32 %v6758, %v6822
    %v6824 = vpop.f32.mrf.mxu0
    %6825 = vmatprep.mubr.bf16.mxu0 0
    %6826 = vmatmul.mubr.bf16.gmra.mxu0 %v4563
    %v6827 = vpop.f32.mrf.mxu0
    %v6828 = vadd.f32 %v6763, %v6827
    %v6829 = vpop.f32.mrf.mxu0
    %v6830 = vpop.f32.mrf.mxu0
    %v6831 = vadd.f32 %v6766, %v6830
    %v6832 = vpop.f32.mrf.mxu0
    %6833 = vmatprep.mubr.bf16.mxu0 0
    %6834 = vmatmul.mubr.bf16.gmra.mxu0 %v4566
    %v6835 = vpop.f32.mrf.mxu0
    %v6836 = vadd.f32 %v6771, %v6835
    %v6837 = vpop.f32.mrf.mxu0
    %v6838 = vpop.f32.mrf.mxu0
    %v6839 = vadd.f32 %v6774, %v6838
    %v6840 = vpop.f32.mrf.mxu0
    %6841 = vmatprep.mubr.bf16.mxu0 0
    %6842 = vmatmul.mubr.bf16.gmra.mxu0 %v4569
    %v6843 = vpop.f32.mrf.mxu0
    %v6844 = vadd.f32 %v6779, %v6843
    %v6845 = vpop.f32.mrf.mxu0
    %v6846 = vpop.f32.mrf.mxu0
    %v6847 = vadd.f32 %v6782, %v6846
    %v6848 = vpop.f32.mrf.mxu0
    %6849 = vdwg.mxu0
    %v6850 = vadd.f32 %v6820, %v4639
    %v6851 = vadd.f32 %v6823, %v4644
    %v6852 = vadd.f32 %v6828, %v4649
    %v6853 = vadd.f32 %v6831, %v4654
    %v6854 = vadd.f32 %v6836, %v4659
    %v6855 = vadd.f32 %v6839, %v4664
    %v6856 = vadd.f32 %v6844, %v4669
    %v6857 = vadd.f32 %v6847, %v4674
    %v6858 = vmax.f32 %v6850, 0.0
    %v6859 = vmax.f32 %v6851, 0.0
    %v6860 = vmax.f32 %v6852, 0.0
    %v6861 = vmax.f32 %v6853, 0.0
    %v6862 = vmax.f32 %v6854, 0.0
    %v6863 = vmax.f32 %v6855, 0.0
    %v6864 = vmax.f32 %v6856, 0.0
    %v6865 = vmax.f32 %v6857, 0.0
    %6866 = vrot.lane.b32.xlu0 %v6858, 2
    %v6867 = vpop.permute.xlu0 %6866
    %6868 = vrot.lane.b32.xlu0 %v6859, 2
    %v6869 = vpop.permute.xlu0 %6868
    %6870 = vrot.lane.b32.xlu0 %v6860, 2
    %v6871 = vpop.permute.xlu0 %6870
    %6872 = vrot.lane.b32.xlu0 %v6861, 2
    %v6873 = vpop.permute.xlu0 %6872
    %6874 = vrot.lane.b32.xlu0 %v6862, 2
    %v6875 = vpop.permute.xlu0 %6874
    %6876 = vrot.lane.b32.xlu0 %v6863, 2
    %v6877 = vpop.permute.xlu0 %6876
    %6878 = vrot.lane.b32.xlu0 %v6864, 2
    %v6879 = vpop.permute.xlu0 %6878
    %6880 = vrot.lane.b32.xlu0 %v6865, 2
    %v6881 = vpop.permute.xlu0 %6880
    %v6882 = vmul.f32 %v6867, %v1278
    %v6883 = vmul.f32 %v6869, %v1278
    %v6884 = vmul.f32 %v6871, %v1278
    %v6885 = vmul.f32 %v6873, %v1278
    %v6886 = vmul.f32 %v6875, %v1278
    %v6887 = vmul.f32 %v6877, %v1278
    %v6888 = vmul.f32 %v6879, %v1278
    %v6889 = vmul.f32 %v6881, %v1278
    %v6890 = vpack.c.bf16 %v6859, %v6858
    %v6891 = vpack.c.bf16 %v6861, %v6860
    %v6892 = vpack.c.bf16 %v6863, %v6862
    %v6893 = vpack.c.bf16 %v6865, %v6864
    %v6894 = vpack.c.bf16 %v6883, %v6882
    %v6895 = vpack.c.bf16 %v6885, %v6884
    %v6896 = vpack.c.bf16 %v6887, %v6886
    %v6897 = vpack.c.bf16 %v6889, %v6888
    %6898 = vmatprep.subr.bf16.mxu0 0
    %6899 = vmatpush1.bf16.msra.mxu0 0
    %6900 = vmatprep.subr.bf16.mxu0 0
    %6901 = vmatpush1.bf16.msra.mxu0 0
    %6902 = vmatprep.subr.bf16.mxu0 0
    %6903 = vmatpush1.bf16.msra.mxu0 0
    %6904 = vmatprep.subr.bf16.mxu0 0
    %6905 = vmatpush1.bf16.msra.mxu0 0
    %6906 = vmatprep.subr.bf16.mxu0 0
    %6907 = vmatpush1.bf16.msra.mxu0 %v6897
    %6908 = vmatprep.subr.bf16.mxu0 0
    %6909 = vmatpush1.bf16.msra.mxu0 %v6896
    %6910 = vmatprep.subr.bf16.mxu0 0
    %6911 = vmatpush1.bf16.msra.mxu0 %v6895
    %6912 = vmatprep.subr.bf16.mxu0 0
    %6913 = vmatpush1.bf16.msra.mxu0 %v6894
    %6914 = vmatprep.subr.bf16.mxu0 0
    %6915 = vmatpush2.bf16.msra.mxu0 0
    %6916 = vmatprep.subr.bf16.mxu0 0
    %6917 = vmatpush2.bf16.msra.mxu0 0
    %6918 = vmatprep.subr.bf16.mxu0 0
    %6919 = vmatpush2.bf16.msra.mxu0 0
    %6920 = vmatprep.subr.bf16.mxu0 0
    %6921 = vmatpush2.bf16.msra.mxu0 0
    %6922 = vmatprep.subr.bf16.mxu0 0
    %6923 = vmatpush2.bf16.msra.mxu0 0
    %6924 = vmatprep.subr.bf16.mxu0 0
    %6925 = vmatpush2.bf16.msra.mxu0 0
    %6926 = vmatprep.subr.bf16.mxu0 0
    %6927 = vmatpush2.bf16.msra.mxu0 0
    %6928 = vmatprep.subr.bf16.mxu0 0
    %6929 = vmatpush2.bf16.msra.mxu0 0
    %6930 = vmatprep.mubr.bf16.mxu0 0
    %6931 = vmatmul.mubr.bf16.gmra.mxu0 %v4772
    %v6932 = vpop.f32.mrf.mxu0
    %v6933 = vadd.f32 0.0, %v6932
    %v6934 = vpop.f32.mrf.mxu0
    %v6935 = vpop.f32.mrf.mxu0
    %v6936 = vadd.f32 0.0, %v6935
    %v6937 = vpop.f32.mrf.mxu0
    %6938 = vmatprep.mubr.bf16.mxu0 0
    %6939 = vmatmul.mubr.bf16.gmra.mxu0 %v4775
    %v6940 = vpop.f32.mrf.mxu0
    %v6941 = vadd.f32 0.0, %v6940
    %v6942 = vpop.f32.mrf.mxu0
    %v6943 = vpop.f32.mrf.mxu0
    %v6944 = vadd.f32 0.0, %v6943
    %v6945 = vpop.f32.mrf.mxu0
    %6946 = vmatprep.mubr.bf16.mxu0 0
    %6947 = vmatmul.mubr.bf16.gmra.mxu0 %v4778
    %v6948 = vpop.f32.mrf.mxu0
    %v6949 = vadd.f32 0.0, %v6948
    %v6950 = vpop.f32.mrf.mxu0
    %v6951 = vpop.f32.mrf.mxu0
    %v6952 = vadd.f32 0.0, %v6951
    %v6953 = vpop.f32.mrf.mxu0
    %6954 = vmatprep.mubr.bf16.mxu0 0
    %6955 = vmatmul.mubr.bf16.gmra.mxu0 %v4781
    %v6956 = vpop.f32.mrf.mxu0
    %v6957 = vadd.f32 0.0, %v6956
    %v6958 = vpop.f32.mrf.mxu0
    %v6959 = vpop.f32.mrf.mxu0
    %v6960 = vadd.f32 0.0, %v6959
    %v6961 = vpop.f32.mrf.mxu0
    %6962 = vdwg.mxu0
    %6963 = vmatprep.subr.bf16.mxu0 0
    %6964 = vmatpush1.bf16.msra.mxu0 0
    %6965 = vmatprep.subr.bf16.mxu0 0
    %6966 = vmatpush1.bf16.msra.mxu0 0
    %6967 = vmatprep.subr.bf16.mxu0 0
    %6968 = vmatpush1.bf16.msra.mxu0 0
    %6969 = vmatprep.subr.bf16.mxu0 0
    %6970 = vmatpush1.bf16.msra.mxu0 0
    %6971 = vmatprep.subr.bf16.mxu0 0
    %6972 = vmatpush1.bf16.msra.mxu0 %v6893
    %6973 = vmatprep.subr.bf16.mxu0 0
    %6974 = vmatpush1.bf16.msra.mxu0 %v6892
    %6975 = vmatprep.subr.bf16.mxu0 0
    %6976 = vmatpush1.bf16.msra.mxu0 %v6891
    %6977 = vmatprep.subr.bf16.mxu0 0
    %6978 = vmatpush1.bf16.msra.mxu0 %v6890
    %6979 = vmatprep.subr.bf16.mxu0 0
    %6980 = vmatpush2.bf16.msra.mxu0 0
    %6981 = vmatprep.subr.bf16.mxu0 0
    %6982 = vmatpush2.bf16.msra.mxu0 0
    %6983 = vmatprep.subr.bf16.mxu0 0
    %6984 = vmatpush2.bf16.msra.mxu0 0
    %6985 = vmatprep.subr.bf16.mxu0 0
    %6986 = vmatpush2.bf16.msra.mxu0 0
    %6987 = vmatprep.subr.bf16.mxu0 0
    %6988 = vmatpush2.bf16.msra.mxu0 0
    %6989 = vmatprep.subr.bf16.mxu0 0
    %6990 = vmatpush2.bf16.msra.mxu0 0
    %6991 = vmatprep.subr.bf16.mxu0 0
    %6992 = vmatpush2.bf16.msra.mxu0 0
    %6993 = vmatprep.subr.bf16.mxu0 0
    %6994 = vmatpush2.bf16.msra.mxu0 0
    %6995 = vmatprep.mubr.bf16.mxu0 0
    %6996 = vmatmul.mubr.bf16.gmra.mxu0 %v4869
    %v6997 = vpop.f32.mrf.mxu0
    %v6998 = vadd.f32 %v6933, %v6997
    %v6999 = vpop.f32.mrf.mxu0
    %v7000 = vpop.f32.mrf.mxu0
    %v7001 = vadd.f32 %v6936, %v7000
    %v7002 = vpop.f32.mrf.mxu0
    %7003 = vmatprep.mubr.bf16.mxu0 0
    %7004 = vmatmul.mubr.bf16.gmra.mxu0 %v4872
    %v7005 = vpop.f32.mrf.mxu0
    %v7006 = vadd.f32 %v6941, %v7005
    %v7007 = vpop.f32.mrf.mxu0
    %v7008 = vpop.f32.mrf.mxu0
    %v7009 = vadd.f32 %v6944, %v7008
    %v7010 = vpop.f32.mrf.mxu0
    %7011 = vmatprep.mubr.bf16.mxu0 0
    %7012 = vmatmul.mubr.bf16.gmra.mxu0 %v4875
    %v7013 = vpop.f32.mrf.mxu0
    %v7014 = vadd.f32 %v6949, %v7013
    %v7015 = vpop.f32.mrf.mxu0
    %v7016 = vpop.f32.mrf.mxu0
    %v7017 = vadd.f32 %v6952, %v7016
    %v7018 = vpop.f32.mrf.mxu0
    %7019 = vmatprep.mubr.bf16.mxu0 0
    %7020 = vmatmul.mubr.bf16.gmra.mxu0 %v4878
    %v7021 = vpop.f32.mrf.mxu0
    %v7022 = vadd.f32 %v6957, %v7021
    %v7023 = vpop.f32.mrf.mxu0
    %v7024 = vpop.f32.mrf.mxu0
    %v7025 = vadd.f32 %v6960, %v7024
    %v7026 = vpop.f32.mrf.mxu0
    %7027 = vdwg.mxu0
    %v7028 = vadd.f32 %v6998, %v4948
    %v7029 = vadd.f32 %v7001, %v4953
    %v7030 = vadd.f32 %v7006, %v4958
    %v7031 = vadd.f32 %v7009, %v4963
    %v7032 = vadd.f32 %v7014, %v4968
    %v7033 = vadd.f32 %v7017, %v4973
    %v7034 = vadd.f32 %v7022, %v4978
    %v7035 = vadd.f32 %v7025, %v4983
    %v7036 = vmax.f32 %v7028, 0.0
    %v7037 = vmax.f32 %v7029, 0.0
    %v7038 = vmax.f32 %v7030, 0.0
    %v7039 = vmax.f32 %v7031, 0.0
    %v7040 = vmax.f32 %v7032, 0.0
    %v7041 = vmax.f32 %v7033, 0.0
    %v7042 = vmax.f32 %v7034, 0.0
    %v7043 = vmax.f32 %v7035, 0.0
    %v7044 = vadd.f32 %v7036, %v6502
    %v7045 = vadd.f32 %v7037, %v6503
    %v7046 = vadd.f32 %v7038, %v6504
    %v7047 = vadd.f32 %v7039, %v6505
    %v7048 = vadd.f32 %v7040, %v6506
    %v7049 = vadd.f32 %v7041, %v6507
    %v7050 = vadd.f32 %v7042, %v6508
    %v7051 = vadd.f32 %v7043, %v6509
    %v7052 = vmax.f32 %v7044, 0.0
    %v7053 = vmax.f32 %v7045, 0.0
    %v7054 = vmax.f32 %v7046, 0.0
    %v7055 = vmax.f32 %v7047, 0.0
    %v7056 = vmax.f32 %v7048, 0.0
    %v7057 = vmax.f32 %v7049, 0.0
    %v7058 = vmax.f32 %v7050, 0.0
    %v7059 = vmax.f32 %v7051, 0.0
    %7060 = vrot.lane.b32.xlu0 %v7052, 4
    %v7061 = vpop.permute.xlu0 %7060
    %7062 = vrot.lane.b32.xlu0 %v7053, 4
    %v7063 = vpop.permute.xlu0 %7062
    %7064 = vrot.lane.b32.xlu0 %v7054, 4
    %v7065 = vpop.permute.xlu0 %7064
    %7066 = vrot.lane.b32.xlu0 %v7055, 4
    %v7067 = vpop.permute.xlu0 %7066
    %7068 = vrot.lane.b32.xlu0 %v7056, 4
    %v7069 = vpop.permute.xlu0 %7068
    %7070 = vrot.lane.b32.xlu0 %v7057, 4
    %v7071 = vpop.permute.xlu0 %7070
    %7072 = vrot.lane.b32.xlu0 %v7058, 4
    %v7073 = vpop.permute.xlu0 %7072
    %7074 = vrot.lane.b32.xlu0 %v7059, 4
    %v7075 = vpop.permute.xlu0 %7074
    %v7076 = vmul.f32 %v7061, %v2229
    %v7077 = vmul.f32 %v7063, %v2229
    %v7078 = vmul.f32 %v7065, %v2229
    %v7079 = vmul.f32 %v7067, %v2229
    %v7080 = vmul.f32 %v7069, %v2229
    %v7081 = vmul.f32 %v7071, %v2229
    %v7082 = vmul.f32 %v7073, %v2229
    %v7083 = vmul.f32 %v7075, %v2229
    %v7084 = vpack.c.bf16 %v7053, %v7052
    %v7085 = vpack.c.bf16 %v7055, %v7054
    %v7086 = vpack.c.bf16 %v7057, %v7056
    %v7087 = vpack.c.bf16 %v7059, %v7058
    %v7088 = vpack.c.bf16 %v7077, %v7076
    %v7089 = vpack.c.bf16 %v7079, %v7078
    %v7090 = vpack.c.bf16 %v7081, %v7080
    %v7091 = vpack.c.bf16 %v7083, %v7082
    %7092 = vmatprep.subr.bf16.mxu0 0
    %7093 = vmatpush1.bf16.msra.mxu0 0
    %7094 = vmatprep.subr.bf16.mxu0 0
    %7095 = vmatpush1.bf16.msra.mxu0 0
    %7096 = vmatprep.subr.bf16.mxu0 0
    %7097 = vmatpush1.bf16.msra.mxu0 0
    %7098 = vmatprep.subr.bf16.mxu0 0
    %7099 = vmatpush1.bf16.msra.mxu0 0
    %7100 = vmatprep.subr.bf16.mxu0 0
    %7101 = vmatpush1.bf16.msra.mxu0 %v7091
    %7102 = vmatprep.subr.bf16.mxu0 0
    %7103 = vmatpush1.bf16.msra.mxu0 %v7090
    %7104 = vmatprep.subr.bf16.mxu0 0
    %7105 = vmatpush1.bf16.msra.mxu0 %v7089
    %7106 = vmatprep.subr.bf16.mxu0 0
    %7107 = vmatpush1.bf16.msra.mxu0 %v7088
    %7108 = vmatprep.subr.bf16.mxu0 0
    %7109 = vmatpush2.bf16.msra.mxu0 0
    %7110 = vmatprep.subr.bf16.mxu0 0
    %7111 = vmatpush2.bf16.msra.mxu0 0
    %7112 = vmatprep.subr.bf16.mxu0 0
    %7113 = vmatpush2.bf16.msra.mxu0 0
    %7114 = vmatprep.subr.bf16.mxu0 0
    %7115 = vmatpush2.bf16.msra.mxu0 0
    %7116 = vmatprep.subr.bf16.mxu0 0
    %7117 = vmatpush2.bf16.msra.mxu0 0
    %7118 = vmatprep.subr.bf16.mxu0 0
    %7119 = vmatpush2.bf16.msra.mxu0 0
    %7120 = vmatprep.subr.bf16.mxu0 0
    %7121 = vmatpush2.bf16.msra.mxu0 0
    %7122 = vmatprep.subr.bf16.mxu0 0
    %7123 = vmatpush2.bf16.msra.mxu0 0
    %7124 = vmatprep.mubr.bf16.mxu0 0
    %7125 = vmatmul.mubr.bf16.gmra.mxu0 %v5097
    %v7126 = vpop.f32.mrf.mxu0
    %v7127 = vadd.f32 0.0, %v7126
    %v7128 = vpop.f32.mrf.mxu0
    %v7129 = vpop.f32.mrf.mxu0
    %v7130 = vadd.f32 0.0, %v7129
    %v7131 = vpop.f32.mrf.mxu0
    %7132 = vmatprep.mubr.bf16.mxu0 0
    %7133 = vmatmul.mubr.bf16.gmra.mxu0 %v5100
    %v7134 = vpop.f32.mrf.mxu0
    %v7135 = vadd.f32 0.0, %v7134
    %v7136 = vpop.f32.mrf.mxu0
    %v7137 = vpop.f32.mrf.mxu0
    %v7138 = vadd.f32 0.0, %v7137
    %v7139 = vpop.f32.mrf.mxu0
    %7140 = vmatprep.mubr.bf16.mxu0 0
    %7141 = vmatmul.mubr.bf16.gmra.mxu0 %v5103
    %v7142 = vpop.f32.mrf.mxu0
    %v7143 = vadd.f32 0.0, %v7142
    %v7144 = vpop.f32.mrf.mxu0
    %v7145 = vpop.f32.mrf.mxu0
    %v7146 = vadd.f32 0.0, %v7145
    %v7147 = vpop.f32.mrf.mxu0
    %7148 = vmatprep.mubr.bf16.mxu0 0
    %7149 = vmatmul.mubr.bf16.gmra.mxu0 %v5106
    %v7150 = vpop.f32.mrf.mxu0
    %v7151 = vadd.f32 0.0, %v7150
    %v7152 = vpop.f32.mrf.mxu0
    %v7153 = vpop.f32.mrf.mxu0
    %v7154 = vadd.f32 0.0, %v7153
    %v7155 = vpop.f32.mrf.mxu0
    %7156 = vdwg.mxu0
    %7157 = vmatprep.subr.bf16.mxu0 0
    %7158 = vmatpush1.bf16.msra.mxu0 0
    %7159 = vmatprep.subr.bf16.mxu0 0
    %7160 = vmatpush1.bf16.msra.mxu0 0
    %7161 = vmatprep.subr.bf16.mxu0 0
    %7162 = vmatpush1.bf16.msra.mxu0 0
    %7163 = vmatprep.subr.bf16.mxu0 0
    %7164 = vmatpush1.bf16.msra.mxu0 0
    %7165 = vmatprep.subr.bf16.mxu0 0
    %7166 = vmatpush1.bf16.msra.mxu0 %v7087
    %7167 = vmatprep.subr.bf16.mxu0 0
    %7168 = vmatpush1.bf16.msra.mxu0 %v7086
    %7169 = vmatprep.subr.bf16.mxu0 0
    %7170 = vmatpush1.bf16.msra.mxu0 %v7085
    %7171 = vmatprep.subr.bf16.mxu0 0
    %7172 = vmatpush1.bf16.msra.mxu0 %v7084
    %7173 = vmatprep.subr.bf16.mxu0 0
    %7174 = vmatpush2.bf16.msra.mxu0 0
    %7175 = vmatprep.subr.bf16.mxu0 0
    %7176 = vmatpush2.bf16.msra.mxu0 0
    %7177 = vmatprep.subr.bf16.mxu0 0
    %7178 = vmatpush2.bf16.msra.mxu0 0
    %7179 = vmatprep.subr.bf16.mxu0 0
    %7180 = vmatpush2.bf16.msra.mxu0 0
    %7181 = vmatprep.subr.bf16.mxu0 0
    %7182 = vmatpush2.bf16.msra.mxu0 0
    %7183 = vmatprep.subr.bf16.mxu0 0
    %7184 = vmatpush2.bf16.msra.mxu0 0
    %7185 = vmatprep.subr.bf16.mxu0 0
    %7186 = vmatpush2.bf16.msra.mxu0 0
    %7187 = vmatprep.subr.bf16.mxu0 0
    %7188 = vmatpush2.bf16.msra.mxu0 0
    %7189 = vmatprep.mubr.bf16.mxu0 0
    %7190 = vmatmul.mubr.bf16.gmra.mxu0 %v5194
    %v7191 = vpop.f32.mrf.mxu0
    %v7192 = vadd.f32 %v7127, %v7191
    %v7193 = vpop.f32.mrf.mxu0
    %v7194 = vpop.f32.mrf.mxu0
    %v7195 = vadd.f32 %v7130, %v7194
    %v7196 = vpop.f32.mrf.mxu0
    %7197 = vmatprep.mubr.bf16.mxu0 0
    %7198 = vmatmul.mubr.bf16.gmra.mxu0 %v5197
    %v7199 = vpop.f32.mrf.mxu0
    %v7200 = vadd.f32 %v7135, %v7199
    %v7201 = vpop.f32.mrf.mxu0
    %v7202 = vpop.f32.mrf.mxu0
    %v7203 = vadd.f32 %v7138, %v7202
    %v7204 = vpop.f32.mrf.mxu0
    %7205 = vmatprep.mubr.bf16.mxu0 0
    %7206 = vmatmul.mubr.bf16.gmra.mxu0 %v5200
    %v7207 = vpop.f32.mrf.mxu0
    %v7208 = vadd.f32 %v7143, %v7207
    %v7209 = vpop.f32.mrf.mxu0
    %v7210 = vpop.f32.mrf.mxu0
    %v7211 = vadd.f32 %v7146, %v7210
    %v7212 = vpop.f32.mrf.mxu0
    %7213 = vmatprep.mubr.bf16.mxu0 0
    %7214 = vmatmul.mubr.bf16.gmra.mxu0 %v5203
    %v7215 = vpop.f32.mrf.mxu0
    %v7216 = vadd.f32 %v7151, %v7215
    %v7217 = vpop.f32.mrf.mxu0
    %v7218 = vpop.f32.mrf.mxu0
    %v7219 = vadd.f32 %v7154, %v7218
    %v7220 = vpop.f32.mrf.mxu0
    %7221 = vdwg.mxu0
    %v7222 = vadd.f32 %v7192, %v5273
    %v7223 = vadd.f32 %v7195, %v5278
    %v7224 = vadd.f32 %v7200, %v5283
    %v7225 = vadd.f32 %v7203, %v5288
    %v7226 = vadd.f32 %v7208, %v5293
    %v7227 = vadd.f32 %v7211, %v5298
    %v7228 = vadd.f32 %v7216, %v5303
    %v7229 = vadd.f32 %v7219, %v5308
    %v7230 = vmax.f32 %v7222, 0.0
    %v7231 = vmax.f32 %v7223, 0.0
    %v7232 = vmax.f32 %v7224, 0.0
    %v7233 = vmax.f32 %v7225, 0.0
    %v7234 = vmax.f32 %v7226, 0.0
    %v7235 = vmax.f32 %v7227, 0.0
    %v7236 = vmax.f32 %v7228, 0.0
    %v7237 = vmax.f32 %v7229, 0.0
    %7238 = vrot.lane.b32.xlu0 %v7230, 4
    %v7239 = vpop.permute.xlu0 %7238
    %7240 = vrot.lane.b32.xlu0 %v7231, 4
    %v7241 = vpop.permute.xlu0 %7240
    %7242 = vrot.lane.b32.xlu0 %v7232, 4
    %v7243 = vpop.permute.xlu0 %7242
    %7244 = vrot.lane.b32.xlu0 %v7233, 4
    %v7245 = vpop.permute.xlu0 %7244
    %7246 = vrot.lane.b32.xlu0 %v7234, 4
    %v7247 = vpop.permute.xlu0 %7246
    %7248 = vrot.lane.b32.xlu0 %v7235, 4
    %v7249 = vpop.permute.xlu0 %7248
    %7250 = vrot.lane.b32.xlu0 %v7236, 4
    %v7251 = vpop.permute.xlu0 %7250
    %7252 = vrot.lane.b32.xlu0 %v7237, 4
    %v7253 = vpop.permute.xlu0 %7252
    %v7254 = vmul.f32 %v7239, %v2229
    %v7255 = vmul.f32 %v7241, %v2229
    %v7256 = vmul.f32 %v7243, %v2229
    %v7257 = vmul.f32 %v7245, %v2229
    %v7258 = vmul.f32 %v7247, %v2229
    %v7259 = vmul.f32 %v7249, %v2229
    %v7260 = vmul.f32 %v7251, %v2229
    %v7261 = vmul.f32 %v7253, %v2229
    %v7262 = vpack.c.bf16 %v7231, %v7230
    %v7263 = vpack.c.bf16 %v7233, %v7232
    %v7264 = vpack.c.bf16 %v7235, %v7234
    %v7265 = vpack.c.bf16 %v7237, %v7236
    %v7266 = vpack.c.bf16 %v7255, %v7254
    %v7267 = vpack.c.bf16 %v7257, %v7256
    %v7268 = vpack.c.bf16 %v7259, %v7258
    %v7269 = vpack.c.bf16 %v7261, %v7260
    %7270 = vmatprep.subr.bf16.mxu0 0
    %7271 = vmatpush1.bf16.msra.mxu0 0
    %7272 = vmatprep.subr.bf16.mxu0 0
    %7273 = vmatpush1.bf16.msra.mxu0 0
    %7274 = vmatprep.subr.bf16.mxu0 0
    %7275 = vmatpush1.bf16.msra.mxu0 0
    %7276 = vmatprep.subr.bf16.mxu0 0
    %7277 = vmatpush1.bf16.msra.mxu0 0
    %7278 = vmatprep.subr.bf16.mxu0 0
    %7279 = vmatpush1.bf16.msra.mxu0 %v7269
    %7280 = vmatprep.subr.bf16.mxu0 0
    %7281 = vmatpush1.bf16.msra.mxu0 %v7268
    %7282 = vmatprep.subr.bf16.mxu0 0
    %7283 = vmatpush1.bf16.msra.mxu0 %v7267
    %7284 = vmatprep.subr.bf16.mxu0 0
    %7285 = vmatpush1.bf16.msra.mxu0 %v7266
    %7286 = vmatprep.subr.bf16.mxu0 0
    %7287 = vmatpush2.bf16.msra.mxu0 0
    %7288 = vmatprep.subr.bf16.mxu0 0
    %7289 = vmatpush2.bf16.msra.mxu0 0
    %7290 = vmatprep.subr.bf16.mxu0 0
    %7291 = vmatpush2.bf16.msra.mxu0 0
    %7292 = vmatprep.subr.bf16.mxu0 0
    %7293 = vmatpush2.bf16.msra.mxu0 0
    %7294 = vmatprep.subr.bf16.mxu0 0
    %7295 = vmatpush2.bf16.msra.mxu0 0
    %7296 = vmatprep.subr.bf16.mxu0 0
    %7297 = vmatpush2.bf16.msra.mxu0 0
    %7298 = vmatprep.subr.bf16.mxu0 0
    %7299 = vmatpush2.bf16.msra.mxu0 0
    %7300 = vmatprep.subr.bf16.mxu0 0
    %7301 = vmatpush2.bf16.msra.mxu0 0
    %7302 = vmatprep.mubr.bf16.mxu0 0
    %7303 = vmatmul.mubr.bf16.gmra.mxu0 %v5406
    %v7304 = vpop.f32.mrf.mxu0
    %v7305 = vadd.f32 0.0, %v7304
    %v7306 = vpop.f32.mrf.mxu0
    %v7307 = vpop.f32.mrf.mxu0
    %v7308 = vadd.f32 0.0, %v7307
    %v7309 = vpop.f32.mrf.mxu0
    %7310 = vmatprep.mubr.bf16.mxu0 0
    %7311 = vmatmul.mubr.bf16.gmra.mxu0 %v5409
    %v7312 = vpop.f32.mrf.mxu0
    %v7313 = vadd.f32 0.0, %v7312
    %v7314 = vpop.f32.mrf.mxu0
    %v7315 = vpop.f32.mrf.mxu0
    %v7316 = vadd.f32 0.0, %v7315
    %v7317 = vpop.f32.mrf.mxu0
    %7318 = vmatprep.mubr.bf16.mxu0 0
    %7319 = vmatmul.mubr.bf16.gmra.mxu0 %v5412
    %v7320 = vpop.f32.mrf.mxu0
    %v7321 = vadd.f32 0.0, %v7320
    %v7322 = vpop.f32.mrf.mxu0
    %v7323 = vpop.f32.mrf.mxu0
    %v7324 = vadd.f32 0.0, %v7323
    %v7325 = vpop.f32.mrf.mxu0
    %7326 = vmatprep.mubr.bf16.mxu0 0
    %7327 = vmatmul.mubr.bf16.gmra.mxu0 %v5415
    %v7328 = vpop.f32.mrf.mxu0
    %v7329 = vadd.f32 0.0, %v7328
    %v7330 = vpop.f32.mrf.mxu0
    %v7331 = vpop.f32.mrf.mxu0
    %v7332 = vadd.f32 0.0, %v7331
    %v7333 = vpop.f32.mrf.mxu0
    %7334 = vdwg.mxu0
    %7335 = vmatprep.subr.bf16.mxu0 0
    %7336 = vmatpush1.bf16.msra.mxu0 0
    %7337 = vmatprep.subr.bf16.mxu0 0
    %7338 = vmatpush1.bf16.msra.mxu0 0
    %7339 = vmatprep.subr.bf16.mxu0 0
    %7340 = vmatpush1.bf16.msra.mxu0 0
    %7341 = vmatprep.subr.bf16.mxu0 0
    %7342 = vmatpush1.bf16.msra.mxu0 0
    %7343 = vmatprep.subr.bf16.mxu0 0
    %7344 = vmatpush1.bf16.msra.mxu0 %v7265
    %7345 = vmatprep.subr.bf16.mxu0 0
    %7346 = vmatpush1.bf16.msra.mxu0 %v7264
    %7347 = vmatprep.subr.bf16.mxu0 0
    %7348 = vmatpush1.bf16.msra.mxu0 %v7263
    %7349 = vmatprep.subr.bf16.mxu0 0
    %7350 = vmatpush1.bf16.msra.mxu0 %v7262
    %7351 = vmatprep.subr.bf16.mxu0 0
    %7352 = vmatpush2.bf16.msra.mxu0 0
    %7353 = vmatprep.subr.bf16.mxu0 0
    %7354 = vmatpush2.bf16.msra.mxu0 0
    %7355 = vmatprep.subr.bf16.mxu0 0
    %7356 = vmatpush2.bf16.msra.mxu0 0
    %7357 = vmatprep.subr.bf16.mxu0 0
    %7358 = vmatpush2.bf16.msra.mxu0 0
    %7359 = vmatprep.subr.bf16.mxu0 0
    %7360 = vmatpush2.bf16.msra.mxu0 0
    %7361 = vmatprep.subr.bf16.mxu0 0
    %7362 = vmatpush2.bf16.msra.mxu0 0
    %7363 = vmatprep.subr.bf16.mxu0 0
    %7364 = vmatpush2.bf16.msra.mxu0 0
    %7365 = vmatprep.subr.bf16.mxu0 0
    %7366 = vmatpush2.bf16.msra.mxu0 0
    %7367 = vmatprep.mubr.bf16.mxu0 0
    %7368 = vmatmul.mubr.bf16.gmra.mxu0 %v5503
    %v7369 = vpop.f32.mrf.mxu0
    %v7370 = vadd.f32 %v7305, %v7369
    %v7371 = vpop.f32.mrf.mxu0
    %v7372 = vpop.f32.mrf.mxu0
    %v7373 = vadd.f32 %v7308, %v7372
    %v7374 = vpop.f32.mrf.mxu0
    %7375 = vmatprep.mubr.bf16.mxu0 0
    %7376 = vmatmul.mubr.bf16.gmra.mxu0 %v5506
    %v7377 = vpop.f32.mrf.mxu0
    %v7378 = vadd.f32 %v7313, %v7377
    %v7379 = vpop.f32.mrf.mxu0
    %v7380 = vpop.f32.mrf.mxu0
    %v7381 = vadd.f32 %v7316, %v7380
    %v7382 = vpop.f32.mrf.mxu0
    %7383 = vmatprep.mubr.bf16.mxu0 0
    %7384 = vmatmul.mubr.bf16.gmra.mxu0 %v5509
    %v7385 = vpop.f32.mrf.mxu0
    %v7386 = vadd.f32 %v7321, %v7385
    %v7387 = vpop.f32.mrf.mxu0
    %v7388 = vpop.f32.mrf.mxu0
    %v7389 = vadd.f32 %v7324, %v7388
    %v7390 = vpop.f32.mrf.mxu0
    %7391 = vmatprep.mubr.bf16.mxu0 0
    %7392 = vmatmul.mubr.bf16.gmra.mxu0 %v5512
    %v7393 = vpop.f32.mrf.mxu0
    %v7394 = vadd.f32 %v7329, %v7393
    %v7395 = vpop.f32.mrf.mxu0
    %v7396 = vpop.f32.mrf.mxu0
    %v7397 = vadd.f32 %v7332, %v7396
    %v7398 = vpop.f32.mrf.mxu0
    %7399 = vdwg.mxu0
    %v7400 = vadd.f32 %v7370, %v5582
    %v7401 = vadd.f32 %v7373, %v5587
    %v7402 = vadd.f32 %v7378, %v5592
    %v7403 = vadd.f32 %v7381, %v5597
    %v7404 = vadd.f32 %v7386, %v5602
    %v7405 = vadd.f32 %v7389, %v5607
    %v7406 = vadd.f32 %v7394, %v5612
    %v7407 = vadd.f32 %v7397, %v5617
    %v7408 = vmax.f32 %v7400, 0.0
    %v7409 = vmax.f32 %v7401, 0.0
    %v7410 = vmax.f32 %v7402, 0.0
    %v7411 = vmax.f32 %v7403, 0.0
    %v7412 = vmax.f32 %v7404, 0.0
    %v7413 = vmax.f32 %v7405, 0.0
    %v7414 = vmax.f32 %v7406, 0.0
    %v7415 = vmax.f32 %v7407, 0.0
    %7416 = vrot.lane.b32.xlu0 %v7408, 4
    %v7417 = vpop.permute.xlu0 %7416
    %7418 = vrot.lane.b32.xlu0 %v7409, 4
    %v7419 = vpop.permute.xlu0 %7418
    %7420 = vrot.lane.b32.xlu0 %v7410, 4
    %v7421 = vpop.permute.xlu0 %7420
    %7422 = vrot.lane.b32.xlu0 %v7411, 4
    %v7423 = vpop.permute.xlu0 %7422
    %7424 = vrot.lane.b32.xlu0 %v7412, 4
    %v7425 = vpop.permute.xlu0 %7424
    %7426 = vrot.lane.b32.xlu0 %v7413, 4
    %v7427 = vpop.permute.xlu0 %7426
    %7428 = vrot.lane.b32.xlu0 %v7414, 4
    %v7429 = vpop.permute.xlu0 %7428
    %7430 = vrot.lane.b32.xlu0 %v7415, 4
    %v7431 = vpop.permute.xlu0 %7430
    %v7432 = vmul.f32 %v7417, %v2229
    %v7433 = vmul.f32 %v7419, %v2229
    %v7434 = vmul.f32 %v7421, %v2229
    %v7435 = vmul.f32 %v7423, %v2229
    %v7436 = vmul.f32 %v7425, %v2229
    %v7437 = vmul.f32 %v7427, %v2229
    %v7438 = vmul.f32 %v7429, %v2229
    %v7439 = vmul.f32 %v7431, %v2229
    %v7440 = vpack.c.bf16 %v7409, %v7408
    %v7441 = vpack.c.bf16 %v7411, %v7410
    %v7442 = vpack.c.bf16 %v7413, %v7412
    %v7443 = vpack.c.bf16 %v7415, %v7414
    %v7444 = vpack.c.bf16 %v7433, %v7432
    %v7445 = vpack.c.bf16 %v7435, %v7434
    %v7446 = vpack.c.bf16 %v7437, %v7436
    %v7447 = vpack.c.bf16 %v7439, %v7438
    %7448 = vmatprep.subr.bf16.mxu0 0
    %7449 = vmatpush1.bf16.msra.mxu0 0
    %7450 = vmatprep.subr.bf16.mxu0 0
    %7451 = vmatpush1.bf16.msra.mxu0 0
    %7452 = vmatprep.subr.bf16.mxu0 0
    %7453 = vmatpush1.bf16.msra.mxu0 0
    %7454 = vmatprep.subr.bf16.mxu0 0
    %7455 = vmatpush1.bf16.msra.mxu0 0
    %7456 = vmatprep.subr.bf16.mxu0 0
    %7457 = vmatpush1.bf16.msra.mxu0 %v7447
    %7458 = vmatprep.subr.bf16.mxu0 0
    %7459 = vmatpush1.bf16.msra.mxu0 %v7446
    %7460 = vmatprep.subr.bf16.mxu0 0
    %7461 = vmatpush1.bf16.msra.mxu0 %v7445
    %7462 = vmatprep.subr.bf16.mxu0 0
    %7463 = vmatpush1.bf16.msra.mxu0 %v7444
    %7464 = vmatprep.subr.bf16.mxu0 0
    %7465 = vmatpush2.bf16.msra.mxu0 0
    %7466 = vmatprep.subr.bf16.mxu0 0
    %7467 = vmatpush2.bf16.msra.mxu0 0
    %7468 = vmatprep.subr.bf16.mxu0 0
    %7469 = vmatpush2.bf16.msra.mxu0 0
    %7470 = vmatprep.subr.bf16.mxu0 0
    %7471 = vmatpush2.bf16.msra.mxu0 0
    %7472 = vmatprep.subr.bf16.mxu0 0
    %7473 = vmatpush2.bf16.msra.mxu0 0
    %7474 = vmatprep.subr.bf16.mxu0 0
    %7475 = vmatpush2.bf16.msra.mxu0 0
    %7476 = vmatprep.subr.bf16.mxu0 0
    %7477 = vmatpush2.bf16.msra.mxu0 0
    %7478 = vmatprep.subr.bf16.mxu0 0
    %7479 = vmatpush2.bf16.msra.mxu0 0
    %7480 = vmatprep.mubr.bf16.mxu0 0
    %7481 = vmatmul.mubr.bf16.gmra.mxu0 %v5715
    %v7482 = vpop.f32.mrf.mxu0
    %v7483 = vadd.f32 0.0, %v7482
    %v7484 = vpop.f32.mrf.mxu0
    %v7485 = vpop.f32.mrf.mxu0
    %v7486 = vadd.f32 0.0, %v7485
    %v7487 = vpop.f32.mrf.mxu0
    %7488 = vmatprep.mubr.bf16.mxu0 0
    %7489 = vmatmul.mubr.bf16.gmra.mxu0 %v5718
    %v7490 = vpop.f32.mrf.mxu0
    %v7491 = vadd.f32 0.0, %v7490
    %v7492 = vpop.f32.mrf.mxu0
    %v7493 = vpop.f32.mrf.mxu0
    %v7494 = vadd.f32 0.0, %v7493
    %v7495 = vpop.f32.mrf.mxu0
    %7496 = vmatprep.mubr.bf16.mxu0 0
    %7497 = vmatmul.mubr.bf16.gmra.mxu0 %v5721
    %v7498 = vpop.f32.mrf.mxu0
    %v7499 = vadd.f32 0.0, %v7498
    %v7500 = vpop.f32.mrf.mxu0
    %v7501 = vpop.f32.mrf.mxu0
    %v7502 = vadd.f32 0.0, %v7501
    %v7503 = vpop.f32.mrf.mxu0
    %7504 = vmatprep.mubr.bf16.mxu0 0
    %7505 = vmatmul.mubr.bf16.gmra.mxu0 %v5724
    %v7506 = vpop.f32.mrf.mxu0
    %v7507 = vadd.f32 0.0, %v7506
    %v7508 = vpop.f32.mrf.mxu0
    %v7509 = vpop.f32.mrf.mxu0
    %v7510 = vadd.f32 0.0, %v7509
    %v7511 = vpop.f32.mrf.mxu0
    %7512 = vdwg.mxu0
    %7513 = vmatprep.subr.bf16.mxu0 0
    %7514 = vmatpush1.bf16.msra.mxu0 0
    %7515 = vmatprep.subr.bf16.mxu0 0
    %7516 = vmatpush1.bf16.msra.mxu0 0
    %7517 = vmatprep.subr.bf16.mxu0 0
    %7518 = vmatpush1.bf16.msra.mxu0 0
    %7519 = vmatprep.subr.bf16.mxu0 0
    %7520 = vmatpush1.bf16.msra.mxu0 0
    %7521 = vmatprep.subr.bf16.mxu0 0
    %7522 = vmatpush1.bf16.msra.mxu0 %v7443
    %7523 = vmatprep.subr.bf16.mxu0 0
    %7524 = vmatpush1.bf16.msra.mxu0 %v7442
    %7525 = vmatprep.subr.bf16.mxu0 0
    %7526 = vmatpush1.bf16.msra.mxu0 %v7441
    %7527 = vmatprep.subr.bf16.mxu0 0
    %7528 = vmatpush1.bf16.msra.mxu0 %v7440
    %7529 = vmatprep.subr.bf16.mxu0 0
    %7530 = vmatpush2.bf16.msra.mxu0 0
    %7531 = vmatprep.subr.bf16.mxu0 0
    %7532 = vmatpush2.bf16.msra.mxu0 0
    %7533 = vmatprep.subr.bf16.mxu0 0
    %7534 = vmatpush2.bf16.msra.mxu0 0
    %7535 = vmatprep.subr.bf16.mxu0 0
    %7536 = vmatpush2.bf16.msra.mxu0 0
    %7537 = vmatprep.subr.bf16.mxu0 0
    %7538 = vmatpush2.bf16.msra.mxu0 0
    %7539 = vmatprep.subr.bf16.mxu0 0
    %7540 = vmatpush2.bf16.msra.mxu0 0
    %7541 = vmatprep.subr.bf16.mxu0 0
    %7542 = vmatpush2.bf16.msra.mxu0 0
    %7543 = vmatprep.subr.bf16.mxu0 0
    %7544 = vmatpush2.bf16.msra.mxu0 0
    %7545 = vmatprep.mubr.bf16.mxu0 0
    %7546 = vmatmul.mubr.bf16.gmra.mxu0 %v5812
    %v7547 = vpop.f32.mrf.mxu0
    %v7548 = vadd.f32 %v7483, %v7547
    %v7549 = vpop.f32.mrf.mxu0
    %v7550 = vpop.f32.mrf.mxu0
    %v7551 = vadd.f32 %v7486, %v7550
    %v7552 = vpop.f32.mrf.mxu0
    %7553 = vmatprep.mubr.bf16.mxu0 0
    %7554 = vmatmul.mubr.bf16.gmra.mxu0 %v5815
    %v7555 = vpop.f32.mrf.mxu0
    %v7556 = vadd.f32 %v7491, %v7555
    %v7557 = vpop.f32.mrf.mxu0
    %v7558 = vpop.f32.mrf.mxu0
    %v7559 = vadd.f32 %v7494, %v7558
    %v7560 = vpop.f32.mrf.mxu0
    %7561 = vmatprep.mubr.bf16.mxu0 0
    %7562 = vmatmul.mubr.bf16.gmra.mxu0 %v5818
    %v7563 = vpop.f32.mrf.mxu0
    %v7564 = vadd.f32 %v7499, %v7563
    %v7565 = vpop.f32.mrf.mxu0
    %v7566 = vpop.f32.mrf.mxu0
    %v7567 = vadd.f32 %v7502, %v7566
    %v7568 = vpop.f32.mrf.mxu0
    %7569 = vmatprep.mubr.bf16.mxu0 0
    %7570 = vmatmul.mubr.bf16.gmra.mxu0 %v5821
    %v7571 = vpop.f32.mrf.mxu0
    %v7572 = vadd.f32 %v7507, %v7571
    %v7573 = vpop.f32.mrf.mxu0
    %v7574 = vpop.f32.mrf.mxu0
    %v7575 = vadd.f32 %v7510, %v7574
    %v7576 = vpop.f32.mrf.mxu0
    %7577 = vdwg.mxu0
    %v7578 = vadd.f32 %v7548, %v5891
    %v7579 = vadd.f32 %v7551, %v5896
    %v7580 = vadd.f32 %v7556, %v5901
    %v7581 = vadd.f32 %v7559, %v5906
    %v7582 = vadd.f32 %v7564, %v5911
    %v7583 = vadd.f32 %v7567, %v5916
    %v7584 = vadd.f32 %v7572, %v5921
    %v7585 = vadd.f32 %v7575, %v5926
    %v7586 = vmax.f32 %v7578, 0.0
    %v7587 = vmax.f32 %v7579, 0.0
    %v7588 = vmax.f32 %v7580, 0.0
    %v7589 = vmax.f32 %v7581, 0.0
    %v7590 = vmax.f32 %v7582, 0.0
    %v7591 = vmax.f32 %v7583, 0.0
    %v7592 = vmax.f32 %v7584, 0.0
    %v7593 = vmax.f32 %v7585, 0.0
    %v7594 = vadd.f32 %v7586, %v7052
    %v7595 = vadd.f32 %v7587, %v7053
    %v7596 = vadd.f32 %v7588, %v7054
    %v7597 = vadd.f32 %v7589, %v7055
    %v7598 = vadd.f32 %v7590, %v7056
    %v7599 = vadd.f32 %v7591, %v7057
    %v7600 = vadd.f32 %v7592, %v7058
    %v7601 = vadd.f32 %v7593, %v7059
    %v7602 = vmax.f32 %v7594, 0.0
    %v7603 = vmax.f32 %v7595, 0.0
    %v7604 = vmax.f32 %v7596, 0.0
    %v7605 = vmax.f32 %v7597, 0.0
    %v7606 = vmax.f32 %v7598, 0.0
    %v7607 = vmax.f32 %v7599, 0.0
    %v7608 = vmax.f32 %v7600, 0.0
    %v7609 = vmax.f32 %v7601, 0.0
    %v7610 = vld [vmem:[%s7] sm:$0xff]
    %v7611 = vld [vmem:[%s7 + $0x8] sm:$0xff]
    %v7612 = vld [vmem:[%s7 + $0x10] sm:$0xff]
    %v7613 = vld [vmem:[%s7 + $0x18] sm:$0xff]
    %v7614 = vld [vmem:[%s7 + $0x20] sm:$0xff]
    %v7615 = vld [vmem:[%s7 + $0x28] sm:$0xff]
    %v7616 = vld [vmem:[%s7 + $0x30] sm:$0xff]
    %v7617 = vld [vmem:[%s7 + $0x38] sm:$0xff]
    %v7618 = vmul.f32 %v7602, %v7610
    %v7619 = vmul.f32 %v7603, %v7611
    %v7620 = vmul.f32 %v7604, %v7612
    %v7621 = vmul.f32 %v7605, %v7613
    %v7622 = vmul.f32 %v7606, %v7614
    %v7623 = vmul.f32 %v7607, %v7615
    %v7624 = vmul.f32 %v7608, %v7616
    %v7625 = vmul.f32 %v7609, %v7617
    %v7626 = vadd.f32 %v7618, %v7619
    %v7627 = vadd.f32 %v7626, %v7620
    %v7628 = vadd.f32 %v7627, %v7621
    %v7629 = vadd.f32 %v7628, %v7622
    %v7630 = vadd.f32 %v7629, %v7623
    %v7631 = vadd.f32 %v7630, %v7624
    %v7632 = vadd.f32 %v7631, %v7625
    %v7633 = vrot.slane %v7632, 4
    %v7634 = vadd.f32 %v7632, %v7633
    %v7635 = vrot.slane %v7634, 2
    %v7636 = vadd.f32 %v7634, %v7635
    %v7637 = vrot.slane %v7636, 1
    %v7638 = vadd.f32 %v7636, %v7637
    %v7639 = vld [vmem:[#allocation12] sm:$0xff]
    %v7640 = vld [vmem:[#allocation12 + $0x8] sm:$0xff]
    %v7641 = vld [vmem:[#allocation12 + $0x10] sm:$0xff]
    %v7642 = vld [vmem:[#allocation12 + $0x18] sm:$0xff]
    %v7643 = vld [vmem:[#allocation12 + $0x20] sm:$0xff]
    %v7644 = vld [vmem:[#allocation12 + $0x28] sm:$0xff]
    %v7645 = vld [vmem:[#allocation12 + $0x30] sm:$0xff]
    %v7646 = vld [vmem:[#allocation12 + $0x38] sm:$0xff]
    %v7647 = vld [vmem:[#allocation12 + $0x40] sm:$0xff]
    %v7648 = vld [vmem:[#allocation12 + $0x48] sm:$0xff]
    %v7649 = vld [vmem:[#allocation12 + $0x50] sm:$0xff]
    %v7650 = vld [vmem:[#allocation12 + $0x58] sm:$0xff]
    %v7651 = vld [vmem:[#allocation12 + $0x60] sm:$0xff]
    %v7652 = vld [vmem:[#allocation12 + $0x68] sm:$0xff]
    %v7653 = vld [vmem:[#allocation12 + $0x70] sm:$0xff]
    %v7654 = vld [vmem:[#allocation12 + $0x78] sm:$0xff]
    %s7655 = sld [smem:[#allocation2]]
    %v7656 = vstv %s7655
    %7657 = vmatprep.subr.mxu0 0.0
    %7658 = vmatpush1.msra.mxu0 %v7654
    %7659 = vmatprep.subr.mxu0 0.0
    %7660 = vmatpush1.msra.mxu0 %v7653
    %7661 = vmatprep.subr.mxu0 0.0
    %7662 = vmatpush1.msra.mxu0 %v7652
    %7663 = vmatprep.subr.mxu0 0.0
    %7664 = vmatpush1.msra.mxu0 %v7651
    %7665 = vmatprep.subr.mxu0 0.0
    %7666 = vmatpush1.msra.mxu0 %v7650
    %7667 = vmatprep.subr.mxu0 0.0
    %7668 = vmatpush1.msra.mxu0 %v7649
    %7669 = vmatprep.subr.mxu0 0.0
    %7670 = vmatpush1.msra.mxu0 %v7648
    %7671 = vmatprep.subr.mxu0 0.0
    %7672 = vmatpush1.msra.mxu0 %v7647
    %7673 = vmatprep.subr.mxu0 0.0
    %7674 = vmatpush1.msra.mxu0 %v7646
    %7675 = vmatprep.subr.mxu0 0.0
    %7676 = vmatpush1.msra.mxu0 %v7645
    %7677 = vmatprep.subr.mxu0 0.0
    %7678 = vmatpush1.msra.mxu0 %v7644
    %7679 = vmatprep.subr.mxu0 0.0
    %7680 = vmatpush1.msra.mxu0 %v7643
    %7681 = vmatprep.subr.mxu0 0.0
    %7682 = vmatpush1.msra.mxu0 %v7642
    %7683 = vmatprep.subr.mxu0 0.0
    %7684 = vmatpush1.msra.mxu0 %v7641
    %7685 = vmatprep.subr.mxu0 0.0
    %7686 = vmatpush1.msra.mxu0 %v7640
    %7687 = vmatprep.subr.mxu0 0.0
    %7688 = vmatpush1.msra.mxu0 %v7639
    %7689 = vmatprep.subr.mxu0 0.0
    %7690 = vmatpush2.msra.mxu0 0.0
    %7691 = vmatprep.subr.mxu0 0.0
    %7692 = vmatpush2.msra.mxu0 0.0
    %7693 = vmatprep.subr.mxu0 0.0
    %7694 = vmatpush2.msra.mxu0 0.0
    %7695 = vmatprep.subr.mxu0 0.0
    %7696 = vmatpush2.msra.mxu0 0.0
    %7697 = vmatprep.subr.mxu0 0.0
    %7698 = vmatpush2.msra.mxu0 0.0
    %7699 = vmatprep.subr.mxu0 0.0
    %7700 = vmatpush2.msra.mxu0 0.0
    %7701 = vmatprep.subr.mxu0 0.0
    %7702 = vmatpush2.msra.mxu0 0.0
    %7703 = vmatprep.subr.mxu0 0.0
    %7704 = vmatpush2.msra.mxu0 0.0
    %7705 = vmatprep.subr.mxu0 0.0
    %7706 = vmatpush2.msra.mxu0 0.0
    %7707 = vmatprep.subr.mxu0 0.0
    %7708 = vmatpush2.msra.mxu0 0.0
    %7709 = vmatprep.subr.mxu0 0.0
    %7710 = vmatpush2.msra.mxu0 0.0
    %7711 = vmatprep.subr.mxu0 0.0
    %7712 = vmatpush2.msra.mxu0 0.0
    %7713 = vmatprep.subr.mxu0 0.0
    %7714 = vmatpush2.msra.mxu0 0.0
    %7715 = vmatprep.subr.mxu0 0.0
    %7716 = vmatpush2.msra.mxu0 0.0
    %7717 = vmatprep.subr.mxu0 0.0
    %7718 = vmatpush2.msra.mxu0 0.0
    %7719 = vmatprep.subr.mxu0 0.0
    %7720 = vmatpush2.msra.mxu0 0.0
    %7721 = vmatprep.mubr.f32.mxu0 0.0
    %7722 = vmatmul.mubr.f32.gmra.mxu0 %v7638
    %v7723 = vpop.f32.mrf.mxu0
    %v7724 = vadd.f32 %v7656, %v7723
    %v7725 = vpop.f32.mrf.mxu0
    %7726 = vdwg.mxu0
    %v7727 = vsub.f32 0.0, %v7724
    %v7728 = vmul.f32 %v7727, 1.442695
    %v7729 = vpow.pop %v7728
    %v7730 = vadd.f32 %v7729, 1.0
    %v7731 = vrcp.pop %v7730
    %v7732 = vmul.f32 1.0, %v7731
    %vm7733 = vcmask 8192
    %7734 = vst.msk [vmem:[#allocation14] sm:$0x1] %vm7733, %v7732
    // Predicated region
    $region66: #{forward.1} parent=1 // pred_check
      _
    $region67: #{forward.1} parent=1 // pred_check_branch
      %7736 = sbr.rel (0) target = $region69
    $region68: #{forward.1} parent=1 // pred_region
      %s7738 = ssub.s32 16, 16
      %7739 = vsyncadd [#allocation5], %s7738
      %s7741 = sshll.u32 [#allocation14], 4
      %s7742 = int_to_ptr.vmem [resolvable:$true] %s7741
      %7744 = dma.vmem_to_hbm [thread:$0]  %s7742, 16, %s10, [#allocation5]
    $region69: #{forward.1} parent=1 // pred_fallthru
      _
    // Predicated region
    $region70: #{forward.1} parent=1 // pred_check
      _
    $region71: #{forward.1} parent=1 // pred_check_branch
      %7746 = sbr.rel (0) target = $region73
    $region72: #{forward.1} parent=1 // pred_region
      %7747 = dma.done [#allocation5], 16
    $region73: #{forward.1} parent=1 // pred_fallthru
      _
    %7748 = vsyncpa [#allocation4], 1
    %7749 = vsyncpa [#allocation7], 1
    %7750 = vsyncpa [#allocation10], 1
    %7751 = vsyncpa [#allocation13], 1
    %7752 = vsyncpa [#allocation5], 1

</llo_original>
